<compile_context>
chip_gen: v7x
topology: tpu7x:2x2x1
jax: 0.10.0
libtpu: 0.0.40
codegen_flags: <defaults>
</compile_context>

<pallas_src>
import functools

import jax
import jax.numpy as jnp
from jax import lax
from jax.experimental import pallas as pl
from jax.experimental.pallas import tpu as pltpu


_TAPS = tuple((dy, dx) for dy in range(3) for dx in range(3))   # K-order: t = dy*3+dx


def _dncnn_fused_kernel(x_ref, w_in_ref, w_med_ref, scale_ref, shift_ref,
                        w_out_ref, out_ref, act_ref, patch_ref, stage_ref,
                        wbuf_ref, *, channels, features, n_med, H, W, R):
    """Whole-network DnCNN_ResNet forward for ONE batch element.

    x_ref    : (1, H, W)          f32   input image (single channel, lane-dense)
    w_in_ref : (9*F, F)           bf16  first conv (input chans zero-padded to F)
    w_med_ref: (n_med, 9*F, F)    bf16  middle convs
    scale_ref: (n_med, 1, F)      f32   folded BatchNorm scale
    shift_ref: (n_med, 1, F)      f32   folded BatchNorm shift
    w_out_ref: (Cout, 9*F)        bf16  last conv, pre-transposed
    out_ref  : (1, NCH, Cout, CH) f32   output, chunked & lane-dense over CH=R*W
    act_ref  : (H+2, W+2, F)      bf16  zero-ring padded activation (VMEM scratch)
    patch_ref: (CH, 9*F)          bf16  im2col chunk buffer       (VMEM scratch)
    stage_ref: (CH, F)            bf16  delayed-write output chunk (VMEM scratch)
    wbuf_ref : (9*F, F)           bf16  current layer's weights    (VMEM scratch)
    """
    F = features
    CH = R * W            # pixels per row chunk
    NCH = H // R          # number of row chunks

    # ---------------- per-image init: zero the 1-pixel ring only -------------
    act_ref[0:1, :, :] = jnp.zeros((1, W + 2, F), act_ref.dtype)
    act_ref[H + 1:H + 2, :, :] = jnp.zeros((1, W + 2, F), act_ref.dtype)
    act_ref[:, 0:1, :] = jnp.zeros((H + 2, 1, F), act_ref.dtype)
    act_ref[:, W + 1:W + 2, :] = jnp.zeros((H + 2, 1, F), act_ref.dtype)

    # Interior init (chunked, lane-dense): image into channel 0, zeros into the
    # pad channels C:F that the zero-padded first-conv weights will multiply.
    def init_body(c, carry):
        row0 = pl.multiple_of(c * R, R)
        x_rows = x_ref[0, pl.ds(row0, R), :]                       # (R, W) f32
        lane = lax.broadcasted_iota(jnp.int32, (R, W, F), 2)
        interior = jnp.where(lane == 0, x_rows[..., None], 0.0)    # (R, W, F)
        act_ref[pl.ds(row0 + 1, R), 1:W + 1, :] = interior.astype(act_ref.dtype)
        return carry
    lax.fori_loop(0, NCH, init_body, 0)

    # ---------------- helpers -------------------------------------------------
    def build_patches(row0):
        """im2col for one row chunk -> patch_ref (CH, 9F); 128-lane-aligned stores."""
        def tap(dy, dx):
            return act_ref[pl.ds(row0 + dy, R), dx:dx + W, :].reshape(CH, F)
        for k in range(4):                    # pairs of 64-ch taps -> (CH, 128) slabs
            (dy0, dx0), (dy1, dx1) = _TAPS[2 * k], _TAPS[2 * k + 1]
            patch_ref[:, 2 * k * F:(2 * k + 2) * F] = jnp.concatenate(
                [tap(dy0, dx0), tap(dy1, dx1)], axis=-1)
        dy8, dx8 = _TAPS[8]
        patch_ref[:, 8 * F:9 * F] = tap(dy8, dx8)       # single leftover tap

    def residual_layer(scale, shift, res_ch):
        """act <- relu(conv(act) [* scale + shift]) + act[..., :res_ch], chunked."""
        def chunk_body(c, carry):
            row0 = pl.multiple_of(c * R, R)
            # Read the (old) activation for this chunk, including its top halo
            # row, BEFORE the previous chunk's output is committed below.
            build_patches(row0)

            # Delayed in-place update: commit chunk c-1 only after its last row
            # has been consumed as chunk c's halo.
            @pl.when(c > 0)
            def _():
                act_ref[pl.ds(row0 - R + 1, R), 1:W + 1, :] = (
                    stage_ref[...].reshape(R, W, F))

            # One deep-K (K = 9*F) bf16 MXU matmul, f32 accumulation.
            y = jnp.dot(patch_ref[...], wbuf_ref[...],
                        preferred_element_type=jnp.float32)         # (CH, F)
            if scale is not None:             # folded eval-mode BatchNorm
                y = y * scale + shift
            y = jnp.maximum(y, 0.0)           # ReLU
            # Residual from the (still old) activation of this chunk.
            res = act_ref[pl.ds(row0 + 1, R), 1:W + 1, 0:res_ch].reshape(CH, res_ch)
            y = y + res.astype(jnp.float32)   # broadcasts when res_ch == 1
            stage_ref[...] = y.astype(stage_ref.dtype)
            return carry
        lax.fori_loop(0, NCH, chunk_body, 0)
        # Epilogue: commit the final chunk of this layer.
        row_last = (NCH - 1) * R + 1
        act_ref[row_last:row_last + R, 1:W + 1, :] = stage_ref[...].reshape(R, W, F)

    # ---------------- in_block: x = x + relu(conv_in(x)) ---------------------
    wbuf_ref[...] = w_in_ref[...]
    residual_layer(None, None, channels)

    # ---------------- med_blocks: x = x + relu(bn(conv(x))) ------------------
    def med_body(l, carry):
        wbuf_ref[...] = w_med_ref[l]
        residual_layer(scale_ref[l], shift_ref[l], F)
        return carry
    lax.fori_loop(0, n_med, med_body, 0)

    # ---------------- out_block: y = conv_out(x) -----------------------------
    def out_body(c, carry):
        row0 = pl.multiple_of(c * R, R)
        build_patches(row0)
        # (Cout, 9F) @ (CH, 9F)^T -> (Cout, CH): lane-dense output tile.
        y = lax.dot_general(w_out_ref[...], patch_ref[...],
                            dimension_numbers=(((1,), (1,)), ((), ())),
                            preferred_element_type=jnp.float32)
        out_ref[0, c, :, :] = y.astype(out_ref.dtype)
        return carry
    lax.fori_loop(0, NCH, out_body, 0)


def _pick_chunk_rows(H, W, target_pixels=2048):
    """Largest R dividing H with R*W <= target pixels (>=2 chunks when possible)."""
    cands = []
    for r in range(1, H + 1):
        if H % r:
            continue
        if r > 1 and r * W > target_pixels:
            continue
        if H >= 8 and r > H // 2:     # keep >=2 chunks so the write pipeline engages
            continue
        cands.append(r)
    aligned = [r for r in cands if (r * W) % 8 == 0]
    return max(aligned) if aligned else max(cands)


def _ceil_to(a, b):
    return -(-a // b) * b


def _vmem_bytes_estimate(H, W, F, n_med, Cout, CH):
    b = 2  # bf16
    act = (H + 2) * _ceil_to(W + 2, 8) * _ceil_to(F, 128) * b
    patch = _ceil_to(CH, 16) * _ceil_to(9 * F, 128) * b
    stage = _ceil_to(CH, 16) * _ceil_to(F, 128) * b
    wbuf = _ceil_to(9 * F, 16) * _ceil_to(F, 128) * b
    weights = (9 * F * F + n_med * 9 * F * F + Cout * 9 * F) * b + n_med * 2 * F * 4
    io = 2 * (H * W * 4 + Cout * H * W * 4)          # pipelined in/out blocks
    return act + patch + stage + wbuf + 2 * weights + io + (2 << 20)


def _pack_params(params):
    """Convert HWIO-layout params into the kernel's packed bf16 layout."""
    w_in = params["w_in"]                                   # (3, 3, C, F)
    C, F = int(w_in.shape[2]), int(w_in.shape[3])
    n_med = len(params["med"])
    w_out = params["w_out"]                                 # (3, 3, F, Cout)
    Cout = int(w_out.shape[3])

    # First conv: zero-pad input channels to F so all layers share one K=9*F path.
    w_in_p = jnp.zeros((9, F, F), jnp.float32)
    w_in_p = w_in_p.at[:, :C, :].set(w_in.reshape(9, C, F))
    w_in_p = w_in_p.reshape(9 * F, F).astype(jnp.bfloat16)

    w_med_p = jnp.stack([w.reshape(9 * F, F) for (w, _, _) in params["med"]]
                        ).astype(jnp.bfloat16)              # (n_med, 9F, F)
    scale_p = jnp.stack([s for (_, s, _) in params["med"]]
                        ).reshape(n_med, 1, F).astype(jnp.float32)
    shift_p = jnp.stack([b for (_, _, b) in params["med"]]
                        ).reshape(n_med, 1, F).astype(jnp.float32)
    # Last conv pre-transposed to (Cout, 9F) for the lane-dense output matmul.
    w_out_p = w_out.reshape(9 * F, Cout).T.astype(jnp.bfloat16)
    return w_in_p, w_med_p, scale_p, shift_p, w_out_p, C, F, n_med, Cout


def dncnn_resnet_forward(x_nchw, params):
    """DnCNN_ResNet forward.  Input/output are NCHW like the PyTorch module."""
    N, C, H, W = x_nchw.shape
    (w_in_p, w_med_p, scale_p, shift_p, w_out_p,
     Cw, F, n_med, Cout) = _pack_params(params)
    assert C == Cw and n_med >= 1
    assert C == 1, "residual `x + in_block(x)` broadcast requires channels == 1"

    R = _pick_chunk_rows(H, W)
    assert H % R == 0
    NCH = H // R
    CH = R * W

    x = x_nchw[:, 0, :, :].astype(jnp.float32)              # (N, H, W), lane-dense

    kernel = functools.partial(_dncnn_fused_kernel, channels=C, features=F,
                               n_med=n_med, H=H, W=W, R=R)

    est = _vmem_bytes_estimate(H, W, F, n_med, Cout, CH)
    vmem_limit = int(min(56 * 2**20, max(32 * 2**20, 1.5 * est)))

    flops = 2 * N * H * W * (9 * F) * (F * (1 + n_med) + Cout)
    bytes_accessed = int(x.size * 4
                         + (w_in_p.size + w_med_p.size + w_out_p.size) * 2
                         + (scale_p.size + shift_p.size) * 4
                         + N * Cout * H * W * 4)

    out = pl.pallas_call(
        kernel,
        out_shape=jax.ShapeDtypeStruct((N, NCH, Cout, CH), jnp.float32),
        grid=(N,),
        in_specs=[
            pl.BlockSpec((1, H, W), lambda n: (n, 0, 0)),             # image
            pl.BlockSpec((9 * F, F), lambda n: (0, 0)),               # w_in (padded)
            pl.BlockSpec((n_med, 9 * F, F), lambda n: (0, 0, 0)),     # w_med
            pl.BlockSpec((n_med, 1, F), lambda n: (0, 0, 0)),         # bn scale
            pl.BlockSpec((n_med, 1, F), lambda n: (0, 0, 0)),         # bn shift
            pl.BlockSpec((Cout, 9 * F), lambda n: (0, 0)),            # w_out^T
        ],
        out_specs=pl.BlockSpec((1, NCH, Cout, CH), lambda n: (n, 0, 0, 0)),
        scratch_shapes=[
            pltpu.VMEM((H + 2, W + 2, F), jnp.bfloat16),   # padded activation (bf16)
            pltpu.VMEM((CH, 9 * F), jnp.bfloat16),         # im2col row-chunk buffer
            pltpu.VMEM((CH, F), jnp.bfloat16),             # delayed-write output chunk
            pltpu.VMEM((9 * F, F), jnp.bfloat16),          # current-layer weights
        ],
        compiler_params=pltpu.CompilerParams(
            dimension_semantics=("parallel",),             # megacore over batch
            vmem_limit_bytes=vmem_limit,
        ),
        cost_estimate=pl.CostEstimate(flops=flops, transcendentals=0,
                                      bytes_accessed=bytes_accessed),
    )(x, w_in_p, w_med_p, scale_p, shift_p, w_out_p)

    # (N, NCH, Cout, R*W) -> (N, Cout, H, W); cheap layout fixup outside the kernel.
    return out.transpose(0, 2, 1, 3).reshape(N, Cout, H, W)


def init_params(key, channels=1, num_of_layers=5, features=64):
    """Deterministic synthetic parameters matching the nn.Module's shapes."""
    assert num_of_layers >= 3
    eps = 1e-5
    keys = iter(jax.random.split(key, 8 * num_of_layers + 8))

    def conv_w(cin, cout):
        std = (2.0 / (9 * cin)) ** 0.5
        return std * jax.random.normal(next(keys), (3, 3, cin, cout), jnp.float32)

    params = {"w_in": conv_w(channels, features), "med": []}
    for _ in range(num_of_layers - 2):
        w = conv_w(features, features)
        gamma = 1.0 + 0.1 * jax.random.normal(next(keys), (features,), jnp.float32)
        beta = 0.1 * jax.random.normal(next(keys), (features,), jnp.float32)
        rmean = 0.1 * jax.random.normal(next(keys), (features,), jnp.float32)
        rvar = jax.random.uniform(next(keys), (features,), jnp.float32, 0.5, 1.5)
        # TODO(synk): BatchNorm2d is implemented in eval/inference mode only
        # (running stats folded into scale/shift); train-mode batch statistics
        # are not reproduced.
        scale = gamma / jnp.sqrt(rvar + eps)
        shift = beta - rmean * scale
        params["med"].append((w, scale, shift))
    params["w_out"] = conv_w(features, channels)
    return params


def reference_forward(x_nchw, params):
    """Pure-JAX f32 reference (lax.conv) for validation."""
    def conv(x, w):
        return jax.lax.conv_general_dilated(
            x, w, window_strides=(1, 1), padding="SAME",
            dimension_numbers=("NHWC", "HWIO", "NHWC"))

    x = jnp.transpose(x_nchw, (0, 2, 3, 1)).astype(jnp.float32)
    x = x + jnp.maximum(conv(x, params["w_in"]), 0.0)
    for (w, scale, shift) in params["med"]:
        x = x + jnp.maximum(conv(x, w) * scale + shift, 0.0)
    y = conv(x, params["w_out"])
    return jnp.transpose(y, (0, 3, 1, 2))


if __name__ == "__main__":
    key = jax.random.PRNGKey(0)
    kx, kp = jax.random.split(key)

    N, C, H, W = 2, 1, 16, 16          # grayscale denoiser-sized toy example
    x = jax.random.normal(kx, (N, C, H, W), jnp.float32)
    params = init_params(kp, channels=C, num_of_layers=5, features=64)

    fwd = jax.jit(dncnn_resnet_forward)
    out = jax.block_until_ready(fwd(x, params))
    assert out.shape == (N, C, H, W) and out.dtype == jnp.float32

    ref = jax.block_until_ready(reference_forward(x, params))
    max_err = float(jnp.max(jnp.abs(out - ref)))
    # bf16 MXU inputs + bf16 resident activations, f32 accumulation.
    tol = 5e-2 * (1.0 + float(jnp.max(jnp.abs(ref))))
    assert max_err < tol, (max_err, tol)

    print("KERNEL_OK")
</pallas_src>

<mosaic_0001>
module attributes {stable_mosaic.version = 11 : i64} {
  func.func @_dncnn_fused_kernel(%arg0: i32, %arg1: memref<1x16x16xf32, #tpu.memory_space<vmem>>, %arg2: memref<576x64xbf16, #tpu.memory_space<vmem>>, %arg3: memref<3x576x64xbf16, #tpu.memory_space<vmem>>, %arg4: memref<3x1x64xf32, #tpu.memory_space<vmem>>, %arg5: memref<3x1x64xf32, #tpu.memory_space<vmem>>, %arg6: memref<1x576xbf16, #tpu.memory_space<vmem>>, %arg7: memref<1x2x1x128xf32, #tpu.memory_space<vmem>>, %arg8: memref<18x18x64xbf16, #tpu.memory_space<vmem>>, %arg9: memref<128x576xbf16, #tpu.memory_space<vmem>>, %arg10: memref<128x64xbf16, #tpu.memory_space<vmem>>, %arg11: memref<576x64xbf16, #tpu.memory_space<vmem>>) attributes {dimension_semantics = [#tpu.dimension_semantics<parallel>], iteration_bounds = array<i64: 2>, scalar_prefetch = 0 : i64, scratch_operands = 4 : i64, tpu.core_type = #tpu.core_type<tc>, window_params = [{transform_indices = @transform_0, window_bounds = array<i64: 1, 16, 16>}, {pipeline_mode = #tpu.pipeline_mode<synchronous>, transform_indices = @transform_1, window_bounds = array<i64: 576, 64>}, {pipeline_mode = #tpu.pipeline_mode<synchronous>, transform_indices = @transform_2, window_bounds = array<i64: 3, 576, 64>}, {pipeline_mode = #tpu.pipeline_mode<synchronous>, transform_indices = @transform_3, window_bounds = array<i64: 3, 1, 64>}, {pipeline_mode = #tpu.pipeline_mode<synchronous>, transform_indices = @transform_4, window_bounds = array<i64: 3, 1, 64>}, {pipeline_mode = #tpu.pipeline_mode<synchronous>, transform_indices = @transform_5, window_bounds = array<i64: 1, 576>}, {transform_indices = @transform_6, window_bounds = array<i64: 1, 2, 1, 128>}]} {
    %cst = arith.constant 0.000000e+00 : bf16
    %0 = vector.broadcast %cst : bf16 to vector<1x18x64xbf16>
    %c0 = arith.constant 0 : index
    %c0_0 = arith.constant 0 : index
    %c0_1 = arith.constant 0 : index
    %1 = vector.load %arg8[%c0, %c0_0, %c0_1] : memref<18x18x64xbf16, #tpu.memory_space<vmem>>, vector<1x18x64xbf16>
    tpu.vector_store %arg8[%c0, %c0_0, %c0_1], %0 {strides = array<i32>} : memref<18x18x64xbf16, #tpu.memory_space<vmem>>, vector<1x18x64xbf16>,
    %cst_2 = arith.constant 0.000000e+00 : bf16
    %2 = vector.broadcast %cst_2 : bf16 to vector<1x18x64xbf16>
    %c17 = arith.constant 17 : index
    %c0_3 = arith.constant 0 : index
    %c0_4 = arith.constant 0 : index
    %3 = vector.load %arg8[%c17, %c0_3, %c0_4] : memref<18x18x64xbf16, #tpu.memory_space<vmem>>, vector<1x18x64xbf16>
    tpu.vector_store %arg8[%c17, %c0_3, %c0_4], %2 {strides = array<i32>} : memref<18x18x64xbf16, #tpu.memory_space<vmem>>, vector<1x18x64xbf16>,
    %cst_5 = arith.constant 0.000000e+00 : bf16
    %4 = vector.broadcast %cst_5 : bf16 to vector<18x1x64xbf16>
    %c0_6 = arith.constant 0 : index
    %c0_7 = arith.constant 0 : index
    %c0_8 = arith.constant 0 : index
    %5 = vector.load %arg8[%c0_6, %c0_7, %c0_8] : memref<18x18x64xbf16, #tpu.memory_space<vmem>>, vector<18x1x64xbf16>
    tpu.vector_store %arg8[%c0_6, %c0_7, %c0_8], %4 {strides = array<i32>} : memref<18x18x64xbf16, #tpu.memory_space<vmem>>, vector<18x1x64xbf16>,
    %cst_9 = arith.constant 0.000000e+00 : bf16
    %6 = vector.broadcast %cst_9 : bf16 to vector<18x1x64xbf16>
    %c0_10 = arith.constant 0 : index
    %c17_11 = arith.constant 17 : index
    %c0_12 = arith.constant 0 : index
    %7 = vector.load %arg8[%c0_10, %c17_11, %c0_12] : memref<18x18x64xbf16, #tpu.memory_space<vmem>>, vector<18x1x64xbf16>
    tpu.vector_store %arg8[%c0_10, %c17_11, %c0_12], %6 {strides = array<i32>} : memref<18x18x64xbf16, #tpu.memory_space<vmem>>, vector<18x1x64xbf16>,
    %c0_i32 = arith.constant 0 : i32
    %c2_i32 = arith.constant 2 : i32
    %8 = arith.addi %c0_i32, %c2_i32 : i32
    %c1_i32 = arith.constant 1 : i32
    scf.for %arg12 = %c0_i32 to %8 step %c1_i32  : i32 {
      %c8_i32 = arith.constant 8 : i32
      %17 = arith.muli %arg12, %c8_i32 : i32
      %18 = tpu.assume_multiple %17, 8 : i32
      %c0_32 = arith.constant 0 : index
      %19 = arith.index_cast %18 : i32 to index
      %c0_33 = arith.constant 0 : index
      %20 = vector.load %arg1[%c0_32, %19, %c0_33] : memref<1x16x16xf32, #tpu.memory_space<vmem>>, vector<1x8x16xf32>
      %21 = vector.shape_cast %20 : vector<1x8x16xf32> to vector<8x16xf32>
      %22 = tpu.iota {dimensions = array<i32: 2>} : vector<8x16x64xi32>
      %c0_i32_34 = arith.constant 0 : i32
      %23 = vector.broadcast %c0_i32_34 : i32 to vector<8x16x64xi32>
      %24 = arith.cmpi eq, %22, %23 : vector<8x16x64xi32>
      %25 = vector.shape_cast %21 : vector<8x16xf32> to vector<8x16x1xf32>
      %cst_35 = arith.constant 0.000000e+00 : f32
      %26 = vector.shape_cast %25 : vector<8x16x1xf32> to vector<8x16x1xf32>
      %27 = vector.broadcast %26 : vector<8x16x1xf32> to vector<8x16x64xf32>
      %28 = vector.broadcast %cst_35 : f32 to vector<8x16x64xf32>
      %29 = arith.select %24, %27, %28 : vector<8x16x64xi1>, vector<8x16x64xf32>
      %30 = arith.truncf %29 : vector<8x16x64xf32> to vector<8x16x64xbf16>
      %c1_i32_36 = arith.constant 1 : i32
      %31 = arith.addi %18, %c1_i32_36 : i32
      %32 = arith.index_cast %31 : i32 to index
      %c1_37 = arith.constant 1 : index
      %c0_38 = arith.constant 0 : index
      %33 = vector.load %arg8[%32, %c1_37, %c0_38] : memref<18x18x64xbf16, #tpu.memory_space<vmem>>, vector<8x16x64xbf16>
      tpu.vector_store %arg8[%32, %c1_37, %c0_38], %30 {strides = array<i32>} : memref<18x18x64xbf16, #tpu.memory_space<vmem>>, vector<8x16x64xbf16>,
    }
    %c2_i32_13 = arith.constant 2 : i32
    %c0_14 = arith.constant 0 : index
    %c0_15 = arith.constant 0 : index
    %9 = vector.load %arg2[%c0_14, %c0_15] : memref<576x64xbf16, #tpu.memory_space<vmem>>, vector<576x64xbf16>
    %c0_16 = arith.constant 0 : index
    %c0_17 = arith.constant 0 : index
    %10 = vector.load %arg11[%c0_16, %c0_17] : memref<576x64xbf16, #tpu.memory_space<vmem>>, vector<576x64xbf16>
    tpu.vector_store %arg11[%c0_16, %c0_17], %9 {strides = array<i32>} : memref<576x64xbf16, #tpu.memory_space<vmem>>, vector<576x64xbf16>,
    %c0_i32_18 = arith.constant 0 : i32
    %c2_i32_19 = arith.constant 2 : i32
    %11 = arith.addi %c0_i32_18, %c2_i32_19 : i32
    %c1_i32_20 = arith.constant 1 : i32
    scf.for %arg12 = %c0_i32_18 to %11 step %c1_i32_20  : i32 {
      %c8_i32 = arith.constant 8 : i32
      %17 = arith.muli %arg12, %c8_i32 : i32
      %18 = tpu.assume_multiple %17, 8 : i32
      %c0_i32_32 = arith.constant 0 : i32
      %19 = arith.addi %18, %c0_i32_32 : i32
      %20 = arith.index_cast %19 : i32 to index
      %c0_33 = arith.constant 0 : index
      %c0_34 = arith.constant 0 : index
      %21 = vector.load %arg8[%20, %c0_33, %c0_34] : memref<18x18x64xbf16, #tpu.memory_space<vmem>>, vector<8x16x64xbf16>
      %22 = vector.shape_cast %21 : vector<8x16x64xbf16> to vector<128x64xbf16>
      %c0_i32_35 = arith.constant 0 : i32
      %23 = arith.addi %18, %c0_i32_35 : i32
      %24 = arith.index_cast %23 : i32 to index
      %c1_36 = arith.constant 1 : index
      %c0_37 = arith.constant 0 : index
      %25 = vector.load %arg8[%24, %c1_36, %c0_37] : memref<18x18x64xbf16, #tpu.memory_space<vmem>>, vector<8x16x64xbf16>
      %26 = vector.shape_cast %25 : vector<8x16x64xbf16> to vector<128x64xbf16>
      %27 = tpu.concatenate %22, %26 in 1 : vector<128x64xbf16>, vector<128x64xbf16> -> vector<128x128xbf16>
      %c0_38 = arith.constant 0 : index
      %c0_39 = arith.constant 0 : index
      %28 = vector.load %arg9[%c0_38, %c0_39] : memref<128x576xbf16, #tpu.memory_space<vmem>>, vector<128x128xbf16>
      tpu.vector_store %arg9[%c0_38, %c0_39], %27 {strides = array<i32>} : memref<128x576xbf16, #tpu.memory_space<vmem>>, vector<128x128xbf16>,
      %c0_i32_40 = arith.constant 0 : i32
      %29 = arith.addi %18, %c0_i32_40 : i32
      %30 = arith.index_cast %29 : i32 to index
      %c2 = arith.constant 2 : index
      %c0_41 = arith.constant 0 : index
      %31 = vector.load %arg8[%30, %c2, %c0_41] : memref<18x18x64xbf16, #tpu.memory_space<vmem>>, vector<8x16x64xbf16>
      %32 = vector.shape_cast %31 : vector<8x16x64xbf16> to vector<128x64xbf16>
      %c1_i32_42 = arith.constant 1 : i32
      %33 = arith.addi %18, %c1_i32_42 : i32
      %34 = arith.index_cast %33 : i32 to index
      %c0_43 = arith.constant 0 : index
      %c0_44 = arith.constant 0 : index
      %35 = vector.load %arg8[%34, %c0_43, %c0_44] : memref<18x18x64xbf16, #tpu.memory_space<vmem>>, vector<8x16x64xbf16>
      %36 = vector.shape_cast %35 : vector<8x16x64xbf16> to vector<128x64xbf16>
      %37 = tpu.concatenate %32, %36 in 1 : vector<128x64xbf16>, vector<128x64xbf16> -> vector<128x128xbf16>
      %c0_45 = arith.constant 0 : index
      %c128 = arith.constant 128 : index
      %38 = vector.load %arg9[%c0_45, %c128] : memref<128x576xbf16, #tpu.memory_space<vmem>>, vector<128x128xbf16>
      tpu.vector_store %arg9[%c0_45, %c128], %37 {strides = array<i32>} : memref<128x576xbf16, #tpu.memory_space<vmem>>, vector<128x128xbf16>,
      %c1_i32_46 = arith.constant 1 : i32
      %39 = arith.addi %18, %c1_i32_46 : i32
      %40 = arith.index_cast %39 : i32 to index
      %c1_47 = arith.constant 1 : index
      %c0_48 = arith.constant 0 : index
      %41 = vector.load %arg8[%40, %c1_47, %c0_48] : memref<18x18x64xbf16, #tpu.memory_space<vmem>>, vector<8x16x64xbf16>
      %42 = vector.shape_cast %41 : vector<8x16x64xbf16> to vector<128x64xbf16>
      %c1_i32_49 = arith.constant 1 : i32
      %43 = arith.addi %18, %c1_i32_49 : i32
      %44 = arith.index_cast %43 : i32 to index
      %c2_50 = arith.constant 2 : index
      %c0_51 = arith.constant 0 : index
      %45 = vector.load %arg8[%44, %c2_50, %c0_51] : memref<18x18x64xbf16, #tpu.memory_space<vmem>>, vector<8x16x64xbf16>
      %46 = vector.shape_cast %45 : vector<8x16x64xbf16> to vector<128x64xbf16>
      %47 = tpu.concatenate %42, %46 in 1 : vector<128x64xbf16>, vector<128x64xbf16> -> vector<128x128xbf16>
      %c0_52 = arith.constant 0 : index
      %c256 = arith.constant 256 : index
      %48 = vector.load %arg9[%c0_52, %c256] : memref<128x576xbf16, #tpu.memory_space<vmem>>, vector<128x128xbf16>
      tpu.vector_store %arg9[%c0_52, %c256], %47 {strides = array<i32>} : memref<128x576xbf16, #tpu.memory_space<vmem>>, vector<128x128xbf16>,
      %c2_i32_53 = arith.constant 2 : i32
      %49 = arith.addi %18, %c2_i32_53 : i32
      %50 = arith.index_cast %49 : i32 to index
      %c0_54 = arith.constant 0 : index
      %c0_55 = arith.constant 0 : index
      %51 = vector.load %arg8[%50, %c0_54, %c0_55] : memref<18x18x64xbf16, #tpu.memory_space<vmem>>, vector<8x16x64xbf16>
      %52 = vector.shape_cast %51 : vector<8x16x64xbf16> to vector<128x64xbf16>
      %c2_i32_56 = arith.constant 2 : i32
      %53 = arith.addi %18, %c2_i32_56 : i32
      %54 = arith.index_cast %53 : i32 to index
      %c1_57 = arith.constant 1 : index
      %c0_58 = arith.constant 0 : index
      %55 = vector.load %arg8[%54, %c1_57, %c0_58] : memref<18x18x64xbf16, #tpu.memory_space<vmem>>, vector<8x16x64xbf16>
      %56 = vector.shape_cast %55 : vector<8x16x64xbf16> to vector<128x64xbf16>
      %57 = tpu.concatenate %52, %56 in 1 : vector<128x64xbf16>, vector<128x64xbf16> -> vector<128x128xbf16>
      %c0_59 = arith.constant 0 : index
      %c384 = arith.constant 384 : index
      %58 = vector.load %arg9[%c0_59, %c384] : memref<128x576xbf16, #tpu.memory_space<vmem>>, vector<128x128xbf16>
      tpu.vector_store %arg9[%c0_59, %c384], %57 {strides = array<i32>} : memref<128x576xbf16, #tpu.memory_space<vmem>>, vector<128x128xbf16>,
      %c2_i32_60 = arith.constant 2 : i32
      %59 = arith.addi %18, %c2_i32_60 : i32
      %60 = arith.index_cast %59 : i32 to index
      %c2_61 = arith.constant 2 : index
      %c0_62 = arith.constant 0 : index
      %61 = vector.load %arg8[%60, %c2_61, %c0_62] : memref<18x18x64xbf16, #tpu.memory_space<vmem>>, vector<8x16x64xbf16>
      %62 = vector.shape_cast %61 : vector<8x16x64xbf16> to vector<128x64xbf16>
      %c0_63 = arith.constant 0 : index
      %c512 = arith.constant 512 : index
      %63 = vector.load %arg9[%c0_63, %c512] : memref<128x576xbf16, #tpu.memory_space<vmem>>, vector<128x64xbf16>
      tpu.vector_store %arg9[%c0_63, %c512], %62 {strides = array<i32>} : memref<128x576xbf16, #tpu.memory_space<vmem>>, vector<128x64xbf16>,
      %c0_i32_64 = arith.constant 0 : i32
      %64 = arith.cmpi sgt, %arg12, %c0_i32_64 : i32
      %65 = arith.extui %64 : i1 to i32
      %c0_i32_65 = arith.constant 0 : i32
      %66 = arith.cmpi ne, %65, %c0_i32_65 : i32
      scf.if %66 {
        %c0_77 = arith.constant 0 : index
        %c0_78 = arith.constant 0 : index
        %81 = vector.load %arg10[%c0_77, %c0_78] : memref<128x64xbf16, #tpu.memory_space<vmem>>, vector<128x64xbf16>
        %82 = vector.shape_cast %81 : vector<128x64xbf16> to vector<8x16x64xbf16>
        %c8_i32_79 = arith.constant 8 : i32
        %83 = arith.subi %18, %c8_i32_79 : i32
        %c1_i32_80 = arith.constant 1 : i32
        %84 = arith.addi %83, %c1_i32_80 : i32
        %85 = arith.index_cast %84 : i32 to index
        %c1_81 = arith.constant 1 : index
        %c0_82 = arith.constant 0 : index
        %86 = vector.load %arg8[%85, %c1_81, %c0_82] : memref<18x18x64xbf16, #tpu.memory_space<vmem>>, vector<8x16x64xbf16>
        tpu.vector_store %arg8[%85, %c1_81, %c0_82], %82 {strides = array<i32>} : memref<18x18x64xbf16, #tpu.memory_space<vmem>>, vector<8x16x64xbf16>,
      } else {
      }
      %c0_66 = arith.constant 0 : index
      %c0_67 = arith.constant 0 : index
      %67 = vector.load %arg9[%c0_66, %c0_67] : memref<128x576xbf16, #tpu.memory_space<vmem>>, vector<128x576xbf16>
      %c0_68 = arith.constant 0 : index
      %c0_69 = arith.constant 0 : index
      %68 = vector.load %arg11[%c0_68, %c0_69] : memref<576x64xbf16, #tpu.memory_space<vmem>>, vector<576x64xbf16>
      %cst_70 = arith.constant dense<0.000000e+00> : vector<128x64xf32>
      %69 = tpu.matmul %67, %68, %cst_70 {dimension_numbers = #tpu.dot_dimension_numbers<[1], [0], [0], [1], [0, 0, 1, 1], [], []>} : vector<128x576xbf16>, vector<576x64xbf16>, vector<128x64xf32> -> vector<128x64xf32>
      %cst_71 = arith.constant 0.000000e+00 : f32
      %70 = vector.broadcast %cst_71 : f32 to vector<128x64xf32>
      %71 = arith.maximumf %69, %70 : vector<128x64xf32>
      %c1_i32_72 = arith.constant 1 : i32
      %72 = arith.addi %18, %c1_i32_72 : i32
      %73 = arith.index_cast %72 : i32 to index
      %c1_73 = arith.constant 1 : index
      %c0_74 = arith.constant 0 : index
      %74 = vector.load %arg8[%73, %c1_73, %c0_74] : memref<18x18x64xbf16, #tpu.memory_space<vmem>>, vector<8x16x1xbf16>
      %75 = vector.shape_cast %74 : vector<8x16x1xbf16> to vector<128x1xbf16>
      %76 = arith.extf %75 : vector<128x1xbf16> to vector<128x1xf32>
      %77 = vector.broadcast %76 : vector<128x1xf32> to vector<128x64xf32>
      %78 = arith.addf %71, %77 : vector<128x64xf32>
      %79 = arith.truncf %78 : vector<128x64xf32> to vector<128x64xbf16>
      %c0_75 = arith.constant 0 : index
      %c0_76 = arith.constant 0 : index
      %80 = vector.load %arg10[%c0_75, %c0_76] : memref<128x64xbf16, #tpu.memory_space<vmem>>, vector<128x64xbf16>
      tpu.vector_store %arg10[%c0_75, %c0_76], %79 {strides = array<i32>} : memref<128x64xbf16, #tpu.memory_space<vmem>>, vector<128x64xbf16>,
    }
    %c2_i32_21 = arith.constant 2 : i32
    %c0_22 = arith.constant 0 : index
    %c0_23 = arith.constant 0 : index
    %12 = vector.load %arg10[%c0_22, %c0_23] : memref<128x64xbf16, #tpu.memory_space<vmem>>, vector<128x64xbf16>
    %13 = vector.shape_cast %12 : vector<128x64xbf16> to vector<8x16x64xbf16>
    %c9 = arith.constant 9 : index
    %c1 = arith.constant 1 : index
    %c0_24 = arith.constant 0 : index
    %14 = vector.load %arg8[%c9, %c1, %c0_24] : memref<18x18x64xbf16, #tpu.memory_space<vmem>>, vector<8x16x64xbf16>
    tpu.vector_store %arg8[%c9, %c1, %c0_24], %13 {strides = array<i32>} : memref<18x18x64xbf16, #tpu.memory_space<vmem>>, vector<8x16x64xbf16>,
    %c0_i32_25 = arith.constant 0 : i32
    %c3_i32 = arith.constant 3 : i32
    %15 = arith.addi %c0_i32_25, %c3_i32 : i32
    %c1_i32_26 = arith.constant 1 : i32
    scf.for %arg12 = %c0_i32_25 to %15 step %c1_i32_26  : i32 {
      %17 = arith.index_cast %arg12 : i32 to index
      %c0_32 = arith.constant 0 : index
      %c0_33 = arith.constant 0 : index
      %18 = vector.load %arg3[%17, %c0_32, %c0_33] : memref<3x576x64xbf16, #tpu.memory_space<vmem>>, vector<1x576x64xbf16>
      %19 = vector.shape_cast %18 : vector<1x576x64xbf16> to vector<576x64xbf16>
      %c0_34 = arith.constant 0 : index
      %c0_35 = arith.constant 0 : index
      %20 = vector.load %arg11[%c0_34, %c0_35] : memref<576x64xbf16, #tpu.memory_space<vmem>>, vector<576x64xbf16>
      tpu.vector_store %arg11[%c0_34, %c0_35], %19 {strides = array<i32>} : memref<576x64xbf16, #tpu.memory_space<vmem>>, vector<576x64xbf16>,
      %21 = arith.index_cast %arg12 : i32 to index
      %c0_36 = arith.constant 0 : index
      %c0_37 = arith.constant 0 : index
      %22 = vector.load %arg4[%21, %c0_36, %c0_37] : memref<3x1x64xf32, #tpu.memory_space<vmem>>, vector<1x1x64xf32>
      %23 = vector.shape_cast %22 : vector<1x1x64xf32> to vector<1x64xf32>
      %24 = arith.index_cast %arg12 : i32 to index
      %c0_38 = arith.constant 0 : index
      %c0_39 = arith.constant 0 : index
      %25 = vector.load %arg5[%24, %c0_38, %c0_39] : memref<3x1x64xf32, #tpu.memory_space<vmem>>, vector<1x1x64xf32>
      %26 = vector.shape_cast %25 : vector<1x1x64xf32> to vector<1x64xf32>
      %c0_i32_40 = arith.constant 0 : i32
      %c2_i32_41 = arith.constant 2 : i32
      %27 = arith.addi %c0_i32_40, %c2_i32_41 : i32
      %c1_i32_42 = arith.constant 1 : i32
      scf.for %arg13 = %c0_i32_40 to %27 step %c1_i32_42  : i32 {
        %c8_i32 = arith.constant 8 : i32
        %31 = arith.muli %arg13, %c8_i32 : i32
        %32 = tpu.assume_multiple %31, 8 : i32
        %c0_i32_49 = arith.constant 0 : i32
        %33 = arith.addi %32, %c0_i32_49 : i32
        %34 = arith.index_cast %33 : i32 to index
        %c0_50 = arith.constant 0 : index
        %c0_51 = arith.constant 0 : index
        %35 = vector.load %arg8[%34, %c0_50, %c0_51] : memref<18x18x64xbf16, #tpu.memory_space<vmem>>, vector<8x16x64xbf16>
        %36 = vector.shape_cast %35 : vector<8x16x64xbf16> to vector<128x64xbf16>
        %c0_i32_52 = arith.constant 0 : i32
        %37 = arith.addi %32, %c0_i32_52 : i32
        %38 = arith.index_cast %37 : i32 to index
        %c1_53 = arith.constant 1 : index
        %c0_54 = arith.constant 0 : index
        %39 = vector.load %arg8[%38, %c1_53, %c0_54] : memref<18x18x64xbf16, #tpu.memory_space<vmem>>, vector<8x16x64xbf16>
        %40 = vector.shape_cast %39 : vector<8x16x64xbf16> to vector<128x64xbf16>
        %41 = tpu.concatenate %36, %40 in 1 : vector<128x64xbf16>, vector<128x64xbf16> -> vector<128x128xbf16>
        %c0_55 = arith.constant 0 : index
        %c0_56 = arith.constant 0 : index
        %42 = vector.load %arg9[%c0_55, %c0_56] : memref<128x576xbf16, #tpu.memory_space<vmem>>, vector<128x128xbf16>
        tpu.vector_store %arg9[%c0_55, %c0_56], %41 {strides = array<i32>} : memref<128x576xbf16, #tpu.memory_space<vmem>>, vector<128x128xbf16>,
        %c0_i32_57 = arith.constant 0 : i32
        %43 = arith.addi %32, %c0_i32_57 : i32
        %44 = arith.index_cast %43 : i32 to index
        %c2 = arith.constant 2 : index
        %c0_58 = arith.constant 0 : index
        %45 = vector.load %arg8[%44, %c2, %c0_58] : memref<18x18x64xbf16, #tpu.memory_space<vmem>>, vector<8x16x64xbf16>
        %46 = vector.shape_cast %45 : vector<8x16x64xbf16> to vector<128x64xbf16>
        %c1_i32_59 = arith.constant 1 : i32
        %47 = arith.addi %32, %c1_i32_59 : i32
        %48 = arith.index_cast %47 : i32 to index
        %c0_60 = arith.constant 0 : index
        %c0_61 = arith.constant 0 : index
        %49 = vector.load %arg8[%48, %c0_60, %c0_61] : memref<18x18x64xbf16, #tpu.memory_space<vmem>>, vector<8x16x64xbf16>
        %50 = vector.shape_cast %49 : vector<8x16x64xbf16> to vector<128x64xbf16>
        %51 = tpu.concatenate %46, %50 in 1 : vector<128x64xbf16>, vector<128x64xbf16> -> vector<128x128xbf16>
        %c0_62 = arith.constant 0 : index
        %c128 = arith.constant 128 : index
        %52 = vector.load %arg9[%c0_62, %c128] : memref<128x576xbf16, #tpu.memory_space<vmem>>, vector<128x128xbf16>
        tpu.vector_store %arg9[%c0_62, %c128], %51 {strides = array<i32>} : memref<128x576xbf16, #tpu.memory_space<vmem>>, vector<128x128xbf16>,
        %c1_i32_63 = arith.constant 1 : i32
        %53 = arith.addi %32, %c1_i32_63 : i32
        %54 = arith.index_cast %53 : i32 to index
        %c1_64 = arith.constant 1 : index
        %c0_65 = arith.constant 0 : index
        %55 = vector.load %arg8[%54, %c1_64, %c0_65] : memref<18x18x64xbf16, #tpu.memory_space<vmem>>, vector<8x16x64xbf16>
        %56 = vector.shape_cast %55 : vector<8x16x64xbf16> to vector<128x64xbf16>
        %c1_i32_66 = arith.constant 1 : i32
        %57 = arith.addi %32, %c1_i32_66 : i32
        %58 = arith.index_cast %57 : i32 to index
        %c2_67 = arith.constant 2 : index
        %c0_68 = arith.constant 0 : index
        %59 = vector.load %arg8[%58, %c2_67, %c0_68] : memref<18x18x64xbf16, #tpu.memory_space<vmem>>, vector<8x16x64xbf16>
        %60 = vector.shape_cast %59 : vector<8x16x64xbf16> to vector<128x64xbf16>
        %61 = tpu.concatenate %56, %60 in 1 : vector<128x64xbf16>, vector<128x64xbf16> -> vector<128x128xbf16>
        %c0_69 = arith.constant 0 : index
        %c256 = arith.constant 256 : index
        %62 = vector.load %arg9[%c0_69, %c256] : memref<128x576xbf16, #tpu.memory_space<vmem>>, vector<128x128xbf16>
        tpu.vector_store %arg9[%c0_69, %c256], %61 {strides = array<i32>} : memref<128x576xbf16, #tpu.memory_space<vmem>>, vector<128x128xbf16>,
        %c2_i32_70 = arith.constant 2 : i32
        %63 = arith.addi %32, %c2_i32_70 : i32
        %64 = arith.index_cast %63 : i32 to index
        %c0_71 = arith.constant 0 : index
        %c0_72 = arith.constant 0 : index
        %65 = vector.load %arg8[%64, %c0_71, %c0_72] : memref<18x18x64xbf16, #tpu.memory_space<vmem>>, vector<8x16x64xbf16>
        %66 = vector.shape_cast %65 : vector<8x16x64xbf16> to vector<128x64xbf16>
        %c2_i32_73 = arith.constant 2 : i32
        %67 = arith.addi %32, %c2_i32_73 : i32
        %68 = arith.index_cast %67 : i32 to index
        %c1_74 = arith.constant 1 : index
        %c0_75 = arith.constant 0 : index
        %69 = vector.load %arg8[%68, %c1_74, %c0_75] : memref<18x18x64xbf16, #tpu.memory_space<vmem>>, vector<8x16x64xbf16>
        %70 = vector.shape_cast %69 : vector<8x16x64xbf16> to vector<128x64xbf16>
        %71 = tpu.concatenate %66, %70 in 1 : vector<128x64xbf16>, vector<128x64xbf16> -> vector<128x128xbf16>
        %c0_76 = arith.constant 0 : index
        %c384 = arith.constant 384 : index
        %72 = vector.load %arg9[%c0_76, %c384] : memref<128x576xbf16, #tpu.memory_space<vmem>>, vector<128x128xbf16>
        tpu.vector_store %arg9[%c0_76, %c384], %71 {strides = array<i32>} : memref<128x576xbf16, #tpu.memory_space<vmem>>, vector<128x128xbf16>,
        %c2_i32_77 = arith.constant 2 : i32
        %73 = arith.addi %32, %c2_i32_77 : i32
        %74 = arith.index_cast %73 : i32 to index
        %c2_78 = arith.constant 2 : index
        %c0_79 = arith.constant 0 : index
        %75 = vector.load %arg8[%74, %c2_78, %c0_79] : memref<18x18x64xbf16, #tpu.memory_space<vmem>>, vector<8x16x64xbf16>
        %76 = vector.shape_cast %75 : vector<8x16x64xbf16> to vector<128x64xbf16>
        %c0_80 = arith.constant 0 : index
        %c512 = arith.constant 512 : index
        %77 = vector.load %arg9[%c0_80, %c512] : memref<128x576xbf16, #tpu.memory_space<vmem>>, vector<128x64xbf16>
        tpu.vector_store %arg9[%c0_80, %c512], %76 {strides = array<i32>} : memref<128x576xbf16, #tpu.memory_space<vmem>>, vector<128x64xbf16>,
        %c0_i32_81 = arith.constant 0 : i32
        %78 = arith.cmpi sgt, %arg13, %c0_i32_81 : i32
        %79 = arith.extui %78 : i1 to i32
        %c0_i32_82 = arith.constant 0 : i32
        %80 = arith.cmpi ne, %79, %c0_i32_82 : i32
        scf.if %80 {
          %c0_94 = arith.constant 0 : index
          %c0_95 = arith.constant 0 : index
          %98 = vector.load %arg10[%c0_94, %c0_95] : memref<128x64xbf16, #tpu.memory_space<vmem>>, vector<128x64xbf16>
          %99 = vector.shape_cast %98 : vector<128x64xbf16> to vector<8x16x64xbf16>
          %c8_i32_96 = arith.constant 8 : i32
          %100 = arith.subi %32, %c8_i32_96 : i32
          %c1_i32_97 = arith.constant 1 : i32
          %101 = arith.addi %100, %c1_i32_97 : i32
          %102 = arith.index_cast %101 : i32 to index
          %c1_98 = arith.constant 1 : index
          %c0_99 = arith.constant 0 : index
          %103 = vector.load %arg8[%102, %c1_98, %c0_99] : memref<18x18x64xbf16, #tpu.memory_space<vmem>>, vector<8x16x64xbf16>
          tpu.vector_store %arg8[%102, %c1_98, %c0_99], %99 {strides = array<i32>} : memref<18x18x64xbf16, #tpu.memory_space<vmem>>, vector<8x16x64xbf16>,
        } else {
        }
        %c0_83 = arith.constant 0 : index
        %c0_84 = arith.constant 0 : index
        %81 = vector.load %arg9[%c0_83, %c0_84] : memref<128x576xbf16, #tpu.memory_space<vmem>>, vector<128x576xbf16>
        %c0_85 = arith.constant 0 : index
        %c0_86 = arith.constant 0 : index
        %82 = vector.load %arg11[%c0_85, %c0_86] : memref<576x64xbf16, #tpu.memory_space<vmem>>, vector<576x64xbf16>
        %cst_87 = arith.constant dense<0.000000e+00> : vector<128x64xf32>
        %83 = tpu.matmul %81, %82, %cst_87 {dimension_numbers = #tpu.dot_dimension_numbers<[1], [0], [0], [1], [0, 0, 1, 1], [], []>} : vector<128x576xbf16>, vector<576x64xbf16>, vector<128x64xf32> -> vector<128x64xf32>
        %84 = vector.broadcast %23 : vector<1x64xf32> to vector<128x64xf32>
        %85 = arith.mulf %83, %84 : vector<128x64xf32>
        %86 = vector.broadcast %26 : vector<1x64xf32> to vector<128x64xf32>
        %87 = arith.addf %85, %86 : vector<128x64xf32>
        %cst_88 = arith.constant 0.000000e+00 : f32
        %88 = vector.broadcast %cst_88 : f32 to vector<128x64xf32>
        %89 = arith.maximumf %87, %88 : vector<128x64xf32>
        %c1_i32_89 = arith.constant 1 : i32
        %90 = arith.addi %32, %c1_i32_89 : i32
        %91 = arith.index_cast %90 : i32 to index
        %c1_90 = arith.constant 1 : index
        %c0_91 = arith.constant 0 : index
        %92 = vector.load %arg8[%91, %c1_90, %c0_91] : memref<18x18x64xbf16, #tpu.memory_space<vmem>>, vector<8x16x64xbf16>
        %93 = vector.shape_cast %92 : vector<8x16x64xbf16> to vector<128x64xbf16>
        %94 = arith.extf %93 : vector<128x64xbf16> to vector<128x64xf32>
        %95 = arith.addf %89, %94 : vector<128x64xf32>
        %96 = arith.truncf %95 : vector<128x64xf32> to vector<128x64xbf16>
        %c0_92 = arith.constant 0 : index
        %c0_93 = arith.constant 0 : index
        %97 = vector.load %arg10[%c0_92, %c0_93] : memref<128x64xbf16, #tpu.memory_space<vmem>>, vector<128x64xbf16>
        tpu.vector_store %arg10[%c0_92, %c0_93], %96 {strides = array<i32>} : memref<128x64xbf16, #tpu.memory_space<vmem>>, vector<128x64xbf16>,
      }
      %c2_i32_43 = arith.constant 2 : i32
      %c0_44 = arith.constant 0 : index
      %c0_45 = arith.constant 0 : index
      %28 = vector.load %arg10[%c0_44, %c0_45] : memref<128x64xbf16, #tpu.memory_space<vmem>>, vector<128x64xbf16>
      %29 = vector.shape_cast %28 : vector<128x64xbf16> to vector<8x16x64xbf16>
      %c9_46 = arith.constant 9 : index
      %c1_47 = arith.constant 1 : index
      %c0_48 = arith.constant 0 : index
      %30 = vector.load %arg8[%c9_46, %c1_47, %c0_48] : memref<18x18x64xbf16, #tpu.memory_space<vmem>>, vector<8x16x64xbf16>
      tpu.vector_store %arg8[%c9_46, %c1_47, %c0_48], %29 {strides = array<i32>} : memref<18x18x64xbf16, #tpu.memory_space<vmem>>, vector<8x16x64xbf16>,
    }
    %c3_i32_27 = arith.constant 3 : i32
    %c0_i32_28 = arith.constant 0 : i32
    %c2_i32_29 = arith.constant 2 : i32
    %16 = arith.addi %c0_i32_28, %c2_i32_29 : i32
    %c1_i32_30 = arith.constant 1 : i32
    scf.for %arg12 = %c0_i32_28 to %16 step %c1_i32_30  : i32 {
      %c8_i32 = arith.constant 8 : i32
      %17 = arith.muli %arg12, %c8_i32 : i32
      %18 = tpu.assume_multiple %17, 8 : i32
      %c0_i32_32 = arith.constant 0 : i32
      %19 = arith.addi %18, %c0_i32_32 : i32
      %20 = arith.index_cast %19 : i32 to index
      %c0_33 = arith.constant 0 : index
      %c0_34 = arith.constant 0 : index
      %21 = vector.load %arg8[%20, %c0_33, %c0_34] : memref<18x18x64xbf16, #tpu.memory_space<vmem>>, vector<8x16x64xbf16>
      %22 = vector.shape_cast %21 : vector<8x16x64xbf16> to vector<128x64xbf16>
      %c0_i32_35 = arith.constant 0 : i32
      %23 = arith.addi %18, %c0_i32_35 : i32
      %24 = arith.index_cast %23 : i32 to index
      %c1_36 = arith.constant 1 : index
      %c0_37 = arith.constant 0 : index
      %25 = vector.load %arg8[%24, %c1_36, %c0_37] : memref<18x18x64xbf16, #tpu.memory_space<vmem>>, vector<8x16x64xbf16>
      %26 = vector.shape_cast %25 : vector<8x16x64xbf16> to vector<128x64xbf16>
      %27 = tpu.concatenate %22, %26 in 1 : vector<128x64xbf16>, vector<128x64xbf16> -> vector<128x128xbf16>
      %c0_38 = arith.constant 0 : index
      %c0_39 = arith.constant 0 : index
      %28 = vector.load %arg9[%c0_38, %c0_39] : memref<128x576xbf16, #tpu.memory_space<vmem>>, vector<128x128xbf16>
      tpu.vector_store %arg9[%c0_38, %c0_39], %27 {strides = array<i32>} : memref<128x576xbf16, #tpu.memory_space<vmem>>, vector<128x128xbf16>,
      %c0_i32_40 = arith.constant 0 : i32
      %29 = arith.addi %18, %c0_i32_40 : i32
      %30 = arith.index_cast %29 : i32 to index
      %c2 = arith.constant 2 : index
      %c0_41 = arith.constant 0 : index
      %31 = vector.load %arg8[%30, %c2, %c0_41] : memref<18x18x64xbf16, #tpu.memory_space<vmem>>, vector<8x16x64xbf16>
      %32 = vector.shape_cast %31 : vector<8x16x64xbf16> to vector<128x64xbf16>
      %c1_i32_42 = arith.constant 1 : i32
      %33 = arith.addi %18, %c1_i32_42 : i32
      %34 = arith.index_cast %33 : i32 to index
      %c0_43 = arith.constant 0 : index
      %c0_44 = arith.constant 0 : index
      %35 = vector.load %arg8[%34, %c0_43, %c0_44] : memref<18x18x64xbf16, #tpu.memory_space<vmem>>, vector<8x16x64xbf16>
      %36 = vector.shape_cast %35 : vector<8x16x64xbf16> to vector<128x64xbf16>
      %37 = tpu.concatenate %32, %36 in 1 : vector<128x64xbf16>, vector<128x64xbf16> -> vector<128x128xbf16>
      %c0_45 = arith.constant 0 : index
      %c128 = arith.constant 128 : index
      %38 = vector.load %arg9[%c0_45, %c128] : memref<128x576xbf16, #tpu.memory_space<vmem>>, vector<128x128xbf16>
      tpu.vector_store %arg9[%c0_45, %c128], %37 {strides = array<i32>} : memref<128x576xbf16, #tpu.memory_space<vmem>>, vector<128x128xbf16>,
      %c1_i32_46 = arith.constant 1 : i32
      %39 = arith.addi %18, %c1_i32_46 : i32
      %40 = arith.index_cast %39 : i32 to index
      %c1_47 = arith.constant 1 : index
      %c0_48 = arith.constant 0 : index
      %41 = vector.load %arg8[%40, %c1_47, %c0_48] : memref<18x18x64xbf16, #tpu.memory_space<vmem>>, vector<8x16x64xbf16>
      %42 = vector.shape_cast %41 : vector<8x16x64xbf16> to vector<128x64xbf16>
      %c1_i32_49 = arith.constant 1 : i32
      %43 = arith.addi %18, %c1_i32_49 : i32
      %44 = arith.index_cast %43 : i32 to index
      %c2_50 = arith.constant 2 : index
      %c0_51 = arith.constant 0 : index
      %45 = vector.load %arg8[%44, %c2_50, %c0_51] : memref<18x18x64xbf16, #tpu.memory_space<vmem>>, vector<8x16x64xbf16>
      %46 = vector.shape_cast %45 : vector<8x16x64xbf16> to vector<128x64xbf16>
      %47 = tpu.concatenate %42, %46 in 1 : vector<128x64xbf16>, vector<128x64xbf16> -> vector<128x128xbf16>
      %c0_52 = arith.constant 0 : index
      %c256 = arith.constant 256 : index
      %48 = vector.load %arg9[%c0_52, %c256] : memref<128x576xbf16, #tpu.memory_space<vmem>>, vector<128x128xbf16>
      tpu.vector_store %arg9[%c0_52, %c256], %47 {strides = array<i32>} : memref<128x576xbf16, #tpu.memory_space<vmem>>, vector<128x128xbf16>,
      %c2_i32_53 = arith.constant 2 : i32
      %49 = arith.addi %18, %c2_i32_53 : i32
      %50 = arith.index_cast %49 : i32 to index
      %c0_54 = arith.constant 0 : index
      %c0_55 = arith.constant 0 : index
      %51 = vector.load %arg8[%50, %c0_54, %c0_55] : memref<18x18x64xbf16, #tpu.memory_space<vmem>>, vector<8x16x64xbf16>
      %52 = vector.shape_cast %51 : vector<8x16x64xbf16> to vector<128x64xbf16>
      %c2_i32_56 = arith.constant 2 : i32
      %53 = arith.addi %18, %c2_i32_56 : i32
      %54 = arith.index_cast %53 : i32 to index
      %c1_57 = arith.constant 1 : index
      %c0_58 = arith.constant 0 : index
      %55 = vector.load %arg8[%54, %c1_57, %c0_58] : memref<18x18x64xbf16, #tpu.memory_space<vmem>>, vector<8x16x64xbf16>
      %56 = vector.shape_cast %55 : vector<8x16x64xbf16> to vector<128x64xbf16>
      %57 = tpu.concatenate %52, %56 in 1 : vector<128x64xbf16>, vector<128x64xbf16> -> vector<128x128xbf16>
      %c0_59 = arith.constant 0 : index
      %c384 = arith.constant 384 : index
      %58 = vector.load %arg9[%c0_59, %c384] : memref<128x576xbf16, #tpu.memory_space<vmem>>, vector<128x128xbf16>
      tpu.vector_store %arg9[%c0_59, %c384], %57 {strides = array<i32>} : memref<128x576xbf16, #tpu.memory_space<vmem>>, vector<128x128xbf16>,
      %c2_i32_60 = arith.constant 2 : i32
      %59 = arith.addi %18, %c2_i32_60 : i32
      %60 = arith.index_cast %59 : i32 to index
      %c2_61 = arith.constant 2 : index
      %c0_62 = arith.constant 0 : index
      %61 = vector.load %arg8[%60, %c2_61, %c0_62] : memref<18x18x64xbf16, #tpu.memory_space<vmem>>, vector<8x16x64xbf16>
      %62 = vector.shape_cast %61 : vector<8x16x64xbf16> to vector<128x64xbf16>
      %c0_63 = arith.constant 0 : index
      %c512 = arith.constant 512 : index
      %63 = vector.load %arg9[%c0_63, %c512] : memref<128x576xbf16, #tpu.memory_space<vmem>>, vector<128x64xbf16>
      tpu.vector_store %arg9[%c0_63, %c512], %62 {strides = array<i32>} : memref<128x576xbf16, #tpu.memory_space<vmem>>, vector<128x64xbf16>,
      %c0_64 = arith.constant 0 : index
      %c0_65 = arith.constant 0 : index
      %64 = vector.load %arg6[%c0_64, %c0_65] : memref<1x576xbf16, #tpu.memory_space<vmem>>, vector<1x576xbf16>
      %c0_66 = arith.constant 0 : index
      %c0_67 = arith.constant 0 : index
      %65 = vector.load %arg9[%c0_66, %c0_67] : memref<128x576xbf16, #tpu.memory_space<vmem>>, vector<128x576xbf16>
      %cst_68 = arith.constant dense<0.000000e+00> : vector<1x128xf32>
      %66 = tpu.matmul %64, %65, %cst_68 {dimension_numbers = #tpu.dot_dimension_numbers<[1], [1], [0], [0], [0, 0, 1, 0], [], []>} : vector<1x576xbf16>, vector<128x576xbf16>, vector<1x128xf32> -> vector<1x128xf32>
      %c0_69 = arith.constant 0 : index
      %67 = arith.index_cast %arg12 : i32 to index
      %c0_70 = arith.constant 0 : index
      %c0_71 = arith.constant 0 : index
      %68 = vector.load %arg7[%c0_69, %67, %c0_70, %c0_71] : memref<1x2x1x128xf32, #tpu.memory_space<vmem>>, vector<1x1x1x128xf32>
      %69 = vector.shape_cast %68 : vector<1x1x1x128xf32> to vector<1x128xf32>
      %70 = vector.shape_cast %66 : vector<1x128xf32> to vector<1x1x1x128xf32>
      tpu.vector_store %arg7[%c0_69, %67, %c0_70, %c0_71], %70 {strides = array<i32>} : memref<1x2x1x128xf32, #tpu.memory_space<vmem>>, vector<1x1x1x128xf32>,
    }
    %c2_i32_31 = arith.constant 2 : i32
    return
  }
  func.func @transform_0(%arg0: i32) -> (i32, i32, i32) {
    %c0_i32 = arith.constant 0 : i32
    %c0_i32_0 = arith.constant 0 : i32
    %c0_i32_1 = arith.constant 0 : i32
    return %arg0, %c0_i32, %c0_i32_0 : i32, i32, i32
  }
  func.func @transform_1(%arg0: i32) -> (i32, i32) {
    %c0_i32 = arith.constant 0 : i32
    %c0_i32_0 = arith.constant 0 : i32
    %c0_i32_1 = arith.constant 0 : i32
    return %c0_i32, %c0_i32_0 : i32, i32
  }
  func.func @transform_2(%arg0: i32) -> (i32, i32, i32) {
    %c0_i32 = arith.constant 0 : i32
    %c0_i32_0 = arith.constant 0 : i32
    %c0_i32_1 = arith.constant 0 : i32
    %c0_i32_2 = arith.constant 0 : i32
    return %c0_i32, %c0_i32_0, %c0_i32_1 : i32, i32, i32
  }
  func.func @transform_3(%arg0: i32) -> (i32, i32, i32) {
    %c0_i32 = arith.constant 0 : i32
    %c0_i32_0 = arith.constant 0 : i32
    %c0_i32_1 = arith.constant 0 : i32
    %c0_i32_2 = arith.constant 0 : i32
    return %c0_i32, %c0_i32_0, %c0_i32_1 : i32, i32, i32
  }
  func.func @transform_4(%arg0: i32) -> (i32, i32, i32) {
    %c0_i32 = arith.constant 0 : i32
    %c0_i32_0 = arith.constant 0 : i32
    %c0_i32_1 = arith.constant 0 : i32
    %c0_i32_2 = arith.constant 0 : i32
    return %c0_i32, %c0_i32_0, %c0_i32_1 : i32, i32, i32
  }
  func.func @transform_5(%arg0: i32) -> (i32, i32) {
    %c0_i32 = arith.constant 0 : i32
    %c0_i32_0 = arith.constant 0 : i32
    %c0_i32_1 = arith.constant 0 : i32
    return %c0_i32, %c0_i32_0 : i32, i32
  }
  func.func @transform_6(%arg0: i32) -> (i32, i32, i32, i32) {
    %c0_i32 = arith.constant 0 : i32
    %c0_i32_0 = arith.constant 0 : i32
    %c0_i32_1 = arith.constant 0 : i32
    %c0_i32_2 = arith.constant 0 : i32
    return %arg0, %c0_i32, %c0_i32_0, %c0_i32_1 : i32, i32, i32, i32
  }
}

</mosaic_0001>

<llo_original>
// kernel: dncnn_resnet_forward.1
$region0: #{dncnn_resnet_forward.1}
  #allocation0 [shape = 'u32[]', space=smem, size = 0x4, offset = 0x4, fixed_abs, tag = 'smem constant byte address 0x4 - core index']
  #allocation1 [shape = 'u32[144,128]{1,0:T(1,128)}', space=vmem, size = 0x12000, scoped, tag = 'internal scratch']
  #allocation2 [shape = 'bf16[18,18,64]{2,1,0:T(8,128)(2,1)}', space=vmem, size = 0x1b000, scoped, tag = 'scratch operand']
  #allocation3 [shape = 'bf16[128,576]{1,0:T(16,128)(2,1)}', space=vmem, size = 0x28000, scoped, tag = 'scratch operand']
  #allocation4 [shape = 'bf16[128,64]{1,0:T(16,128)(2,1)}', space=vmem, size = 0x8000, scoped, tag = 'scratch operand']
  #allocation5 [shape = 'bf16[576,64]{1,0:T(16,128)(2,1)}', space=vmem, size = 0x24000, scoped, tag = 'scratch operand']
  %s0 = inlined_call_operand.vmem [shape: f32[2,16,16], index: 0, kind: input, shape index: {}]
  %s1 = inlined_call_operand.vmem [shape: bf16[576,64], index: 1, kind: input, shape index: {}]
  %s2 = inlined_call_operand.vmem [shape: bf16[3,576,64], index: 2, kind: input, shape index: {}]
  %s3 = inlined_call_operand.vmem [shape: f32[3,1,64], index: 3, kind: input, shape index: {}]
  %s4 = inlined_call_operand.vmem [shape: f32[3,1,64], index: 4, kind: input, shape index: {}]
  %s5 = inlined_call_operand.vmem [shape: bf16[1,576], index: 5, kind: input, shape index: {}]
  %s6 = inlined_call_operand.vmem [shape: f32[2,2,1,128], index: 6, kind: output, shape index: {}]
  %s7 = sld [smem:[#allocation0]]
  $region100: #{dncnn_resnet_forward.1} parent=0
    _
  %s9 = ssub.s32 1, %s7
  %s10 = scalar_select 0, %s9, %s7
  loop: start=0, step=1, limit=4
  $region2: #{dncnn_resnet_forward.1} parent=0 // loop_pre_header
    _
  $region3: #{dncnn_resnet_forward.1} parent=0 // loop_header
    %s12 = sphi 0, %s16
    %p13 = scmp.ge.s32.totalorder %s12, 4
    %s22 = sphi 0, %s24
    %s25 = sphi 0, %s22
    %s26 = sphi 0, %s25
    %s42 = sphi 0, %s26
    %s46 = sphi 0, %s46
    %s48 = sphi 0, %s46
    %s49 = sphi 0, %s48
    %s63 = sphi 0, %s49
    %s67 = sphi 0, %s67
    %s69 = sphi 0, %s67
    %s70 = sphi 0, %s69
    %s84 = sphi 0, %s70
    %s88 = sphi 0, %s88
    %s90 = sphi 0, %s88
    %s91 = sphi 0, %s90
    %s105 = sphi 0, %s91
    %s109 = sphi 0, %s109
    %s111 = sphi 0, %s109
    %s112 = sphi 0, %s111
    %s126 = sphi 0, %s112
    %s130 = sphi 0, %s130
    %s132 = sphi 0, %s130
    %s133 = sphi 0, %s132
    %s147 = sphi 0, %s133
    %s153 = sphi 0, %s155
    %s156 = sphi 0, %s153
    %s157 = sphi 0, %s156
    %s173 = sphi 0, %s157
  $region4: #{dncnn_resnet_forward.1} parent=0 // loop_header_branch
    %15 = sbr.rel (%p13) target = $region8
  $region5: #{dncnn_resnet_forward.1} parent=0 // loop_body
    %s17 = ssub.s32 %s12, 1
    %s18 = ssub.s32 %s12, 2
    %s19 = sadd.s32 %s12, 1
    %s20 = ssub.s32 %s12, %s19
    %p21 = scmp.eq.s32.totalorder %s20, 0
    %s23 = sadd.s32 %s22, 1
    %s24 = scalar_select %p21, %s22, %s23
    %p27 = pneg %p21
    %p28 = scmp.eq.s32.totalorder %s12, 1
    %p29 = por %p27, %p28
    %p30 = scmp.ne.s32.totalorder %s22, %s25
    %p31 = scmp.eq.s32.totalorder %s12, 0
    %p32 = por %p30, %p31
    %p33 = scmp.ne.s32.totalorder %s22, %s25
    %p34 = scmp.eq.s32.totalorder %s17, 1
    %p35 = por %p33, %p34
    %p36 = scmp.ne.s32.totalorder %s25, %s26
    %p37 = scmp.eq.s32.totalorder %s17, 0
    %p38 = por %p36, %p37
    %p39 = scmp.ne.s32.totalorder %s25, %s26
    %p40 = scmp.eq.s32.totalorder %s18, 1
    %p41 = por %p39, %p40
    %p43 = scmp.ne.s32.totalorder %s26, %s42
    %p44 = scmp.eq.s32.totalorder %s18, 0
    %p45 = por %p43, %p44
    %s47 = sadd.s32 %s46, 1
    %p50 = scmp.eq.s32.totalorder %s12, 1
    %p51 = scmp.ne.s32.totalorder %s46, %s48
    %p52 = scmp.eq.s32.totalorder %s12, 0
    %p53 = por %p51, %p52
    %p54 = scmp.ne.s32.totalorder %s46, %s48
    %p55 = scmp.eq.s32.totalorder %s17, 1
    %p56 = por %p54, %p55
    %p57 = scmp.ne.s32.totalorder %s48, %s49
    %p58 = scmp.eq.s32.totalorder %s17, 0
    %p59 = por %p57, %p58
    %p60 = scmp.ne.s32.totalorder %s48, %s49
    %p61 = scmp.eq.s32.totalorder %s18, 1
    %p62 = por %p60, %p61
    %p64 = scmp.ne.s32.totalorder %s49, %s63
    %p65 = scmp.eq.s32.totalorder %s18, 0
    %p66 = por %p64, %p65
    %s68 = sadd.s32 %s67, 1
    %p71 = scmp.eq.s32.totalorder %s12, 1
    %p72 = scmp.ne.s32.totalorder %s67, %s69
    %p73 = scmp.eq.s32.totalorder %s12, 0
    %p74 = por %p72, %p73
    %p75 = scmp.ne.s32.totalorder %s67, %s69
    %p76 = scmp.eq.s32.totalorder %s17, 1
    %p77 = por %p75, %p76
    %p78 = scmp.ne.s32.totalorder %s69, %s70
    %p79 = scmp.eq.s32.totalorder %s17, 0
    %p80 = por %p78, %p79
    %p81 = scmp.ne.s32.totalorder %s69, %s70
    %p82 = scmp.eq.s32.totalorder %s18, 1
    %p83 = por %p81, %p82
    %p85 = scmp.ne.s32.totalorder %s70, %s84
    %p86 = scmp.eq.s32.totalorder %s18, 0
    %p87 = por %p85, %p86
    %s89 = sadd.s32 %s88, 1
    %p92 = scmp.eq.s32.totalorder %s12, 1
    %p93 = scmp.ne.s32.totalorder %s88, %s90
    %p94 = scmp.eq.s32.totalorder %s12, 0
    %p95 = por %p93, %p94
    %p96 = scmp.ne.s32.totalorder %s88, %s90
    %p97 = scmp.eq.s32.totalorder %s17, 1
    %p98 = por %p96, %p97
    %p99 = scmp.ne.s32.totalorder %s90, %s91
    %p100 = scmp.eq.s32.totalorder %s17, 0
    %p101 = por %p99, %p100
    %p102 = scmp.ne.s32.totalorder %s90, %s91
    %p103 = scmp.eq.s32.totalorder %s18, 1
    %p104 = por %p102, %p103
    %p106 = scmp.ne.s32.totalorder %s91, %s105
    %p107 = scmp.eq.s32.totalorder %s18, 0
    %p108 = por %p106, %p107
    %s110 = sadd.s32 %s109, 1
    %p113 = scmp.eq.s32.totalorder %s12, 1
    %p114 = scmp.ne.s32.totalorder %s109, %s111
    %p115 = scmp.eq.s32.totalorder %s12, 0
    %p116 = por %p114, %p115
    %p117 = scmp.ne.s32.totalorder %s109, %s111
    %p118 = scmp.eq.s32.totalorder %s17, 1
    %p119 = por %p117, %p118
    %p120 = scmp.ne.s32.totalorder %s111, %s112
    %p121 = scmp.eq.s32.totalorder %s17, 0
    %p122 = por %p120, %p121
    %p123 = scmp.ne.s32.totalorder %s111, %s112
    %p124 = scmp.eq.s32.totalorder %s18, 1
    %p125 = por %p123, %p124
    %p127 = scmp.ne.s32.totalorder %s112, %s126
    %p128 = scmp.eq.s32.totalorder %s18, 0
    %p129 = por %p127, %p128
    %s131 = sadd.s32 %s130, 1
    %p134 = scmp.eq.s32.totalorder %s12, 1
    %p135 = scmp.ne.s32.totalorder %s130, %s132
    %p136 = scmp.eq.s32.totalorder %s12, 0
    %p137 = por %p135, %p136
    %p138 = scmp.ne.s32.totalorder %s130, %s132
    %p139 = scmp.eq.s32.totalorder %s17, 1
    %p140 = por %p138, %p139
    %p141 = scmp.ne.s32.totalorder %s132, %s133
    %p142 = scmp.eq.s32.totalorder %s17, 0
    %p143 = por %p141, %p142
    %p144 = scmp.ne.s32.totalorder %s132, %s133
    %p145 = scmp.eq.s32.totalorder %s18, 1
    %p146 = por %p144, %p145
    %p148 = scmp.ne.s32.totalorder %s133, %s147
    %p149 = scmp.eq.s32.totalorder %s18, 0
    %p150 = por %p148, %p149
    %s151 = ssub.s32 %s12, %s19
    %p152 = scmp.eq.s32.totalorder %s151, 0
    %s154 = sadd.s32 %s153, 1
    %s155 = scalar_select %p152, %s153, %s154
    %p158 = pneg %p152
    %p159 = scmp.eq.s32.totalorder %s12, 1
    %p160 = por %p158, %p159
    %p161 = scmp.ne.s32.totalorder %s153, %s156
    %p162 = scmp.eq.s32.totalorder %s12, 0
    %p163 = por %p161, %p162
    %p164 = scmp.ne.s32.totalorder %s153, %s156
    %p165 = scmp.eq.s32.totalorder %s17, 1
    %p166 = por %p164, %p165
    %p167 = scmp.ne.s32.totalorder %s156, %s157
    %p168 = scmp.eq.s32.totalorder %s17, 0
    %p169 = por %p167, %p168
    %p170 = scmp.ne.s32.totalorder %s156, %s157
    %p171 = scmp.eq.s32.totalorder %s18, 1
    %p172 = por %p170, %p171
    %p174 = scmp.ne.s32.totalorder %s157, %s173
    %p175 = scmp.eq.s32.totalorder %s18, 0
    %p176 = por %p174, %p175
    %p177 = scmp.le.s32.totalorder 1, %s12
    %p178 = scmp.lt.s32.totalorder %s12, 3
    %p179 = pnand %p177, %p178
    %p180 = pneg %p179
    // Predicated region
    $region9: #{dncnn_resnet_forward.1} parent=5 // pred_check
      _
    $region10: #{dncnn_resnet_forward.1} parent=5 // pred_check_branch
      %182 = sbr.rel (%p179) target = $region12
    $region11: #{dncnn_resnet_forward.1} parent=5 // pred_region
      %s183 = ssub.s32 %s12, 1
      // Predicated region
      $region13: #{dncnn_resnet_forward.1} parent=11 // pred_check
        %p184 = pneg %p59
      $region14: #{dncnn_resnet_forward.1} parent=11 // pred_check_branch
        %186 = sbr.rel (%p184) target = $region16
      $region15: #{dncnn_resnet_forward.1} parent=11 // pred_region
        _
      $region16: #{dncnn_resnet_forward.1} parent=11 // pred_fallthru
        _
      // Predicated region
      $region17: #{dncnn_resnet_forward.1} parent=11 // pred_check
        %p187 = pneg %p80
      $region18: #{dncnn_resnet_forward.1} parent=11 // pred_check_branch
        %189 = sbr.rel (%p187) target = $region20
      $region19: #{dncnn_resnet_forward.1} parent=11 // pred_region
        _
      $region20: #{dncnn_resnet_forward.1} parent=11 // pred_fallthru
        _
      // Predicated region
      $region21: #{dncnn_resnet_forward.1} parent=11 // pred_check
        %p190 = pneg %p101
      $region22: #{dncnn_resnet_forward.1} parent=11 // pred_check_branch
        %192 = sbr.rel (%p190) target = $region24
      $region23: #{dncnn_resnet_forward.1} parent=11 // pred_region
        _
      $region24: #{dncnn_resnet_forward.1} parent=11 // pred_fallthru
        _
      // Predicated region
      $region25: #{dncnn_resnet_forward.1} parent=11 // pred_check
        %p193 = pneg %p122
      $region26: #{dncnn_resnet_forward.1} parent=11 // pred_check_branch
        %195 = sbr.rel (%p193) target = $region28
      $region27: #{dncnn_resnet_forward.1} parent=11 // pred_region
        _
      $region28: #{dncnn_resnet_forward.1} parent=11 // pred_fallthru
        _
      // Predicated region
      $region29: #{dncnn_resnet_forward.1} parent=11 // pred_check
        %p196 = pneg %p143
      $region30: #{dncnn_resnet_forward.1} parent=11 // pred_check_branch
        %198 = sbr.rel (%p196) target = $region32
      $region31: #{dncnn_resnet_forward.1} parent=11 // pred_region
        _
      $region32: #{dncnn_resnet_forward.1} parent=11 // pred_fallthru
        _
    $region12: #{dncnn_resnet_forward.1} parent=5 // pred_fallthru
      _
    %p199 = scmp.lt.s32.totalorder %s12, 2
    // Predicated region
    $region33: #{dncnn_resnet_forward.1} parent=5 // pred_check
      %p200 = pneg %p199
    $region34: #{dncnn_resnet_forward.1} parent=5 // pred_check_branch
      %202 = sbr.rel (%p200) target = $region36
    $region35: #{dncnn_resnet_forward.1} parent=5 // pred_region
      // Predicated region
      $region37: #{dncnn_resnet_forward.1} parent=35 // pred_check
        %p203 = pneg %p32
      $region38: #{dncnn_resnet_forward.1} parent=35 // pred_check_branch
        %205 = sbr.rel (%p203) target = $region40
      $region39: #{dncnn_resnet_forward.1} parent=35 // pred_region
        %p206 = scmp.lt.s32.totalorder %s12, 1
        %s207 = scalar_select %p206, %s12, 1
        %s208 = smul.addr %s207, 2
        %s209 = smul.addr %s208, 8
        %s210 = scalar_lea.vmem %s0, %s209
      $region40: #{dncnn_resnet_forward.1} parent=35 // pred_fallthru
        _
    $region36: #{dncnn_resnet_forward.1} parent=5 // pred_fallthru
      _
    %p211 = scmp.le.s32.totalorder 1, %s12
    %p212 = scmp.lt.s32.totalorder %s12, 3
    %p213 = pnand %p211, %p212
    %p214 = pneg %p213
    // Predicated region
    $region41: #{dncnn_resnet_forward.1} parent=5 // pred_check
      _
    $region42: #{dncnn_resnet_forward.1} parent=5 // pred_check_branch
      %216 = sbr.rel (%p213) target = $region44
    $region43: #{dncnn_resnet_forward.1} parent=5 // pred_region
      %s217 = ssub.s32 %s12, 1
      %p218 = scmp.lt.s32.totalorder %s17, 1
      %s219 = scalar_select %p218, %s17, 1
      %s220 = smul.addr %s219, 2
      %s221 = smul.addr %s220, 8
      %s222 = scalar_lea.vmem %s0, %s221
      %p223 = pneg %p38
      %p224 = pneg %p35
      %p225 = pneg %p59
      %p226 = pneg %p56
      %p227 = pneg %p80
      %p228 = pneg %p77
      %p229 = pneg %p101
      %p230 = pneg %p98
      %p231 = pneg %p122
      %p232 = pneg %p119
      %p233 = pneg %p143
      %p234 = pneg %p140
      %p235 = pneg %p169
      %p236 = pneg %p166
      %p237 = scmp.lt.s32.totalorder %s17, 1
      %s238 = scalar_select %p237, %s17, 1
      %s239 = smul.addr %s238, 2
      %s240 = scalar_lea.vmem %s6, %s239
      %p241 = scmp.lt.s32.totalorder %s17, 1
      %s242 = scalar_select %p241, %s17, 1
      %s243 = smul.addr %s242, 2
      %s244 = smul.addr %s243, 8
      %s245 = scalar_lea.vmem %s0, %s244
      %p246 = scmp.lt.s32.totalorder %s17, 1
      %s247 = scalar_select %p246, %s17, 1
      %s248 = smul.addr %s247, 2
      %s249 = scalar_lea.vmem %s6, %s248
      %vm251 = vcmask 519168
      %252 = vst.msk [vmem:[#allocation2] sm:$0xf] %vm251, 0
      %253 = vst.msk [vmem:[#allocation2 + $0x4] sm:$0xf] %vm251, 0
      %vm254 = vcmask 516096
      %255 = vst.msk [vmem:[#allocation2 + $0x8] sm:$0x1] %vm254, 0
      %s256 = scalar_lea.vmem [#allocation2], 204
      %257 = vst.msk [vmem:[%s256] sm:$0xf] %vm251, 0
      %258 = vst.msk [vmem:[%s256 + $0x4] sm:$0xf] %vm251, 0
      %259 = vst.msk [vmem:[%s256 + $0x8] sm:$0x1] %vm254, 0
      %vm260 = vcmask 516096
      %vm261 = vsmask.f32 256
      %vm262 = vmand %vm260, %vm261
      %v263 = vld [vmem:[#allocation2] sm:$0x1]
      %v264 = vsel %vm262, 0, %v263
      %265 = vst [vmem:[#allocation2] sm:$0x1] %v264
      %v266 = vld [vmem:[#allocation2 + $0xc] sm:$0x1]
      %v267 = vsel %vm262, 0, %v266
      %268 = vst [vmem:[#allocation2 + $0xc] sm:$0x1] %v267
      %v269 = vld [vmem:[#allocation2 + $0x18] sm:$0x1]
      %v270 = vsel %vm262, 0, %v269
      %271 = vst [vmem:[#allocation2 + $0x18] sm:$0x1] %v270
      %v272 = vld [vmem:[#allocation2 + $0x24] sm:$0x1]
      %v273 = vsel %vm262, 0, %v272
      %274 = vst [vmem:[#allocation2 + $0x24] sm:$0x1] %v273
      %v275 = vld [vmem:[#allocation2 + $0x30] sm:$0x1]
      %v276 = vsel %vm262, 0, %v275
      %277 = vst [vmem:[#allocation2 + $0x30] sm:$0x1] %v276
      %v278 = vld [vmem:[#allocation2 + $0x3c] sm:$0x1]
      %v279 = vsel %vm262, 0, %v278
      %280 = vst [vmem:[#allocation2 + $0x3c] sm:$0x1] %v279
      %v281 = vld [vmem:[#allocation2 + $0x48] sm:$0x1]
      %v282 = vsel %vm262, 0, %v281
      %283 = vst [vmem:[#allocation2 + $0x48] sm:$0x1] %v282
      %v284 = vld [vmem:[#allocation2 + $0x54] sm:$0x1]
      %v285 = vsel %vm262, 0, %v284
      %286 = vst [vmem:[#allocation2 + $0x54] sm:$0x1] %v285
      %v287 = vld [vmem:[#allocation2 + $0x60] sm:$0x1]
      %v288 = vsel %vm262, 0, %v287
      %289 = vst [vmem:[#allocation2 + $0x60] sm:$0x1] %v288
      %v290 = vld [vmem:[#allocation2 + $0x6c] sm:$0x1]
      %v291 = vsel %vm262, 0, %v290
      %292 = vst [vmem:[#allocation2 + $0x6c] sm:$0x1] %v291
      %v293 = vld [vmem:[#allocation2 + $0x78] sm:$0x1]
      %v294 = vsel %vm262, 0, %v293
      %295 = vst [vmem:[#allocation2 + $0x78] sm:$0x1] %v294
      %v296 = vld [vmem:[#allocation2 + $0x84] sm:$0x1]
      %v297 = vsel %vm262, 0, %v296
      %298 = vst [vmem:[#allocation2 + $0x84] sm:$0x1] %v297
      %v299 = vld [vmem:[#allocation2 + $0x90] sm:$0x1]
      %v300 = vsel %vm262, 0, %v299
      %301 = vst [vmem:[#allocation2 + $0x90] sm:$0x1] %v300
      %v302 = vld [vmem:[#allocation2 + $0x9c] sm:$0x1]
      %v303 = vsel %vm262, 0, %v302
      %304 = vst [vmem:[#allocation2 + $0x9c] sm:$0x1] %v303
      %v305 = vld [vmem:[#allocation2 + $0xa8] sm:$0x1]
      %v306 = vsel %vm262, 0, %v305
      %307 = vst [vmem:[#allocation2 + $0xa8] sm:$0x1] %v306
      %v308 = vld [vmem:[#allocation2 + $0xb4] sm:$0x1]
      %v309 = vsel %vm262, 0, %v308
      %310 = vst [vmem:[#allocation2 + $0xb4] sm:$0x1] %v309
      %v311 = vld [vmem:[#allocation2 + $0xc0] sm:$0x1]
      %v312 = vsel %vm262, 0, %v311
      %313 = vst [vmem:[#allocation2 + $0xc0] sm:$0x1] %v312
      %v314 = vld [vmem:[#allocation2 + $0xcc] sm:$0x1]
      %v315 = vsel %vm262, 0, %v314
      %316 = vst [vmem:[#allocation2 + $0xcc] sm:$0x1] %v315
      %vm317 = vsmask.f32 7938
      %vm318 = vmand %vm260, %vm317
      %v319 = vld [vmem:[#allocation2 + $0x8] sm:$0x1]
      %v320 = vsel %vm318, 0, %v319
      %321 = vst [vmem:[#allocation2 + $0x8] sm:$0x1] %v320
      %v322 = vld [vmem:[#allocation2 + $0x14] sm:$0x1]
      %v323 = vsel %vm318, 0, %v322
      %324 = vst [vmem:[#allocation2 + $0x14] sm:$0x1] %v323
      %v325 = vld [vmem:[#allocation2 + $0x20] sm:$0x1]
      %v326 = vsel %vm318, 0, %v325
      %327 = vst [vmem:[#allocation2 + $0x20] sm:$0x1] %v326
      %v328 = vld [vmem:[#allocation2 + $0x2c] sm:$0x1]
      %v329 = vsel %vm318, 0, %v328
      %330 = vst [vmem:[#allocation2 + $0x2c] sm:$0x1] %v329
      %v331 = vld [vmem:[#allocation2 + $0x38] sm:$0x1]
      %v332 = vsel %vm318, 0, %v331
      %333 = vst [vmem:[#allocation2 + $0x38] sm:$0x1] %v332
      %v334 = vld [vmem:[#allocation2 + $0x44] sm:$0x1]
      %v335 = vsel %vm318, 0, %v334
      %336 = vst [vmem:[#allocation2 + $0x44] sm:$0x1] %v335
      %v337 = vld [vmem:[#allocation2 + $0x50] sm:$0x1]
      %v338 = vsel %vm318, 0, %v337
      %339 = vst [vmem:[#allocation2 + $0x50] sm:$0x1] %v338
      %v340 = vld [vmem:[#allocation2 + $0x5c] sm:$0x1]
      %v341 = vsel %vm318, 0, %v340
      %342 = vst [vmem:[#allocation2 + $0x5c] sm:$0x1] %v341
      %v343 = vld [vmem:[#allocation2 + $0x68] sm:$0x1]
      %v344 = vsel %vm318, 0, %v343
      %345 = vst [vmem:[#allocation2 + $0x68] sm:$0x1] %v344
      %v346 = vld [vmem:[#allocation2 + $0x74] sm:$0x1]
      %v347 = vsel %vm318, 0, %v346
      %348 = vst [vmem:[#allocation2 + $0x74] sm:$0x1] %v347
      %v349 = vld [vmem:[#allocation2 + $0x80] sm:$0x1]
      %v350 = vsel %vm318, 0, %v349
      %351 = vst [vmem:[#allocation2 + $0x80] sm:$0x1] %v350
      %v352 = vld [vmem:[#allocation2 + $0x8c] sm:$0x1]
      %v353 = vsel %vm318, 0, %v352
      %354 = vst [vmem:[#allocation2 + $0x8c] sm:$0x1] %v353
      %v355 = vld [vmem:[#allocation2 + $0x98] sm:$0x1]
      %v356 = vsel %vm318, 0, %v355
      %357 = vst [vmem:[#allocation2 + $0x98] sm:$0x1] %v356
      %v358 = vld [vmem:[#allocation2 + $0xa4] sm:$0x1]
      %v359 = vsel %vm318, 0, %v358
      %360 = vst [vmem:[#allocation2 + $0xa4] sm:$0x1] %v359
      %v361 = vld [vmem:[#allocation2 + $0xb0] sm:$0x1]
      %v362 = vsel %vm318, 0, %v361
      %363 = vst [vmem:[#allocation2 + $0xb0] sm:$0x1] %v362
      %v364 = vld [vmem:[#allocation2 + $0xbc] sm:$0x1]
      %v365 = vsel %vm318, 0, %v364
      %366 = vst [vmem:[#allocation2 + $0xbc] sm:$0x1] %v365
      %v367 = vld [vmem:[#allocation2 + $0xc8] sm:$0x1]
      %v368 = vsel %vm318, 0, %v367
      %369 = vst [vmem:[#allocation2 + $0xc8] sm:$0x1] %v368
      %v370 = vld [vmem:[#allocation2 + $0xd4] sm:$0x1]
      %v371 = vsel %vm318, 0, %v370
      %372 = vst [vmem:[#allocation2 + $0xd4] sm:$0x1] %v371
      loop: start=0, step=1, limit=2
      $region45: #{dncnn_resnet_forward.1} parent=43 // loop_pre_header
        _
      $region46: #{dncnn_resnet_forward.1} parent=43 // loop_header
        %s374 = sphi 0, %s378
        %p375 = scmp.ge.s32.totalorder %s374, 2
      $region47: #{dncnn_resnet_forward.1} parent=43 // loop_header_branch
        %377 = sbr.rel (%p375) target = $region51
      $region48: #{dncnn_resnet_forward.1} parent=43 // loop_body
        %s379 = smul.u32 %s374, 8
        %s380 = scalar_lea.vmem %s245, %s379
        %v381 = vld [vmem:[%s380] sm:$0xff]
        %v382 = vlaneseq
        %v383 = vand.u32 %v382, 127
        %vm384 = vcmp.eq.s32.totalorder %v383, 0
        %v385 = vlaneseq
        %v386 = vshrl.u32 %v385, 7
        %v387 = vsub.s32 0, %v386
        %v388 = vrot.slane %v381, %v387
        %390 = vbcast.lane.b32.xlu0 %v388, 256
        %v391 = vpop.permute.xlu0 %390
        %s393 = sor.u32 256, 8
        %394 = vbcast.lane.b32.xlu0 %v388, %s393
        %v395 = vpop.permute.xlu0 %394
        %v396 = vlaneseq
        %v397 = vshrl.u32 %v396, 7
        %v398 = vsub.s32 1, %v397
        %v399 = vrot.slane %v381, %v398
        %401 = vbcast.lane.b32.xlu0 %v399, 256
        %v402 = vpop.permute.xlu0 %401
        %s404 = sor.u32 256, 8
        %405 = vbcast.lane.b32.xlu0 %v399, %s404
        %v406 = vpop.permute.xlu0 %405
        %v407 = vlaneseq
        %v408 = vshrl.u32 %v407, 7
        %v409 = vsub.s32 2, %v408
        %v410 = vrot.slane %v381, %v409
        %412 = vbcast.lane.b32.xlu0 %v410, 256
        %v413 = vpop.permute.xlu0 %412
        %s415 = sor.u32 256, 8
        %416 = vbcast.lane.b32.xlu0 %v410, %s415
        %v417 = vpop.permute.xlu0 %416
        %v418 = vlaneseq
        %v419 = vshrl.u32 %v418, 7
        %v420 = vsub.s32 3, %v419
        %v421 = vrot.slane %v381, %v420
        %423 = vbcast.lane.b32.xlu0 %v421, 256
        %v424 = vpop.permute.xlu0 %423
        %s426 = sor.u32 256, 8
        %427 = vbcast.lane.b32.xlu0 %v421, %s426
        %v428 = vpop.permute.xlu0 %427
        %v429 = vlaneseq
        %v430 = vshrl.u32 %v429, 7
        %v431 = vsub.s32 4, %v430
        %v432 = vrot.slane %v381, %v431
        %434 = vbcast.lane.b32.xlu0 %v432, 256
        %v435 = vpop.permute.xlu0 %434
        %s437 = sor.u32 256, 8
        %438 = vbcast.lane.b32.xlu0 %v432, %s437
        %v439 = vpop.permute.xlu0 %438
        %v440 = vlaneseq
        %v441 = vshrl.u32 %v440, 7
        %v442 = vsub.s32 5, %v441
        %v443 = vrot.slane %v381, %v442
        %445 = vbcast.lane.b32.xlu0 %v443, 256
        %v446 = vpop.permute.xlu0 %445
        %s448 = sor.u32 256, 8
        %449 = vbcast.lane.b32.xlu0 %v443, %s448
        %v450 = vpop.permute.xlu0 %449
        %v451 = vlaneseq
        %v452 = vshrl.u32 %v451, 7
        %v453 = vsub.s32 6, %v452
        %v454 = vrot.slane %v381, %v453
        %456 = vbcast.lane.b32.xlu0 %v454, 256
        %v457 = vpop.permute.xlu0 %456
        %s459 = sor.u32 256, 8
        %460 = vbcast.lane.b32.xlu0 %v454, %s459
        %v461 = vpop.permute.xlu0 %460
        %v462 = vlaneseq
        %v463 = vshrl.u32 %v462, 7
        %v464 = vsub.s32 7, %v463
        %v465 = vrot.slane %v381, %v464
        %467 = vbcast.lane.b32.xlu0 %v465, 256
        %v468 = vpop.permute.xlu0 %467
        %s470 = sor.u32 256, 8
        %471 = vbcast.lane.b32.xlu0 %v465, %s470
        %v472 = vpop.permute.xlu0 %471
        %v473 = vsel %vm384, %v391, 0.0
        %v474 = vsel %vm384, %v395, 0.0
        %v475 = vsel %vm384, %v402, 0.0
        %v476 = vsel %vm384, %v406, 0.0
        %v477 = vsel %vm384, %v413, 0.0
        %v478 = vsel %vm384, %v417, 0.0
        %v479 = vsel %vm384, %v424, 0.0
        %v480 = vsel %vm384, %v428, 0.0
        %v481 = vsel %vm384, %v435, 0.0
        %v482 = vsel %vm384, %v439, 0.0
        %v483 = vsel %vm384, %v446, 0.0
        %v484 = vsel %vm384, %v450, 0.0
        %v485 = vsel %vm384, %v457, 0.0
        %v486 = vsel %vm384, %v461, 0.0
        %v487 = vsel %vm384, %v468, 0.0
        %v488 = vsel %vm384, %v472, 0.0
        %v489 = vpack.c.bf16 %v474, %v473
        %v490 = vpack.c.bf16 %v476, %v475
        %v491 = vpack.c.bf16 %v478, %v477
        %v492 = vpack.c.bf16 %v480, %v479
        %v493 = vpack.c.bf16 %v482, %v481
        %v494 = vpack.c.bf16 %v484, %v483
        %v495 = vpack.c.bf16 %v486, %v485
        %v496 = vpack.c.bf16 %v488, %v487
        %s497 = sadd.s32 %s379, 1
        %v506 = vunpack.c.l.b16 %v489
        %v507 = vunpack.c.h.b16 %v489
        %v508 = vunpack.c.l.b16 %v490
        %v509 = vunpack.c.h.b16 %v490
        %v510 = vunpack.c.l.b16 %v491
        %v511 = vunpack.c.h.b16 %v491
        %v512 = vunpack.c.l.b16 %v492
        %v513 = vunpack.c.h.b16 %v492
        %v514 = vunpack.c.l.b16 %v493
        %v515 = vunpack.c.h.b16 %v493
        %v516 = vunpack.c.l.b16 %v494
        %v517 = vunpack.c.h.b16 %v494
        %v518 = vunpack.c.l.b16 %v495
        %v519 = vunpack.c.h.b16 %v495
        %v520 = vunpack.c.l.b16 %v496
        %v521 = vunpack.c.h.b16 %v496
        %v522 = vpack.c.b16 %v506, %v506
        %v523 = vpack.c.b16 %v507, %v507
        %v524 = vpack.c.b16 %v508, %v508
        %v525 = vpack.c.b16 %v509, %v509
        %v526 = vpack.c.b16 %v510, %v510
        %v527 = vpack.c.b16 %v511, %v511
        %v528 = vpack.c.b16 %v512, %v512
        %v529 = vpack.c.b16 %v513, %v513
        %v530 = vpack.c.b16 %v514, %v514
        %v531 = vpack.c.b16 %v515, %v515
        %v532 = vpack.c.b16 %v516, %v516
        %v533 = vpack.c.b16 %v517, %v517
        %v534 = vpack.c.b16 %v518, %v518
        %v535 = vpack.c.b16 %v519, %v519
        %v536 = vpack.c.b16 %v520, %v520
        %v537 = vpack.c.b16 %v521, %v521
        %vm538 = vsmask.f32 4368
        %vm539 = vmor %vm261, %vm538
        %v541 = vshrl.u32 %v522, 16
        %v543 = vrot.slane %v541, 7
        %v544 = vshll.u32 %v522, 16
        %v546 = vor.u32 %v543, %v544
        %v547 = vrot.slane %v543, 4
        %v549 = vshrl.u32 %v523, 16
        %v551 = vrot.slane %v549, 7
        %v552 = vshll.u32 %v523, 16
        %v554 = vor.u32 %v551, %v552
        %v555 = vsel %vm539, %v547, %v554
        %v556 = vrot.slane %v551, 4
        %v558 = vshrl.u32 %v524, 16
        %v560 = vrot.slane %v558, 7
        %v561 = vshll.u32 %v524, 16
        %v563 = vor.u32 %v560, %v561
        %v564 = vrot.slane %v560, 4
        %v566 = vshrl.u32 %v525, 16
        %v568 = vrot.slane %v566, 7
        %v569 = vshll.u32 %v525, 16
        %v571 = vor.u32 %v568, %v569
        %v572 = vsel %vm539, %v564, %v571
        %v573 = vrot.slane %v568, 4
        %v575 = vshrl.u32 %v526, 16
        %v577 = vrot.slane %v575, 7
        %v578 = vshll.u32 %v526, 16
        %v580 = vor.u32 %v577, %v578
        %v581 = vrot.slane %v577, 4
        %v583 = vshrl.u32 %v527, 16
        %v585 = vrot.slane %v583, 7
        %v586 = vshll.u32 %v527, 16
        %v588 = vor.u32 %v585, %v586
        %v589 = vsel %vm539, %v581, %v588
        %v590 = vrot.slane %v585, 4
        %v592 = vshrl.u32 %v528, 16
        %v594 = vrot.slane %v592, 7
        %v595 = vshll.u32 %v528, 16
        %v597 = vor.u32 %v594, %v595
        %v598 = vrot.slane %v594, 4
        %v600 = vshrl.u32 %v529, 16
        %v602 = vrot.slane %v600, 7
        %v603 = vshll.u32 %v529, 16
        %v605 = vor.u32 %v602, %v603
        %v606 = vsel %vm539, %v598, %v605
        %v607 = vrot.slane %v602, 4
        %v609 = vshrl.u32 %v530, 16
        %v611 = vrot.slane %v609, 7
        %v612 = vshll.u32 %v530, 16
        %v614 = vor.u32 %v611, %v612
        %v615 = vrot.slane %v611, 4
        %v617 = vshrl.u32 %v531, 16
        %v619 = vrot.slane %v617, 7
        %v620 = vshll.u32 %v531, 16
        %v622 = vor.u32 %v619, %v620
        %v623 = vsel %vm539, %v615, %v622
        %v624 = vrot.slane %v619, 4
        %v626 = vshrl.u32 %v532, 16
        %v628 = vrot.slane %v626, 7
        %v629 = vshll.u32 %v532, 16
        %v631 = vor.u32 %v628, %v629
        %v632 = vrot.slane %v628, 4
        %v634 = vshrl.u32 %v533, 16
        %v636 = vrot.slane %v634, 7
        %v637 = vshll.u32 %v533, 16
        %v639 = vor.u32 %v636, %v637
        %v640 = vsel %vm539, %v632, %v639
        %v641 = vrot.slane %v636, 4
        %v643 = vshrl.u32 %v534, 16
        %v645 = vrot.slane %v643, 7
        %v646 = vshll.u32 %v534, 16
        %v648 = vor.u32 %v645, %v646
        %v649 = vrot.slane %v645, 4
        %v651 = vshrl.u32 %v535, 16
        %v653 = vrot.slane %v651, 7
        %v654 = vshll.u32 %v535, 16
        %v656 = vor.u32 %v653, %v654
        %v657 = vsel %vm539, %v649, %v656
        %v658 = vrot.slane %v653, 4
        %v660 = vshrl.u32 %v536, 16
        %v662 = vrot.slane %v660, 7
        %v663 = vshll.u32 %v536, 16
        %v665 = vor.u32 %v662, %v663
        %v666 = vrot.slane %v662, 4
        %v668 = vshrl.u32 %v537, 16
        %v670 = vrot.slane %v668, 7
        %v671 = vshll.u32 %v537, 16
        %v673 = vor.u32 %v670, %v671
        %v674 = vsel %vm539, %v666, %v673
        %v675 = vrot.slane %v670, 4
        %s700 = smul.u32 %s497, 3
        %s701 = smul.addr %s700, 4
        %s702 = scalar_lea.vmem [#allocation2], %s701
        %vm703 = vcmask 519168
        %vm704 = vmand %vm703, %vm317
        %v705 = vld [vmem:[%s702] sm:$0xf]
        %v706 = vsel %vm704, %v546, %v705
        %707 = vst [vmem:[%s702] sm:$0xf] %v706
        %708 = vst.msk [vmem:[%s702 + $0x4] sm:$0xf] %vm251, %v555
        %v709 = vld [vmem:[%s702 + $0x8] sm:$0x1]
        %v710 = vsel %vm262, %v556, %v709
        %711 = vst [vmem:[%s702 + $0x8] sm:$0x1] %v710
        %v712 = vld [vmem:[%s702 + $0xc] sm:$0xf]
        %v713 = vsel %vm704, %v563, %v712
        %714 = vst [vmem:[%s702 + $0xc] sm:$0xf] %v713
        %715 = vst.msk [vmem:[%s702 + $0x10] sm:$0xf] %vm251, %v572
        %v716 = vld [vmem:[%s702 + $0x14] sm:$0x1]
        %v717 = vsel %vm262, %v573, %v716
        %718 = vst [vmem:[%s702 + $0x14] sm:$0x1] %v717
        %v719 = vld [vmem:[%s702 + $0x18] sm:$0xf]
        %v720 = vsel %vm704, %v580, %v719
        %721 = vst [vmem:[%s702 + $0x18] sm:$0xf] %v720
        %722 = vst.msk [vmem:[%s702 + $0x1c] sm:$0xf] %vm251, %v589
        %v723 = vld [vmem:[%s702 + $0x20] sm:$0x1]
        %v724 = vsel %vm262, %v590, %v723
        %725 = vst [vmem:[%s702 + $0x20] sm:$0x1] %v724
        %v726 = vld [vmem:[%s702 + $0x24] sm:$0xf]
        %v727 = vsel %vm704, %v597, %v726
        %728 = vst [vmem:[%s702 + $0x24] sm:$0xf] %v727
        %729 = vst.msk [vmem:[%s702 + $0x28] sm:$0xf] %vm251, %v606
        %v730 = vld [vmem:[%s702 + $0x2c] sm:$0x1]
        %v731 = vsel %vm262, %v607, %v730
        %732 = vst [vmem:[%s702 + $0x2c] sm:$0x1] %v731
        %v733 = vld [vmem:[%s702 + $0x30] sm:$0xf]
        %v734 = vsel %vm704, %v614, %v733
        %735 = vst [vmem:[%s702 + $0x30] sm:$0xf] %v734
        %736 = vst.msk [vmem:[%s702 + $0x34] sm:$0xf] %vm251, %v623
        %v737 = vld [vmem:[%s702 + $0x38] sm:$0x1]
        %v738 = vsel %vm262, %v624, %v737
        %739 = vst [vmem:[%s702 + $0x38] sm:$0x1] %v738
        %v740 = vld [vmem:[%s702 + $0x3c] sm:$0xf]
        %v741 = vsel %vm704, %v631, %v740
        %742 = vst [vmem:[%s702 + $0x3c] sm:$0xf] %v741
        %743 = vst.msk [vmem:[%s702 + $0x40] sm:$0xf] %vm251, %v640
        %v744 = vld [vmem:[%s702 + $0x44] sm:$0x1]
        %v745 = vsel %vm262, %v641, %v744
        %746 = vst [vmem:[%s702 + $0x44] sm:$0x1] %v745
        %v747 = vld [vmem:[%s702 + $0x48] sm:$0xf]
        %v748 = vsel %vm704, %v648, %v747
        %749 = vst [vmem:[%s702 + $0x48] sm:$0xf] %v748
        %750 = vst.msk [vmem:[%s702 + $0x4c] sm:$0xf] %vm251, %v657
        %v751 = vld [vmem:[%s702 + $0x50] sm:$0x1]
        %v752 = vsel %vm262, %v658, %v751
        %753 = vst [vmem:[%s702 + $0x50] sm:$0x1] %v752
        %v754 = vld [vmem:[%s702 + $0x54] sm:$0xf]
        %v755 = vsel %vm704, %v665, %v754
        %756 = vst [vmem:[%s702 + $0x54] sm:$0xf] %v755
        %757 = vst.msk [vmem:[%s702 + $0x58] sm:$0xf] %vm251, %v674
        %v758 = vld [vmem:[%s702 + $0x5c] sm:$0x1]
        %v759 = vsel %vm262, %v675, %v758
        %760 = vst [vmem:[%s702 + $0x5c] sm:$0x1] %v759
      $region49: #{dncnn_resnet_forward.1} parent=43 // loop_footer
        %s378 = sadd.s32 1, %s374
      $region50: #{dncnn_resnet_forward.1} parent=43 // loop_footer_branch
        %373 = sbr.rel target = $region46
      $region51: #{dncnn_resnet_forward.1} parent=43 // loop_exit
        _
      %v761 = vld [vmem:[%s1] sm:$0xf]
      %v762 = vld [vmem:[%s1 + $0x4] sm:$0xf]
      %v763 = vld [vmem:[%s1 + $0x8] sm:$0xf]
      %v764 = vld [vmem:[%s1 + $0xc] sm:$0xf]
      %v765 = vld [vmem:[%s1 + $0x10] sm:$0xf]
      %v766 = vld [vmem:[%s1 + $0x14] sm:$0xf]
      %v767 = vld [vmem:[%s1 + $0x18] sm:$0xf]
      %v768 = vld [vmem:[%s1 + $0x1c] sm:$0xf]
      %v769 = vld [vmem:[%s1 + $0x20] sm:$0xf]
      %v770 = vld [vmem:[%s1 + $0x24] sm:$0xf]
      %v771 = vld [vmem:[%s1 + $0x28] sm:$0xf]
      %v772 = vld [vmem:[%s1 + $0x2c] sm:$0xf]
      %v773 = vld [vmem:[%s1 + $0x30] sm:$0xf]
      %v774 = vld [vmem:[%s1 + $0x34] sm:$0xf]
      %v775 = vld [vmem:[%s1 + $0x38] sm:$0xf]
      %v776 = vld [vmem:[%s1 + $0x3c] sm:$0xf]
      %v777 = vld [vmem:[%s1 + $0x40] sm:$0xf]
      %v778 = vld [vmem:[%s1 + $0x44] sm:$0xf]
      %v779 = vld [vmem:[%s1 + $0x48] sm:$0xf]
      %v780 = vld [vmem:[%s1 + $0x4c] sm:$0xf]
      %v781 = vld [vmem:[%s1 + $0x50] sm:$0xf]
      %v782 = vld [vmem:[%s1 + $0x54] sm:$0xf]
      %v783 = vld [vmem:[%s1 + $0x58] sm:$0xf]
      %v784 = vld [vmem:[%s1 + $0x5c] sm:$0xf]
      %v785 = vld [vmem:[%s1 + $0x60] sm:$0xf]
      %v786 = vld [vmem:[%s1 + $0x64] sm:$0xf]
      %v787 = vld [vmem:[%s1 + $0x68] sm:$0xf]
      %v788 = vld [vmem:[%s1 + $0x6c] sm:$0xf]
      %v789 = vld [vmem:[%s1 + $0x70] sm:$0xf]
      %v790 = vld [vmem:[%s1 + $0x74] sm:$0xf]
      %v791 = vld [vmem:[%s1 + $0x78] sm:$0xf]
      %v792 = vld [vmem:[%s1 + $0x7c] sm:$0xf]
      %v793 = vld [vmem:[%s1 + $0x80] sm:$0xf]
      %v794 = vld [vmem:[%s1 + $0x84] sm:$0xf]
      %v795 = vld [vmem:[%s1 + $0x88] sm:$0xf]
      %v796 = vld [vmem:[%s1 + $0x8c] sm:$0xf]
      %v797 = vld [vmem:[%s1 + $0x90] sm:$0xf]
      %v798 = vld [vmem:[%s1 + $0x94] sm:$0xf]
      %v799 = vld [vmem:[%s1 + $0x98] sm:$0xf]
      %v800 = vld [vmem:[%s1 + $0x9c] sm:$0xf]
      %v801 = vld [vmem:[%s1 + $0xa0] sm:$0xf]
      %v802 = vld [vmem:[%s1 + $0xa4] sm:$0xf]
      %v803 = vld [vmem:[%s1 + $0xa8] sm:$0xf]
      %v804 = vld [vmem:[%s1 + $0xac] sm:$0xf]
      %v805 = vld [vmem:[%s1 + $0xb0] sm:$0xf]
      %v806 = vld [vmem:[%s1 + $0xb4] sm:$0xf]
      %v807 = vld [vmem:[%s1 + $0xb8] sm:$0xf]
      %v808 = vld [vmem:[%s1 + $0xbc] sm:$0xf]
      %v809 = vld [vmem:[%s1 + $0xc0] sm:$0xf]
      %v810 = vld [vmem:[%s1 + $0xc4] sm:$0xf]
      %v811 = vld [vmem:[%s1 + $0xc8] sm:$0xf]
      %v812 = vld [vmem:[%s1 + $0xcc] sm:$0xf]
      %v813 = vld [vmem:[%s1 + $0xd0] sm:$0xf]
      %v814 = vld [vmem:[%s1 + $0xd4] sm:$0xf]
      %v815 = vld [vmem:[%s1 + $0xd8] sm:$0xf]
      %v816 = vld [vmem:[%s1 + $0xdc] sm:$0xf]
      %v817 = vld [vmem:[%s1 + $0xe0] sm:$0xf]
      %v818 = vld [vmem:[%s1 + $0xe4] sm:$0xf]
      %v819 = vld [vmem:[%s1 + $0xe8] sm:$0xf]
      %v820 = vld [vmem:[%s1 + $0xec] sm:$0xf]
      %v821 = vld [vmem:[%s1 + $0xf0] sm:$0xf]
      %v822 = vld [vmem:[%s1 + $0xf4] sm:$0xf]
      %v823 = vld [vmem:[%s1 + $0xf8] sm:$0xf]
      %v824 = vld [vmem:[%s1 + $0xfc] sm:$0xf]
      %v825 = vld [vmem:[%s1 + $0x100] sm:$0xf]
      %v826 = vld [vmem:[%s1 + $0x104] sm:$0xf]
      %v827 = vld [vmem:[%s1 + $0x108] sm:$0xf]
      %v828 = vld [vmem:[%s1 + $0x10c] sm:$0xf]
      %v829 = vld [vmem:[%s1 + $0x110] sm:$0xf]
      %v830 = vld [vmem:[%s1 + $0x114] sm:$0xf]
      %v831 = vld [vmem:[%s1 + $0x118] sm:$0xf]
      %v832 = vld [vmem:[%s1 + $0x11c] sm:$0xf]
      %v905 = vunpack.c.l.b16 %v761
      %v906 = vunpack.c.l.b16 %v762
      %v907 = vunpack.c.l.b16 %v763
      %v908 = vunpack.c.l.b16 %v764
      %v909 = vunpack.c.l.b16 %v765
      %v910 = vunpack.c.l.b16 %v766
      %v911 = vunpack.c.l.b16 %v767
      %v912 = vunpack.c.l.b16 %v768
      %v913 = vunpack.c.l.b16 %v769
      %v914 = vunpack.c.l.b16 %v770
      %v915 = vunpack.c.l.b16 %v771
      %v916 = vunpack.c.l.b16 %v772
      %v917 = vunpack.c.l.b16 %v773
      %v918 = vunpack.c.l.b16 %v774
      %v919 = vunpack.c.l.b16 %v775
      %v920 = vunpack.c.l.b16 %v776
      %v921 = vunpack.c.l.b16 %v777
      %v922 = vunpack.c.l.b16 %v778
      %v923 = vunpack.c.l.b16 %v779
      %v924 = vunpack.c.l.b16 %v780
      %v925 = vunpack.c.l.b16 %v781
      %v926 = vunpack.c.l.b16 %v782
      %v927 = vunpack.c.l.b16 %v783
      %v928 = vunpack.c.l.b16 %v784
      %v929 = vunpack.c.l.b16 %v785
      %v930 = vunpack.c.l.b16 %v786
      %v931 = vunpack.c.l.b16 %v787
      %v932 = vunpack.c.l.b16 %v788
      %v933 = vunpack.c.l.b16 %v789
      %v934 = vunpack.c.l.b16 %v790
      %v935 = vunpack.c.l.b16 %v791
      %v936 = vunpack.c.l.b16 %v792
      %v937 = vunpack.c.l.b16 %v793
      %v938 = vunpack.c.l.b16 %v794
      %v939 = vunpack.c.l.b16 %v795
      %v940 = vunpack.c.l.b16 %v796
      %v941 = vunpack.c.l.b16 %v797
      %v942 = vunpack.c.l.b16 %v798
      %v943 = vunpack.c.l.b16 %v799
      %v944 = vunpack.c.l.b16 %v800
      %v945 = vunpack.c.l.b16 %v801
      %v946 = vunpack.c.l.b16 %v802
      %v947 = vunpack.c.l.b16 %v803
      %v948 = vunpack.c.l.b16 %v804
      %v949 = vunpack.c.l.b16 %v805
      %v950 = vunpack.c.l.b16 %v806
      %v951 = vunpack.c.l.b16 %v807
      %v952 = vunpack.c.l.b16 %v808
      %v953 = vunpack.c.l.b16 %v809
      %v954 = vunpack.c.l.b16 %v810
      %v955 = vunpack.c.l.b16 %v811
      %v956 = vunpack.c.l.b16 %v812
      %v957 = vunpack.c.l.b16 %v813
      %v958 = vunpack.c.l.b16 %v814
      %v959 = vunpack.c.l.b16 %v815
      %v960 = vunpack.c.l.b16 %v816
      %v961 = vunpack.c.l.b16 %v817
      %v962 = vunpack.c.l.b16 %v818
      %v963 = vunpack.c.l.b16 %v819
      %v964 = vunpack.c.l.b16 %v820
      %v965 = vunpack.c.l.b16 %v821
      %v966 = vunpack.c.l.b16 %v822
      %v967 = vunpack.c.l.b16 %v823
      %v968 = vunpack.c.l.b16 %v824
      %v969 = vunpack.c.l.b16 %v825
      %v970 = vunpack.c.l.b16 %v826
      %v971 = vunpack.c.l.b16 %v827
      %v972 = vunpack.c.l.b16 %v828
      %v973 = vunpack.c.l.b16 %v829
      %v974 = vunpack.c.l.b16 %v830
      %v975 = vunpack.c.l.b16 %v831
      %v976 = vunpack.c.l.b16 %v832
      %v977 = vpack.c.b16 %v906, %v905
      %v978 = vpack.c.b16 %v908, %v907
      %v979 = vpack.c.b16 %v910, %v909
      %v980 = vpack.c.b16 %v912, %v911
      %v981 = vpack.c.b16 %v914, %v913
      %v982 = vpack.c.b16 %v916, %v915
      %v983 = vpack.c.b16 %v918, %v917
      %v984 = vpack.c.b16 %v920, %v919
      %v985 = vpack.c.b16 %v922, %v921
      %v986 = vpack.c.b16 %v924, %v923
      %v987 = vpack.c.b16 %v926, %v925
      %v988 = vpack.c.b16 %v928, %v927
      %v989 = vpack.c.b16 %v930, %v929
      %v990 = vpack.c.b16 %v932, %v931
      %v991 = vpack.c.b16 %v934, %v933
      %v992 = vpack.c.b16 %v936, %v935
      %v993 = vpack.c.b16 %v938, %v937
      %v994 = vpack.c.b16 %v940, %v939
      %v995 = vpack.c.b16 %v942, %v941
      %v996 = vpack.c.b16 %v944, %v943
      %v997 = vpack.c.b16 %v946, %v945
      %v998 = vpack.c.b16 %v948, %v947
      %v999 = vpack.c.b16 %v950, %v949
      %v1000 = vpack.c.b16 %v952, %v951
      %v1001 = vpack.c.b16 %v954, %v953
      %v1002 = vpack.c.b16 %v956, %v955
      %v1003 = vpack.c.b16 %v958, %v957
      %v1004 = vpack.c.b16 %v960, %v959
      %v1005 = vpack.c.b16 %v962, %v961
      %v1006 = vpack.c.b16 %v964, %v963
      %v1007 = vpack.c.b16 %v966, %v965
      %v1008 = vpack.c.b16 %v968, %v967
      %v1009 = vpack.c.b16 %v970, %v969
      %v1010 = vpack.c.b16 %v972, %v971
      %v1011 = vpack.c.b16 %v974, %v973
      %v1012 = vpack.c.b16 %v976, %v975
      %vm1049 = vcmask 523264
      %1050 = vst.msk [vmem:[#allocation5] sm:$0xff] %vm1049, %v977
      %1051 = vst.msk [vmem:[#allocation5 + $0x8] sm:$0xff] %vm1049, %v978
      %1052 = vst.msk [vmem:[#allocation5 + $0x10] sm:$0xff] %vm1049, %v979
      %1053 = vst.msk [vmem:[#allocation5 + $0x18] sm:$0xff] %vm1049, %v980
      %1054 = vst.msk [vmem:[#allocation5 + $0x20] sm:$0xff] %vm1049, %v981
      %1055 = vst.msk [vmem:[#allocation5 + $0x28] sm:$0xff] %vm1049, %v982
      %1056 = vst.msk [vmem:[#allocation5 + $0x30] sm:$0xff] %vm1049, %v983
      %1057 = vst.msk [vmem:[#allocation5 + $0x38] sm:$0xff] %vm1049, %v984
      %1058 = vst.msk [vmem:[#allocation5 + $0x40] sm:$0xff] %vm1049, %v985
      %1059 = vst.msk [vmem:[#allocation5 + $0x48] sm:$0xff] %vm1049, %v986
      %1060 = vst.msk [vmem:[#allocation5 + $0x50] sm:$0xff] %vm1049, %v987
      %1061 = vst.msk [vmem:[#allocation5 + $0x58] sm:$0xff] %vm1049, %v988
      %1062 = vst.msk [vmem:[#allocation5 + $0x60] sm:$0xff] %vm1049, %v989
      %1063 = vst.msk [vmem:[#allocation5 + $0x68] sm:$0xff] %vm1049, %v990
      %1064 = vst.msk [vmem:[#allocation5 + $0x70] sm:$0xff] %vm1049, %v991
      %1065 = vst.msk [vmem:[#allocation5 + $0x78] sm:$0xff] %vm1049, %v992
      %1066 = vst.msk [vmem:[#allocation5 + $0x80] sm:$0xff] %vm1049, %v993
      %1067 = vst.msk [vmem:[#allocation5 + $0x88] sm:$0xff] %vm1049, %v994
      %1068 = vst.msk [vmem:[#allocation5 + $0x90] sm:$0xff] %vm1049, %v995
      %1069 = vst.msk [vmem:[#allocation5 + $0x98] sm:$0xff] %vm1049, %v996
      %1070 = vst.msk [vmem:[#allocation5 + $0xa0] sm:$0xff] %vm1049, %v997
      %1071 = vst.msk [vmem:[#allocation5 + $0xa8] sm:$0xff] %vm1049, %v998
      %1072 = vst.msk [vmem:[#allocation5 + $0xb0] sm:$0xff] %vm1049, %v999
      %1073 = vst.msk [vmem:[#allocation5 + $0xb8] sm:$0xff] %vm1049, %v1000
      %1074 = vst.msk [vmem:[#allocation5 + $0xc0] sm:$0xff] %vm1049, %v1001
      %1075 = vst.msk [vmem:[#allocation5 + $0xc8] sm:$0xff] %vm1049, %v1002
      %1076 = vst.msk [vmem:[#allocation5 + $0xd0] sm:$0xff] %vm1049, %v1003
      %1077 = vst.msk [vmem:[#allocation5 + $0xd8] sm:$0xff] %vm1049, %v1004
      %1078 = vst.msk [vmem:[#allocation5 + $0xe0] sm:$0xff] %vm1049, %v1005
      %1079 = vst.msk [vmem:[#allocation5 + $0xe8] sm:$0xff] %vm1049, %v1006
      %1080 = vst.msk [vmem:[#allocation5 + $0xf0] sm:$0xff] %vm1049, %v1007
      %1081 = vst.msk [vmem:[#allocation5 + $0xf8] sm:$0xff] %vm1049, %v1008
      %1082 = vst.msk [vmem:[#allocation5 + $0x100] sm:$0xff] %vm1049, %v1009
      %1083 = vst.msk [vmem:[#allocation5 + $0x108] sm:$0xff] %vm1049, %v1010
      %1084 = vst.msk [vmem:[#allocation5 + $0x110] sm:$0xff] %vm1049, %v1011
      %1085 = vst.msk [vmem:[#allocation5 + $0x118] sm:$0xff] %vm1049, %v1012
      loop: start=0, step=1, limit=2
      $region52: #{dncnn_resnet_forward.1} parent=43 // loop_pre_header
        _
      $region53: #{dncnn_resnet_forward.1} parent=43 // loop_header
        %s1087 = sphi 0, %s1091
        %p1088 = scmp.ge.s32.totalorder %s1087, 2
      $region54: #{dncnn_resnet_forward.1} parent=43 // loop_header_branch
        %1090 = sbr.rel (%p1088) target = $region58
      $region55: #{dncnn_resnet_forward.1} parent=43 // loop_body
        %s1092 = smul.u32 %s1087, 8
        %s1093 = smul.u32 %s1092, 3
        %s1094 = smul.addr %s1093, 4
        %s1095 = scalar_lea.vmem [#allocation2], %s1094
        %v1096 = vld [vmem:[%s1095] sm:$0xf]
        %v1097 = vld [vmem:[%s1095 + $0x4] sm:$0xf]
        %v1098 = vld [vmem:[%s1095 + $0xc] sm:$0xf]
        %v1099 = vld [vmem:[%s1095 + $0x10] sm:$0xf]
        %v1100 = vld [vmem:[%s1095 + $0x18] sm:$0xf]
        %v1101 = vld [vmem:[%s1095 + $0x1c] sm:$0xf]
        %v1102 = vld [vmem:[%s1095 + $0x24] sm:$0xf]
        %v1103 = vld [vmem:[%s1095 + $0x28] sm:$0xf]
        %v1104 = vld [vmem:[%s1095 + $0x30] sm:$0xf]
        %v1105 = vld [vmem:[%s1095 + $0x34] sm:$0xf]
        %v1106 = vld [vmem:[%s1095 + $0x3c] sm:$0xf]
        %v1107 = vld [vmem:[%s1095 + $0x40] sm:$0xf]
        %v1108 = vld [vmem:[%s1095 + $0x48] sm:$0xf]
        %v1109 = vld [vmem:[%s1095 + $0x4c] sm:$0xf]
        %v1110 = vld [vmem:[%s1095 + $0x54] sm:$0xf]
        %v1111 = vld [vmem:[%s1095 + $0x58] sm:$0xf]
        %v1112 = vld [vmem:[%s1095 + $0x8] sm:$0x1]
        %v1113 = vld [vmem:[%s1095 + $0x14] sm:$0x1]
        %v1114 = vld [vmem:[%s1095 + $0x20] sm:$0x1]
        %v1115 = vld [vmem:[%s1095 + $0x2c] sm:$0x1]
        %v1116 = vld [vmem:[%s1095 + $0x38] sm:$0x1]
        %v1117 = vld [vmem:[%s1095 + $0x44] sm:$0x1]
        %v1118 = vld [vmem:[%s1095 + $0x50] sm:$0x1]
        %v1119 = vld [vmem:[%s1095 + $0x5c] sm:$0x1]
        %vm1120 = vsmask.f32 3328
        %vm1121 = vsmask.f32 7440
        %vm1122 = vmor %vm1120, %vm1121
        %v1124 = vshrl.u32 %v1096, 16
        %v1126 = vrot.slane %v1124, 4
        %v1127 = vshll.u32 %v1096, 16
        %v1129 = vrot.slane %v1127, 5
        %v1130 = vor.u32 %v1126, %v1129
        %v1131 = vrot.slane %v1130, 4
        %v1133 = vshll.u32 %v1097, 16
        %v1135 = vrot.slane %v1133, 5
        %v1136 = vsel %vm1122, %v1131, %v1135
        %v1137 = vshrl.u32 %v1097, 16
        %v1139 = vrot.slane %v1137, 4
        %v1140 = vor.u32 %v1139, %v1135
        %v1141 = vrot.slane %v1140, 4
        %v1143 = vshll.u32 %v1112, 16
        %v1145 = vrot.slane %v1143, 5
        %v1146 = vsel %vm1122, %v1141, %v1145
        %v1148 = vshrl.u32 %v1098, 16
        %v1150 = vrot.slane %v1148, 4
        %v1151 = vshll.u32 %v1098, 16
        %v1153 = vrot.slane %v1151, 5
        %v1154 = vor.u32 %v1150, %v1153
        %v1155 = vrot.slane %v1154, 4
        %v1157 = vshll.u32 %v1099, 16
        %v1159 = vrot.slane %v1157, 5
        %v1160 = vsel %vm1122, %v1155, %v1159
        %v1161 = vshrl.u32 %v1099, 16
        %v1163 = vrot.slane %v1161, 4
        %v1164 = vor.u32 %v1163, %v1159
        %v1165 = vrot.slane %v1164, 4
        %v1167 = vshll.u32 %v1113, 16
        %v1169 = vrot.slane %v1167, 5
        %v1170 = vsel %vm1122, %v1165, %v1169
        %v1172 = vshrl.u32 %v1100, 16
        %v1174 = vrot.slane %v1172, 4
        %v1175 = vshll.u32 %v1100, 16
        %v1177 = vrot.slane %v1175, 5
        %v1178 = vor.u32 %v1174, %v1177
        %v1179 = vrot.slane %v1178, 4
        %v1181 = vshll.u32 %v1101, 16
        %v1183 = vrot.slane %v1181, 5
        %v1184 = vsel %vm1122, %v1179, %v1183
        %v1185 = vshrl.u32 %v1101, 16
        %v1187 = vrot.slane %v1185, 4
        %v1188 = vor.u32 %v1187, %v1183
        %v1189 = vrot.slane %v1188, 4
        %v1191 = vshll.u32 %v1114, 16
        %v1193 = vrot.slane %v1191, 5
        %v1194 = vsel %vm1122, %v1189, %v1193
        %v1196 = vshrl.u32 %v1102, 16
        %v1198 = vrot.slane %v1196, 4
        %v1199 = vshll.u32 %v1102, 16
        %v1201 = vrot.slane %v1199, 5
        %v1202 = vor.u32 %v1198, %v1201
        %v1203 = vrot.slane %v1202, 4
        %v1205 = vshll.u32 %v1103, 16
        %v1207 = vrot.slane %v1205, 5
        %v1208 = vsel %vm1122, %v1203, %v1207
        %v1209 = vshrl.u32 %v1103, 16
        %v1211 = vrot.slane %v1209, 4
        %v1212 = vor.u32 %v1211, %v1207
        %v1213 = vrot.slane %v1212, 4
        %v1215 = vshll.u32 %v1115, 16
        %v1217 = vrot.slane %v1215, 5
        %v1218 = vsel %vm1122, %v1213, %v1217
        %v1220 = vshrl.u32 %v1104, 16
        %v1222 = vrot.slane %v1220, 4
        %v1223 = vshll.u32 %v1104, 16
        %v1225 = vrot.slane %v1223, 5
        %v1226 = vor.u32 %v1222, %v1225
        %v1227 = vrot.slane %v1226, 4
        %v1229 = vshll.u32 %v1105, 16
        %v1231 = vrot.slane %v1229, 5
        %v1232 = vsel %vm1122, %v1227, %v1231
        %v1233 = vshrl.u32 %v1105, 16
        %v1235 = vrot.slane %v1233, 4
        %v1236 = vor.u32 %v1235, %v1231
        %v1237 = vrot.slane %v1236, 4
        %v1239 = vshll.u32 %v1116, 16
        %v1241 = vrot.slane %v1239, 5
        %v1242 = vsel %vm1122, %v1237, %v1241
        %v1244 = vshrl.u32 %v1106, 16
        %v1246 = vrot.slane %v1244, 4
        %v1247 = vshll.u32 %v1106, 16
        %v1249 = vrot.slane %v1247, 5
        %v1250 = vor.u32 %v1246, %v1249
        %v1251 = vrot.slane %v1250, 4
        %v1253 = vshll.u32 %v1107, 16
        %v1255 = vrot.slane %v1253, 5
        %v1256 = vsel %vm1122, %v1251, %v1255
        %v1257 = vshrl.u32 %v1107, 16
        %v1259 = vrot.slane %v1257, 4
        %v1260 = vor.u32 %v1259, %v1255
        %v1261 = vrot.slane %v1260, 4
        %v1263 = vshll.u32 %v1117, 16
        %v1265 = vrot.slane %v1263, 5
        %v1266 = vsel %vm1122, %v1261, %v1265
        %v1268 = vshrl.u32 %v1108, 16
        %v1270 = vrot.slane %v1268, 4
        %v1271 = vshll.u32 %v1108, 16
        %v1273 = vrot.slane %v1271, 5
        %v1274 = vor.u32 %v1270, %v1273
        %v1275 = vrot.slane %v1274, 4
        %v1277 = vshll.u32 %v1109, 16
        %v1279 = vrot.slane %v1277, 5
        %v1280 = vsel %vm1122, %v1275, %v1279
        %v1281 = vshrl.u32 %v1109, 16
        %v1283 = vrot.slane %v1281, 4
        %v1284 = vor.u32 %v1283, %v1279
        %v1285 = vrot.slane %v1284, 4
        %v1287 = vshll.u32 %v1118, 16
        %v1289 = vrot.slane %v1287, 5
        %v1290 = vsel %vm1122, %v1285, %v1289
        %v1292 = vshrl.u32 %v1110, 16
        %v1294 = vrot.slane %v1292, 4
        %v1295 = vshll.u32 %v1110, 16
        %v1297 = vrot.slane %v1295, 5
        %v1298 = vor.u32 %v1294, %v1297
        %v1299 = vrot.slane %v1298, 4
        %v1301 = vshll.u32 %v1111, 16
        %v1303 = vrot.slane %v1301, 5
        %v1304 = vsel %vm1122, %v1299, %v1303
        %v1305 = vshrl.u32 %v1111, 16
        %v1307 = vrot.slane %v1305, 4
        %v1308 = vor.u32 %v1307, %v1303
        %v1309 = vrot.slane %v1308, 4
        %v1311 = vshll.u32 %v1119, 16
        %v1313 = vrot.slane %v1311, 5
        %v1314 = vsel %vm1122, %v1309, %v1313
        %v1331 = vunpack.c.l.b16 %v1096
        %v1332 = vunpack.c.l.b16 %v1097
        %v1333 = vunpack.c.l.b16 %v1098
        %v1334 = vunpack.c.l.b16 %v1099
        %v1335 = vunpack.c.l.b16 %v1100
        %v1336 = vunpack.c.l.b16 %v1101
        %v1337 = vunpack.c.l.b16 %v1102
        %v1338 = vunpack.c.l.b16 %v1103
        %v1339 = vunpack.c.l.b16 %v1104
        %v1340 = vunpack.c.l.b16 %v1105
        %v1341 = vunpack.c.l.b16 %v1106
        %v1342 = vunpack.c.l.b16 %v1107
        %v1343 = vunpack.c.l.b16 %v1108
        %v1344 = vunpack.c.l.b16 %v1109
        %v1345 = vunpack.c.l.b16 %v1110
        %v1346 = vunpack.c.l.b16 %v1111
        %v1347 = vpack.c.b16 %v1332, %v1331
        %v1348 = vpack.c.b16 %v1334, %v1333
        %v1349 = vpack.c.b16 %v1336, %v1335
        %v1350 = vpack.c.b16 %v1338, %v1337
        %v1351 = vpack.c.b16 %v1340, %v1339
        %v1352 = vpack.c.b16 %v1342, %v1341
        %v1353 = vpack.c.b16 %v1344, %v1343
        %v1354 = vpack.c.b16 %v1346, %v1345
        %v1355 = vunpack.c.l.b16 %v1136
        %v1356 = vunpack.c.l.b16 %v1146
        %v1357 = vunpack.c.l.b16 %v1160
        %v1358 = vunpack.c.l.b16 %v1170
        %v1359 = vunpack.c.l.b16 %v1184
        %v1360 = vunpack.c.l.b16 %v1194
        %v1361 = vunpack.c.l.b16 %v1208
        %v1362 = vunpack.c.l.b16 %v1218
        %v1363 = vunpack.c.l.b16 %v1232
        %v1364 = vunpack.c.l.b16 %v1242
        %v1365 = vunpack.c.l.b16 %v1256
        %v1366 = vunpack.c.l.b16 %v1266
        %v1367 = vunpack.c.l.b16 %v1280
        %v1368 = vunpack.c.l.b16 %v1290
        %v1369 = vunpack.c.l.b16 %v1304
        %v1370 = vunpack.c.l.b16 %v1314
        %v1371 = vpack.c.b16 %v1356, %v1355
        %v1372 = vpack.c.b16 %v1358, %v1357
        %v1373 = vpack.c.b16 %v1360, %v1359
        %v1374 = vpack.c.b16 %v1362, %v1361
        %v1375 = vpack.c.b16 %v1364, %v1363
        %v1376 = vpack.c.b16 %v1366, %v1365
        %v1377 = vpack.c.b16 %v1368, %v1367
        %v1378 = vpack.c.b16 %v1370, %v1369
        %1379 = vrot.lane.b32.xlu0 %v1371, 64
        %v1380 = vpop.permute.xlu0 %1379
        %1381 = vrot.lane.b32.xlu0 %v1372, 64
        %v1382 = vpop.permute.xlu0 %1381
        %1383 = vrot.lane.b32.xlu0 %v1373, 64
        %v1384 = vpop.permute.xlu0 %1383
        %1385 = vrot.lane.b32.xlu0 %v1374, 64
        %v1386 = vpop.permute.xlu0 %1385
        %1387 = vrot.lane.b32.xlu0 %v1375, 64
        %v1388 = vpop.permute.xlu0 %1387
        %1389 = vrot.lane.b32.xlu0 %v1376, 64
        %v1390 = vpop.permute.xlu0 %1389
        %1391 = vrot.lane.b32.xlu0 %v1377, 64
        %v1392 = vpop.permute.xlu0 %1391
        %1393 = vrot.lane.b32.xlu0 %v1378, 64
        %v1394 = vpop.permute.xlu0 %1393
        %v1397 = vsel %vm1049, %v1347, %v1380
        %v1401 = vsel %vm1049, %v1348, %v1382
        %v1405 = vsel %vm1049, %v1349, %v1384
        %v1409 = vsel %vm1049, %v1350, %v1386
        %v1413 = vsel %vm1049, %v1351, %v1388
        %v1417 = vsel %vm1049, %v1352, %v1390
        %v1421 = vsel %vm1049, %v1353, %v1392
        %v1425 = vsel %vm1049, %v1354, %v1394
        %1427 = vst [vmem:[#allocation3] sm:$0xff] %v1397
        %1428 = vst [vmem:[#allocation3 + $0x28] sm:$0xff] %v1401
        %1429 = vst [vmem:[#allocation3 + $0x50] sm:$0xff] %v1405
        %1430 = vst [vmem:[#allocation3 + $0x78] sm:$0xff] %v1409
        %1431 = vst [vmem:[#allocation3 + $0xa0] sm:$0xff] %v1413
        %1432 = vst [vmem:[#allocation3 + $0xc8] sm:$0xff] %v1417
        %1433 = vst [vmem:[#allocation3 + $0xf0] sm:$0xff] %v1421
        %1434 = vst [vmem:[#allocation3 + $0x118] sm:$0xff] %v1425
        %v1435 = vld [vmem:[%s1095] sm:$0xe]
        %v1436 = vld [vmem:[%s1095 + $0x4] sm:$0xf]
        %v1437 = vld [vmem:[%s1095 + $0x8] sm:$0x1]
        %v1438 = vld [vmem:[%s1095 + $0xc] sm:$0xe]
        %v1439 = vld [vmem:[%s1095 + $0x10] sm:$0xf]
        %v1440 = vld [vmem:[%s1095 + $0x14] sm:$0x1]
        %v1441 = vld [vmem:[%s1095 + $0x18] sm:$0xe]
        %v1442 = vld [vmem:[%s1095 + $0x1c] sm:$0xf]
        %v1443 = vld [vmem:[%s1095 + $0x20] sm:$0x1]
        %v1444 = vld [vmem:[%s1095 + $0x24] sm:$0xe]
        %v1445 = vld [vmem:[%s1095 + $0x28] sm:$0xf]
        %v1446 = vld [vmem:[%s1095 + $0x2c] sm:$0x1]
        %v1447 = vld [vmem:[%s1095 + $0x30] sm:$0xe]
        %v1448 = vld [vmem:[%s1095 + $0x34] sm:$0xf]
        %v1449 = vld [vmem:[%s1095 + $0x38] sm:$0x1]
        %v1450 = vld [vmem:[%s1095 + $0x3c] sm:$0xe]
        %v1451 = vld [vmem:[%s1095 + $0x40] sm:$0xf]
        %v1452 = vld [vmem:[%s1095 + $0x44] sm:$0x1]
        %v1453 = vld [vmem:[%s1095 + $0x48] sm:$0xe]
        %v1454 = vld [vmem:[%s1095 + $0x4c] sm:$0xf]
        %v1455 = vld [vmem:[%s1095 + $0x50] sm:$0x1]
        %v1456 = vld [vmem:[%s1095 + $0x54] sm:$0xe]
        %v1457 = vld [vmem:[%s1095 + $0x58] sm:$0xf]
        %v1458 = vld [vmem:[%s1095 + $0x5c] sm:$0x1]
        %vm1483 = vcmask 1042432
        %vm1484 = vcmask 1046532
        %vm1485 = vmor %vm1483, %vm1484
        %v1486 = vrot.slane %v1435, 5
        %v1487 = vrot.slane %v1486, 4
        %v1488 = vrot.slane %v1436, 5
        %v1489 = vsel %vm1485, %v1487, %v1488
        %v1490 = vrot.slane %v1488, 4
        %v1491 = vrot.slane %v1437, 5
        %v1492 = vsel %vm1485, %v1490, %v1491
        %v1493 = vrot.slane %v1438, 5
        %v1494 = vrot.slane %v1493, 4
        %v1495 = vrot.slane %v1439, 5
        %v1496 = vsel %vm1485, %v1494, %v1495
        %v1497 = vrot.slane %v1495, 4
        %v1498 = vrot.slane %v1440, 5
        %v1499 = vsel %vm1485, %v1497, %v1498
        %v1500 = vrot.slane %v1441, 5
        %v1501 = vrot.slane %v1500, 4
        %v1502 = vrot.slane %v1442, 5
        %v1503 = vsel %vm1485, %v1501, %v1502
        %v1504 = vrot.slane %v1502, 4
        %v1505 = vrot.slane %v1443, 5
        %v1506 = vsel %vm1485, %v1504, %v1505
        %v1507 = vrot.slane %v1444, 5
        %v1508 = vrot.slane %v1507, 4
        %v1509 = vrot.slane %v1445, 5
        %v1510 = vsel %vm1485, %v1508, %v1509
        %v1511 = vrot.slane %v1509, 4
        %v1512 = vrot.slane %v1446, 5
        %v1513 = vsel %vm1485, %v1511, %v1512
        %v1514 = vrot.slane %v1447, 5
        %v1515 = vrot.slane %v1514, 4
        %v1516 = vrot.slane %v1448, 5
        %v1517 = vsel %vm1485, %v1515, %v1516
        %v1518 = vrot.slane %v1516, 4
        %v1519 = vrot.slane %v1449, 5
        %v1520 = vsel %vm1485, %v1518, %v1519
        %v1521 = vrot.slane %v1450, 5
        %v1522 = vrot.slane %v1521, 4
        %v1523 = vrot.slane %v1451, 5
        %v1524 = vsel %vm1485, %v1522, %v1523
        %v1525 = vrot.slane %v1523, 4
        %v1526 = vrot.slane %v1452, 5
        %v1527 = vsel %vm1485, %v1525, %v1526
        %v1528 = vrot.slane %v1453, 5
        %v1529 = vrot.slane %v1528, 4
        %v1530 = vrot.slane %v1454, 5
        %v1531 = vsel %vm1485, %v1529, %v1530
        %v1532 = vrot.slane %v1530, 4
        %v1533 = vrot.slane %v1455, 5
        %v1534 = vsel %vm1485, %v1532, %v1533
        %v1535 = vrot.slane %v1456, 5
        %v1536 = vrot.slane %v1535, 4
        %v1537 = vrot.slane %v1457, 5
        %v1538 = vsel %vm1485, %v1536, %v1537
        %v1539 = vrot.slane %v1537, 4
        %v1540 = vrot.slane %v1458, 5
        %v1541 = vsel %vm1485, %v1539, %v1540
        %s1542 = sadd.s32 %s1092, 1
        %s1543 = smul.u32 %s1542, 3
        %s1544 = smul.addr %s1543, 4
        %s1545 = scalar_lea.vmem [#allocation2], %s1544
        %v1546 = vld [vmem:[%s1545] sm:$0xf]
        %v1547 = vld [vmem:[%s1545 + $0x4] sm:$0xf]
        %v1548 = vld [vmem:[%s1545 + $0xc] sm:$0xf]
        %v1549 = vld [vmem:[%s1545 + $0x10] sm:$0xf]
        %v1550 = vld [vmem:[%s1545 + $0x18] sm:$0xf]
        %v1551 = vld [vmem:[%s1545 + $0x1c] sm:$0xf]
        %v1552 = vld [vmem:[%s1545 + $0x24] sm:$0xf]
        %v1553 = vld [vmem:[%s1545 + $0x28] sm:$0xf]
        %v1554 = vld [vmem:[%s1545 + $0x30] sm:$0xf]
        %v1555 = vld [vmem:[%s1545 + $0x34] sm:$0xf]
        %v1556 = vld [vmem:[%s1545 + $0x3c] sm:$0xf]
        %v1557 = vld [vmem:[%s1545 + $0x40] sm:$0xf]
        %v1558 = vld [vmem:[%s1545 + $0x48] sm:$0xf]
        %v1559 = vld [vmem:[%s1545 + $0x4c] sm:$0xf]
        %v1560 = vld [vmem:[%s1545 + $0x54] sm:$0xf]
        %v1561 = vld [vmem:[%s1545 + $0x58] sm:$0xf]
        %v1562 = vunpack.c.l.b16 %v1489
        %v1563 = vunpack.c.l.b16 %v1492
        %v1564 = vunpack.c.l.b16 %v1496
        %v1565 = vunpack.c.l.b16 %v1499
        %v1566 = vunpack.c.l.b16 %v1503
        %v1567 = vunpack.c.l.b16 %v1506
        %v1568 = vunpack.c.l.b16 %v1510
        %v1569 = vunpack.c.l.b16 %v1513
        %v1570 = vunpack.c.l.b16 %v1517
        %v1571 = vunpack.c.l.b16 %v1520
        %v1572 = vunpack.c.l.b16 %v1524
        %v1573 = vunpack.c.l.b16 %v1527
        %v1574 = vunpack.c.l.b16 %v1531
        %v1575 = vunpack.c.l.b16 %v1534
        %v1576 = vunpack.c.l.b16 %v1538
        %v1577 = vunpack.c.l.b16 %v1541
        %v1578 = vpack.c.b16 %v1563, %v1562
        %v1579 = vpack.c.b16 %v1565, %v1564
        %v1580 = vpack.c.b16 %v1567, %v1566
        %v1581 = vpack.c.b16 %v1569, %v1568
        %v1582 = vpack.c.b16 %v1571, %v1570
        %v1583 = vpack.c.b16 %v1573, %v1572
        %v1584 = vpack.c.b16 %v1575, %v1574
        %v1585 = vpack.c.b16 %v1577, %v1576
        %v1602 = vunpack.c.l.b16 %v1546
        %v1603 = vunpack.c.l.b16 %v1547
        %v1604 = vunpack.c.l.b16 %v1548
        %v1605 = vunpack.c.l.b16 %v1549
        %v1606 = vunpack.c.l.b16 %v1550
        %v1607 = vunpack.c.l.b16 %v1551
        %v1608 = vunpack.c.l.b16 %v1552
        %v1609 = vunpack.c.l.b16 %v1553
        %v1610 = vunpack.c.l.b16 %v1554
        %v1611 = vunpack.c.l.b16 %v1555
        %v1612 = vunpack.c.l.b16 %v1556
        %v1613 = vunpack.c.l.b16 %v1557
        %v1614 = vunpack.c.l.b16 %v1558
        %v1615 = vunpack.c.l.b16 %v1559
        %v1616 = vunpack.c.l.b16 %v1560
        %v1617 = vunpack.c.l.b16 %v1561
        %v1618 = vpack.c.b16 %v1603, %v1602
        %v1619 = vpack.c.b16 %v1605, %v1604
        %v1620 = vpack.c.b16 %v1607, %v1606
        %v1621 = vpack.c.b16 %v1609, %v1608
        %v1622 = vpack.c.b16 %v1611, %v1610
        %v1623 = vpack.c.b16 %v1613, %v1612
        %v1624 = vpack.c.b16 %v1615, %v1614
        %v1625 = vpack.c.b16 %v1617, %v1616
        %1626 = vrot.lane.b32.xlu0 %v1618, 64
        %v1627 = vpop.permute.xlu0 %1626
        %1628 = vrot.lane.b32.xlu0 %v1619, 64
        %v1629 = vpop.permute.xlu0 %1628
        %1630 = vrot.lane.b32.xlu0 %v1620, 64
        %v1631 = vpop.permute.xlu0 %1630
        %1632 = vrot.lane.b32.xlu0 %v1621, 64
        %v1633 = vpop.permute.xlu0 %1632
        %1634 = vrot.lane.b32.xlu0 %v1622, 64
        %v1635 = vpop.permute.xlu0 %1634
        %1636 = vrot.lane.b32.xlu0 %v1623, 64
        %v1637 = vpop.permute.xlu0 %1636
        %1638 = vrot.lane.b32.xlu0 %v1624, 64
        %v1639 = vpop.permute.xlu0 %1638
        %1640 = vrot.lane.b32.xlu0 %v1625, 64
        %v1641 = vpop.permute.xlu0 %1640
        %v1644 = vsel %vm1049, %v1578, %v1627
        %v1648 = vsel %vm1049, %v1579, %v1629
        %v1652 = vsel %vm1049, %v1580, %v1631
        %v1656 = vsel %vm1049, %v1581, %v1633
        %v1660 = vsel %vm1049, %v1582, %v1635
        %v1664 = vsel %vm1049, %v1583, %v1637
        %v1668 = vsel %vm1049, %v1584, %v1639
        %v1672 = vsel %vm1049, %v1585, %v1641
        %1674 = vst [vmem:[#allocation3 + $0x8] sm:$0xff] %v1644
        %1675 = vst [vmem:[#allocation3 + $0x30] sm:$0xff] %v1648
        %1676 = vst [vmem:[#allocation3 + $0x58] sm:$0xff] %v1652
        %1677 = vst [vmem:[#allocation3 + $0x80] sm:$0xff] %v1656
        %1678 = vst [vmem:[#allocation3 + $0xa8] sm:$0xff] %v1660
        %1679 = vst [vmem:[#allocation3 + $0xd0] sm:$0xff] %v1664
        %1680 = vst [vmem:[#allocation3 + $0xf8] sm:$0xff] %v1668
        %1681 = vst [vmem:[#allocation3 + $0x120] sm:$0xff] %v1672
        %v1682 = vld [vmem:[%s1545] sm:$0xf]
        %v1683 = vld [vmem:[%s1545 + $0x4] sm:$0xf]
        %v1684 = vld [vmem:[%s1545 + $0x8] sm:$0x1]
        %v1685 = vld [vmem:[%s1545 + $0xc] sm:$0xf]
        %v1686 = vld [vmem:[%s1545 + $0x10] sm:$0xf]
        %v1687 = vld [vmem:[%s1545 + $0x14] sm:$0x1]
        %v1688 = vld [vmem:[%s1545 + $0x18] sm:$0xf]
        %v1689 = vld [vmem:[%s1545 + $0x1c] sm:$0xf]
        %v1690 = vld [vmem:[%s1545 + $0x20] sm:$0x1]
        %v1691 = vld [vmem:[%s1545 + $0x24] sm:$0xf]
        %v1692 = vld [vmem:[%s1545 + $0x28] sm:$0xf]
        %v1693 = vld [vmem:[%s1545 + $0x2c] sm:$0x1]
        %v1694 = vld [vmem:[%s1545 + $0x30] sm:$0xf]
        %v1695 = vld [vmem:[%s1545 + $0x34] sm:$0xf]
        %v1696 = vld [vmem:[%s1545 + $0x38] sm:$0x1]
        %v1697 = vld [vmem:[%s1545 + $0x3c] sm:$0xf]
        %v1698 = vld [vmem:[%s1545 + $0x40] sm:$0xf]
        %v1699 = vld [vmem:[%s1545 + $0x44] sm:$0x1]
        %v1700 = vld [vmem:[%s1545 + $0x48] sm:$0xf]
        %v1701 = vld [vmem:[%s1545 + $0x4c] sm:$0xf]
        %v1702 = vld [vmem:[%s1545 + $0x50] sm:$0x1]
        %v1703 = vld [vmem:[%s1545 + $0x54] sm:$0xf]
        %v1704 = vld [vmem:[%s1545 + $0x58] sm:$0xf]
        %v1705 = vld [vmem:[%s1545 + $0x5c] sm:$0x1]
        %v1707 = vshrl.u32 %v1682, 16
        %v1709 = vrot.slane %v1707, 4
        %v1710 = vshll.u32 %v1682, 16
        %v1712 = vrot.slane %v1710, 5
        %v1713 = vor.u32 %v1709, %v1712
        %v1714 = vrot.slane %v1713, 4
        %v1716 = vshll.u32 %v1683, 16
        %v1718 = vrot.slane %v1716, 5
        %v1719 = vsel %vm1122, %v1714, %v1718
        %v1720 = vshrl.u32 %v1683, 16
        %v1722 = vrot.slane %v1720, 4
        %v1723 = vor.u32 %v1722, %v1718
        %v1724 = vrot.slane %v1723, 4
        %v1726 = vshll.u32 %v1684, 16
        %v1728 = vrot.slane %v1726, 5
        %v1729 = vsel %vm1122, %v1724, %v1728
        %v1731 = vshrl.u32 %v1685, 16
        %v1733 = vrot.slane %v1731, 4
        %v1734 = vshll.u32 %v1685, 16
        %v1736 = vrot.slane %v1734, 5
        %v1737 = vor.u32 %v1733, %v1736
        %v1738 = vrot.slane %v1737, 4
        %v1740 = vshll.u32 %v1686, 16
        %v1742 = vrot.slane %v1740, 5
        %v1743 = vsel %vm1122, %v1738, %v1742
        %v1744 = vshrl.u32 %v1686, 16
        %v1746 = vrot.slane %v1744, 4
        %v1747 = vor.u32 %v1746, %v1742
        %v1748 = vrot.slane %v1747, 4
        %v1750 = vshll.u32 %v1687, 16
        %v1752 = vrot.slane %v1750, 5
        %v1753 = vsel %vm1122, %v1748, %v1752
        %v1755 = vshrl.u32 %v1688, 16
        %v1757 = vrot.slane %v1755, 4
        %v1758 = vshll.u32 %v1688, 16
        %v1760 = vrot.slane %v1758, 5
        %v1761 = vor.u32 %v1757, %v1760
        %v1762 = vrot.slane %v1761, 4
        %v1764 = vshll.u32 %v1689, 16
        %v1766 = vrot.slane %v1764, 5
        %v1767 = vsel %vm1122, %v1762, %v1766
        %v1768 = vshrl.u32 %v1689, 16
        %v1770 = vrot.slane %v1768, 4
        %v1771 = vor.u32 %v1770, %v1766
        %v1772 = vrot.slane %v1771, 4
        %v1774 = vshll.u32 %v1690, 16
        %v1776 = vrot.slane %v1774, 5
        %v1777 = vsel %vm1122, %v1772, %v1776
        %v1779 = vshrl.u32 %v1691, 16
        %v1781 = vrot.slane %v1779, 4
        %v1782 = vshll.u32 %v1691, 16
        %v1784 = vrot.slane %v1782, 5
        %v1785 = vor.u32 %v1781, %v1784
        %v1786 = vrot.slane %v1785, 4
        %v1788 = vshll.u32 %v1692, 16
        %v1790 = vrot.slane %v1788, 5
        %v1791 = vsel %vm1122, %v1786, %v1790
        %v1792 = vshrl.u32 %v1692, 16
        %v1794 = vrot.slane %v1792, 4
        %v1795 = vor.u32 %v1794, %v1790
        %v1796 = vrot.slane %v1795, 4
        %v1798 = vshll.u32 %v1693, 16
        %v1800 = vrot.slane %v1798, 5
        %v1801 = vsel %vm1122, %v1796, %v1800
        %v1803 = vshrl.u32 %v1694, 16
        %v1805 = vrot.slane %v1803, 4
        %v1806 = vshll.u32 %v1694, 16
        %v1808 = vrot.slane %v1806, 5
        %v1809 = vor.u32 %v1805, %v1808
        %v1810 = vrot.slane %v1809, 4
        %v1812 = vshll.u32 %v1695, 16
        %v1814 = vrot.slane %v1812, 5
        %v1815 = vsel %vm1122, %v1810, %v1814
        %v1816 = vshrl.u32 %v1695, 16
        %v1818 = vrot.slane %v1816, 4
        %v1819 = vor.u32 %v1818, %v1814
        %v1820 = vrot.slane %v1819, 4
        %v1822 = vshll.u32 %v1696, 16
        %v1824 = vrot.slane %v1822, 5
        %v1825 = vsel %vm1122, %v1820, %v1824
        %v1827 = vshrl.u32 %v1697, 16
        %v1829 = vrot.slane %v1827, 4
        %v1830 = vshll.u32 %v1697, 16
        %v1832 = vrot.slane %v1830, 5
        %v1833 = vor.u32 %v1829, %v1832
        %v1834 = vrot.slane %v1833, 4
        %v1836 = vshll.u32 %v1698, 16
        %v1838 = vrot.slane %v1836, 5
        %v1839 = vsel %vm1122, %v1834, %v1838
        %v1840 = vshrl.u32 %v1698, 16
        %v1842 = vrot.slane %v1840, 4
        %v1843 = vor.u32 %v1842, %v1838
        %v1844 = vrot.slane %v1843, 4
        %v1846 = vshll.u32 %v1699, 16
        %v1848 = vrot.slane %v1846, 5
        %v1849 = vsel %vm1122, %v1844, %v1848
        %v1851 = vshrl.u32 %v1700, 16
        %v1853 = vrot.slane %v1851, 4
        %v1854 = vshll.u32 %v1700, 16
        %v1856 = vrot.slane %v1854, 5
        %v1857 = vor.u32 %v1853, %v1856
        %v1858 = vrot.slane %v1857, 4
        %v1860 = vshll.u32 %v1701, 16
        %v1862 = vrot.slane %v1860, 5
        %v1863 = vsel %vm1122, %v1858, %v1862
        %v1864 = vshrl.u32 %v1701, 16
        %v1866 = vrot.slane %v1864, 4
        %v1867 = vor.u32 %v1866, %v1862
        %v1868 = vrot.slane %v1867, 4
        %v1870 = vshll.u32 %v1702, 16
        %v1872 = vrot.slane %v1870, 5
        %v1873 = vsel %vm1122, %v1868, %v1872
        %v1875 = vshrl.u32 %v1703, 16
        %v1877 = vrot.slane %v1875, 4
        %v1878 = vshll.u32 %v1703, 16
        %v1880 = vrot.slane %v1878, 5
        %v1881 = vor.u32 %v1877, %v1880
        %v1882 = vrot.slane %v1881, 4
        %v1884 = vshll.u32 %v1704, 16
        %v1886 = vrot.slane %v1884, 5
        %v1887 = vsel %vm1122, %v1882, %v1886
        %v1888 = vshrl.u32 %v1704, 16
        %v1890 = vrot.slane %v1888, 4
        %v1891 = vor.u32 %v1890, %v1886
        %v1892 = vrot.slane %v1891, 4
        %v1894 = vshll.u32 %v1705, 16
        %v1896 = vrot.slane %v1894, 5
        %v1897 = vsel %vm1122, %v1892, %v1896
        %v1898 = vld [vmem:[%s1545] sm:$0xe]
        %v1899 = vld [vmem:[%s1545 + $0xc] sm:$0xe]
        %v1900 = vld [vmem:[%s1545 + $0x18] sm:$0xe]
        %v1901 = vld [vmem:[%s1545 + $0x24] sm:$0xe]
        %v1902 = vld [vmem:[%s1545 + $0x30] sm:$0xe]
        %v1903 = vld [vmem:[%s1545 + $0x3c] sm:$0xe]
        %v1904 = vld [vmem:[%s1545 + $0x48] sm:$0xe]
        %v1905 = vld [vmem:[%s1545 + $0x54] sm:$0xe]
        %v1930 = vrot.slane %v1898, 5
        %v1931 = vrot.slane %v1930, 4
        %v1932 = vrot.slane %v1683, 5
        %v1933 = vsel %vm1485, %v1931, %v1932
        %v1934 = vrot.slane %v1932, 4
        %v1935 = vrot.slane %v1684, 5
        %v1936 = vsel %vm1485, %v1934, %v1935
        %v1937 = vrot.slane %v1899, 5
        %v1938 = vrot.slane %v1937, 4
        %v1939 = vrot.slane %v1686, 5
        %v1940 = vsel %vm1485, %v1938, %v1939
        %v1941 = vrot.slane %v1939, 4
        %v1942 = vrot.slane %v1687, 5
        %v1943 = vsel %vm1485, %v1941, %v1942
        %v1944 = vrot.slane %v1900, 5
        %v1945 = vrot.slane %v1944, 4
        %v1946 = vrot.slane %v1689, 5
        %v1947 = vsel %vm1485, %v1945, %v1946
        %v1948 = vrot.slane %v1946, 4
        %v1949 = vrot.slane %v1690, 5
        %v1950 = vsel %vm1485, %v1948, %v1949
        %v1951 = vrot.slane %v1901, 5
        %v1952 = vrot.slane %v1951, 4
        %v1953 = vrot.slane %v1692, 5
        %v1954 = vsel %vm1485, %v1952, %v1953
        %v1955 = vrot.slane %v1953, 4
        %v1956 = vrot.slane %v1693, 5
        %v1957 = vsel %vm1485, %v1955, %v1956
        %v1958 = vrot.slane %v1902, 5
        %v1959 = vrot.slane %v1958, 4
        %v1960 = vrot.slane %v1695, 5
        %v1961 = vsel %vm1485, %v1959, %v1960
        %v1962 = vrot.slane %v1960, 4
        %v1963 = vrot.slane %v1696, 5
        %v1964 = vsel %vm1485, %v1962, %v1963
        %v1965 = vrot.slane %v1903, 5
        %v1966 = vrot.slane %v1965, 4
        %v1967 = vrot.slane %v1698, 5
        %v1968 = vsel %vm1485, %v1966, %v1967
        %v1969 = vrot.slane %v1967, 4
        %v1970 = vrot.slane %v1699, 5
        %v1971 = vsel %vm1485, %v1969, %v1970
        %v1972 = vrot.slane %v1904, 5
        %v1973 = vrot.slane %v1972, 4
        %v1974 = vrot.slane %v1701, 5
        %v1975 = vsel %vm1485, %v1973, %v1974
        %v1976 = vrot.slane %v1974, 4
        %v1977 = vrot.slane %v1702, 5
        %v1978 = vsel %vm1485, %v1976, %v1977
        %v1979 = vrot.slane %v1905, 5
        %v1980 = vrot.slane %v1979, 4
        %v1981 = vrot.slane %v1704, 5
        %v1982 = vsel %vm1485, %v1980, %v1981
        %v1983 = vrot.slane %v1981, 4
        %v1984 = vrot.slane %v1705, 5
        %v1985 = vsel %vm1485, %v1983, %v1984
        %v1986 = vunpack.c.l.b16 %v1719
        %v1987 = vunpack.c.l.b16 %v1729
        %v1988 = vunpack.c.l.b16 %v1743
        %v1989 = vunpack.c.l.b16 %v1753
        %v1990 = vunpack.c.l.b16 %v1767
        %v1991 = vunpack.c.l.b16 %v1777
        %v1992 = vunpack.c.l.b16 %v1791
        %v1993 = vunpack.c.l.b16 %v1801
        %v1994 = vunpack.c.l.b16 %v1815
        %v1995 = vunpack.c.l.b16 %v1825
        %v1996 = vunpack.c.l.b16 %v1839
        %v1997 = vunpack.c.l.b16 %v1849
        %v1998 = vunpack.c.l.b16 %v1863
        %v1999 = vunpack.c.l.b16 %v1873
        %v2000 = vunpack.c.l.b16 %v1887
        %v2001 = vunpack.c.l.b16 %v1897
        %v2002 = vpack.c.b16 %v1987, %v1986
        %v2003 = vpack.c.b16 %v1989, %v1988
        %v2004 = vpack.c.b16 %v1991, %v1990
        %v2005 = vpack.c.b16 %v1993, %v1992
        %v2006 = vpack.c.b16 %v1995, %v1994
        %v2007 = vpack.c.b16 %v1997, %v1996
        %v2008 = vpack.c.b16 %v1999, %v1998
        %v2009 = vpack.c.b16 %v2001, %v2000
        %v2010 = vunpack.c.l.b16 %v1933
        %v2011 = vunpack.c.l.b16 %v1936
        %v2012 = vunpack.c.l.b16 %v1940
        %v2013 = vunpack.c.l.b16 %v1943
        %v2014 = vunpack.c.l.b16 %v1947
        %v2015 = vunpack.c.l.b16 %v1950
        %v2016 = vunpack.c.l.b16 %v1954
        %v2017 = vunpack.c.l.b16 %v1957
        %v2018 = vunpack.c.l.b16 %v1961
        %v2019 = vunpack.c.l.b16 %v1964
        %v2020 = vunpack.c.l.b16 %v1968
        %v2021 = vunpack.c.l.b16 %v1971
        %v2022 = vunpack.c.l.b16 %v1975
        %v2023 = vunpack.c.l.b16 %v1978
        %v2024 = vunpack.c.l.b16 %v1982
        %v2025 = vunpack.c.l.b16 %v1985
        %v2026 = vpack.c.b16 %v2011, %v2010
        %v2027 = vpack.c.b16 %v2013, %v2012
        %v2028 = vpack.c.b16 %v2015, %v2014
        %v2029 = vpack.c.b16 %v2017, %v2016
        %v2030 = vpack.c.b16 %v2019, %v2018
        %v2031 = vpack.c.b16 %v2021, %v2020
        %v2032 = vpack.c.b16 %v2023, %v2022
        %v2033 = vpack.c.b16 %v2025, %v2024
        %2034 = vrot.lane.b32.xlu0 %v2026, 64
        %v2035 = vpop.permute.xlu0 %2034
        %2036 = vrot.lane.b32.xlu0 %v2027, 64
        %v2037 = vpop.permute.xlu0 %2036
        %2038 = vrot.lane.b32.xlu0 %v2028, 64
        %v2039 = vpop.permute.xlu0 %2038
        %2040 = vrot.lane.b32.xlu0 %v2029, 64
        %v2041 = vpop.permute.xlu0 %2040
        %2042 = vrot.lane.b32.xlu0 %v2030, 64
        %v2043 = vpop.permute.xlu0 %2042
        %2044 = vrot.lane.b32.xlu0 %v2031, 64
        %v2045 = vpop.permute.xlu0 %2044
        %2046 = vrot.lane.b32.xlu0 %v2032, 64
        %v2047 = vpop.permute.xlu0 %2046
        %2048 = vrot.lane.b32.xlu0 %v2033, 64
        %v2049 = vpop.permute.xlu0 %2048
        %v2052 = vsel %vm1049, %v2002, %v2035
        %v2056 = vsel %vm1049, %v2003, %v2037
        %v2060 = vsel %vm1049, %v2004, %v2039
        %v2064 = vsel %vm1049, %v2005, %v2041
        %v2068 = vsel %vm1049, %v2006, %v2043
        %v2072 = vsel %vm1049, %v2007, %v2045
        %v2076 = vsel %vm1049, %v2008, %v2047
        %v2080 = vsel %vm1049, %v2009, %v2049
        %2082 = vst [vmem:[#allocation3 + $0x10] sm:$0xff] %v2052
        %2083 = vst [vmem:[#allocation3 + $0x38] sm:$0xff] %v2056
        %2084 = vst [vmem:[#allocation3 + $0x60] sm:$0xff] %v2060
        %2085 = vst [vmem:[#allocation3 + $0x88] sm:$0xff] %v2064
        %2086 = vst [vmem:[#allocation3 + $0xb0] sm:$0xff] %v2068
        %2087 = vst [vmem:[#allocation3 + $0xd8] sm:$0xff] %v2072
        %2088 = vst [vmem:[#allocation3 + $0x100] sm:$0xff] %v2076
        %2089 = vst [vmem:[#allocation3 + $0x128] sm:$0xff] %v2080
        %s2090 = sadd.s32 %s1092, 2
        %s2091 = smul.u32 %s2090, 3
        %s2092 = smul.addr %s2091, 4
        %s2093 = scalar_lea.vmem [#allocation2], %s2092
        %v2094 = vld [vmem:[%s2093] sm:$0xf]
        %v2095 = vld [vmem:[%s2093 + $0x4] sm:$0xf]
        %v2096 = vld [vmem:[%s2093 + $0xc] sm:$0xf]
        %v2097 = vld [vmem:[%s2093 + $0x10] sm:$0xf]
        %v2098 = vld [vmem:[%s2093 + $0x18] sm:$0xf]
        %v2099 = vld [vmem:[%s2093 + $0x1c] sm:$0xf]
        %v2100 = vld [vmem:[%s2093 + $0x24] sm:$0xf]
        %v2101 = vld [vmem:[%s2093 + $0x28] sm:$0xf]
        %v2102 = vld [vmem:[%s2093 + $0x30] sm:$0xf]
        %v2103 = vld [vmem:[%s2093 + $0x34] sm:$0xf]
        %v2104 = vld [vmem:[%s2093 + $0x3c] sm:$0xf]
        %v2105 = vld [vmem:[%s2093 + $0x40] sm:$0xf]
        %v2106 = vld [vmem:[%s2093 + $0x48] sm:$0xf]
        %v2107 = vld [vmem:[%s2093 + $0x4c] sm:$0xf]
        %v2108 = vld [vmem:[%s2093 + $0x54] sm:$0xf]
        %v2109 = vld [vmem:[%s2093 + $0x58] sm:$0xf]
        %v2110 = vld [vmem:[%s2093 + $0x8] sm:$0x1]
        %v2111 = vld [vmem:[%s2093 + $0x14] sm:$0x1]
        %v2112 = vld [vmem:[%s2093 + $0x20] sm:$0x1]
        %v2113 = vld [vmem:[%s2093 + $0x2c] sm:$0x1]
        %v2114 = vld [vmem:[%s2093 + $0x38] sm:$0x1]
        %v2115 = vld [vmem:[%s2093 + $0x44] sm:$0x1]
        %v2116 = vld [vmem:[%s2093 + $0x50] sm:$0x1]
        %v2117 = vld [vmem:[%s2093 + $0x5c] sm:$0x1]
        %v2119 = vshrl.u32 %v2094, 16
        %v2121 = vrot.slane %v2119, 4
        %v2122 = vshll.u32 %v2094, 16
        %v2124 = vrot.slane %v2122, 5
        %v2125 = vor.u32 %v2121, %v2124
        %v2126 = vrot.slane %v2125, 4
        %v2128 = vshll.u32 %v2095, 16
        %v2130 = vrot.slane %v2128, 5
        %v2131 = vsel %vm1122, %v2126, %v2130
        %v2132 = vshrl.u32 %v2095, 16
        %v2134 = vrot.slane %v2132, 4
        %v2135 = vor.u32 %v2134, %v2130
        %v2136 = vrot.slane %v2135, 4
        %v2138 = vshll.u32 %v2110, 16
        %v2140 = vrot.slane %v2138, 5
        %v2141 = vsel %vm1122, %v2136, %v2140
        %v2143 = vshrl.u32 %v2096, 16
        %v2145 = vrot.slane %v2143, 4
        %v2146 = vshll.u32 %v2096, 16
        %v2148 = vrot.slane %v2146, 5
        %v2149 = vor.u32 %v2145, %v2148
        %v2150 = vrot.slane %v2149, 4
        %v2152 = vshll.u32 %v2097, 16
        %v2154 = vrot.slane %v2152, 5
        %v2155 = vsel %vm1122, %v2150, %v2154
        %v2156 = vshrl.u32 %v2097, 16
        %v2158 = vrot.slane %v2156, 4
        %v2159 = vor.u32 %v2158, %v2154
        %v2160 = vrot.slane %v2159, 4
        %v2162 = vshll.u32 %v2111, 16
        %v2164 = vrot.slane %v2162, 5
        %v2165 = vsel %vm1122, %v2160, %v2164
        %v2167 = vshrl.u32 %v2098, 16
        %v2169 = vrot.slane %v2167, 4
        %v2170 = vshll.u32 %v2098, 16
        %v2172 = vrot.slane %v2170, 5
        %v2173 = vor.u32 %v2169, %v2172
        %v2174 = vrot.slane %v2173, 4
        %v2176 = vshll.u32 %v2099, 16
        %v2178 = vrot.slane %v2176, 5
        %v2179 = vsel %vm1122, %v2174, %v2178
        %v2180 = vshrl.u32 %v2099, 16
        %v2182 = vrot.slane %v2180, 4
        %v2183 = vor.u32 %v2182, %v2178
        %v2184 = vrot.slane %v2183, 4
        %v2186 = vshll.u32 %v2112, 16
        %v2188 = vrot.slane %v2186, 5
        %v2189 = vsel %vm1122, %v2184, %v2188
        %v2191 = vshrl.u32 %v2100, 16
        %v2193 = vrot.slane %v2191, 4
        %v2194 = vshll.u32 %v2100, 16
        %v2196 = vrot.slane %v2194, 5
        %v2197 = vor.u32 %v2193, %v2196
        %v2198 = vrot.slane %v2197, 4
        %v2200 = vshll.u32 %v2101, 16
        %v2202 = vrot.slane %v2200, 5
        %v2203 = vsel %vm1122, %v2198, %v2202
        %v2204 = vshrl.u32 %v2101, 16
        %v2206 = vrot.slane %v2204, 4
        %v2207 = vor.u32 %v2206, %v2202
        %v2208 = vrot.slane %v2207, 4
        %v2210 = vshll.u32 %v2113, 16
        %v2212 = vrot.slane %v2210, 5
        %v2213 = vsel %vm1122, %v2208, %v2212
        %v2215 = vshrl.u32 %v2102, 16
        %v2217 = vrot.slane %v2215, 4
        %v2218 = vshll.u32 %v2102, 16
        %v2220 = vrot.slane %v2218, 5
        %v2221 = vor.u32 %v2217, %v2220
        %v2222 = vrot.slane %v2221, 4
        %v2224 = vshll.u32 %v2103, 16
        %v2226 = vrot.slane %v2224, 5
        %v2227 = vsel %vm1122, %v2222, %v2226
        %v2228 = vshrl.u32 %v2103, 16
        %v2230 = vrot.slane %v2228, 4
        %v2231 = vor.u32 %v2230, %v2226
        %v2232 = vrot.slane %v2231, 4
        %v2234 = vshll.u32 %v2114, 16
        %v2236 = vrot.slane %v2234, 5
        %v2237 = vsel %vm1122, %v2232, %v2236
        %v2239 = vshrl.u32 %v2104, 16
        %v2241 = vrot.slane %v2239, 4
        %v2242 = vshll.u32 %v2104, 16
        %v2244 = vrot.slane %v2242, 5
        %v2245 = vor.u32 %v2241, %v2244
        %v2246 = vrot.slane %v2245, 4
        %v2248 = vshll.u32 %v2105, 16
        %v2250 = vrot.slane %v2248, 5
        %v2251 = vsel %vm1122, %v2246, %v2250
        %v2252 = vshrl.u32 %v2105, 16
        %v2254 = vrot.slane %v2252, 4
        %v2255 = vor.u32 %v2254, %v2250
        %v2256 = vrot.slane %v2255, 4
        %v2258 = vshll.u32 %v2115, 16
        %v2260 = vrot.slane %v2258, 5
        %v2261 = vsel %vm1122, %v2256, %v2260
        %v2263 = vshrl.u32 %v2106, 16
        %v2265 = vrot.slane %v2263, 4
        %v2266 = vshll.u32 %v2106, 16
        %v2268 = vrot.slane %v2266, 5
        %v2269 = vor.u32 %v2265, %v2268
        %v2270 = vrot.slane %v2269, 4
        %v2272 = vshll.u32 %v2107, 16
        %v2274 = vrot.slane %v2272, 5
        %v2275 = vsel %vm1122, %v2270, %v2274
        %v2276 = vshrl.u32 %v2107, 16
        %v2278 = vrot.slane %v2276, 4
        %v2279 = vor.u32 %v2278, %v2274
        %v2280 = vrot.slane %v2279, 4
        %v2282 = vshll.u32 %v2116, 16
        %v2284 = vrot.slane %v2282, 5
        %v2285 = vsel %vm1122, %v2280, %v2284
        %v2287 = vshrl.u32 %v2108, 16
        %v2289 = vrot.slane %v2287, 4
        %v2290 = vshll.u32 %v2108, 16
        %v2292 = vrot.slane %v2290, 5
        %v2293 = vor.u32 %v2289, %v2292
        %v2294 = vrot.slane %v2293, 4
        %v2296 = vshll.u32 %v2109, 16
        %v2298 = vrot.slane %v2296, 5
        %v2299 = vsel %vm1122, %v2294, %v2298
        %v2300 = vshrl.u32 %v2109, 16
        %v2302 = vrot.slane %v2300, 4
        %v2303 = vor.u32 %v2302, %v2298
        %v2304 = vrot.slane %v2303, 4
        %v2306 = vshll.u32 %v2117, 16
        %v2308 = vrot.slane %v2306, 5
        %v2309 = vsel %vm1122, %v2304, %v2308
        %v2326 = vunpack.c.l.b16 %v2094
        %v2327 = vunpack.c.l.b16 %v2095
        %v2328 = vunpack.c.l.b16 %v2096
        %v2329 = vunpack.c.l.b16 %v2097
        %v2330 = vunpack.c.l.b16 %v2098
        %v2331 = vunpack.c.l.b16 %v2099
        %v2332 = vunpack.c.l.b16 %v2100
        %v2333 = vunpack.c.l.b16 %v2101
        %v2334 = vunpack.c.l.b16 %v2102
        %v2335 = vunpack.c.l.b16 %v2103
        %v2336 = vunpack.c.l.b16 %v2104
        %v2337 = vunpack.c.l.b16 %v2105
        %v2338 = vunpack.c.l.b16 %v2106
        %v2339 = vunpack.c.l.b16 %v2107
        %v2340 = vunpack.c.l.b16 %v2108
        %v2341 = vunpack.c.l.b16 %v2109
        %v2342 = vpack.c.b16 %v2327, %v2326
        %v2343 = vpack.c.b16 %v2329, %v2328
        %v2344 = vpack.c.b16 %v2331, %v2330
        %v2345 = vpack.c.b16 %v2333, %v2332
        %v2346 = vpack.c.b16 %v2335, %v2334
        %v2347 = vpack.c.b16 %v2337, %v2336
        %v2348 = vpack.c.b16 %v2339, %v2338
        %v2349 = vpack.c.b16 %v2341, %v2340
        %v2350 = vunpack.c.l.b16 %v2131
        %v2351 = vunpack.c.l.b16 %v2141
        %v2352 = vunpack.c.l.b16 %v2155
        %v2353 = vunpack.c.l.b16 %v2165
        %v2354 = vunpack.c.l.b16 %v2179
        %v2355 = vunpack.c.l.b16 %v2189
        %v2356 = vunpack.c.l.b16 %v2203
        %v2357 = vunpack.c.l.b16 %v2213
        %v2358 = vunpack.c.l.b16 %v2227
        %v2359 = vunpack.c.l.b16 %v2237
        %v2360 = vunpack.c.l.b16 %v2251
        %v2361 = vunpack.c.l.b16 %v2261
        %v2362 = vunpack.c.l.b16 %v2275
        %v2363 = vunpack.c.l.b16 %v2285
        %v2364 = vunpack.c.l.b16 %v2299
        %v2365 = vunpack.c.l.b16 %v2309
        %v2366 = vpack.c.b16 %v2351, %v2350
        %v2367 = vpack.c.b16 %v2353, %v2352
        %v2368 = vpack.c.b16 %v2355, %v2354
        %v2369 = vpack.c.b16 %v2357, %v2356
        %v2370 = vpack.c.b16 %v2359, %v2358
        %v2371 = vpack.c.b16 %v2361, %v2360
        %v2372 = vpack.c.b16 %v2363, %v2362
        %v2373 = vpack.c.b16 %v2365, %v2364
        %2374 = vrot.lane.b32.xlu0 %v2366, 64
        %v2375 = vpop.permute.xlu0 %2374
        %2376 = vrot.lane.b32.xlu0 %v2367, 64
        %v2377 = vpop.permute.xlu0 %2376
        %2378 = vrot.lane.b32.xlu0 %v2368, 64
        %v2379 = vpop.permute.xlu0 %2378
        %2380 = vrot.lane.b32.xlu0 %v2369, 64
        %v2381 = vpop.permute.xlu0 %2380
        %2382 = vrot.lane.b32.xlu0 %v2370, 64
        %v2383 = vpop.permute.xlu0 %2382
        %2384 = vrot.lane.b32.xlu0 %v2371, 64
        %v2385 = vpop.permute.xlu0 %2384
        %2386 = vrot.lane.b32.xlu0 %v2372, 64
        %v2387 = vpop.permute.xlu0 %2386
        %2388 = vrot.lane.b32.xlu0 %v2373, 64
        %v2389 = vpop.permute.xlu0 %2388
        %v2392 = vsel %vm1049, %v2342, %v2375
        %v2396 = vsel %vm1049, %v2343, %v2377
        %v2400 = vsel %vm1049, %v2344, %v2379
        %v2404 = vsel %vm1049, %v2345, %v2381
        %v2408 = vsel %vm1049, %v2346, %v2383
        %v2412 = vsel %vm1049, %v2347, %v2385
        %v2416 = vsel %vm1049, %v2348, %v2387
        %v2420 = vsel %vm1049, %v2349, %v2389
        %2422 = vst [vmem:[#allocation3 + $0x18] sm:$0xff] %v2392
        %2423 = vst [vmem:[#allocation3 + $0x40] sm:$0xff] %v2396
        %2424 = vst [vmem:[#allocation3 + $0x68] sm:$0xff] %v2400
        %2425 = vst [vmem:[#allocation3 + $0x90] sm:$0xff] %v2404
        %2426 = vst [vmem:[#allocation3 + $0xb8] sm:$0xff] %v2408
        %2427 = vst [vmem:[#allocation3 + $0xe0] sm:$0xff] %v2412
        %2428 = vst [vmem:[#allocation3 + $0x108] sm:$0xff] %v2416
        %2429 = vst [vmem:[#allocation3 + $0x130] sm:$0xff] %v2420
        %v2430 = vld [vmem:[%s2093] sm:$0xe]
        %v2431 = vld [vmem:[%s2093 + $0x4] sm:$0xf]
        %v2432 = vld [vmem:[%s2093 + $0x8] sm:$0x1]
        %v2433 = vld [vmem:[%s2093 + $0xc] sm:$0xe]
        %v2434 = vld [vmem:[%s2093 + $0x10] sm:$0xf]
        %v2435 = vld [vmem:[%s2093 + $0x14] sm:$0x1]
        %v2436 = vld [vmem:[%s2093 + $0x18] sm:$0xe]
        %v2437 = vld [vmem:[%s2093 + $0x1c] sm:$0xf]
        %v2438 = vld [vmem:[%s2093 + $0x20] sm:$0x1]
        %v2439 = vld [vmem:[%s2093 + $0x24] sm:$0xe]
        %v2440 = vld [vmem:[%s2093 + $0x28] sm:$0xf]
        %v2441 = vld [vmem:[%s2093 + $0x2c] sm:$0x1]
        %v2442 = vld [vmem:[%s2093 + $0x30] sm:$0xe]
        %v2443 = vld [vmem:[%s2093 + $0x34] sm:$0xf]
        %v2444 = vld [vmem:[%s2093 + $0x38] sm:$0x1]
        %v2445 = vld [vmem:[%s2093 + $0x3c] sm:$0xe]
        %v2446 = vld [vmem:[%s2093 + $0x40] sm:$0xf]
        %v2447 = vld [vmem:[%s2093 + $0x44] sm:$0x1]
        %v2448 = vld [vmem:[%s2093 + $0x48] sm:$0xe]
        %v2449 = vld [vmem:[%s2093 + $0x4c] sm:$0xf]
        %v2450 = vld [vmem:[%s2093 + $0x50] sm:$0x1]
        %v2451 = vld [vmem:[%s2093 + $0x54] sm:$0xe]
        %v2452 = vld [vmem:[%s2093 + $0x58] sm:$0xf]
        %v2453 = vld [vmem:[%s2093 + $0x5c] sm:$0x1]
        %v2478 = vrot.slane %v2430, 5
        %v2479 = vrot.slane %v2478, 4
        %v2480 = vrot.slane %v2431, 5
        %v2481 = vsel %vm1485, %v2479, %v2480
        %v2482 = vrot.slane %v2480, 4
        %v2483 = vrot.slane %v2432, 5
        %v2484 = vsel %vm1485, %v2482, %v2483
        %v2485 = vrot.slane %v2433, 5
        %v2486 = vrot.slane %v2485, 4
        %v2487 = vrot.slane %v2434, 5
        %v2488 = vsel %vm1485, %v2486, %v2487
        %v2489 = vrot.slane %v2487, 4
        %v2490 = vrot.slane %v2435, 5
        %v2491 = vsel %vm1485, %v2489, %v2490
        %v2492 = vrot.slane %v2436, 5
        %v2493 = vrot.slane %v2492, 4
        %v2494 = vrot.slane %v2437, 5
        %v2495 = vsel %vm1485, %v2493, %v2494
        %v2496 = vrot.slane %v2494, 4
        %v2497 = vrot.slane %v2438, 5
        %v2498 = vsel %vm1485, %v2496, %v2497
        %v2499 = vrot.slane %v2439, 5
        %v2500 = vrot.slane %v2499, 4
        %v2501 = vrot.slane %v2440, 5
        %v2502 = vsel %vm1485, %v2500, %v2501
        %v2503 = vrot.slane %v2501, 4
        %v2504 = vrot.slane %v2441, 5
        %v2505 = vsel %vm1485, %v2503, %v2504
        %v2506 = vrot.slane %v2442, 5
        %v2507 = vrot.slane %v2506, 4
        %v2508 = vrot.slane %v2443, 5
        %v2509 = vsel %vm1485, %v2507, %v2508
        %v2510 = vrot.slane %v2508, 4
        %v2511 = vrot.slane %v2444, 5
        %v2512 = vsel %vm1485, %v2510, %v2511
        %v2513 = vrot.slane %v2445, 5
        %v2514 = vrot.slane %v2513, 4
        %v2515 = vrot.slane %v2446, 5
        %v2516 = vsel %vm1485, %v2514, %v2515
        %v2517 = vrot.slane %v2515, 4
        %v2518 = vrot.slane %v2447, 5
        %v2519 = vsel %vm1485, %v2517, %v2518
        %v2520 = vrot.slane %v2448, 5
        %v2521 = vrot.slane %v2520, 4
        %v2522 = vrot.slane %v2449, 5
        %v2523 = vsel %vm1485, %v2521, %v2522
        %v2524 = vrot.slane %v2522, 4
        %v2525 = vrot.slane %v2450, 5
        %v2526 = vsel %vm1485, %v2524, %v2525
        %v2527 = vrot.slane %v2451, 5
        %v2528 = vrot.slane %v2527, 4
        %v2529 = vrot.slane %v2452, 5
        %v2530 = vsel %vm1485, %v2528, %v2529
        %v2531 = vrot.slane %v2529, 4
        %v2532 = vrot.slane %v2453, 5
        %v2533 = vsel %vm1485, %v2531, %v2532
        %v2534 = vunpack.c.l.b16 %v2481
        %v2535 = vunpack.c.l.b16 %v2484
        %v2536 = vunpack.c.l.b16 %v2488
        %v2537 = vunpack.c.l.b16 %v2491
        %v2538 = vunpack.c.l.b16 %v2495
        %v2539 = vunpack.c.l.b16 %v2498
        %v2540 = vunpack.c.l.b16 %v2502
        %v2541 = vunpack.c.l.b16 %v2505
        %v2542 = vunpack.c.l.b16 %v2509
        %v2543 = vunpack.c.l.b16 %v2512
        %v2544 = vunpack.c.l.b16 %v2516
        %v2545 = vunpack.c.l.b16 %v2519
        %v2546 = vunpack.c.l.b16 %v2523
        %v2547 = vunpack.c.l.b16 %v2526
        %v2548 = vunpack.c.l.b16 %v2530
        %v2549 = vunpack.c.l.b16 %v2533
        %v2550 = vpack.c.b16 %v2535, %v2534
        %v2551 = vpack.c.b16 %v2537, %v2536
        %v2552 = vpack.c.b16 %v2539, %v2538
        %v2553 = vpack.c.b16 %v2541, %v2540
        %v2554 = vpack.c.b16 %v2543, %v2542
        %v2555 = vpack.c.b16 %v2545, %v2544
        %v2556 = vpack.c.b16 %v2547, %v2546
        %v2557 = vpack.c.b16 %v2549, %v2548
        %2566 = vst.msk [vmem:[#allocation3 + $0x20] sm:$0xff] %vm1049, %v2550
        %2567 = vst.msk [vmem:[#allocation3 + $0x48] sm:$0xff] %vm1049, %v2551
        %2568 = vst.msk [vmem:[#allocation3 + $0x70] sm:$0xff] %vm1049, %v2552
        %2569 = vst.msk [vmem:[#allocation3 + $0x98] sm:$0xff] %vm1049, %v2553
        %2570 = vst.msk [vmem:[#allocation3 + $0xc0] sm:$0xff] %vm1049, %v2554
        %2571 = vst.msk [vmem:[#allocation3 + $0xe8] sm:$0xff] %vm1049, %v2555
        %2572 = vst.msk [vmem:[#allocation3 + $0x110] sm:$0xff] %vm1049, %v2556
        %2573 = vst.msk [vmem:[#allocation3 + $0x138] sm:$0xff] %vm1049, %v2557
        %p2574 = scmp.gt.s32.totalorder %s1087, 0
        // Predicated region
        $region59: #{dncnn_resnet_forward.1} parent=55 // pred_check
          %p2575 = pneg %p2574
        $region60: #{dncnn_resnet_forward.1} parent=55 // pred_check_branch
          %2577 = sbr.rel (%p2575) target = $region62
        $region61: #{dncnn_resnet_forward.1} parent=55 // pred_region
          %v2578 = vld [vmem:[#allocation4] sm:$0xff]
          %v2579 = vld [vmem:[#allocation4 + $0x8] sm:$0xff]
          %v2580 = vld [vmem:[#allocation4 + $0x10] sm:$0xff]
          %v2581 = vld [vmem:[#allocation4 + $0x18] sm:$0xff]
          %v2582 = vld [vmem:[#allocation4 + $0x20] sm:$0xff]
          %v2583 = vld [vmem:[#allocation4 + $0x28] sm:$0xff]
          %v2584 = vld [vmem:[#allocation4 + $0x30] sm:$0xff]
          %v2585 = vld [vmem:[#allocation4 + $0x38] sm:$0xff]
          %s2586 = sadd.s32 %s1092, 4294967289
          %v2595 = vunpack.c.l.b16 %v2578
          %v2596 = vunpack.c.h.b16 %v2578
          %v2597 = vunpack.c.l.b16 %v2579
          %v2598 = vunpack.c.h.b16 %v2579
          %v2599 = vunpack.c.l.b16 %v2580
          %v2600 = vunpack.c.h.b16 %v2580
          %v2601 = vunpack.c.l.b16 %v2581
          %v2602 = vunpack.c.h.b16 %v2581
          %v2603 = vunpack.c.l.b16 %v2582
          %v2604 = vunpack.c.h.b16 %v2582
          %v2605 = vunpack.c.l.b16 %v2583
          %v2606 = vunpack.c.h.b16 %v2583
          %v2607 = vunpack.c.l.b16 %v2584
          %v2608 = vunpack.c.h.b16 %v2584
          %v2609 = vunpack.c.l.b16 %v2585
          %v2610 = vunpack.c.h.b16 %v2585
          %v2611 = vpack.c.b16 %v2595, %v2595
          %v2612 = vpack.c.b16 %v2596, %v2596
          %v2613 = vpack.c.b16 %v2597, %v2597
          %v2614 = vpack.c.b16 %v2598, %v2598
          %v2615 = vpack.c.b16 %v2599, %v2599
          %v2616 = vpack.c.b16 %v2600, %v2600
          %v2617 = vpack.c.b16 %v2601, %v2601
          %v2618 = vpack.c.b16 %v2602, %v2602
          %v2619 = vpack.c.b16 %v2603, %v2603
          %v2620 = vpack.c.b16 %v2604, %v2604
          %v2621 = vpack.c.b16 %v2605, %v2605
          %v2622 = vpack.c.b16 %v2606, %v2606
          %v2623 = vpack.c.b16 %v2607, %v2607
          %v2624 = vpack.c.b16 %v2608, %v2608
          %v2625 = vpack.c.b16 %v2609, %v2609
          %v2626 = vpack.c.b16 %v2610, %v2610
          %vm2627 = vsmask.f32 4368
          %vm2628 = vmor %vm261, %vm2627
          %v2630 = vshrl.u32 %v2611, 16
          %v2632 = vrot.slane %v2630, 7
          %v2633 = vshll.u32 %v2611, 16
          %v2635 = vor.u32 %v2632, %v2633
          %v2636 = vrot.slane %v2632, 4
          %v2638 = vshrl.u32 %v2612, 16
          %v2640 = vrot.slane %v2638, 7
          %v2641 = vshll.u32 %v2612, 16
          %v2643 = vor.u32 %v2640, %v2641
          %v2644 = vsel %vm2628, %v2636, %v2643
          %v2645 = vrot.slane %v2640, 4
          %v2647 = vshrl.u32 %v2613, 16
          %v2649 = vrot.slane %v2647, 7
          %v2650 = vshll.u32 %v2613, 16
          %v2652 = vor.u32 %v2649, %v2650
          %v2653 = vrot.slane %v2649, 4
          %v2655 = vshrl.u32 %v2614, 16
          %v2657 = vrot.slane %v2655, 7
          %v2658 = vshll.u32 %v2614, 16
          %v2660 = vor.u32 %v2657, %v2658
          %v2661 = vsel %vm2628, %v2653, %v2660
          %v2662 = vrot.slane %v2657, 4
          %v2664 = vshrl.u32 %v2615, 16
          %v2666 = vrot.slane %v2664, 7
          %v2667 = vshll.u32 %v2615, 16
          %v2669 = vor.u32 %v2666, %v2667
          %v2670 = vrot.slane %v2666, 4
          %v2672 = vshrl.u32 %v2616, 16
          %v2674 = vrot.slane %v2672, 7
          %v2675 = vshll.u32 %v2616, 16
          %v2677 = vor.u32 %v2674, %v2675
          %v2678 = vsel %vm2628, %v2670, %v2677
          %v2679 = vrot.slane %v2674, 4
          %v2681 = vshrl.u32 %v2617, 16
          %v2683 = vrot.slane %v2681, 7
          %v2684 = vshll.u32 %v2617, 16
          %v2686 = vor.u32 %v2683, %v2684
          %v2687 = vrot.slane %v2683, 4
          %v2689 = vshrl.u32 %v2618, 16
          %v2691 = vrot.slane %v2689, 7
          %v2692 = vshll.u32 %v2618, 16
          %v2694 = vor.u32 %v2691, %v2692
          %v2695 = vsel %vm2628, %v2687, %v2694
          %v2696 = vrot.slane %v2691, 4
          %v2698 = vshrl.u32 %v2619, 16
          %v2700 = vrot.slane %v2698, 7
          %v2701 = vshll.u32 %v2619, 16
          %v2703 = vor.u32 %v2700, %v2701
          %v2704 = vrot.slane %v2700, 4
          %v2706 = vshrl.u32 %v2620, 16
          %v2708 = vrot.slane %v2706, 7
          %v2709 = vshll.u32 %v2620, 16
          %v2711 = vor.u32 %v2708, %v2709
          %v2712 = vsel %vm2628, %v2704, %v2711
          %v2713 = vrot.slane %v2708, 4
          %v2715 = vshrl.u32 %v2621, 16
          %v2717 = vrot.slane %v2715, 7
          %v2718 = vshll.u32 %v2621, 16
          %v2720 = vor.u32 %v2717, %v2718
          %v2721 = vrot.slane %v2717, 4
          %v2723 = vshrl.u32 %v2622, 16
          %v2725 = vrot.slane %v2723, 7
          %v2726 = vshll.u32 %v2622, 16
          %v2728 = vor.u32 %v2725, %v2726
          %v2729 = vsel %vm2628, %v2721, %v2728
          %v2730 = vrot.slane %v2725, 4
          %v2732 = vshrl.u32 %v2623, 16
          %v2734 = vrot.slane %v2732, 7
          %v2735 = vshll.u32 %v2623, 16
          %v2737 = vor.u32 %v2734, %v2735
          %v2738 = vrot.slane %v2734, 4
          %v2740 = vshrl.u32 %v2624, 16
          %v2742 = vrot.slane %v2740, 7
          %v2743 = vshll.u32 %v2624, 16
          %v2745 = vor.u32 %v2742, %v2743
          %v2746 = vsel %vm2628, %v2738, %v2745
          %v2747 = vrot.slane %v2742, 4
          %v2749 = vshrl.u32 %v2625, 16
          %v2751 = vrot.slane %v2749, 7
          %v2752 = vshll.u32 %v2625, 16
          %v2754 = vor.u32 %v2751, %v2752
          %v2755 = vrot.slane %v2751, 4
          %v2757 = vshrl.u32 %v2626, 16
          %v2759 = vrot.slane %v2757, 7
          %v2760 = vshll.u32 %v2626, 16
          %v2762 = vor.u32 %v2759, %v2760
          %v2763 = vsel %vm2628, %v2755, %v2762
          %v2764 = vrot.slane %v2759, 4
          %s2789 = smul.u32 %s2586, 3
          %s2790 = smul.addr %s2789, 4
          %s2791 = scalar_lea.vmem [#allocation2], %s2790
          %vm2792 = vcmask 519168
          %vm2793 = vmand %vm2792, %vm317
          %v2794 = vld [vmem:[%s2791] sm:$0xf]
          %v2795 = vsel %vm2793, %v2635, %v2794
          %2796 = vst [vmem:[%s2791] sm:$0xf] %v2795
          %2797 = vst.msk [vmem:[%s2791 + $0x4] sm:$0xf] %vm251, %v2644
          %v2798 = vld [vmem:[%s2791 + $0x8] sm:$0x1]
          %v2799 = vsel %vm262, %v2645, %v2798
          %2800 = vst [vmem:[%s2791 + $0x8] sm:$0x1] %v2799
          %v2801 = vld [vmem:[%s2791 + $0xc] sm:$0xf]
          %v2802 = vsel %vm2793, %v2652, %v2801
          %2803 = vst [vmem:[%s2791 + $0xc] sm:$0xf] %v2802
          %2804 = vst.msk [vmem:[%s2791 + $0x10] sm:$0xf] %vm251, %v2661
          %v2805 = vld [vmem:[%s2791 + $0x14] sm:$0x1]
          %v2806 = vsel %vm262, %v2662, %v2805
          %2807 = vst [vmem:[%s2791 + $0x14] sm:$0x1] %v2806
          %v2808 = vld [vmem:[%s2791 + $0x18] sm:$0xf]
          %v2809 = vsel %vm2793, %v2669, %v2808
          %2810 = vst [vmem:[%s2791 + $0x18] sm:$0xf] %v2809
          %2811 = vst.msk [vmem:[%s2791 + $0x1c] sm:$0xf] %vm251, %v2678
          %v2812 = vld [vmem:[%s2791 + $0x20] sm:$0x1]
          %v2813 = vsel %vm262, %v2679, %v2812
          %2814 = vst [vmem:[%s2791 + $0x20] sm:$0x1] %v2813
          %v2815 = vld [vmem:[%s2791 + $0x24] sm:$0xf]
          %v2816 = vsel %vm2793, %v2686, %v2815
          %2817 = vst [vmem:[%s2791 + $0x24] sm:$0xf] %v2816
          %2818 = vst.msk [vmem:[%s2791 + $0x28] sm:$0xf] %vm251, %v2695
          %v2819 = vld [vmem:[%s2791 + $0x2c] sm:$0x1]
          %v2820 = vsel %vm262, %v2696, %v2819
          %2821 = vst [vmem:[%s2791 + $0x2c] sm:$0x1] %v2820
          %v2822 = vld [vmem:[%s2791 + $0x30] sm:$0xf]
          %v2823 = vsel %vm2793, %v2703, %v2822
          %2824 = vst [vmem:[%s2791 + $0x30] sm:$0xf] %v2823
          %2825 = vst.msk [vmem:[%s2791 + $0x34] sm:$0xf] %vm251, %v2712
          %v2826 = vld [vmem:[%s2791 + $0x38] sm:$0x1]
          %v2827 = vsel %vm262, %v2713, %v2826
          %2828 = vst [vmem:[%s2791 + $0x38] sm:$0x1] %v2827
          %v2829 = vld [vmem:[%s2791 + $0x3c] sm:$0xf]
          %v2830 = vsel %vm2793, %v2720, %v2829
          %2831 = vst [vmem:[%s2791 + $0x3c] sm:$0xf] %v2830
          %2832 = vst.msk [vmem:[%s2791 + $0x40] sm:$0xf] %vm251, %v2729
          %v2833 = vld [vmem:[%s2791 + $0x44] sm:$0x1]
          %v2834 = vsel %vm262, %v2730, %v2833
          %2835 = vst [vmem:[%s2791 + $0x44] sm:$0x1] %v2834
          %v2836 = vld [vmem:[%s2791 + $0x48] sm:$0xf]
          %v2837 = vsel %vm2793, %v2737, %v2836
          %2838 = vst [vmem:[%s2791 + $0x48] sm:$0xf] %v2837
          %2839 = vst.msk [vmem:[%s2791 + $0x4c] sm:$0xf] %vm251, %v2746
          %v2840 = vld [vmem:[%s2791 + $0x50] sm:$0x1]
          %v2841 = vsel %vm262, %v2747, %v2840
          %2842 = vst [vmem:[%s2791 + $0x50] sm:$0x1] %v2841
          %v2843 = vld [vmem:[%s2791 + $0x54] sm:$0xf]
          %v2844 = vsel %vm2793, %v2754, %v2843
          %2845 = vst [vmem:[%s2791 + $0x54] sm:$0xf] %v2844
          %2846 = vst.msk [vmem:[%s2791 + $0x58] sm:$0xf] %vm251, %v2763
          %v2847 = vld [vmem:[%s2791 + $0x5c] sm:$0x1]
          %v2848 = vsel %vm262, %v2764, %v2847
          %2849 = vst [vmem:[%s2791 + $0x5c] sm:$0x1] %v2848
        $region62: #{dncnn_resnet_forward.1} parent=55 // pred_fallthru
          _
        %v2850 = vld [vmem:[#allocation3] sm:$0xff]
        %v2851 = vld [vmem:[#allocation3 + $0x8] sm:$0xff]
        %v2852 = vld [vmem:[#allocation3 + $0x10] sm:$0xff]
        %v2853 = vld [vmem:[#allocation3 + $0x18] sm:$0xff]
        %v2854 = vld [vmem:[#allocation3 + $0x20] sm:$0xff]
        %v2855 = vld [vmem:[#allocation3 + $0x28] sm:$0xff]
        %v2856 = vld [vmem:[#allocation3 + $0x30] sm:$0xff]
        %v2857 = vld [vmem:[#allocation3 + $0x38] sm:$0xff]
        %v2858 = vld [vmem:[#allocation3 + $0x40] sm:$0xff]
        %v2859 = vld [vmem:[#allocation3 + $0x48] sm:$0xff]
        %v2860 = vld [vmem:[#allocation3 + $0x50] sm:$0xff]
        %v2861 = vld [vmem:[#allocation3 + $0x58] sm:$0xff]
        %v2862 = vld [vmem:[#allocation3 + $0x60] sm:$0xff]
        %v2863 = vld [vmem:[#allocation3 + $0x68] sm:$0xff]
        %v2864 = vld [vmem:[#allocation3 + $0x70] sm:$0xff]
        %v2865 = vld [vmem:[#allocation3 + $0x78] sm:$0xff]
        %v2866 = vld [vmem:[#allocation3 + $0x80] sm:$0xff]
        %v2867 = vld [vmem:[#allocation3 + $0x88] sm:$0xff]
        %v2868 = vld [vmem:[#allocation3 + $0x90] sm:$0xff]
        %v2869 = vld [vmem:[#allocation3 + $0x98] sm:$0xff]
        %v2870 = vld [vmem:[#allocation3 + $0xa0] sm:$0xff]
        %v2871 = vld [vmem:[#allocation3 + $0xa8] sm:$0xff]
        %v2872 = vld [vmem:[#allocation3 + $0xb0] sm:$0xff]
        %v2873 = vld [vmem:[#allocation3 + $0xb8] sm:$0xff]
        %v2874 = vld [vmem:[#allocation3 + $0xc0] sm:$0xff]
        %v2875 = vld [vmem:[#allocation3 + $0xc8] sm:$0xff]
        %v2876 = vld [vmem:[#allocation3 + $0xd0] sm:$0xff]
        %v2877 = vld [vmem:[#allocation3 + $0xd8] sm:$0xff]
        %v2878 = vld [vmem:[#allocation3 + $0xe0] sm:$0xff]
        %v2879 = vld [vmem:[#allocation3 + $0xe8] sm:$0xff]
        %v2880 = vld [vmem:[#allocation3 + $0xf0] sm:$0xff]
        %v2881 = vld [vmem:[#allocation3 + $0xf8] sm:$0xff]
        %v2882 = vld [vmem:[#allocation3 + $0x100] sm:$0xff]
        %v2883 = vld [vmem:[#allocation3 + $0x108] sm:$0xff]
        %v2884 = vld [vmem:[#allocation3 + $0x110] sm:$0xff]
        %v2885 = vld [vmem:[#allocation3 + $0x118] sm:$0xff]
        %v2886 = vld [vmem:[#allocation3 + $0x120] sm:$0xff]
        %v2887 = vld [vmem:[#allocation3 + $0x128] sm:$0xff]
        %v2888 = vld [vmem:[#allocation3 + $0x130] sm:$0xff]
        %v2889 = vld [vmem:[#allocation3 + $0x138] sm:$0xff]
        %v2890 = vld [vmem:[#allocation5] sm:$0xff]
        %v2891 = vld [vmem:[#allocation5 + $0x8] sm:$0xff]
        %v2892 = vld [vmem:[#allocation5 + $0x10] sm:$0xff]
        %v2893 = vld [vmem:[#allocation5 + $0x18] sm:$0xff]
        %v2894 = vld [vmem:[#allocation5 + $0x20] sm:$0xff]
        %v2895 = vld [vmem:[#allocation5 + $0x28] sm:$0xff]
        %v2896 = vld [vmem:[#allocation5 + $0x30] sm:$0xff]
        %v2897 = vld [vmem:[#allocation5 + $0x38] sm:$0xff]
        %v2898 = vld [vmem:[#allocation5 + $0x40] sm:$0xff]
        %v2899 = vld [vmem:[#allocation5 + $0x48] sm:$0xff]
        %v2900 = vld [vmem:[#allocation5 + $0x50] sm:$0xff]
        %v2901 = vld [vmem:[#allocation5 + $0x58] sm:$0xff]
        %v2902 = vld [vmem:[#allocation5 + $0x60] sm:$0xff]
        %v2903 = vld [vmem:[#allocation5 + $0x68] sm:$0xff]
        %v2904 = vld [vmem:[#allocation5 + $0x70] sm:$0xff]
        %v2905 = vld [vmem:[#allocation5 + $0x78] sm:$0xff]
        %v2906 = vld [vmem:[#allocation5 + $0x80] sm:$0xff]
        %v2907 = vld [vmem:[#allocation5 + $0x88] sm:$0xff]
        %v2908 = vld [vmem:[#allocation5 + $0x90] sm:$0xff]
        %v2909 = vld [vmem:[#allocation5 + $0x98] sm:$0xff]
        %v2910 = vld [vmem:[#allocation5 + $0xa0] sm:$0xff]
        %v2911 = vld [vmem:[#allocation5 + $0xa8] sm:$0xff]
        %v2912 = vld [vmem:[#allocation5 + $0xb0] sm:$0xff]
        %v2913 = vld [vmem:[#allocation5 + $0xb8] sm:$0xff]
        %v2914 = vld [vmem:[#allocation5 + $0xc0] sm:$0xff]
        %v2915 = vld [vmem:[#allocation5 + $0xc8] sm:$0xff]
        %v2916 = vld [vmem:[#allocation5 + $0xd0] sm:$0xff]
        %v2917 = vld [vmem:[#allocation5 + $0xd8] sm:$0xff]
        %v2918 = vld [vmem:[#allocation5 + $0xe0] sm:$0xff]
        %v2919 = vld [vmem:[#allocation5 + $0xe8] sm:$0xff]
        %v2920 = vld [vmem:[#allocation5 + $0xf0] sm:$0xff]
        %v2921 = vld [vmem:[#allocation5 + $0xf8] sm:$0xff]
        %v2922 = vld [vmem:[#allocation5 + $0x100] sm:$0xff]
        %v2923 = vld [vmem:[#allocation5 + $0x108] sm:$0xff]
        %v2924 = vld [vmem:[#allocation5 + $0x110] sm:$0xff]
        %v2925 = vld [vmem:[#allocation5 + $0x118] sm:$0xff]
        %v2927 = vsel %vm1049, %v2854, 0
        %v2930 = vsel %vm1049, %v2859, 0
        %v2933 = vsel %vm1049, %v2864, 0
        %v2936 = vsel %vm1049, %v2869, 0
        %v2939 = vsel %vm1049, %v2874, 0
        %v2942 = vsel %vm1049, %v2879, 0
        %v2945 = vsel %vm1049, %v2884, 0
        %v2948 = vsel %vm1049, %v2889, 0
        %2950 = vmatprep.subr.bf16.mxu0 0
        %2951 = vmatpush1.bf16.msra.mxu0 %v2890
        %2952 = vmatprep.subr.bf16.mxu0 0
        %2953 = vmatpush1.bf16.msra.mxu0 %v2891
        %2954 = vmatprep.subr.bf16.mxu0 0
        %2955 = vmatpush1.bf16.msra.mxu0 %v2892
        %2956 = vmatprep.subr.bf16.mxu0 0
        %2957 = vmatpush1.bf16.msra.mxu0 %v2893
        %2958 = vmatprep.subr.bf16.mxu0 0
        %2959 = vmatpush1.bf16.msra.mxu0 %v2894
        %2960 = vmatprep.subr.bf16.mxu0 0
        %2961 = vmatpush1.bf16.msra.mxu0 %v2895
        %2962 = vmatprep.subr.bf16.mxu0 0
        %2963 = vmatpush1.bf16.msra.mxu0 %v2896
        %2964 = vmatprep.subr.bf16.mxu0 0
        %2965 = vmatpush1.bf16.msra.mxu0 %v2897
        %2966 = vmatprep.subr.bf16.mxu0 0
        %2967 = vmatpush1.bf16.msra.mxu0 %v2898
        %2968 = vmatprep.subr.bf16.mxu0 0
        %2969 = vmatpush1.bf16.msra.mxu0 %v2899
        %2970 = vmatprep.subr.bf16.mxu0 0
        %2971 = vmatpush1.bf16.msra.mxu0 %v2900
        %2972 = vmatprep.subr.bf16.mxu0 0
        %2973 = vmatpush1.bf16.msra.mxu0 %v2901
        %2974 = vmatprep.subr.bf16.mxu0 0
        %2975 = vmatpush1.bf16.msra.mxu0 %v2902
        %2976 = vmatprep.subr.bf16.mxu0 0
        %2977 = vmatpush1.bf16.msra.mxu0 %v2903
        %2978 = vmatprep.subr.bf16.mxu0 0
        %2979 = vmatpush1.bf16.msra.mxu0 %v2904
        %2980 = vmatprep.subr.bf16.mxu0 0
        %2981 = vmatpush1.bf16.msra.mxu0 %v2905
        %2982 = vmatprep.mubr.bf16.mxu0 %v2851
        %2983 = vmatmul.mubr.bf16.gmra.mrb[0].mxu0 %v2850
        %v2984 = vpop.f32.mrb[0].mxu0
        %v2985 = vadd.f32 0.0, %v2984
        %v2986 = vpop.f32.mrb[0].mxu0
        %v2987 = vpop.f32.mrb[0].mxu0
        %v2988 = vadd.f32 0.0, %v2987
        %v2989 = vpop.f32.mrb[0].mxu0
        %2990 = vmatprep.mubr.bf16.mxu0 %v2856
        %2991 = vmatmul.mubr.bf16.gmra.mrb[0].mxu0 %v2855
        %v2992 = vpop.f32.mrb[0].mxu0
        %v2993 = vadd.f32 0.0, %v2992
        %v2994 = vpop.f32.mrb[0].mxu0
        %v2995 = vpop.f32.mrb[0].mxu0
        %v2996 = vadd.f32 0.0, %v2995
        %v2997 = vpop.f32.mrb[0].mxu0
        %2998 = vmatprep.mubr.bf16.mxu0 %v2861
        %2999 = vmatmul.mubr.bf16.gmra.mrb[0].mxu0 %v2860
        %v3000 = vpop.f32.mrb[0].mxu0
        %v3001 = vadd.f32 0.0, %v3000
        %v3002 = vpop.f32.mrb[0].mxu0
        %v3003 = vpop.f32.mrb[0].mxu0
        %v3004 = vadd.f32 0.0, %v3003
        %v3005 = vpop.f32.mrb[0].mxu0
        %3006 = vmatprep.mubr.bf16.mxu0 %v2866
        %3007 = vmatmul.mubr.bf16.gmra.mrb[0].mxu0 %v2865
        %v3008 = vpop.f32.mrb[0].mxu0
        %v3009 = vadd.f32 0.0, %v3008
        %v3010 = vpop.f32.mrb[0].mxu0
        %v3011 = vpop.f32.mrb[0].mxu0
        %v3012 = vadd.f32 0.0, %v3011
        %v3013 = vpop.f32.mrb[0].mxu0
        %3014 = vmatprep.mubr.bf16.mxu0 %v2871
        %3015 = vmatmul.mubr.bf16.gmra.mrb[0].mxu0 %v2870
        %v3016 = vpop.f32.mrb[0].mxu0
        %v3017 = vadd.f32 0.0, %v3016
        %v3018 = vpop.f32.mrb[0].mxu0
        %v3019 = vpop.f32.mrb[0].mxu0
        %v3020 = vadd.f32 0.0, %v3019
        %v3021 = vpop.f32.mrb[0].mxu0
        %3022 = vmatprep.mubr.bf16.mxu0 %v2876
        %3023 = vmatmul.mubr.bf16.gmra.mrb[0].mxu0 %v2875
        %v3024 = vpop.f32.mrb[0].mxu0
        %v3025 = vadd.f32 0.0, %v3024
        %v3026 = vpop.f32.mrb[0].mxu0
        %v3027 = vpop.f32.mrb[0].mxu0
        %v3028 = vadd.f32 0.0, %v3027
        %v3029 = vpop.f32.mrb[0].mxu0
        %3030 = vmatprep.mubr.bf16.mxu0 %v2881
        %3031 = vmatmul.mubr.bf16.gmra.mrb[0].mxu0 %v2880
        %v3032 = vpop.f32.mrb[0].mxu0
        %v3033 = vadd.f32 0.0, %v3032
        %v3034 = vpop.f32.mrb[0].mxu0
        %v3035 = vpop.f32.mrb[0].mxu0
        %v3036 = vadd.f32 0.0, %v3035
        %v3037 = vpop.f32.mrb[0].mxu0
        %3038 = vmatprep.mubr.bf16.mxu0 %v2886
        %3039 = vmatmul.mubr.bf16.gmra.mrb[0].mxu0 %v2885
        %v3040 = vpop.f32.mrb[0].mxu0
        %v3041 = vadd.f32 0.0, %v3040
        %v3042 = vpop.f32.mrb[0].mxu0
        %v3043 = vpop.f32.mrb[0].mxu0
        %v3044 = vadd.f32 0.0, %v3043
        %v3045 = vpop.f32.mrb[0].mxu0
        %3046 = vdwg.mxu0
        %3047 = vmatprep.subr.bf16.mxu0 0
        %3048 = vmatpush1.bf16.msra.mxu0 %v2906
        %3049 = vmatprep.subr.bf16.mxu0 0
        %3050 = vmatpush1.bf16.msra.mxu0 %v2907
        %3051 = vmatprep.subr.bf16.mxu0 0
        %3052 = vmatpush1.bf16.msra.mxu0 %v2908
        %3053 = vmatprep.subr.bf16.mxu0 0
        %3054 = vmatpush1.bf16.msra.mxu0 %v2909
        %3055 = vmatprep.subr.bf16.mxu0 0
        %3056 = vmatpush1.bf16.msra.mxu0 %v2910
        %3057 = vmatprep.subr.bf16.mxu0 0
        %3058 = vmatpush1.bf16.msra.mxu0 %v2911
        %3059 = vmatprep.subr.bf16.mxu0 0
        %3060 = vmatpush1.bf16.msra.mxu0 %v2912
        %3061 = vmatprep.subr.bf16.mxu0 0
        %3062 = vmatpush1.bf16.msra.mxu0 %v2913
        %3063 = vmatprep.subr.bf16.mxu0 0
        %3064 = vmatpush1.bf16.msra.mxu0 %v2914
        %3065 = vmatprep.subr.bf16.mxu0 0
        %3066 = vmatpush1.bf16.msra.mxu0 %v2915
        %3067 = vmatprep.subr.bf16.mxu0 0
        %3068 = vmatpush1.bf16.msra.mxu0 %v2916
        %3069 = vmatprep.subr.bf16.mxu0 0
        %3070 = vmatpush1.bf16.msra.mxu0 %v2917
        %3071 = vmatprep.subr.bf16.mxu0 0
        %3072 = vmatpush1.bf16.msra.mxu0 %v2918
        %3073 = vmatprep.subr.bf16.mxu0 0
        %3074 = vmatpush1.bf16.msra.mxu0 %v2919
        %3075 = vmatprep.subr.bf16.mxu0 0
        %3076 = vmatpush1.bf16.msra.mxu0 %v2920
        %3077 = vmatprep.subr.bf16.mxu0 0
        %3078 = vmatpush1.bf16.msra.mxu0 %v2921
        %3079 = vmatprep.mubr.bf16.mxu0 %v2853
        %3080 = vmatmul.mubr.bf16.gmra.mrb[0].mxu0 %v2852
        %v3081 = vpop.f32.mrb[0].mxu0
        %v3082 = vadd.f32 %v2985, %v3081
        %v3083 = vpop.f32.mrb[0].mxu0
        %v3084 = vpop.f32.mrb[0].mxu0
        %v3085 = vadd.f32 %v2988, %v3084
        %v3086 = vpop.f32.mrb[0].mxu0
        %3087 = vmatprep.mubr.bf16.mxu0 %v2858
        %3088 = vmatmul.mubr.bf16.gmra.mrb[0].mxu0 %v2857
        %v3089 = vpop.f32.mrb[0].mxu0
        %v3090 = vadd.f32 %v2993, %v3089
        %v3091 = vpop.f32.mrb[0].mxu0
        %v3092 = vpop.f32.mrb[0].mxu0
        %v3093 = vadd.f32 %v2996, %v3092
        %v3094 = vpop.f32.mrb[0].mxu0
        %3095 = vmatprep.mubr.bf16.mxu0 %v2863
        %3096 = vmatmul.mubr.bf16.gmra.mrb[0].mxu0 %v2862
        %v3097 = vpop.f32.mrb[0].mxu0
        %v3098 = vadd.f32 %v3001, %v3097
        %v3099 = vpop.f32.mrb[0].mxu0
        %v3100 = vpop.f32.mrb[0].mxu0
        %v3101 = vadd.f32 %v3004, %v3100
        %v3102 = vpop.f32.mrb[0].mxu0
        %3103 = vmatprep.mubr.bf16.mxu0 %v2868
        %3104 = vmatmul.mubr.bf16.gmra.mrb[0].mxu0 %v2867
        %v3105 = vpop.f32.mrb[0].mxu0
        %v3106 = vadd.f32 %v3009, %v3105
        %v3107 = vpop.f32.mrb[0].mxu0
        %v3108 = vpop.f32.mrb[0].mxu0
        %v3109 = vadd.f32 %v3012, %v3108
        %v3110 = vpop.f32.mrb[0].mxu0
        %3111 = vmatprep.mubr.bf16.mxu0 %v2873
        %3112 = vmatmul.mubr.bf16.gmra.mrb[0].mxu0 %v2872
        %v3113 = vpop.f32.mrb[0].mxu0
        %v3114 = vadd.f32 %v3017, %v3113
        %v3115 = vpop.f32.mrb[0].mxu0
        %v3116 = vpop.f32.mrb[0].mxu0
        %v3117 = vadd.f32 %v3020, %v3116
        %v3118 = vpop.f32.mrb[0].mxu0
        %3119 = vmatprep.mubr.bf16.mxu0 %v2878
        %3120 = vmatmul.mubr.bf16.gmra.mrb[0].mxu0 %v2877
        %v3121 = vpop.f32.mrb[0].mxu0
        %v3122 = vadd.f32 %v3025, %v3121
        %v3123 = vpop.f32.mrb[0].mxu0
        %v3124 = vpop.f32.mrb[0].mxu0
        %v3125 = vadd.f32 %v3028, %v3124
        %v3126 = vpop.f32.mrb[0].mxu0
        %3127 = vmatprep.mubr.bf16.mxu0 %v2883
        %3128 = vmatmul.mubr.bf16.gmra.mrb[0].mxu0 %v2882
        %v3129 = vpop.f32.mrb[0].mxu0
        %v3130 = vadd.f32 %v3033, %v3129
        %v3131 = vpop.f32.mrb[0].mxu0
        %v3132 = vpop.f32.mrb[0].mxu0
        %v3133 = vadd.f32 %v3036, %v3132
        %v3134 = vpop.f32.mrb[0].mxu0
        %3135 = vmatprep.mubr.bf16.mxu0 %v2888
        %3136 = vmatmul.mubr.bf16.gmra.mrb[0].mxu0 %v2887
        %v3137 = vpop.f32.mrb[0].mxu0
        %v3138 = vadd.f32 %v3041, %v3137
        %v3139 = vpop.f32.mrb[0].mxu0
        %v3140 = vpop.f32.mrb[0].mxu0
        %v3141 = vadd.f32 %v3044, %v3140
        %v3142 = vpop.f32.mrb[0].mxu0
        %3143 = vdwg.mxu0
        %3144 = vmatprep.subr.bf16.mxu0 0
        %3145 = vmatpush1.bf16.msra.mxu0 %v2922
        %3146 = vmatprep.subr.bf16.mxu0 0
        %3147 = vmatpush1.bf16.msra.mxu0 %v2923
        %3148 = vmatprep.subr.bf16.mxu0 0
        %3149 = vmatpush1.bf16.msra.mxu0 %v2924
        %3150 = vmatprep.subr.bf16.mxu0 0
        %3151 = vmatpush1.bf16.msra.mxu0 %v2925
        %3152 = vmatprep.subr.bf16.mxu0 0
        %3153 = vmatpush1.bf16.msra.mxu0 0
        %3154 = vmatprep.subr.bf16.mxu0 0
        %3155 = vmatpush1.bf16.msra.mxu0 0
        %3156 = vmatprep.subr.bf16.mxu0 0
        %3157 = vmatpush1.bf16.msra.mxu0 0
        %3158 = vmatprep.subr.bf16.mxu0 0
        %3159 = vmatpush1.bf16.msra.mxu0 0
        %3160 = vmatprep.subr.bf16.mxu0 0
        %3161 = vmatpush1.bf16.msra.mxu0 0
        %3162 = vmatprep.subr.bf16.mxu0 0
        %3163 = vmatpush1.bf16.msra.mxu0 0
        %3164 = vmatprep.subr.bf16.mxu0 0
        %3165 = vmatpush1.bf16.msra.mxu0 0
        %3166 = vmatprep.subr.bf16.mxu0 0
        %3167 = vmatpush1.bf16.msra.mxu0 0
        %3168 = vmatprep.subr.bf16.mxu0 0
        %3169 = vmatpush1.bf16.msra.mxu0 0
        %3170 = vmatprep.subr.bf16.mxu0 0
        %3171 = vmatpush1.bf16.msra.mxu0 0
        %3172 = vmatprep.subr.bf16.mxu0 0
        %3173 = vmatpush1.bf16.msra.mxu0 0
        %3174 = vmatprep.subr.bf16.mxu0 0
        %3175 = vmatpush1.bf16.msra.mxu0 0
        %3176 = vmatprep.mubr.bf16.mxu0 0
        %3177 = vmatmul.mubr.bf16.gmra.mrb[0].mxu0 %v2927
        %v3178 = vpop.f32.mrb[0].mxu0
        %v3179 = vadd.f32 %v3082, %v3178
        %v3180 = vpop.f32.mrb[0].mxu0
        %v3181 = vpop.f32.mrb[0].mxu0
        %v3182 = vadd.f32 %v3085, %v3181
        %v3183 = vpop.f32.mrb[0].mxu0
        %3184 = vmatprep.mubr.bf16.mxu0 0
        %3185 = vmatmul.mubr.bf16.gmra.mrb[0].mxu0 %v2930
        %v3186 = vpop.f32.mrb[0].mxu0
        %v3187 = vadd.f32 %v3090, %v3186
        %v3188 = vpop.f32.mrb[0].mxu0
        %v3189 = vpop.f32.mrb[0].mxu0
        %v3190 = vadd.f32 %v3093, %v3189
        %v3191 = vpop.f32.mrb[0].mxu0
        %3192 = vmatprep.mubr.bf16.mxu0 0
        %3193 = vmatmul.mubr.bf16.gmra.mrb[0].mxu0 %v2933
        %v3194 = vpop.f32.mrb[0].mxu0
        %v3195 = vadd.f32 %v3098, %v3194
        %v3196 = vpop.f32.mrb[0].mxu0
        %v3197 = vpop.f32.mrb[0].mxu0
        %v3198 = vadd.f32 %v3101, %v3197
        %v3199 = vpop.f32.mrb[0].mxu0
        %3200 = vmatprep.mubr.bf16.mxu0 0
        %3201 = vmatmul.mubr.bf16.gmra.mrb[0].mxu0 %v2936
        %v3202 = vpop.f32.mrb[0].mxu0
        %v3203 = vadd.f32 %v3106, %v3202
        %v3204 = vpop.f32.mrb[0].mxu0
        %v3205 = vpop.f32.mrb[0].mxu0
        %v3206 = vadd.f32 %v3109, %v3205
        %v3207 = vpop.f32.mrb[0].mxu0
        %3208 = vmatprep.mubr.bf16.mxu0 0
        %3209 = vmatmul.mubr.bf16.gmra.mrb[0].mxu0 %v2939
        %v3210 = vpop.f32.mrb[0].mxu0
        %v3211 = vadd.f32 %v3114, %v3210
        %v3212 = vpop.f32.mrb[0].mxu0
        %v3213 = vpop.f32.mrb[0].mxu0
        %v3214 = vadd.f32 %v3117, %v3213
        %v3215 = vpop.f32.mrb[0].mxu0
        %3216 = vmatprep.mubr.bf16.mxu0 0
        %3217 = vmatmul.mubr.bf16.gmra.mrb[0].mxu0 %v2942
        %v3218 = vpop.f32.mrb[0].mxu0
        %v3219 = vadd.f32 %v3122, %v3218
        %v3220 = vpop.f32.mrb[0].mxu0
        %v3221 = vpop.f32.mrb[0].mxu0
        %v3222 = vadd.f32 %v3125, %v3221
        %v3223 = vpop.f32.mrb[0].mxu0
        %3224 = vmatprep.mubr.bf16.mxu0 0
        %3225 = vmatmul.mubr.bf16.gmra.mrb[0].mxu0 %v2945
        %v3226 = vpop.f32.mrb[0].mxu0
        %v3227 = vadd.f32 %v3130, %v3226
        %v3228 = vpop.f32.mrb[0].mxu0
        %v3229 = vpop.f32.mrb[0].mxu0
        %v3230 = vadd.f32 %v3133, %v3229
        %v3231 = vpop.f32.mrb[0].mxu0
        %3232 = vmatprep.mubr.bf16.mxu0 0
        %3233 = vmatmul.mubr.bf16.gmra.mrb[0].mxu0 %v2948
        %v3234 = vpop.f32.mrb[0].mxu0
        %v3235 = vadd.f32 %v3138, %v3234
        %v3236 = vpop.f32.mrb[0].mxu0
        %v3237 = vpop.f32.mrb[0].mxu0
        %v3238 = vadd.f32 %v3141, %v3237
        %v3239 = vpop.f32.mrb[0].mxu0
        %3240 = vdwg.mxu0
        %v3241 = vmax.f32 %v3179, 0.0
        %v3242 = vmax.f32 %v3182, 0.0
        %v3243 = vmax.f32 %v3187, 0.0
        %v3244 = vmax.f32 %v3190, 0.0
        %v3245 = vmax.f32 %v3195, 0.0
        %v3246 = vmax.f32 %v3198, 0.0
        %v3247 = vmax.f32 %v3203, 0.0
        %v3248 = vmax.f32 %v3206, 0.0
        %v3249 = vmax.f32 %v3211, 0.0
        %v3250 = vmax.f32 %v3214, 0.0
        %v3251 = vmax.f32 %v3219, 0.0
        %v3252 = vmax.f32 %v3222, 0.0
        %v3253 = vmax.f32 %v3227, 0.0
        %v3254 = vmax.f32 %v3230, 0.0
        %v3255 = vmax.f32 %v3235, 0.0
        %v3256 = vmax.f32 %v3238, 0.0
        %v3257 = vld [vmem:[%s1545] sm:$0xf]
        %v3258 = vld [vmem:[%s1545 + $0x4] sm:$0xf]
        %v3259 = vld [vmem:[%s1545 + $0x8] sm:$0x1]
        %v3260 = vld [vmem:[%s1545 + $0xc] sm:$0xf]
        %v3261 = vld [vmem:[%s1545 + $0x10] sm:$0xf]
        %v3262 = vld [vmem:[%s1545 + $0x14] sm:$0x1]
        %v3263 = vld [vmem:[%s1545 + $0x18] sm:$0xf]
        %v3264 = vld [vmem:[%s1545 + $0x1c] sm:$0xf]
        %v3265 = vld [vmem:[%s1545 + $0x20] sm:$0x1]
        %v3266 = vld [vmem:[%s1545 + $0x24] sm:$0xf]
        %v3267 = vld [vmem:[%s1545 + $0x28] sm:$0xf]
        %v3268 = vld [vmem:[%s1545 + $0x2c] sm:$0x1]
        %v3269 = vld [vmem:[%s1545 + $0x30] sm:$0xf]
        %v3270 = vld [vmem:[%s1545 + $0x34] sm:$0xf]
        %v3271 = vld [vmem:[%s1545 + $0x38] sm:$0x1]
        %v3272 = vld [vmem:[%s1545 + $0x3c] sm:$0xf]
        %v3273 = vld [vmem:[%s1545 + $0x40] sm:$0xf]
        %v3274 = vld [vmem:[%s1545 + $0x44] sm:$0x1]
        %v3275 = vld [vmem:[%s1545 + $0x48] sm:$0xf]
        %v3276 = vld [vmem:[%s1545 + $0x4c] sm:$0xf]
        %v3277 = vld [vmem:[%s1545 + $0x50] sm:$0x1]
        %v3278 = vld [vmem:[%s1545 + $0x54] sm:$0xf]
        %v3279 = vld [vmem:[%s1545 + $0x58] sm:$0xf]
        %v3280 = vld [vmem:[%s1545 + $0x5c] sm:$0x1]
        %v3282 = vshrl.u32 %v3257, 16
        %v3284 = vrot.slane %v3282, 4
        %v3285 = vshll.u32 %v3257, 16
        %v3287 = vrot.slane %v3285, 5
        %v3288 = vor.u32 %v3284, %v3287
        %v3289 = vrot.slane %v3288, 4
        %v3291 = vshll.u32 %v3258, 16
        %v3293 = vrot.slane %v3291, 5
        %v3294 = vsel %vm1122, %v3289, %v3293
        %v3295 = vshrl.u32 %v3258, 16
        %v3297 = vrot.slane %v3295, 4
        %v3298 = vor.u32 %v3297, %v3293
        %v3299 = vrot.slane %v3298, 4
        %v3301 = vshll.u32 %v3259, 16
        %v3303 = vrot.slane %v3301, 5
        %v3304 = vsel %vm1122, %v3299, %v3303
        %v3306 = vshrl.u32 %v3260, 16
        %v3308 = vrot.slane %v3306, 4
        %v3309 = vshll.u32 %v3260, 16
        %v3311 = vrot.slane %v3309, 5
        %v3312 = vor.u32 %v3308, %v3311
        %v3313 = vrot.slane %v3312, 4
        %v3315 = vshll.u32 %v3261, 16
        %v3317 = vrot.slane %v3315, 5
        %v3318 = vsel %vm1122, %v3313, %v3317
        %v3319 = vshrl.u32 %v3261, 16
        %v3321 = vrot.slane %v3319, 4
        %v3322 = vor.u32 %v3321, %v3317
        %v3323 = vrot.slane %v3322, 4
        %v3325 = vshll.u32 %v3262, 16
        %v3327 = vrot.slane %v3325, 5
        %v3328 = vsel %vm1122, %v3323, %v3327
        %v3330 = vshrl.u32 %v3263, 16
        %v3332 = vrot.slane %v3330, 4
        %v3333 = vshll.u32 %v3263, 16
        %v3335 = vrot.slane %v3333, 5
        %v3336 = vor.u32 %v3332, %v3335
        %v3337 = vrot.slane %v3336, 4
        %v3339 = vshll.u32 %v3264, 16
        %v3341 = vrot.slane %v3339, 5
        %v3342 = vsel %vm1122, %v3337, %v3341
        %v3343 = vshrl.u32 %v3264, 16
        %v3345 = vrot.slane %v3343, 4
        %v3346 = vor.u32 %v3345, %v3341
        %v3347 = vrot.slane %v3346, 4
        %v3349 = vshll.u32 %v3265, 16
        %v3351 = vrot.slane %v3349, 5
        %v3352 = vsel %vm1122, %v3347, %v3351
        %v3354 = vshrl.u32 %v3266, 16
        %v3356 = vrot.slane %v3354, 4
        %v3357 = vshll.u32 %v3266, 16
        %v3359 = vrot.slane %v3357, 5
        %v3360 = vor.u32 %v3356, %v3359
        %v3361 = vrot.slane %v3360, 4
        %v3363 = vshll.u32 %v3267, 16
        %v3365 = vrot.slane %v3363, 5
        %v3366 = vsel %vm1122, %v3361, %v3365
        %v3367 = vshrl.u32 %v3267, 16
        %v3369 = vrot.slane %v3367, 4
        %v3370 = vor.u32 %v3369, %v3365
        %v3371 = vrot.slane %v3370, 4
        %v3373 = vshll.u32 %v3268, 16
        %v3375 = vrot.slane %v3373, 5
        %v3376 = vsel %vm1122, %v3371, %v3375
        %v3378 = vshrl.u32 %v3269, 16
        %v3380 = vrot.slane %v3378, 4
        %v3381 = vshll.u32 %v3269, 16
        %v3383 = vrot.slane %v3381, 5
        %v3384 = vor.u32 %v3380, %v3383
        %v3385 = vrot.slane %v3384, 4
        %v3387 = vshll.u32 %v3270, 16
        %v3389 = vrot.slane %v3387, 5
        %v3390 = vsel %vm1122, %v3385, %v3389
        %v3391 = vshrl.u32 %v3270, 16
        %v3393 = vrot.slane %v3391, 4
        %v3394 = vor.u32 %v3393, %v3389
        %v3395 = vrot.slane %v3394, 4
        %v3397 = vshll.u32 %v3271, 16
        %v3399 = vrot.slane %v3397, 5
        %v3400 = vsel %vm1122, %v3395, %v3399
        %v3402 = vshrl.u32 %v3272, 16
        %v3404 = vrot.slane %v3402, 4
        %v3405 = vshll.u32 %v3272, 16
        %v3407 = vrot.slane %v3405, 5
        %v3408 = vor.u32 %v3404, %v3407
        %v3409 = vrot.slane %v3408, 4
        %v3411 = vshll.u32 %v3273, 16
        %v3413 = vrot.slane %v3411, 5
        %v3414 = vsel %vm1122, %v3409, %v3413
        %v3415 = vshrl.u32 %v3273, 16
        %v3417 = vrot.slane %v3415, 4
        %v3418 = vor.u32 %v3417, %v3413
        %v3419 = vrot.slane %v3418, 4
        %v3421 = vshll.u32 %v3274, 16
        %v3423 = vrot.slane %v3421, 5
        %v3424 = vsel %vm1122, %v3419, %v3423
        %v3426 = vshrl.u32 %v3275, 16
        %v3428 = vrot.slane %v3426, 4
        %v3429 = vshll.u32 %v3275, 16
        %v3431 = vrot.slane %v3429, 5
        %v3432 = vor.u32 %v3428, %v3431
        %v3433 = vrot.slane %v3432, 4
        %v3435 = vshll.u32 %v3276, 16
        %v3437 = vrot.slane %v3435, 5
        %v3438 = vsel %vm1122, %v3433, %v3437
        %v3439 = vshrl.u32 %v3276, 16
        %v3441 = vrot.slane %v3439, 4
        %v3442 = vor.u32 %v3441, %v3437
        %v3443 = vrot.slane %v3442, 4
        %v3445 = vshll.u32 %v3277, 16
        %v3447 = vrot.slane %v3445, 5
        %v3448 = vsel %vm1122, %v3443, %v3447
        %v3450 = vshrl.u32 %v3278, 16
        %v3452 = vrot.slane %v3450, 4
        %v3453 = vshll.u32 %v3278, 16
        %v3455 = vrot.slane %v3453, 5
        %v3456 = vor.u32 %v3452, %v3455
        %v3457 = vrot.slane %v3456, 4
        %v3459 = vshll.u32 %v3279, 16
        %v3461 = vrot.slane %v3459, 5
        %v3462 = vsel %vm1122, %v3457, %v3461
        %v3463 = vshrl.u32 %v3279, 16
        %v3465 = vrot.slane %v3463, 4
        %v3466 = vor.u32 %v3465, %v3461
        %v3467 = vrot.slane %v3466, 4
        %v3469 = vshll.u32 %v3280, 16
        %v3471 = vrot.slane %v3469, 5
        %v3472 = vsel %vm1122, %v3467, %v3471
        %v3489 = vunpack.c.l.bf16 %v3294
        %v3490 = vunpack.c.l.bf16 %v3304
        %v3491 = vunpack.c.l.bf16 %v3318
        %v3492 = vunpack.c.l.bf16 %v3328
        %v3493 = vunpack.c.l.bf16 %v3342
        %v3494 = vunpack.c.l.bf16 %v3352
        %v3495 = vunpack.c.l.bf16 %v3366
        %v3496 = vunpack.c.l.bf16 %v3376
        %v3497 = vunpack.c.l.bf16 %v3390
        %v3498 = vunpack.c.l.bf16 %v3400
        %v3499 = vunpack.c.l.bf16 %v3414
        %v3500 = vunpack.c.l.bf16 %v3424
        %v3501 = vunpack.c.l.bf16 %v3438
        %v3502 = vunpack.c.l.bf16 %v3448
        %v3503 = vunpack.c.l.bf16 %v3462
        %v3504 = vunpack.c.l.bf16 %v3472
        %3506 = vset.pattern.permute.xlu0 0
        %3507 = vperm.xlu0 %3506, %v3489
        %v3508 = vpop.permute.xlu0 %3507
        %3511 = vset.pattern.permute.xlu0 0
        %3512 = vperm.xlu0 %3511, %v3490
        %v3513 = vpop.permute.xlu0 %3512
        %3516 = vset.pattern.permute.xlu0 0
        %3517 = vperm.xlu0 %3516, %v3491
        %v3518 = vpop.permute.xlu0 %3517
        %3521 = vset.pattern.permute.xlu0 0
        %3522 = vperm.xlu0 %3521, %v3492
        %v3523 = vpop.permute.xlu0 %3522
        %3526 = vset.pattern.permute.xlu0 0
        %3527 = vperm.xlu0 %3526, %v3493
        %v3528 = vpop.permute.xlu0 %3527
        %3531 = vset.pattern.permute.xlu0 0
        %3532 = vperm.xlu0 %3531, %v3494
        %v3533 = vpop.permute.xlu0 %3532
        %3536 = vset.pattern.permute.xlu0 0
        %3537 = vperm.xlu0 %3536, %v3495
        %v3538 = vpop.permute.xlu0 %3537
        %3541 = vset.pattern.permute.xlu0 0
        %3542 = vperm.xlu0 %3541, %v3496
        %v3543 = vpop.permute.xlu0 %3542
        %3546 = vset.pattern.permute.xlu0 0
        %3547 = vperm.xlu0 %3546, %v3497
        %v3548 = vpop.permute.xlu0 %3547
        %3551 = vset.pattern.permute.xlu0 0
        %3552 = vperm.xlu0 %3551, %v3498
        %v3553 = vpop.permute.xlu0 %3552
        %3556 = vset.pattern.permute.xlu0 0
        %3557 = vperm.xlu0 %3556, %v3499
        %v3558 = vpop.permute.xlu0 %3557
        %3561 = vset.pattern.permute.xlu0 0
        %3562 = vperm.xlu0 %3561, %v3500
        %v3563 = vpop.permute.xlu0 %3562
        %3566 = vset.pattern.permute.xlu0 0
        %3567 = vperm.xlu0 %3566, %v3501
        %v3568 = vpop.permute.xlu0 %3567
        %3571 = vset.pattern.permute.xlu0 0
        %3572 = vperm.xlu0 %3571, %v3502
        %v3573 = vpop.permute.xlu0 %3572
        %3576 = vset.pattern.permute.xlu0 0
        %3577 = vperm.xlu0 %3576, %v3503
        %v3578 = vpop.permute.xlu0 %3577
        %3581 = vset.pattern.permute.xlu0 0
        %3582 = vperm.xlu0 %3581, %v3504
        %v3583 = vpop.permute.xlu0 %3582
        %v3585 = vadd.f32 %v3241, %v3508
        %v3586 = vadd.f32 %v3242, %v3513
        %v3587 = vadd.f32 %v3243, %v3518
        %v3588 = vadd.f32 %v3244, %v3523
        %v3589 = vadd.f32 %v3245, %v3528
        %v3590 = vadd.f32 %v3246, %v3533
        %v3591 = vadd.f32 %v3247, %v3538
        %v3592 = vadd.f32 %v3248, %v3543
        %v3593 = vadd.f32 %v3249, %v3548
        %v3594 = vadd.f32 %v3250, %v3553
        %v3595 = vadd.f32 %v3251, %v3558
        %v3596 = vadd.f32 %v3252, %v3563
        %v3597 = vadd.f32 %v3253, %v3568
        %v3598 = vadd.f32 %v3254, %v3573
        %v3599 = vadd.f32 %v3255, %v3578
        %v3600 = vadd.f32 %v3256, %v3583
        %v3601 = vpack.c.bf16 %v3586, %v3585
        %v3602 = vpack.c.bf16 %v3588, %v3587
        %v3603 = vpack.c.bf16 %v3590, %v3589
        %v3604 = vpack.c.bf16 %v3592, %v3591
        %v3605 = vpack.c.bf16 %v3594, %v3593
        %v3606 = vpack.c.bf16 %v3596, %v3595
        %v3607 = vpack.c.bf16 %v3598, %v3597
        %v3608 = vpack.c.bf16 %v3600, %v3599
        %3609 = vst.msk [vmem:[#allocation4] sm:$0xff] %vm1049, %v3601
        %3610 = vst.msk [vmem:[#allocation4 + $0x8] sm:$0xff] %vm1049, %v3602
        %3611 = vst.msk [vmem:[#allocation4 + $0x10] sm:$0xff] %vm1049, %v3603
        %3612 = vst.msk [vmem:[#allocation4 + $0x18] sm:$0xff] %vm1049, %v3604
        %3613 = vst.msk [vmem:[#allocation4 + $0x20] sm:$0xff] %vm1049, %v3605
        %3614 = vst.msk [vmem:[#allocation4 + $0x28] sm:$0xff] %vm1049, %v3606
        %3615 = vst.msk [vmem:[#allocation4 + $0x30] sm:$0xff] %vm1049, %v3607
        %3616 = vst.msk [vmem:[#allocation4 + $0x38] sm:$0xff] %vm1049, %v3608
      $region56: #{dncnn_resnet_forward.1} parent=43 // loop_footer
        %s1091 = sadd.s32 1, %s1087
      $region57: #{dncnn_resnet_forward.1} parent=43 // loop_footer_branch
        %1086 = sbr.rel target = $region53
      $region58: #{dncnn_resnet_forward.1} parent=43 // loop_exit
        _
      %v3617 = vld [vmem:[#allocation4] sm:$0xff]
      %v3618 = vld [vmem:[#allocation4 + $0x8] sm:$0xff]
      %v3619 = vld [vmem:[#allocation4 + $0x10] sm:$0xff]
      %v3620 = vld [vmem:[#allocation4 + $0x18] sm:$0xff]
      %v3621 = vld [vmem:[#allocation4 + $0x20] sm:$0xff]
      %v3622 = vld [vmem:[#allocation4 + $0x28] sm:$0xff]
      %v3623 = vld [vmem:[#allocation4 + $0x30] sm:$0xff]
      %v3624 = vld [vmem:[#allocation4 + $0x38] sm:$0xff]
      %v3633 = vunpack.c.l.b16 %v3617
      %v3634 = vunpack.c.h.b16 %v3617
      %v3635 = vunpack.c.l.b16 %v3618
      %v3636 = vunpack.c.h.b16 %v3618
      %v3637 = vunpack.c.l.b16 %v3619
      %v3638 = vunpack.c.h.b16 %v3619
      %v3639 = vunpack.c.l.b16 %v3620
      %v3640 = vunpack.c.h.b16 %v3620
      %v3641 = vunpack.c.l.b16 %v3621
      %v3642 = vunpack.c.h.b16 %v3621
      %v3643 = vunpack.c.l.b16 %v3622
      %v3644 = vunpack.c.h.b16 %v3622
      %v3645 = vunpack.c.l.b16 %v3623
      %v3646 = vunpack.c.h.b16 %v3623
      %v3647 = vunpack.c.l.b16 %v3624
      %v3648 = vunpack.c.h.b16 %v3624
      %v3649 = vpack.c.b16 %v3633, %v3633
      %v3650 = vpack.c.b16 %v3634, %v3634
      %v3651 = vpack.c.b16 %v3635, %v3635
      %v3652 = vpack.c.b16 %v3636, %v3636
      %v3653 = vpack.c.b16 %v3637, %v3637
      %v3654 = vpack.c.b16 %v3638, %v3638
      %v3655 = vpack.c.b16 %v3639, %v3639
      %v3656 = vpack.c.b16 %v3640, %v3640
      %v3657 = vpack.c.b16 %v3641, %v3641
      %v3658 = vpack.c.b16 %v3642, %v3642
      %v3659 = vpack.c.b16 %v3643, %v3643
      %v3660 = vpack.c.b16 %v3644, %v3644
      %v3661 = vpack.c.b16 %v3645, %v3645
      %v3662 = vpack.c.b16 %v3646, %v3646
      %v3663 = vpack.c.b16 %v3647, %v3647
      %v3664 = vpack.c.b16 %v3648, %v3648
      %vm3665 = vsmask.f32 4368
      %vm3666 = vmor %vm261, %vm3665
      %v3668 = vshrl.u32 %v3649, 16
      %v3670 = vrot.slane %v3668, 7
      %v3671 = vshll.u32 %v3649, 16
      %v3673 = vor.u32 %v3670, %v3671
      %v3674 = vrot.slane %v3670, 4
      %v3676 = vshrl.u32 %v3650, 16
      %v3678 = vrot.slane %v3676, 7
      %v3679 = vshll.u32 %v3650, 16
      %v3681 = vor.u32 %v3678, %v3679
      %v3682 = vsel %vm3666, %v3674, %v3681
      %v3683 = vrot.slane %v3678, 4
      %v3685 = vshrl.u32 %v3651, 16
      %v3687 = vrot.slane %v3685, 7
      %v3688 = vshll.u32 %v3651, 16
      %v3690 = vor.u32 %v3687, %v3688
      %v3691 = vrot.slane %v3687, 4
      %v3693 = vshrl.u32 %v3652, 16
      %v3695 = vrot.slane %v3693, 7
      %v3696 = vshll.u32 %v3652, 16
      %v3698 = vor.u32 %v3695, %v3696
      %v3699 = vsel %vm3666, %v3691, %v3698
      %v3700 = vrot.slane %v3695, 4
      %v3702 = vshrl.u32 %v3653, 16
      %v3704 = vrot.slane %v3702, 7
      %v3705 = vshll.u32 %v3653, 16
      %v3707 = vor.u32 %v3704, %v3705
      %v3708 = vrot.slane %v3704, 4
      %v3710 = vshrl.u32 %v3654, 16
      %v3712 = vrot.slane %v3710, 7
      %v3713 = vshll.u32 %v3654, 16
      %v3715 = vor.u32 %v3712, %v3713
      %v3716 = vsel %vm3666, %v3708, %v3715
      %v3717 = vrot.slane %v3712, 4
      %v3719 = vshrl.u32 %v3655, 16
      %v3721 = vrot.slane %v3719, 7
      %v3722 = vshll.u32 %v3655, 16
      %v3724 = vor.u32 %v3721, %v3722
      %v3725 = vrot.slane %v3721, 4
      %v3727 = vshrl.u32 %v3656, 16
      %v3729 = vrot.slane %v3727, 7
      %v3730 = vshll.u32 %v3656, 16
      %v3732 = vor.u32 %v3729, %v3730
      %v3733 = vsel %vm3666, %v3725, %v3732
      %v3734 = vrot.slane %v3729, 4
      %v3736 = vshrl.u32 %v3657, 16
      %v3738 = vrot.slane %v3736, 7
      %v3739 = vshll.u32 %v3657, 16
      %v3741 = vor.u32 %v3738, %v3739
      %v3742 = vrot.slane %v3738, 4
      %v3744 = vshrl.u32 %v3658, 16
      %v3746 = vrot.slane %v3744, 7
      %v3747 = vshll.u32 %v3658, 16
      %v3749 = vor.u32 %v3746, %v3747
      %v3750 = vsel %vm3666, %v3742, %v3749
      %v3751 = vrot.slane %v3746, 4
      %v3753 = vshrl.u32 %v3659, 16
      %v3755 = vrot.slane %v3753, 7
      %v3756 = vshll.u32 %v3659, 16
      %v3758 = vor.u32 %v3755, %v3756
      %v3759 = vrot.slane %v3755, 4
      %v3761 = vshrl.u32 %v3660, 16
      %v3763 = vrot.slane %v3761, 7
      %v3764 = vshll.u32 %v3660, 16
      %v3766 = vor.u32 %v3763, %v3764
      %v3767 = vsel %vm3666, %v3759, %v3766
      %v3768 = vrot.slane %v3763, 4
      %v3770 = vshrl.u32 %v3661, 16
      %v3772 = vrot.slane %v3770, 7
      %v3773 = vshll.u32 %v3661, 16
      %v3775 = vor.u32 %v3772, %v3773
      %v3776 = vrot.slane %v3772, 4
      %v3778 = vshrl.u32 %v3662, 16
      %v3780 = vrot.slane %v3778, 7
      %v3781 = vshll.u32 %v3662, 16
      %v3783 = vor.u32 %v3780, %v3781
      %v3784 = vsel %vm3666, %v3776, %v3783
      %v3785 = vrot.slane %v3780, 4
      %v3787 = vshrl.u32 %v3663, 16
      %v3789 = vrot.slane %v3787, 7
      %v3790 = vshll.u32 %v3663, 16
      %v3792 = vor.u32 %v3789, %v3790
      %v3793 = vrot.slane %v3789, 4
      %v3795 = vshrl.u32 %v3664, 16
      %v3797 = vrot.slane %v3795, 7
      %v3798 = vshll.u32 %v3664, 16
      %v3800 = vor.u32 %v3797, %v3798
      %v3801 = vsel %vm3666, %v3793, %v3800
      %v3802 = vrot.slane %v3797, 4
      %s3827 = scalar_lea.vmem [#allocation2], 108
      %vm3828 = vcmask 519168
      %vm3829 = vmand %vm3828, %vm317
      %v3830 = vld [vmem:[%s3827] sm:$0xf]
      %v3831 = vsel %vm3829, %v3673, %v3830
      %3832 = vst [vmem:[%s3827] sm:$0xf] %v3831
      %3833 = vst.msk [vmem:[%s3827 + $0x4] sm:$0xf] %vm251, %v3682
      %v3834 = vld [vmem:[%s3827 + $0x8] sm:$0x1]
      %v3835 = vsel %vm262, %v3683, %v3834
      %3836 = vst [vmem:[%s3827 + $0x8] sm:$0x1] %v3835
      %v3837 = vld [vmem:[%s3827 + $0xc] sm:$0xf]
      %v3838 = vsel %vm3829, %v3690, %v3837
      %3839 = vst [vmem:[%s3827 + $0xc] sm:$0xf] %v3838
      %3840 = vst.msk [vmem:[%s3827 + $0x10] sm:$0xf] %vm251, %v3699
      %v3841 = vld [vmem:[%s3827 + $0x14] sm:$0x1]
      %v3842 = vsel %vm262, %v3700, %v3841
      %3843 = vst [vmem:[%s3827 + $0x14] sm:$0x1] %v3842
      %v3844 = vld [vmem:[%s3827 + $0x18] sm:$0xf]
      %v3845 = vsel %vm3829, %v3707, %v3844
      %3846 = vst [vmem:[%s3827 + $0x18] sm:$0xf] %v3845
      %3847 = vst.msk [vmem:[%s3827 + $0x1c] sm:$0xf] %vm251, %v3716
      %v3848 = vld [vmem:[%s3827 + $0x20] sm:$0x1]
      %v3849 = vsel %vm262, %v3717, %v3848
      %3850 = vst [vmem:[%s3827 + $0x20] sm:$0x1] %v3849
      %v3851 = vld [vmem:[%s3827 + $0x24] sm:$0xf]
      %v3852 = vsel %vm3829, %v3724, %v3851
      %3853 = vst [vmem:[%s3827 + $0x24] sm:$0xf] %v3852
      %3854 = vst.msk [vmem:[%s3827 + $0x28] sm:$0xf] %vm251, %v3733
      %v3855 = vld [vmem:[%s3827 + $0x2c] sm:$0x1]
      %v3856 = vsel %vm262, %v3734, %v3855
      %3857 = vst [vmem:[%s3827 + $0x2c] sm:$0x1] %v3856
      %v3858 = vld [vmem:[%s3827 + $0x30] sm:$0xf]
      %v3859 = vsel %vm3829, %v3741, %v3858
      %3860 = vst [vmem:[%s3827 + $0x30] sm:$0xf] %v3859
      %3861 = vst.msk [vmem:[%s3827 + $0x34] sm:$0xf] %vm251, %v3750
      %v3862 = vld [vmem:[%s3827 + $0x38] sm:$0x1]
      %v3863 = vsel %vm262, %v3751, %v3862
      %3864 = vst [vmem:[%s3827 + $0x38] sm:$0x1] %v3863
      %v3865 = vld [vmem:[%s3827 + $0x3c] sm:$0xf]
      %v3866 = vsel %vm3829, %v3758, %v3865
      %3867 = vst [vmem:[%s3827 + $0x3c] sm:$0xf] %v3866
      %3868 = vst.msk [vmem:[%s3827 + $0x40] sm:$0xf] %vm251, %v3767
      %v3869 = vld [vmem:[%s3827 + $0x44] sm:$0x1]
      %v3870 = vsel %vm262, %v3768, %v3869
      %3871 = vst [vmem:[%s3827 + $0x44] sm:$0x1] %v3870
      %v3872 = vld [vmem:[%s3827 + $0x48] sm:$0xf]
      %v3873 = vsel %vm3829, %v3775, %v3872
      %3874 = vst [vmem:[%s3827 + $0x48] sm:$0xf] %v3873
      %3875 = vst.msk [vmem:[%s3827 + $0x4c] sm:$0xf] %vm251, %v3784
      %v3876 = vld [vmem:[%s3827 + $0x50] sm:$0x1]
      %v3877 = vsel %vm262, %v3785, %v3876
      %3878 = vst [vmem:[%s3827 + $0x50] sm:$0x1] %v3877
      %v3879 = vld [vmem:[%s3827 + $0x54] sm:$0xf]
      %v3880 = vsel %vm3829, %v3792, %v3879
      %3881 = vst [vmem:[%s3827 + $0x54] sm:$0xf] %v3880
      %3882 = vst.msk [vmem:[%s3827 + $0x58] sm:$0xf] %vm251, %v3801
      %v3883 = vld [vmem:[%s3827 + $0x5c] sm:$0x1]
      %v3884 = vsel %vm262, %v3802, %v3883
      %3885 = vst [vmem:[%s3827 + $0x5c] sm:$0x1] %v3884
      loop: start=0, step=1, limit=3
      $region63: #{dncnn_resnet_forward.1} parent=43 // loop_pre_header
        _
      $region64: #{dncnn_resnet_forward.1} parent=43 // loop_header
        %s3887 = sphi 0, %s3891
        %p3888 = scmp.ge.s32.totalorder %s3887, 3
      $region65: #{dncnn_resnet_forward.1} parent=43 // loop_header_branch
        %3890 = sbr.rel (%p3888) target = $region69
      $region66: #{dncnn_resnet_forward.1} parent=43 // loop_body
        %s3892 = smul.u32 %s3887, 72
        %s3893 = smul.addr %s3892, 4
        %s3894 = scalar_lea.vmem %s2, %s3893
        %v3895 = vld [vmem:[%s3894] sm:$0xf]
        %v3896 = vld [vmem:[%s3894 + $0x4] sm:$0xf]
        %v3897 = vld [vmem:[%s3894 + $0x8] sm:$0xf]
        %v3898 = vld [vmem:[%s3894 + $0xc] sm:$0xf]
        %v3899 = vld [vmem:[%s3894 + $0x10] sm:$0xf]
        %v3900 = vld [vmem:[%s3894 + $0x14] sm:$0xf]
        %v3901 = vld [vmem:[%s3894 + $0x18] sm:$0xf]
        %v3902 = vld [vmem:[%s3894 + $0x1c] sm:$0xf]
        %v3903 = vld [vmem:[%s3894 + $0x20] sm:$0xf]
        %v3904 = vld [vmem:[%s3894 + $0x24] sm:$0xf]
        %v3905 = vld [vmem:[%s3894 + $0x28] sm:$0xf]
        %v3906 = vld [vmem:[%s3894 + $0x2c] sm:$0xf]
        %v3907 = vld [vmem:[%s3894 + $0x30] sm:$0xf]
        %v3908 = vld [vmem:[%s3894 + $0x34] sm:$0xf]
        %v3909 = vld [vmem:[%s3894 + $0x38] sm:$0xf]
        %v3910 = vld [vmem:[%s3894 + $0x3c] sm:$0xf]
        %v3911 = vld [vmem:[%s3894 + $0x40] sm:$0xf]
        %v3912 = vld [vmem:[%s3894 + $0x44] sm:$0xf]
        %v3913 = vld [vmem:[%s3894 + $0x48] sm:$0xf]
        %v3914 = vld [vmem:[%s3894 + $0x4c] sm:$0xf]
        %v3915 = vld [vmem:[%s3894 + $0x50] sm:$0xf]
        %v3916 = vld [vmem:[%s3894 + $0x54] sm:$0xf]
        %v3917 = vld [vmem:[%s3894 + $0x58] sm:$0xf]
        %v3918 = vld [vmem:[%s3894 + $0x5c] sm:$0xf]
        %v3919 = vld [vmem:[%s3894 + $0x60] sm:$0xf]
        %v3920 = vld [vmem:[%s3894 + $0x64] sm:$0xf]
        %v3921 = vld [vmem:[%s3894 + $0x68] sm:$0xf]
        %v3922 = vld [vmem:[%s3894 + $0x6c] sm:$0xf]
        %v3923 = vld [vmem:[%s3894 + $0x70] sm:$0xf]
        %v3924 = vld [vmem:[%s3894 + $0x74] sm:$0xf]
        %v3925 = vld [vmem:[%s3894 + $0x78] sm:$0xf]
        %v3926 = vld [vmem:[%s3894 + $0x7c] sm:$0xf]
        %v3927 = vld [vmem:[%s3894 + $0x80] sm:$0xf]
        %v3928 = vld [vmem:[%s3894 + $0x84] sm:$0xf]
        %v3929 = vld [vmem:[%s3894 + $0x88] sm:$0xf]
        %v3930 = vld [vmem:[%s3894 + $0x8c] sm:$0xf]
        %v3931 = vld [vmem:[%s3894 + $0x90] sm:$0xf]
        %v3932 = vld [vmem:[%s3894 + $0x94] sm:$0xf]
        %v3933 = vld [vmem:[%s3894 + $0x98] sm:$0xf]
        %v3934 = vld [vmem:[%s3894 + $0x9c] sm:$0xf]
        %v3935 = vld [vmem:[%s3894 + $0xa0] sm:$0xf]
        %v3936 = vld [vmem:[%s3894 + $0xa4] sm:$0xf]
        %v3937 = vld [vmem:[%s3894 + $0xa8] sm:$0xf]
        %v3938 = vld [vmem:[%s3894 + $0xac] sm:$0xf]
        %v3939 = vld [vmem:[%s3894 + $0xb0] sm:$0xf]
        %v3940 = vld [vmem:[%s3894 + $0xb4] sm:$0xf]
        %v3941 = vld [vmem:[%s3894 + $0xb8] sm:$0xf]
        %v3942 = vld [vmem:[%s3894 + $0xbc] sm:$0xf]
        %v3943 = vld [vmem:[%s3894 + $0xc0] sm:$0xf]
        %v3944 = vld [vmem:[%s3894 + $0xc4] sm:$0xf]
        %v3945 = vld [vmem:[%s3894 + $0xc8] sm:$0xf]
        %v3946 = vld [vmem:[%s3894 + $0xcc] sm:$0xf]
        %v3947 = vld [vmem:[%s3894 + $0xd0] sm:$0xf]
        %v3948 = vld [vmem:[%s3894 + $0xd4] sm:$0xf]
        %v3949 = vld [vmem:[%s3894 + $0xd8] sm:$0xf]
        %v3950 = vld [vmem:[%s3894 + $0xdc] sm:$0xf]
        %v3951 = vld [vmem:[%s3894 + $0xe0] sm:$0xf]
        %v3952 = vld [vmem:[%s3894 + $0xe4] sm:$0xf]
        %v3953 = vld [vmem:[%s3894 + $0xe8] sm:$0xf]
        %v3954 = vld [vmem:[%s3894 + $0xec] sm:$0xf]
        %v3955 = vld [vmem:[%s3894 + $0xf0] sm:$0xf]
        %v3956 = vld [vmem:[%s3894 + $0xf4] sm:$0xf]
        %v3957 = vld [vmem:[%s3894 + $0xf8] sm:$0xf]
        %v3958 = vld [vmem:[%s3894 + $0xfc] sm:$0xf]
        %v3959 = vld [vmem:[%s3894 + $0x100] sm:$0xf]
        %v3960 = vld [vmem:[%s3894 + $0x104] sm:$0xf]
        %v3961 = vld [vmem:[%s3894 + $0x108] sm:$0xf]
        %v3962 = vld [vmem:[%s3894 + $0x10c] sm:$0xf]
        %v3963 = vld [vmem:[%s3894 + $0x110] sm:$0xf]
        %v3964 = vld [vmem:[%s3894 + $0x114] sm:$0xf]
        %v3965 = vld [vmem:[%s3894 + $0x118] sm:$0xf]
        %v3966 = vld [vmem:[%s3894 + $0x11c] sm:$0xf]
        %v4039 = vunpack.c.l.b16 %v3895
        %v4040 = vunpack.c.l.b16 %v3896
        %v4041 = vunpack.c.l.b16 %v3897
        %v4042 = vunpack.c.l.b16 %v3898
        %v4043 = vunpack.c.l.b16 %v3899
        %v4044 = vunpack.c.l.b16 %v3900
        %v4045 = vunpack.c.l.b16 %v3901
        %v4046 = vunpack.c.l.b16 %v3902
        %v4047 = vunpack.c.l.b16 %v3903
        %v4048 = vunpack.c.l.b16 %v3904
        %v4049 = vunpack.c.l.b16 %v3905
        %v4050 = vunpack.c.l.b16 %v3906
        %v4051 = vunpack.c.l.b16 %v3907
        %v4052 = vunpack.c.l.b16 %v3908
        %v4053 = vunpack.c.l.b16 %v3909
        %v4054 = vunpack.c.l.b16 %v3910
        %v4055 = vunpack.c.l.b16 %v3911
        %v4056 = vunpack.c.l.b16 %v3912
        %v4057 = vunpack.c.l.b16 %v3913
        %v4058 = vunpack.c.l.b16 %v3914
        %v4059 = vunpack.c.l.b16 %v3915
        %v4060 = vunpack.c.l.b16 %v3916
        %v4061 = vunpack.c.l.b16 %v3917
        %v4062 = vunpack.c.l.b16 %v3918
        %v4063 = vunpack.c.l.b16 %v3919
        %v4064 = vunpack.c.l.b16 %v3920
        %v4065 = vunpack.c.l.b16 %v3921
        %v4066 = vunpack.c.l.b16 %v3922
        %v4067 = vunpack.c.l.b16 %v3923
        %v4068 = vunpack.c.l.b16 %v3924
        %v4069 = vunpack.c.l.b16 %v3925
        %v4070 = vunpack.c.l.b16 %v3926
        %v4071 = vunpack.c.l.b16 %v3927
        %v4072 = vunpack.c.l.b16 %v3928
        %v4073 = vunpack.c.l.b16 %v3929
        %v4074 = vunpack.c.l.b16 %v3930
        %v4075 = vunpack.c.l.b16 %v3931
        %v4076 = vunpack.c.l.b16 %v3932
        %v4077 = vunpack.c.l.b16 %v3933
        %v4078 = vunpack.c.l.b16 %v3934
        %v4079 = vunpack.c.l.b16 %v3935
        %v4080 = vunpack.c.l.b16 %v3936
        %v4081 = vunpack.c.l.b16 %v3937
        %v4082 = vunpack.c.l.b16 %v3938
        %v4083 = vunpack.c.l.b16 %v3939
        %v4084 = vunpack.c.l.b16 %v3940
        %v4085 = vunpack.c.l.b16 %v3941
        %v4086 = vunpack.c.l.b16 %v3942
        %v4087 = vunpack.c.l.b16 %v3943
        %v4088 = vunpack.c.l.b16 %v3944
        %v4089 = vunpack.c.l.b16 %v3945
        %v4090 = vunpack.c.l.b16 %v3946
        %v4091 = vunpack.c.l.b16 %v3947
        %v4092 = vunpack.c.l.b16 %v3948
        %v4093 = vunpack.c.l.b16 %v3949
        %v4094 = vunpack.c.l.b16 %v3950
        %v4095 = vunpack.c.l.b16 %v3951
        %v4096 = vunpack.c.l.b16 %v3952
        %v4097 = vunpack.c.l.b16 %v3953
        %v4098 = vunpack.c.l.b16 %v3954
        %v4099 = vunpack.c.l.b16 %v3955
        %v4100 = vunpack.c.l.b16 %v3956
        %v4101 = vunpack.c.l.b16 %v3957
        %v4102 = vunpack.c.l.b16 %v3958
        %v4103 = vunpack.c.l.b16 %v3959
        %v4104 = vunpack.c.l.b16 %v3960
        %v4105 = vunpack.c.l.b16 %v3961
        %v4106 = vunpack.c.l.b16 %v3962
        %v4107 = vunpack.c.l.b16 %v3963
        %v4108 = vunpack.c.l.b16 %v3964
        %v4109 = vunpack.c.l.b16 %v3965
        %v4110 = vunpack.c.l.b16 %v3966
        %v4111 = vpack.c.b16 %v4040, %v4039
        %v4112 = vpack.c.b16 %v4042, %v4041
        %v4113 = vpack.c.b16 %v4044, %v4043
        %v4114 = vpack.c.b16 %v4046, %v4045
        %v4115 = vpack.c.b16 %v4048, %v4047
        %v4116 = vpack.c.b16 %v4050, %v4049
        %v4117 = vpack.c.b16 %v4052, %v4051
        %v4118 = vpack.c.b16 %v4054, %v4053
        %v4119 = vpack.c.b16 %v4056, %v4055
        %v4120 = vpack.c.b16 %v4058, %v4057
        %v4121 = vpack.c.b16 %v4060, %v4059
        %v4122 = vpack.c.b16 %v4062, %v4061
        %v4123 = vpack.c.b16 %v4064, %v4063
        %v4124 = vpack.c.b16 %v4066, %v4065
        %v4125 = vpack.c.b16 %v4068, %v4067
        %v4126 = vpack.c.b16 %v4070, %v4069
        %v4127 = vpack.c.b16 %v4072, %v4071
        %v4128 = vpack.c.b16 %v4074, %v4073
        %v4129 = vpack.c.b16 %v4076, %v4075
        %v4130 = vpack.c.b16 %v4078, %v4077
        %v4131 = vpack.c.b16 %v4080, %v4079
        %v4132 = vpack.c.b16 %v4082, %v4081
        %v4133 = vpack.c.b16 %v4084, %v4083
        %v4134 = vpack.c.b16 %v4086, %v4085
        %v4135 = vpack.c.b16 %v4088, %v4087
        %v4136 = vpack.c.b16 %v4090, %v4089
        %v4137 = vpack.c.b16 %v4092, %v4091
        %v4138 = vpack.c.b16 %v4094, %v4093
        %v4139 = vpack.c.b16 %v4096, %v4095
        %v4140 = vpack.c.b16 %v4098, %v4097
        %v4141 = vpack.c.b16 %v4100, %v4099
        %v4142 = vpack.c.b16 %v4102, %v4101
        %v4143 = vpack.c.b16 %v4104, %v4103
        %v4144 = vpack.c.b16 %v4106, %v4105
        %v4145 = vpack.c.b16 %v4108, %v4107
        %v4146 = vpack.c.b16 %v4110, %v4109
        %4183 = vst.msk [vmem:[#allocation5] sm:$0xff] %vm1049, %v4111
        %4184 = vst.msk [vmem:[#allocation5 + $0x8] sm:$0xff] %vm1049, %v4112
        %4185 = vst.msk [vmem:[#allocation5 + $0x10] sm:$0xff] %vm1049, %v4113
        %4186 = vst.msk [vmem:[#allocation5 + $0x18] sm:$0xff] %vm1049, %v4114
        %4187 = vst.msk [vmem:[#allocation5 + $0x20] sm:$0xff] %vm1049, %v4115
        %4188 = vst.msk [vmem:[#allocation5 + $0x28] sm:$0xff] %vm1049, %v4116
        %4189 = vst.msk [vmem:[#allocation5 + $0x30] sm:$0xff] %vm1049, %v4117
        %4190 = vst.msk [vmem:[#allocation5 + $0x38] sm:$0xff] %vm1049, %v4118
        %4191 = vst.msk [vmem:[#allocation5 + $0x40] sm:$0xff] %vm1049, %v4119
        %4192 = vst.msk [vmem:[#allocation5 + $0x48] sm:$0xff] %vm1049, %v4120
        %4193 = vst.msk [vmem:[#allocation5 + $0x50] sm:$0xff] %vm1049, %v4121
        %4194 = vst.msk [vmem:[#allocation5 + $0x58] sm:$0xff] %vm1049, %v4122
        %4195 = vst.msk [vmem:[#allocation5 + $0x60] sm:$0xff] %vm1049, %v4123
        %4196 = vst.msk [vmem:[#allocation5 + $0x68] sm:$0xff] %vm1049, %v4124
        %4197 = vst.msk [vmem:[#allocation5 + $0x70] sm:$0xff] %vm1049, %v4125
        %4198 = vst.msk [vmem:[#allocation5 + $0x78] sm:$0xff] %vm1049, %v4126
        %4199 = vst.msk [vmem:[#allocation5 + $0x80] sm:$0xff] %vm1049, %v4127
        %4200 = vst.msk [vmem:[#allocation5 + $0x88] sm:$0xff] %vm1049, %v4128
        %4201 = vst.msk [vmem:[#allocation5 + $0x90] sm:$0xff] %vm1049, %v4129
        %4202 = vst.msk [vmem:[#allocation5 + $0x98] sm:$0xff] %vm1049, %v4130
        %4203 = vst.msk [vmem:[#allocation5 + $0xa0] sm:$0xff] %vm1049, %v4131
        %4204 = vst.msk [vmem:[#allocation5 + $0xa8] sm:$0xff] %vm1049, %v4132
        %4205 = vst.msk [vmem:[#allocation5 + $0xb0] sm:$0xff] %vm1049, %v4133
        %4206 = vst.msk [vmem:[#allocation5 + $0xb8] sm:$0xff] %vm1049, %v4134
        %4207 = vst.msk [vmem:[#allocation5 + $0xc0] sm:$0xff] %vm1049, %v4135
        %4208 = vst.msk [vmem:[#allocation5 + $0xc8] sm:$0xff] %vm1049, %v4136
        %4209 = vst.msk [vmem:[#allocation5 + $0xd0] sm:$0xff] %vm1049, %v4137
        %4210 = vst.msk [vmem:[#allocation5 + $0xd8] sm:$0xff] %vm1049, %v4138
        %4211 = vst.msk [vmem:[#allocation5 + $0xe0] sm:$0xff] %vm1049, %v4139
        %4212 = vst.msk [vmem:[#allocation5 + $0xe8] sm:$0xff] %vm1049, %v4140
        %4213 = vst.msk [vmem:[#allocation5 + $0xf0] sm:$0xff] %vm1049, %v4141
        %4214 = vst.msk [vmem:[#allocation5 + $0xf8] sm:$0xff] %vm1049, %v4142
        %4215 = vst.msk [vmem:[#allocation5 + $0x100] sm:$0xff] %vm1049, %v4143
        %4216 = vst.msk [vmem:[#allocation5 + $0x108] sm:$0xff] %vm1049, %v4144
        %4217 = vst.msk [vmem:[#allocation5 + $0x110] sm:$0xff] %vm1049, %v4145
        %4218 = vst.msk [vmem:[#allocation5 + $0x118] sm:$0xff] %vm1049, %v4146
        %s4219 = scalar_lea.vmem %s3, %s3887
        %v4220 = vld [vmem:[%s4219] sm:$0x1]
        %s4221 = scalar_lea.vmem %s4, %s3887
        %v4222 = vld [vmem:[%s4221] sm:$0x1]
        loop: start=0, step=1, limit=2
        $region70: #{dncnn_resnet_forward.1} parent=66 // loop_pre_header
          _
        $region71: #{dncnn_resnet_forward.1} parent=66 // loop_header
          %s4224 = sphi 0, %s4228
          %p4225 = scmp.ge.s32.totalorder %s4224, 2
        $region72: #{dncnn_resnet_forward.1} parent=66 // loop_header_branch
          %4227 = sbr.rel (%p4225) target = $region76
        $region73: #{dncnn_resnet_forward.1} parent=66 // loop_body
          %s4229 = smul.u32 %s4224, 8
          %s4230 = smul.u32 %s4229, 3
          %s4231 = smul.addr %s4230, 4
          %s4232 = scalar_lea.vmem [#allocation2], %s4231
          %v4233 = vld [vmem:[%s4232] sm:$0xf]
          %v4234 = vld [vmem:[%s4232 + $0x4] sm:$0xf]
          %v4235 = vld [vmem:[%s4232 + $0xc] sm:$0xf]
          %v4236 = vld [vmem:[%s4232 + $0x10] sm:$0xf]
          %v4237 = vld [vmem:[%s4232 + $0x18] sm:$0xf]
          %v4238 = vld [vmem:[%s4232 + $0x1c] sm:$0xf]
          %v4239 = vld [vmem:[%s4232 + $0x24] sm:$0xf]
          %v4240 = vld [vmem:[%s4232 + $0x28] sm:$0xf]
          %v4241 = vld [vmem:[%s4232 + $0x30] sm:$0xf]
          %v4242 = vld [vmem:[%s4232 + $0x34] sm:$0xf]
          %v4243 = vld [vmem:[%s4232 + $0x3c] sm:$0xf]
          %v4244 = vld [vmem:[%s4232 + $0x40] sm:$0xf]
          %v4245 = vld [vmem:[%s4232 + $0x48] sm:$0xf]
          %v4246 = vld [vmem:[%s4232 + $0x4c] sm:$0xf]
          %v4247 = vld [vmem:[%s4232 + $0x54] sm:$0xf]
          %v4248 = vld [vmem:[%s4232 + $0x58] sm:$0xf]
          %v4249 = vld [vmem:[%s4232 + $0x8] sm:$0x1]
          %v4250 = vld [vmem:[%s4232 + $0x14] sm:$0x1]
          %v4251 = vld [vmem:[%s4232 + $0x20] sm:$0x1]
          %v4252 = vld [vmem:[%s4232 + $0x2c] sm:$0x1]
          %v4253 = vld [vmem:[%s4232 + $0x38] sm:$0x1]
          %v4254 = vld [vmem:[%s4232 + $0x44] sm:$0x1]
          %v4255 = vld [vmem:[%s4232 + $0x50] sm:$0x1]
          %v4256 = vld [vmem:[%s4232 + $0x5c] sm:$0x1]
          %vm4257 = vsmask.f32 3328
          %vm4258 = vsmask.f32 7440
          %vm4259 = vmor %vm4257, %vm4258
          %v4261 = vshrl.u32 %v4233, 16
          %v4263 = vrot.slane %v4261, 4
          %v4264 = vshll.u32 %v4233, 16
          %v4266 = vrot.slane %v4264, 5
          %v4267 = vor.u32 %v4263, %v4266
          %v4268 = vrot.slane %v4267, 4
          %v4270 = vshll.u32 %v4234, 16
          %v4272 = vrot.slane %v4270, 5
          %v4273 = vsel %vm4259, %v4268, %v4272
          %v4274 = vshrl.u32 %v4234, 16
          %v4276 = vrot.slane %v4274, 4
          %v4277 = vor.u32 %v4276, %v4272
          %v4278 = vrot.slane %v4277, 4
          %v4280 = vshll.u32 %v4249, 16
          %v4282 = vrot.slane %v4280, 5
          %v4283 = vsel %vm4259, %v4278, %v4282
          %v4285 = vshrl.u32 %v4235, 16
          %v4287 = vrot.slane %v4285, 4
          %v4288 = vshll.u32 %v4235, 16
          %v4290 = vrot.slane %v4288, 5
          %v4291 = vor.u32 %v4287, %v4290
          %v4292 = vrot.slane %v4291, 4
          %v4294 = vshll.u32 %v4236, 16
          %v4296 = vrot.slane %v4294, 5
          %v4297 = vsel %vm4259, %v4292, %v4296
          %v4298 = vshrl.u32 %v4236, 16
          %v4300 = vrot.slane %v4298, 4
          %v4301 = vor.u32 %v4300, %v4296
          %v4302 = vrot.slane %v4301, 4
          %v4304 = vshll.u32 %v4250, 16
          %v4306 = vrot.slane %v4304, 5
          %v4307 = vsel %vm4259, %v4302, %v4306
          %v4309 = vshrl.u32 %v4237, 16
          %v4311 = vrot.slane %v4309, 4
          %v4312 = vshll.u32 %v4237, 16
          %v4314 = vrot.slane %v4312, 5
          %v4315 = vor.u32 %v4311, %v4314
          %v4316 = vrot.slane %v4315, 4
          %v4318 = vshll.u32 %v4238, 16
          %v4320 = vrot.slane %v4318, 5
          %v4321 = vsel %vm4259, %v4316, %v4320
          %v4322 = vshrl.u32 %v4238, 16
          %v4324 = vrot.slane %v4322, 4
          %v4325 = vor.u32 %v4324, %v4320
          %v4326 = vrot.slane %v4325, 4
          %v4328 = vshll.u32 %v4251, 16
          %v4330 = vrot.slane %v4328, 5
          %v4331 = vsel %vm4259, %v4326, %v4330
          %v4333 = vshrl.u32 %v4239, 16
          %v4335 = vrot.slane %v4333, 4
          %v4336 = vshll.u32 %v4239, 16
          %v4338 = vrot.slane %v4336, 5
          %v4339 = vor.u32 %v4335, %v4338
          %v4340 = vrot.slane %v4339, 4
          %v4342 = vshll.u32 %v4240, 16
          %v4344 = vrot.slane %v4342, 5
          %v4345 = vsel %vm4259, %v4340, %v4344
          %v4346 = vshrl.u32 %v4240, 16
          %v4348 = vrot.slane %v4346, 4
          %v4349 = vor.u32 %v4348, %v4344
          %v4350 = vrot.slane %v4349, 4
          %v4352 = vshll.u32 %v4252, 16
          %v4354 = vrot.slane %v4352, 5
          %v4355 = vsel %vm4259, %v4350, %v4354
          %v4357 = vshrl.u32 %v4241, 16
          %v4359 = vrot.slane %v4357, 4
          %v4360 = vshll.u32 %v4241, 16
          %v4362 = vrot.slane %v4360, 5
          %v4363 = vor.u32 %v4359, %v4362
          %v4364 = vrot.slane %v4363, 4
          %v4366 = vshll.u32 %v4242, 16
          %v4368 = vrot.slane %v4366, 5
          %v4369 = vsel %vm4259, %v4364, %v4368
          %v4370 = vshrl.u32 %v4242, 16
          %v4372 = vrot.slane %v4370, 4
          %v4373 = vor.u32 %v4372, %v4368
          %v4374 = vrot.slane %v4373, 4
          %v4376 = vshll.u32 %v4253, 16
          %v4378 = vrot.slane %v4376, 5
          %v4379 = vsel %vm4259, %v4374, %v4378
          %v4381 = vshrl.u32 %v4243, 16
          %v4383 = vrot.slane %v4381, 4
          %v4384 = vshll.u32 %v4243, 16
          %v4386 = vrot.slane %v4384, 5
          %v4387 = vor.u32 %v4383, %v4386
          %v4388 = vrot.slane %v4387, 4
          %v4390 = vshll.u32 %v4244, 16
          %v4392 = vrot.slane %v4390, 5
          %v4393 = vsel %vm4259, %v4388, %v4392
          %v4394 = vshrl.u32 %v4244, 16
          %v4396 = vrot.slane %v4394, 4
          %v4397 = vor.u32 %v4396, %v4392
          %v4398 = vrot.slane %v4397, 4
          %v4400 = vshll.u32 %v4254, 16
          %v4402 = vrot.slane %v4400, 5
          %v4403 = vsel %vm4259, %v4398, %v4402
          %v4405 = vshrl.u32 %v4245, 16
          %v4407 = vrot.slane %v4405, 4
          %v4408 = vshll.u32 %v4245, 16
          %v4410 = vrot.slane %v4408, 5
          %v4411 = vor.u32 %v4407, %v4410
          %v4412 = vrot.slane %v4411, 4
          %v4414 = vshll.u32 %v4246, 16
          %v4416 = vrot.slane %v4414, 5
          %v4417 = vsel %vm4259, %v4412, %v4416
          %v4418 = vshrl.u32 %v4246, 16
          %v4420 = vrot.slane %v4418, 4
          %v4421 = vor.u32 %v4420, %v4416
          %v4422 = vrot.slane %v4421, 4
          %v4424 = vshll.u32 %v4255, 16
          %v4426 = vrot.slane %v4424, 5
          %v4427 = vsel %vm4259, %v4422, %v4426
          %v4429 = vshrl.u32 %v4247, 16
          %v4431 = vrot.slane %v4429, 4
          %v4432 = vshll.u32 %v4247, 16
          %v4434 = vrot.slane %v4432, 5
          %v4435 = vor.u32 %v4431, %v4434
          %v4436 = vrot.slane %v4435, 4
          %v4438 = vshll.u32 %v4248, 16
          %v4440 = vrot.slane %v4438, 5
          %v4441 = vsel %vm4259, %v4436, %v4440
          %v4442 = vshrl.u32 %v4248, 16
          %v4444 = vrot.slane %v4442, 4
          %v4445 = vor.u32 %v4444, %v4440
          %v4446 = vrot.slane %v4445, 4
          %v4448 = vshll.u32 %v4256, 16
          %v4450 = vrot.slane %v4448, 5
          %v4451 = vsel %vm4259, %v4446, %v4450
          %v4468 = vunpack.c.l.b16 %v4233
          %v4469 = vunpack.c.l.b16 %v4234
          %v4470 = vunpack.c.l.b16 %v4235
          %v4471 = vunpack.c.l.b16 %v4236
          %v4472 = vunpack.c.l.b16 %v4237
          %v4473 = vunpack.c.l.b16 %v4238
          %v4474 = vunpack.c.l.b16 %v4239
          %v4475 = vunpack.c.l.b16 %v4240
          %v4476 = vunpack.c.l.b16 %v4241
          %v4477 = vunpack.c.l.b16 %v4242
          %v4478 = vunpack.c.l.b16 %v4243
          %v4479 = vunpack.c.l.b16 %v4244
          %v4480 = vunpack.c.l.b16 %v4245
          %v4481 = vunpack.c.l.b16 %v4246
          %v4482 = vunpack.c.l.b16 %v4247
          %v4483 = vunpack.c.l.b16 %v4248
          %v4484 = vpack.c.b16 %v4469, %v4468
          %v4485 = vpack.c.b16 %v4471, %v4470
          %v4486 = vpack.c.b16 %v4473, %v4472
          %v4487 = vpack.c.b16 %v4475, %v4474
          %v4488 = vpack.c.b16 %v4477, %v4476
          %v4489 = vpack.c.b16 %v4479, %v4478
          %v4490 = vpack.c.b16 %v4481, %v4480
          %v4491 = vpack.c.b16 %v4483, %v4482
          %v4492 = vunpack.c.l.b16 %v4273
          %v4493 = vunpack.c.l.b16 %v4283
          %v4494 = vunpack.c.l.b16 %v4297
          %v4495 = vunpack.c.l.b16 %v4307
          %v4496 = vunpack.c.l.b16 %v4321
          %v4497 = vunpack.c.l.b16 %v4331
          %v4498 = vunpack.c.l.b16 %v4345
          %v4499 = vunpack.c.l.b16 %v4355
          %v4500 = vunpack.c.l.b16 %v4369
          %v4501 = vunpack.c.l.b16 %v4379
          %v4502 = vunpack.c.l.b16 %v4393
          %v4503 = vunpack.c.l.b16 %v4403
          %v4504 = vunpack.c.l.b16 %v4417
          %v4505 = vunpack.c.l.b16 %v4427
          %v4506 = vunpack.c.l.b16 %v4441
          %v4507 = vunpack.c.l.b16 %v4451
          %v4508 = vpack.c.b16 %v4493, %v4492
          %v4509 = vpack.c.b16 %v4495, %v4494
          %v4510 = vpack.c.b16 %v4497, %v4496
          %v4511 = vpack.c.b16 %v4499, %v4498
          %v4512 = vpack.c.b16 %v4501, %v4500
          %v4513 = vpack.c.b16 %v4503, %v4502
          %v4514 = vpack.c.b16 %v4505, %v4504
          %v4515 = vpack.c.b16 %v4507, %v4506
          %4516 = vrot.lane.b32.xlu0 %v4508, 64
          %v4517 = vpop.permute.xlu0 %4516
          %4518 = vrot.lane.b32.xlu0 %v4509, 64
          %v4519 = vpop.permute.xlu0 %4518
          %4520 = vrot.lane.b32.xlu0 %v4510, 64
          %v4521 = vpop.permute.xlu0 %4520
          %4522 = vrot.lane.b32.xlu0 %v4511, 64
          %v4523 = vpop.permute.xlu0 %4522
          %4524 = vrot.lane.b32.xlu0 %v4512, 64
          %v4525 = vpop.permute.xlu0 %4524
          %4526 = vrot.lane.b32.xlu0 %v4513, 64
          %v4527 = vpop.permute.xlu0 %4526
          %4528 = vrot.lane.b32.xlu0 %v4514, 64
          %v4529 = vpop.permute.xlu0 %4528
          %4530 = vrot.lane.b32.xlu0 %v4515, 64
          %v4531 = vpop.permute.xlu0 %4530
          %v4534 = vsel %vm1049, %v4484, %v4517
          %v4538 = vsel %vm1049, %v4485, %v4519
          %v4542 = vsel %vm1049, %v4486, %v4521
          %v4546 = vsel %vm1049, %v4487, %v4523
          %v4550 = vsel %vm1049, %v4488, %v4525
          %v4554 = vsel %vm1049, %v4489, %v4527
          %v4558 = vsel %vm1049, %v4490, %v4529
          %v4562 = vsel %vm1049, %v4491, %v4531
          %4564 = vst [vmem:[#allocation3] sm:$0xff] %v4534
          %4565 = vst [vmem:[#allocation3 + $0x28] sm:$0xff] %v4538
          %4566 = vst [vmem:[#allocation3 + $0x50] sm:$0xff] %v4542
          %4567 = vst [vmem:[#allocation3 + $0x78] sm:$0xff] %v4546
          %4568 = vst [vmem:[#allocation3 + $0xa0] sm:$0xff] %v4550
          %4569 = vst [vmem:[#allocation3 + $0xc8] sm:$0xff] %v4554
          %4570 = vst [vmem:[#allocation3 + $0xf0] sm:$0xff] %v4558
          %4571 = vst [vmem:[#allocation3 + $0x118] sm:$0xff] %v4562
          %v4572 = vld [vmem:[%s4232] sm:$0xe]
          %v4573 = vld [vmem:[%s4232 + $0x4] sm:$0xf]
          %v4574 = vld [vmem:[%s4232 + $0x8] sm:$0x1]
          %v4575 = vld [vmem:[%s4232 + $0xc] sm:$0xe]
          %v4576 = vld [vmem:[%s4232 + $0x10] sm:$0xf]
          %v4577 = vld [vmem:[%s4232 + $0x14] sm:$0x1]
          %v4578 = vld [vmem:[%s4232 + $0x18] sm:$0xe]
          %v4579 = vld [vmem:[%s4232 + $0x1c] sm:$0xf]
          %v4580 = vld [vmem:[%s4232 + $0x20] sm:$0x1]
          %v4581 = vld [vmem:[%s4232 + $0x24] sm:$0xe]
          %v4582 = vld [vmem:[%s4232 + $0x28] sm:$0xf]
          %v4583 = vld [vmem:[%s4232 + $0x2c] sm:$0x1]
          %v4584 = vld [vmem:[%s4232 + $0x30] sm:$0xe]
          %v4585 = vld [vmem:[%s4232 + $0x34] sm:$0xf]
          %v4586 = vld [vmem:[%s4232 + $0x38] sm:$0x1]
          %v4587 = vld [vmem:[%s4232 + $0x3c] sm:$0xe]
          %v4588 = vld [vmem:[%s4232 + $0x40] sm:$0xf]
          %v4589 = vld [vmem:[%s4232 + $0x44] sm:$0x1]
          %v4590 = vld [vmem:[%s4232 + $0x48] sm:$0xe]
          %v4591 = vld [vmem:[%s4232 + $0x4c] sm:$0xf]
          %v4592 = vld [vmem:[%s4232 + $0x50] sm:$0x1]
          %v4593 = vld [vmem:[%s4232 + $0x54] sm:$0xe]
          %v4594 = vld [vmem:[%s4232 + $0x58] sm:$0xf]
          %v4595 = vld [vmem:[%s4232 + $0x5c] sm:$0x1]
          %vm4620 = vcmask 1042432
          %vm4621 = vcmask 1046532
          %vm4622 = vmor %vm4620, %vm4621
          %v4623 = vrot.slane %v4572, 5
          %v4624 = vrot.slane %v4623, 4
          %v4625 = vrot.slane %v4573, 5
          %v4626 = vsel %vm4622, %v4624, %v4625
          %v4627 = vrot.slane %v4625, 4
          %v4628 = vrot.slane %v4574, 5
          %v4629 = vsel %vm4622, %v4627, %v4628
          %v4630 = vrot.slane %v4575, 5
          %v4631 = vrot.slane %v4630, 4
          %v4632 = vrot.slane %v4576, 5
          %v4633 = vsel %vm4622, %v4631, %v4632
          %v4634 = vrot.slane %v4632, 4
          %v4635 = vrot.slane %v4577, 5
          %v4636 = vsel %vm4622, %v4634, %v4635
          %v4637 = vrot.slane %v4578, 5
          %v4638 = vrot.slane %v4637, 4
          %v4639 = vrot.slane %v4579, 5
          %v4640 = vsel %vm4622, %v4638, %v4639
          %v4641 = vrot.slane %v4639, 4
          %v4642 = vrot.slane %v4580, 5
          %v4643 = vsel %vm4622, %v4641, %v4642
          %v4644 = vrot.slane %v4581, 5
          %v4645 = vrot.slane %v4644, 4
          %v4646 = vrot.slane %v4582, 5
          %v4647 = vsel %vm4622, %v4645, %v4646
          %v4648 = vrot.slane %v4646, 4
          %v4649 = vrot.slane %v4583, 5
          %v4650 = vsel %vm4622, %v4648, %v4649
          %v4651 = vrot.slane %v4584, 5
          %v4652 = vrot.slane %v4651, 4
          %v4653 = vrot.slane %v4585, 5
          %v4654 = vsel %vm4622, %v4652, %v4653
          %v4655 = vrot.slane %v4653, 4
          %v4656 = vrot.slane %v4586, 5
          %v4657 = vsel %vm4622, %v4655, %v4656
          %v4658 = vrot.slane %v4587, 5
          %v4659 = vrot.slane %v4658, 4
          %v4660 = vrot.slane %v4588, 5
          %v4661 = vsel %vm4622, %v4659, %v4660
          %v4662 = vrot.slane %v4660, 4
          %v4663 = vrot.slane %v4589, 5
          %v4664 = vsel %vm4622, %v4662, %v4663
          %v4665 = vrot.slane %v4590, 5
          %v4666 = vrot.slane %v4665, 4
          %v4667 = vrot.slane %v4591, 5
          %v4668 = vsel %vm4622, %v4666, %v4667
          %v4669 = vrot.slane %v4667, 4
          %v4670 = vrot.slane %v4592, 5
          %v4671 = vsel %vm4622, %v4669, %v4670
          %v4672 = vrot.slane %v4593, 5
          %v4673 = vrot.slane %v4672, 4
          %v4674 = vrot.slane %v4594, 5
          %v4675 = vsel %vm4622, %v4673, %v4674
          %v4676 = vrot.slane %v4674, 4
          %v4677 = vrot.slane %v4595, 5
          %v4678 = vsel %vm4622, %v4676, %v4677
          %s4679 = sadd.s32 %s4229, 1
          %s4680 = smul.u32 %s4679, 3
          %s4681 = smul.addr %s4680, 4
          %s4682 = scalar_lea.vmem [#allocation2], %s4681
          %v4683 = vld [vmem:[%s4682] sm:$0xf]
          %v4684 = vld [vmem:[%s4682 + $0x4] sm:$0xf]
          %v4685 = vld [vmem:[%s4682 + $0xc] sm:$0xf]
          %v4686 = vld [vmem:[%s4682 + $0x10] sm:$0xf]
          %v4687 = vld [vmem:[%s4682 + $0x18] sm:$0xf]
          %v4688 = vld [vmem:[%s4682 + $0x1c] sm:$0xf]
          %v4689 = vld [vmem:[%s4682 + $0x24] sm:$0xf]
          %v4690 = vld [vmem:[%s4682 + $0x28] sm:$0xf]
          %v4691 = vld [vmem:[%s4682 + $0x30] sm:$0xf]
          %v4692 = vld [vmem:[%s4682 + $0x34] sm:$0xf]
          %v4693 = vld [vmem:[%s4682 + $0x3c] sm:$0xf]
          %v4694 = vld [vmem:[%s4682 + $0x40] sm:$0xf]
          %v4695 = vld [vmem:[%s4682 + $0x48] sm:$0xf]
          %v4696 = vld [vmem:[%s4682 + $0x4c] sm:$0xf]
          %v4697 = vld [vmem:[%s4682 + $0x54] sm:$0xf]
          %v4698 = vld [vmem:[%s4682 + $0x58] sm:$0xf]
          %v4699 = vunpack.c.l.b16 %v4626
          %v4700 = vunpack.c.l.b16 %v4629
          %v4701 = vunpack.c.l.b16 %v4633
          %v4702 = vunpack.c.l.b16 %v4636
          %v4703 = vunpack.c.l.b16 %v4640
          %v4704 = vunpack.c.l.b16 %v4643
          %v4705 = vunpack.c.l.b16 %v4647
          %v4706 = vunpack.c.l.b16 %v4650
          %v4707 = vunpack.c.l.b16 %v4654
          %v4708 = vunpack.c.l.b16 %v4657
          %v4709 = vunpack.c.l.b16 %v4661
          %v4710 = vunpack.c.l.b16 %v4664
          %v4711 = vunpack.c.l.b16 %v4668
          %v4712 = vunpack.c.l.b16 %v4671
          %v4713 = vunpack.c.l.b16 %v4675
          %v4714 = vunpack.c.l.b16 %v4678
          %v4715 = vpack.c.b16 %v4700, %v4699
          %v4716 = vpack.c.b16 %v4702, %v4701
          %v4717 = vpack.c.b16 %v4704, %v4703
          %v4718 = vpack.c.b16 %v4706, %v4705
          %v4719 = vpack.c.b16 %v4708, %v4707
          %v4720 = vpack.c.b16 %v4710, %v4709
          %v4721 = vpack.c.b16 %v4712, %v4711
          %v4722 = vpack.c.b16 %v4714, %v4713
          %v4739 = vunpack.c.l.b16 %v4683
          %v4740 = vunpack.c.l.b16 %v4684
          %v4741 = vunpack.c.l.b16 %v4685
          %v4742 = vunpack.c.l.b16 %v4686
          %v4743 = vunpack.c.l.b16 %v4687
          %v4744 = vunpack.c.l.b16 %v4688
          %v4745 = vunpack.c.l.b16 %v4689
          %v4746 = vunpack.c.l.b16 %v4690
          %v4747 = vunpack.c.l.b16 %v4691
          %v4748 = vunpack.c.l.b16 %v4692
          %v4749 = vunpack.c.l.b16 %v4693
          %v4750 = vunpack.c.l.b16 %v4694
          %v4751 = vunpack.c.l.b16 %v4695
          %v4752 = vunpack.c.l.b16 %v4696
          %v4753 = vunpack.c.l.b16 %v4697
          %v4754 = vunpack.c.l.b16 %v4698
          %v4755 = vpack.c.b16 %v4740, %v4739
          %v4756 = vpack.c.b16 %v4742, %v4741
          %v4757 = vpack.c.b16 %v4744, %v4743
          %v4758 = vpack.c.b16 %v4746, %v4745
          %v4759 = vpack.c.b16 %v4748, %v4747
          %v4760 = vpack.c.b16 %v4750, %v4749
          %v4761 = vpack.c.b16 %v4752, %v4751
          %v4762 = vpack.c.b16 %v4754, %v4753
          %4763 = vrot.lane.b32.xlu0 %v4755, 64
          %v4764 = vpop.permute.xlu0 %4763
          %4765 = vrot.lane.b32.xlu0 %v4756, 64
          %v4766 = vpop.permute.xlu0 %4765
          %4767 = vrot.lane.b32.xlu0 %v4757, 64
          %v4768 = vpop.permute.xlu0 %4767
          %4769 = vrot.lane.b32.xlu0 %v4758, 64
          %v4770 = vpop.permute.xlu0 %4769
          %4771 = vrot.lane.b32.xlu0 %v4759, 64
          %v4772 = vpop.permute.xlu0 %4771
          %4773 = vrot.lane.b32.xlu0 %v4760, 64
          %v4774 = vpop.permute.xlu0 %4773
          %4775 = vrot.lane.b32.xlu0 %v4761, 64
          %v4776 = vpop.permute.xlu0 %4775
          %4777 = vrot.lane.b32.xlu0 %v4762, 64
          %v4778 = vpop.permute.xlu0 %4777
          %v4781 = vsel %vm1049, %v4715, %v4764
          %v4785 = vsel %vm1049, %v4716, %v4766
          %v4789 = vsel %vm1049, %v4717, %v4768
          %v4793 = vsel %vm1049, %v4718, %v4770
          %v4797 = vsel %vm1049, %v4719, %v4772
          %v4801 = vsel %vm1049, %v4720, %v4774
          %v4805 = vsel %vm1049, %v4721, %v4776
          %v4809 = vsel %vm1049, %v4722, %v4778
          %4811 = vst [vmem:[#allocation3 + $0x8] sm:$0xff] %v4781
          %4812 = vst [vmem:[#allocation3 + $0x30] sm:$0xff] %v4785
          %4813 = vst [vmem:[#allocation3 + $0x58] sm:$0xff] %v4789
          %4814 = vst [vmem:[#allocation3 + $0x80] sm:$0xff] %v4793
          %4815 = vst [vmem:[#allocation3 + $0xa8] sm:$0xff] %v4797
          %4816 = vst [vmem:[#allocation3 + $0xd0] sm:$0xff] %v4801
          %4817 = vst [vmem:[#allocation3 + $0xf8] sm:$0xff] %v4805
          %4818 = vst [vmem:[#allocation3 + $0x120] sm:$0xff] %v4809
          %v4819 = vld [vmem:[%s4682] sm:$0xf]
          %v4820 = vld [vmem:[%s4682 + $0x4] sm:$0xf]
          %v4821 = vld [vmem:[%s4682 + $0x8] sm:$0x1]
          %v4822 = vld [vmem:[%s4682 + $0xc] sm:$0xf]
          %v4823 = vld [vmem:[%s4682 + $0x10] sm:$0xf]
          %v4824 = vld [vmem:[%s4682 + $0x14] sm:$0x1]
          %v4825 = vld [vmem:[%s4682 + $0x18] sm:$0xf]
          %v4826 = vld [vmem:[%s4682 + $0x1c] sm:$0xf]
          %v4827 = vld [vmem:[%s4682 + $0x20] sm:$0x1]
          %v4828 = vld [vmem:[%s4682 + $0x24] sm:$0xf]
          %v4829 = vld [vmem:[%s4682 + $0x28] sm:$0xf]
          %v4830 = vld [vmem:[%s4682 + $0x2c] sm:$0x1]
          %v4831 = vld [vmem:[%s4682 + $0x30] sm:$0xf]
          %v4832 = vld [vmem:[%s4682 + $0x34] sm:$0xf]
          %v4833 = vld [vmem:[%s4682 + $0x38] sm:$0x1]
          %v4834 = vld [vmem:[%s4682 + $0x3c] sm:$0xf]
          %v4835 = vld [vmem:[%s4682 + $0x40] sm:$0xf]
          %v4836 = vld [vmem:[%s4682 + $0x44] sm:$0x1]
          %v4837 = vld [vmem:[%s4682 + $0x48] sm:$0xf]
          %v4838 = vld [vmem:[%s4682 + $0x4c] sm:$0xf]
          %v4839 = vld [vmem:[%s4682 + $0x50] sm:$0x1]
          %v4840 = vld [vmem:[%s4682 + $0x54] sm:$0xf]
          %v4841 = vld [vmem:[%s4682 + $0x58] sm:$0xf]
          %v4842 = vld [vmem:[%s4682 + $0x5c] sm:$0x1]
          %v4844 = vshrl.u32 %v4819, 16
          %v4846 = vrot.slane %v4844, 4
          %v4847 = vshll.u32 %v4819, 16
          %v4849 = vrot.slane %v4847, 5
          %v4850 = vor.u32 %v4846, %v4849
          %v4851 = vrot.slane %v4850, 4
          %v4853 = vshll.u32 %v4820, 16
          %v4855 = vrot.slane %v4853, 5
          %v4856 = vsel %vm4259, %v4851, %v4855
          %v4857 = vshrl.u32 %v4820, 16
          %v4859 = vrot.slane %v4857, 4
          %v4860 = vor.u32 %v4859, %v4855
          %v4861 = vrot.slane %v4860, 4
          %v4863 = vshll.u32 %v4821, 16
          %v4865 = vrot.slane %v4863, 5
          %v4866 = vsel %vm4259, %v4861, %v4865
          %v4868 = vshrl.u32 %v4822, 16
          %v4870 = vrot.slane %v4868, 4
          %v4871 = vshll.u32 %v4822, 16
          %v4873 = vrot.slane %v4871, 5
          %v4874 = vor.u32 %v4870, %v4873
          %v4875 = vrot.slane %v4874, 4
          %v4877 = vshll.u32 %v4823, 16
          %v4879 = vrot.slane %v4877, 5
          %v4880 = vsel %vm4259, %v4875, %v4879
          %v4881 = vshrl.u32 %v4823, 16
          %v4883 = vrot.slane %v4881, 4
          %v4884 = vor.u32 %v4883, %v4879
          %v4885 = vrot.slane %v4884, 4
          %v4887 = vshll.u32 %v4824, 16
          %v4889 = vrot.slane %v4887, 5
          %v4890 = vsel %vm4259, %v4885, %v4889
          %v4892 = vshrl.u32 %v4825, 16
          %v4894 = vrot.slane %v4892, 4
          %v4895 = vshll.u32 %v4825, 16
          %v4897 = vrot.slane %v4895, 5
          %v4898 = vor.u32 %v4894, %v4897
          %v4899 = vrot.slane %v4898, 4
          %v4901 = vshll.u32 %v4826, 16
          %v4903 = vrot.slane %v4901, 5
          %v4904 = vsel %vm4259, %v4899, %v4903
          %v4905 = vshrl.u32 %v4826, 16
          %v4907 = vrot.slane %v4905, 4
          %v4908 = vor.u32 %v4907, %v4903
          %v4909 = vrot.slane %v4908, 4
          %v4911 = vshll.u32 %v4827, 16
          %v4913 = vrot.slane %v4911, 5
          %v4914 = vsel %vm4259, %v4909, %v4913
          %v4916 = vshrl.u32 %v4828, 16
          %v4918 = vrot.slane %v4916, 4
          %v4919 = vshll.u32 %v4828, 16
          %v4921 = vrot.slane %v4919, 5
          %v4922 = vor.u32 %v4918, %v4921
          %v4923 = vrot.slane %v4922, 4
          %v4925 = vshll.u32 %v4829, 16
          %v4927 = vrot.slane %v4925, 5
          %v4928 = vsel %vm4259, %v4923, %v4927
          %v4929 = vshrl.u32 %v4829, 16
          %v4931 = vrot.slane %v4929, 4
          %v4932 = vor.u32 %v4931, %v4927
          %v4933 = vrot.slane %v4932, 4
          %v4935 = vshll.u32 %v4830, 16
          %v4937 = vrot.slane %v4935, 5
          %v4938 = vsel %vm4259, %v4933, %v4937
          %v4940 = vshrl.u32 %v4831, 16
          %v4942 = vrot.slane %v4940, 4
          %v4943 = vshll.u32 %v4831, 16
          %v4945 = vrot.slane %v4943, 5
          %v4946 = vor.u32 %v4942, %v4945
          %v4947 = vrot.slane %v4946, 4
          %v4949 = vshll.u32 %v4832, 16
          %v4951 = vrot.slane %v4949, 5
          %v4952 = vsel %vm4259, %v4947, %v4951
          %v4953 = vshrl.u32 %v4832, 16
          %v4955 = vrot.slane %v4953, 4
          %v4956 = vor.u32 %v4955, %v4951
          %v4957 = vrot.slane %v4956, 4
          %v4959 = vshll.u32 %v4833, 16
          %v4961 = vrot.slane %v4959, 5
          %v4962 = vsel %vm4259, %v4957, %v4961
          %v4964 = vshrl.u32 %v4834, 16
          %v4966 = vrot.slane %v4964, 4
          %v4967 = vshll.u32 %v4834, 16
          %v4969 = vrot.slane %v4967, 5
          %v4970 = vor.u32 %v4966, %v4969
          %v4971 = vrot.slane %v4970, 4
          %v4973 = vshll.u32 %v4835, 16
          %v4975 = vrot.slane %v4973, 5
          %v4976 = vsel %vm4259, %v4971, %v4975
          %v4977 = vshrl.u32 %v4835, 16
          %v4979 = vrot.slane %v4977, 4
          %v4980 = vor.u32 %v4979, %v4975
          %v4981 = vrot.slane %v4980, 4
          %v4983 = vshll.u32 %v4836, 16
          %v4985 = vrot.slane %v4983, 5
          %v4986 = vsel %vm4259, %v4981, %v4985
          %v4988 = vshrl.u32 %v4837, 16
          %v4990 = vrot.slane %v4988, 4
          %v4991 = vshll.u32 %v4837, 16
          %v4993 = vrot.slane %v4991, 5
          %v4994 = vor.u32 %v4990, %v4993
          %v4995 = vrot.slane %v4994, 4
          %v4997 = vshll.u32 %v4838, 16
          %v4999 = vrot.slane %v4997, 5
          %v5000 = vsel %vm4259, %v4995, %v4999
          %v5001 = vshrl.u32 %v4838, 16
          %v5003 = vrot.slane %v5001, 4
          %v5004 = vor.u32 %v5003, %v4999
          %v5005 = vrot.slane %v5004, 4
          %v5007 = vshll.u32 %v4839, 16
          %v5009 = vrot.slane %v5007, 5
          %v5010 = vsel %vm4259, %v5005, %v5009
          %v5012 = vshrl.u32 %v4840, 16
          %v5014 = vrot.slane %v5012, 4
          %v5015 = vshll.u32 %v4840, 16
          %v5017 = vrot.slane %v5015, 5
          %v5018 = vor.u32 %v5014, %v5017
          %v5019 = vrot.slane %v5018, 4
          %v5021 = vshll.u32 %v4841, 16
          %v5023 = vrot.slane %v5021, 5
          %v5024 = vsel %vm4259, %v5019, %v5023
          %v5025 = vshrl.u32 %v4841, 16
          %v5027 = vrot.slane %v5025, 4
          %v5028 = vor.u32 %v5027, %v5023
          %v5029 = vrot.slane %v5028, 4
          %v5031 = vshll.u32 %v4842, 16
          %v5033 = vrot.slane %v5031, 5
          %v5034 = vsel %vm4259, %v5029, %v5033
          %v5035 = vld [vmem:[%s4682] sm:$0xe]
          %v5036 = vld [vmem:[%s4682 + $0xc] sm:$0xe]
          %v5037 = vld [vmem:[%s4682 + $0x18] sm:$0xe]
          %v5038 = vld [vmem:[%s4682 + $0x24] sm:$0xe]
          %v5039 = vld [vmem:[%s4682 + $0x30] sm:$0xe]
          %v5040 = vld [vmem:[%s4682 + $0x3c] sm:$0xe]
          %v5041 = vld [vmem:[%s4682 + $0x48] sm:$0xe]
          %v5042 = vld [vmem:[%s4682 + $0x54] sm:$0xe]
          %v5067 = vrot.slane %v5035, 5
          %v5068 = vrot.slane %v5067, 4
          %v5069 = vrot.slane %v4820, 5
          %v5070 = vsel %vm4622, %v5068, %v5069
          %v5071 = vrot.slane %v5069, 4
          %v5072 = vrot.slane %v4821, 5
          %v5073 = vsel %vm4622, %v5071, %v5072
          %v5074 = vrot.slane %v5036, 5
          %v5075 = vrot.slane %v5074, 4
          %v5076 = vrot.slane %v4823, 5
          %v5077 = vsel %vm4622, %v5075, %v5076
          %v5078 = vrot.slane %v5076, 4
          %v5079 = vrot.slane %v4824, 5
          %v5080 = vsel %vm4622, %v5078, %v5079
          %v5081 = vrot.slane %v5037, 5
          %v5082 = vrot.slane %v5081, 4
          %v5083 = vrot.slane %v4826, 5
          %v5084 = vsel %vm4622, %v5082, %v5083
          %v5085 = vrot.slane %v5083, 4
          %v5086 = vrot.slane %v4827, 5
          %v5087 = vsel %vm4622, %v5085, %v5086
          %v5088 = vrot.slane %v5038, 5
          %v5089 = vrot.slane %v5088, 4
          %v5090 = vrot.slane %v4829, 5
          %v5091 = vsel %vm4622, %v5089, %v5090
          %v5092 = vrot.slane %v5090, 4
          %v5093 = vrot.slane %v4830, 5
          %v5094 = vsel %vm4622, %v5092, %v5093
          %v5095 = vrot.slane %v5039, 5
          %v5096 = vrot.slane %v5095, 4
          %v5097 = vrot.slane %v4832, 5
          %v5098 = vsel %vm4622, %v5096, %v5097
          %v5099 = vrot.slane %v5097, 4
          %v5100 = vrot.slane %v4833, 5
          %v5101 = vsel %vm4622, %v5099, %v5100
          %v5102 = vrot.slane %v5040, 5
          %v5103 = vrot.slane %v5102, 4
          %v5104 = vrot.slane %v4835, 5
          %v5105 = vsel %vm4622, %v5103, %v5104
          %v5106 = vrot.slane %v5104, 4
          %v5107 = vrot.slane %v4836, 5
          %v5108 = vsel %vm4622, %v5106, %v5107
          %v5109 = vrot.slane %v5041, 5
          %v5110 = vrot.slane %v5109, 4
          %v5111 = vrot.slane %v4838, 5
          %v5112 = vsel %vm4622, %v5110, %v5111
          %v5113 = vrot.slane %v5111, 4
          %v5114 = vrot.slane %v4839, 5
          %v5115 = vsel %vm4622, %v5113, %v5114
          %v5116 = vrot.slane %v5042, 5
          %v5117 = vrot.slane %v5116, 4
          %v5118 = vrot.slane %v4841, 5
          %v5119 = vsel %vm4622, %v5117, %v5118
          %v5120 = vrot.slane %v5118, 4
          %v5121 = vrot.slane %v4842, 5
          %v5122 = vsel %vm4622, %v5120, %v5121
          %v5123 = vunpack.c.l.b16 %v4856
          %v5124 = vunpack.c.l.b16 %v4866
          %v5125 = vunpack.c.l.b16 %v4880
          %v5126 = vunpack.c.l.b16 %v4890
          %v5127 = vunpack.c.l.b16 %v4904
          %v5128 = vunpack.c.l.b16 %v4914
          %v5129 = vunpack.c.l.b16 %v4928
          %v5130 = vunpack.c.l.b16 %v4938
          %v5131 = vunpack.c.l.b16 %v4952
          %v5132 = vunpack.c.l.b16 %v4962
          %v5133 = vunpack.c.l.b16 %v4976
          %v5134 = vunpack.c.l.b16 %v4986
          %v5135 = vunpack.c.l.b16 %v5000
          %v5136 = vunpack.c.l.b16 %v5010
          %v5137 = vunpack.c.l.b16 %v5024
          %v5138 = vunpack.c.l.b16 %v5034
          %v5139 = vpack.c.b16 %v5124, %v5123
          %v5140 = vpack.c.b16 %v5126, %v5125
          %v5141 = vpack.c.b16 %v5128, %v5127
          %v5142 = vpack.c.b16 %v5130, %v5129
          %v5143 = vpack.c.b16 %v5132, %v5131
          %v5144 = vpack.c.b16 %v5134, %v5133
          %v5145 = vpack.c.b16 %v5136, %v5135
          %v5146 = vpack.c.b16 %v5138, %v5137
          %v5147 = vunpack.c.l.b16 %v5070
          %v5148 = vunpack.c.l.b16 %v5073
          %v5149 = vunpack.c.l.b16 %v5077
          %v5150 = vunpack.c.l.b16 %v5080
          %v5151 = vunpack.c.l.b16 %v5084
          %v5152 = vunpack.c.l.b16 %v5087
          %v5153 = vunpack.c.l.b16 %v5091
          %v5154 = vunpack.c.l.b16 %v5094
          %v5155 = vunpack.c.l.b16 %v5098
          %v5156 = vunpack.c.l.b16 %v5101
          %v5157 = vunpack.c.l.b16 %v5105
          %v5158 = vunpack.c.l.b16 %v5108
          %v5159 = vunpack.c.l.b16 %v5112
          %v5160 = vunpack.c.l.b16 %v5115
          %v5161 = vunpack.c.l.b16 %v5119
          %v5162 = vunpack.c.l.b16 %v5122
          %v5163 = vpack.c.b16 %v5148, %v5147
          %v5164 = vpack.c.b16 %v5150, %v5149
          %v5165 = vpack.c.b16 %v5152, %v5151
          %v5166 = vpack.c.b16 %v5154, %v5153
          %v5167 = vpack.c.b16 %v5156, %v5155
          %v5168 = vpack.c.b16 %v5158, %v5157
          %v5169 = vpack.c.b16 %v5160, %v5159
          %v5170 = vpack.c.b16 %v5162, %v5161
          %5171 = vrot.lane.b32.xlu0 %v5163, 64
          %v5172 = vpop.permute.xlu0 %5171
          %5173 = vrot.lane.b32.xlu0 %v5164, 64
          %v5174 = vpop.permute.xlu0 %5173
          %5175 = vrot.lane.b32.xlu0 %v5165, 64
          %v5176 = vpop.permute.xlu0 %5175
          %5177 = vrot.lane.b32.xlu0 %v5166, 64
          %v5178 = vpop.permute.xlu0 %5177
          %5179 = vrot.lane.b32.xlu0 %v5167, 64
          %v5180 = vpop.permute.xlu0 %5179
          %5181 = vrot.lane.b32.xlu0 %v5168, 64
          %v5182 = vpop.permute.xlu0 %5181
          %5183 = vrot.lane.b32.xlu0 %v5169, 64
          %v5184 = vpop.permute.xlu0 %5183
          %5185 = vrot.lane.b32.xlu0 %v5170, 64
          %v5186 = vpop.permute.xlu0 %5185
          %v5189 = vsel %vm1049, %v5139, %v5172
          %v5193 = vsel %vm1049, %v5140, %v5174
          %v5197 = vsel %vm1049, %v5141, %v5176
          %v5201 = vsel %vm1049, %v5142, %v5178
          %v5205 = vsel %vm1049, %v5143, %v5180
          %v5209 = vsel %vm1049, %v5144, %v5182
          %v5213 = vsel %vm1049, %v5145, %v5184
          %v5217 = vsel %vm1049, %v5146, %v5186
          %5219 = vst [vmem:[#allocation3 + $0x10] sm:$0xff] %v5189
          %5220 = vst [vmem:[#allocation3 + $0x38] sm:$0xff] %v5193
          %5221 = vst [vmem:[#allocation3 + $0x60] sm:$0xff] %v5197
          %5222 = vst [vmem:[#allocation3 + $0x88] sm:$0xff] %v5201
          %5223 = vst [vmem:[#allocation3 + $0xb0] sm:$0xff] %v5205
          %5224 = vst [vmem:[#allocation3 + $0xd8] sm:$0xff] %v5209
          %5225 = vst [vmem:[#allocation3 + $0x100] sm:$0xff] %v5213
          %5226 = vst [vmem:[#allocation3 + $0x128] sm:$0xff] %v5217
          %s5227 = sadd.s32 %s4229, 2
          %s5228 = smul.u32 %s5227, 3
          %s5229 = smul.addr %s5228, 4
          %s5230 = scalar_lea.vmem [#allocation2], %s5229
          %v5231 = vld [vmem:[%s5230] sm:$0xf]
          %v5232 = vld [vmem:[%s5230 + $0x4] sm:$0xf]
          %v5233 = vld [vmem:[%s5230 + $0xc] sm:$0xf]
          %v5234 = vld [vmem:[%s5230 + $0x10] sm:$0xf]
          %v5235 = vld [vmem:[%s5230 + $0x18] sm:$0xf]
          %v5236 = vld [vmem:[%s5230 + $0x1c] sm:$0xf]
          %v5237 = vld [vmem:[%s5230 + $0x24] sm:$0xf]
          %v5238 = vld [vmem:[%s5230 + $0x28] sm:$0xf]
          %v5239 = vld [vmem:[%s5230 + $0x30] sm:$0xf]
          %v5240 = vld [vmem:[%s5230 + $0x34] sm:$0xf]
          %v5241 = vld [vmem:[%s5230 + $0x3c] sm:$0xf]
          %v5242 = vld [vmem:[%s5230 + $0x40] sm:$0xf]
          %v5243 = vld [vmem:[%s5230 + $0x48] sm:$0xf]
          %v5244 = vld [vmem:[%s5230 + $0x4c] sm:$0xf]
          %v5245 = vld [vmem:[%s5230 + $0x54] sm:$0xf]
          %v5246 = vld [vmem:[%s5230 + $0x58] sm:$0xf]
          %v5247 = vld [vmem:[%s5230 + $0x8] sm:$0x1]
          %v5248 = vld [vmem:[%s5230 + $0x14] sm:$0x1]
          %v5249 = vld [vmem:[%s5230 + $0x20] sm:$0x1]
          %v5250 = vld [vmem:[%s5230 + $0x2c] sm:$0x1]
          %v5251 = vld [vmem:[%s5230 + $0x38] sm:$0x1]
          %v5252 = vld [vmem:[%s5230 + $0x44] sm:$0x1]
          %v5253 = vld [vmem:[%s5230 + $0x50] sm:$0x1]
          %v5254 = vld [vmem:[%s5230 + $0x5c] sm:$0x1]
          %v5256 = vshrl.u32 %v5231, 16
          %v5258 = vrot.slane %v5256, 4
          %v5259 = vshll.u32 %v5231, 16
          %v5261 = vrot.slane %v5259, 5
          %v5262 = vor.u32 %v5258, %v5261
          %v5263 = vrot.slane %v5262, 4
          %v5265 = vshll.u32 %v5232, 16
          %v5267 = vrot.slane %v5265, 5
          %v5268 = vsel %vm4259, %v5263, %v5267
          %v5269 = vshrl.u32 %v5232, 16
          %v5271 = vrot.slane %v5269, 4
          %v5272 = vor.u32 %v5271, %v5267
          %v5273 = vrot.slane %v5272, 4
          %v5275 = vshll.u32 %v5247, 16
          %v5277 = vrot.slane %v5275, 5
          %v5278 = vsel %vm4259, %v5273, %v5277
          %v5280 = vshrl.u32 %v5233, 16
          %v5282 = vrot.slane %v5280, 4
          %v5283 = vshll.u32 %v5233, 16
          %v5285 = vrot.slane %v5283, 5
          %v5286 = vor.u32 %v5282, %v5285
          %v5287 = vrot.slane %v5286, 4
          %v5289 = vshll.u32 %v5234, 16
          %v5291 = vrot.slane %v5289, 5
          %v5292 = vsel %vm4259, %v5287, %v5291
          %v5293 = vshrl.u32 %v5234, 16
          %v5295 = vrot.slane %v5293, 4
          %v5296 = vor.u32 %v5295, %v5291
          %v5297 = vrot.slane %v5296, 4
          %v5299 = vshll.u32 %v5248, 16
          %v5301 = vrot.slane %v5299, 5
          %v5302 = vsel %vm4259, %v5297, %v5301
          %v5304 = vshrl.u32 %v5235, 16
          %v5306 = vrot.slane %v5304, 4
          %v5307 = vshll.u32 %v5235, 16
          %v5309 = vrot.slane %v5307, 5
          %v5310 = vor.u32 %v5306, %v5309
          %v5311 = vrot.slane %v5310, 4
          %v5313 = vshll.u32 %v5236, 16
          %v5315 = vrot.slane %v5313, 5
          %v5316 = vsel %vm4259, %v5311, %v5315
          %v5317 = vshrl.u32 %v5236, 16
          %v5319 = vrot.slane %v5317, 4
          %v5320 = vor.u32 %v5319, %v5315
          %v5321 = vrot.slane %v5320, 4
          %v5323 = vshll.u32 %v5249, 16
          %v5325 = vrot.slane %v5323, 5
          %v5326 = vsel %vm4259, %v5321, %v5325
          %v5328 = vshrl.u32 %v5237, 16
          %v5330 = vrot.slane %v5328, 4
          %v5331 = vshll.u32 %v5237, 16
          %v5333 = vrot.slane %v5331, 5
          %v5334 = vor.u32 %v5330, %v5333
          %v5335 = vrot.slane %v5334, 4
          %v5337 = vshll.u32 %v5238, 16
          %v5339 = vrot.slane %v5337, 5
          %v5340 = vsel %vm4259, %v5335, %v5339
          %v5341 = vshrl.u32 %v5238, 16
          %v5343 = vrot.slane %v5341, 4
          %v5344 = vor.u32 %v5343, %v5339
          %v5345 = vrot.slane %v5344, 4
          %v5347 = vshll.u32 %v5250, 16
          %v5349 = vrot.slane %v5347, 5
          %v5350 = vsel %vm4259, %v5345, %v5349
          %v5352 = vshrl.u32 %v5239, 16
          %v5354 = vrot.slane %v5352, 4
          %v5355 = vshll.u32 %v5239, 16
          %v5357 = vrot.slane %v5355, 5
          %v5358 = vor.u32 %v5354, %v5357
          %v5359 = vrot.slane %v5358, 4
          %v5361 = vshll.u32 %v5240, 16
          %v5363 = vrot.slane %v5361, 5
          %v5364 = vsel %vm4259, %v5359, %v5363
          %v5365 = vshrl.u32 %v5240, 16
          %v5367 = vrot.slane %v5365, 4
          %v5368 = vor.u32 %v5367, %v5363
          %v5369 = vrot.slane %v5368, 4
          %v5371 = vshll.u32 %v5251, 16
          %v5373 = vrot.slane %v5371, 5
          %v5374 = vsel %vm4259, %v5369, %v5373
          %v5376 = vshrl.u32 %v5241, 16
          %v5378 = vrot.slane %v5376, 4
          %v5379 = vshll.u32 %v5241, 16
          %v5381 = vrot.slane %v5379, 5
          %v5382 = vor.u32 %v5378, %v5381
          %v5383 = vrot.slane %v5382, 4
          %v5385 = vshll.u32 %v5242, 16
          %v5387 = vrot.slane %v5385, 5
          %v5388 = vsel %vm4259, %v5383, %v5387
          %v5389 = vshrl.u32 %v5242, 16
          %v5391 = vrot.slane %v5389, 4
          %v5392 = vor.u32 %v5391, %v5387
          %v5393 = vrot.slane %v5392, 4
          %v5395 = vshll.u32 %v5252, 16
          %v5397 = vrot.slane %v5395, 5
          %v5398 = vsel %vm4259, %v5393, %v5397
          %v5400 = vshrl.u32 %v5243, 16
          %v5402 = vrot.slane %v5400, 4
          %v5403 = vshll.u32 %v5243, 16
          %v5405 = vrot.slane %v5403, 5
          %v5406 = vor.u32 %v5402, %v5405
          %v5407 = vrot.slane %v5406, 4
          %v5409 = vshll.u32 %v5244, 16
          %v5411 = vrot.slane %v5409, 5
          %v5412 = vsel %vm4259, %v5407, %v5411
          %v5413 = vshrl.u32 %v5244, 16
          %v5415 = vrot.slane %v5413, 4
          %v5416 = vor.u32 %v5415, %v5411
          %v5417 = vrot.slane %v5416, 4
          %v5419 = vshll.u32 %v5253, 16
          %v5421 = vrot.slane %v5419, 5
          %v5422 = vsel %vm4259, %v5417, %v5421
          %v5424 = vshrl.u32 %v5245, 16
          %v5426 = vrot.slane %v5424, 4
          %v5427 = vshll.u32 %v5245, 16
          %v5429 = vrot.slane %v5427, 5
          %v5430 = vor.u32 %v5426, %v5429
          %v5431 = vrot.slane %v5430, 4
          %v5433 = vshll.u32 %v5246, 16
          %v5435 = vrot.slane %v5433, 5
          %v5436 = vsel %vm4259, %v5431, %v5435
          %v5437 = vshrl.u32 %v5246, 16
          %v5439 = vrot.slane %v5437, 4
          %v5440 = vor.u32 %v5439, %v5435
          %v5441 = vrot.slane %v5440, 4
          %v5443 = vshll.u32 %v5254, 16
          %v5445 = vrot.slane %v5443, 5
          %v5446 = vsel %vm4259, %v5441, %v5445
          %v5463 = vunpack.c.l.b16 %v5231
          %v5464 = vunpack.c.l.b16 %v5232
          %v5465 = vunpack.c.l.b16 %v5233
          %v5466 = vunpack.c.l.b16 %v5234
          %v5467 = vunpack.c.l.b16 %v5235
          %v5468 = vunpack.c.l.b16 %v5236
          %v5469 = vunpack.c.l.b16 %v5237
          %v5470 = vunpack.c.l.b16 %v5238
          %v5471 = vunpack.c.l.b16 %v5239
          %v5472 = vunpack.c.l.b16 %v5240
          %v5473 = vunpack.c.l.b16 %v5241
          %v5474 = vunpack.c.l.b16 %v5242
          %v5475 = vunpack.c.l.b16 %v5243
          %v5476 = vunpack.c.l.b16 %v5244
          %v5477 = vunpack.c.l.b16 %v5245
          %v5478 = vunpack.c.l.b16 %v5246
          %v5479 = vpack.c.b16 %v5464, %v5463
          %v5480 = vpack.c.b16 %v5466, %v5465
          %v5481 = vpack.c.b16 %v5468, %v5467
          %v5482 = vpack.c.b16 %v5470, %v5469
          %v5483 = vpack.c.b16 %v5472, %v5471
          %v5484 = vpack.c.b16 %v5474, %v5473
          %v5485 = vpack.c.b16 %v5476, %v5475
          %v5486 = vpack.c.b16 %v5478, %v5477
          %v5487 = vunpack.c.l.b16 %v5268
          %v5488 = vunpack.c.l.b16 %v5278
          %v5489 = vunpack.c.l.b16 %v5292
          %v5490 = vunpack.c.l.b16 %v5302
          %v5491 = vunpack.c.l.b16 %v5316
          %v5492 = vunpack.c.l.b16 %v5326
          %v5493 = vunpack.c.l.b16 %v5340
          %v5494 = vunpack.c.l.b16 %v5350
          %v5495 = vunpack.c.l.b16 %v5364
          %v5496 = vunpack.c.l.b16 %v5374
          %v5497 = vunpack.c.l.b16 %v5388
          %v5498 = vunpack.c.l.b16 %v5398
          %v5499 = vunpack.c.l.b16 %v5412
          %v5500 = vunpack.c.l.b16 %v5422
          %v5501 = vunpack.c.l.b16 %v5436
          %v5502 = vunpack.c.l.b16 %v5446
          %v5503 = vpack.c.b16 %v5488, %v5487
          %v5504 = vpack.c.b16 %v5490, %v5489
          %v5505 = vpack.c.b16 %v5492, %v5491
          %v5506 = vpack.c.b16 %v5494, %v5493
          %v5507 = vpack.c.b16 %v5496, %v5495
          %v5508 = vpack.c.b16 %v5498, %v5497
          %v5509 = vpack.c.b16 %v5500, %v5499
          %v5510 = vpack.c.b16 %v5502, %v5501
          %5511 = vrot.lane.b32.xlu0 %v5503, 64
          %v5512 = vpop.permute.xlu0 %5511
          %5513 = vrot.lane.b32.xlu0 %v5504, 64
          %v5514 = vpop.permute.xlu0 %5513
          %5515 = vrot.lane.b32.xlu0 %v5505, 64
          %v5516 = vpop.permute.xlu0 %5515
          %5517 = vrot.lane.b32.xlu0 %v5506, 64
          %v5518 = vpop.permute.xlu0 %5517
          %5519 = vrot.lane.b32.xlu0 %v5507, 64
          %v5520 = vpop.permute.xlu0 %5519
          %5521 = vrot.lane.b32.xlu0 %v5508, 64
          %v5522 = vpop.permute.xlu0 %5521
          %5523 = vrot.lane.b32.xlu0 %v5509, 64
          %v5524 = vpop.permute.xlu0 %5523
          %5525 = vrot.lane.b32.xlu0 %v5510, 64
          %v5526 = vpop.permute.xlu0 %5525
          %v5529 = vsel %vm1049, %v5479, %v5512
          %v5533 = vsel %vm1049, %v5480, %v5514
          %v5537 = vsel %vm1049, %v5481, %v5516
          %v5541 = vsel %vm1049, %v5482, %v5518
          %v5545 = vsel %vm1049, %v5483, %v5520
          %v5549 = vsel %vm1049, %v5484, %v5522
          %v5553 = vsel %vm1049, %v5485, %v5524
          %v5557 = vsel %vm1049, %v5486, %v5526
          %5559 = vst [vmem:[#allocation3 + $0x18] sm:$0xff] %v5529
          %5560 = vst [vmem:[#allocation3 + $0x40] sm:$0xff] %v5533
          %5561 = vst [vmem:[#allocation3 + $0x68] sm:$0xff] %v5537
          %5562 = vst [vmem:[#allocation3 + $0x90] sm:$0xff] %v5541
          %5563 = vst [vmem:[#allocation3 + $0xb8] sm:$0xff] %v5545
          %5564 = vst [vmem:[#allocation3 + $0xe0] sm:$0xff] %v5549
          %5565 = vst [vmem:[#allocation3 + $0x108] sm:$0xff] %v5553
          %5566 = vst [vmem:[#allocation3 + $0x130] sm:$0xff] %v5557
          %v5567 = vld [vmem:[%s5230] sm:$0xe]
          %v5568 = vld [vmem:[%s5230 + $0x4] sm:$0xf]
          %v5569 = vld [vmem:[%s5230 + $0x8] sm:$0x1]
          %v5570 = vld [vmem:[%s5230 + $0xc] sm:$0xe]
          %v5571 = vld [vmem:[%s5230 + $0x10] sm:$0xf]
          %v5572 = vld [vmem:[%s5230 + $0x14] sm:$0x1]
          %v5573 = vld [vmem:[%s5230 + $0x18] sm:$0xe]
          %v5574 = vld [vmem:[%s5230 + $0x1c] sm:$0xf]
          %v5575 = vld [vmem:[%s5230 + $0x20] sm:$0x1]
          %v5576 = vld [vmem:[%s5230 + $0x24] sm:$0xe]
          %v5577 = vld [vmem:[%s5230 + $0x28] sm:$0xf]
          %v5578 = vld [vmem:[%s5230 + $0x2c] sm:$0x1]
          %v5579 = vld [vmem:[%s5230 + $0x30] sm:$0xe]
          %v5580 = vld [vmem:[%s5230 + $0x34] sm:$0xf]
          %v5581 = vld [vmem:[%s5230 + $0x38] sm:$0x1]
          %v5582 = vld [vmem:[%s5230 + $0x3c] sm:$0xe]
          %v5583 = vld [vmem:[%s5230 + $0x40] sm:$0xf]
          %v5584 = vld [vmem:[%s5230 + $0x44] sm:$0x1]
          %v5585 = vld [vmem:[%s5230 + $0x48] sm:$0xe]
          %v5586 = vld [vmem:[%s5230 + $0x4c] sm:$0xf]
          %v5587 = vld [vmem:[%s5230 + $0x50] sm:$0x1]
          %v5588 = vld [vmem:[%s5230 + $0x54] sm:$0xe]
          %v5589 = vld [vmem:[%s5230 + $0x58] sm:$0xf]
          %v5590 = vld [vmem:[%s5230 + $0x5c] sm:$0x1]
          %v5615 = vrot.slane %v5567, 5
          %v5616 = vrot.slane %v5615, 4
          %v5617 = vrot.slane %v5568, 5
          %v5618 = vsel %vm4622, %v5616, %v5617
          %v5619 = vrot.slane %v5617, 4
          %v5620 = vrot.slane %v5569, 5
          %v5621 = vsel %vm4622, %v5619, %v5620
          %v5622 = vrot.slane %v5570, 5
          %v5623 = vrot.slane %v5622, 4
          %v5624 = vrot.slane %v5571, 5
          %v5625 = vsel %vm4622, %v5623, %v5624
          %v5626 = vrot.slane %v5624, 4
          %v5627 = vrot.slane %v5572, 5
          %v5628 = vsel %vm4622, %v5626, %v5627
          %v5629 = vrot.slane %v5573, 5
          %v5630 = vrot.slane %v5629, 4
          %v5631 = vrot.slane %v5574, 5
          %v5632 = vsel %vm4622, %v5630, %v5631
          %v5633 = vrot.slane %v5631, 4
          %v5634 = vrot.slane %v5575, 5
          %v5635 = vsel %vm4622, %v5633, %v5634
          %v5636 = vrot.slane %v5576, 5
          %v5637 = vrot.slane %v5636, 4
          %v5638 = vrot.slane %v5577, 5
          %v5639 = vsel %vm4622, %v5637, %v5638
          %v5640 = vrot.slane %v5638, 4
          %v5641 = vrot.slane %v5578, 5
          %v5642 = vsel %vm4622, %v5640, %v5641
          %v5643 = vrot.slane %v5579, 5
          %v5644 = vrot.slane %v5643, 4
          %v5645 = vrot.slane %v5580, 5
          %v5646 = vsel %vm4622, %v5644, %v5645
          %v5647 = vrot.slane %v5645, 4
          %v5648 = vrot.slane %v5581, 5
          %v5649 = vsel %vm4622, %v5647, %v5648
          %v5650 = vrot.slane %v5582, 5
          %v5651 = vrot.slane %v5650, 4
          %v5652 = vrot.slane %v5583, 5
          %v5653 = vsel %vm4622, %v5651, %v5652
          %v5654 = vrot.slane %v5652, 4
          %v5655 = vrot.slane %v5584, 5
          %v5656 = vsel %vm4622, %v5654, %v5655
          %v5657 = vrot.slane %v5585, 5
          %v5658 = vrot.slane %v5657, 4
          %v5659 = vrot.slane %v5586, 5
          %v5660 = vsel %vm4622, %v5658, %v5659
          %v5661 = vrot.slane %v5659, 4
          %v5662 = vrot.slane %v5587, 5
          %v5663 = vsel %vm4622, %v5661, %v5662
          %v5664 = vrot.slane %v5588, 5
          %v5665 = vrot.slane %v5664, 4
          %v5666 = vrot.slane %v5589, 5
          %v5667 = vsel %vm4622, %v5665, %v5666
          %v5668 = vrot.slane %v5666, 4
          %v5669 = vrot.slane %v5590, 5
          %v5670 = vsel %vm4622, %v5668, %v5669
          %v5671 = vunpack.c.l.b16 %v5618
          %v5672 = vunpack.c.l.b16 %v5621
          %v5673 = vunpack.c.l.b16 %v5625
          %v5674 = vunpack.c.l.b16 %v5628
          %v5675 = vunpack.c.l.b16 %v5632
          %v5676 = vunpack.c.l.b16 %v5635
          %v5677 = vunpack.c.l.b16 %v5639
          %v5678 = vunpack.c.l.b16 %v5642
          %v5679 = vunpack.c.l.b16 %v5646
          %v5680 = vunpack.c.l.b16 %v5649
          %v5681 = vunpack.c.l.b16 %v5653
          %v5682 = vunpack.c.l.b16 %v5656
          %v5683 = vunpack.c.l.b16 %v5660
          %v5684 = vunpack.c.l.b16 %v5663
          %v5685 = vunpack.c.l.b16 %v5667
          %v5686 = vunpack.c.l.b16 %v5670
          %v5687 = vpack.c.b16 %v5672, %v5671
          %v5688 = vpack.c.b16 %v5674, %v5673
          %v5689 = vpack.c.b16 %v5676, %v5675
          %v5690 = vpack.c.b16 %v5678, %v5677
          %v5691 = vpack.c.b16 %v5680, %v5679
          %v5692 = vpack.c.b16 %v5682, %v5681
          %v5693 = vpack.c.b16 %v5684, %v5683
          %v5694 = vpack.c.b16 %v5686, %v5685
          %5703 = vst.msk [vmem:[#allocation3 + $0x20] sm:$0xff] %vm1049, %v5687
          %5704 = vst.msk [vmem:[#allocation3 + $0x48] sm:$0xff] %vm1049, %v5688
          %5705 = vst.msk [vmem:[#allocation3 + $0x70] sm:$0xff] %vm1049, %v5689
          %5706 = vst.msk [vmem:[#allocation3 + $0x98] sm:$0xff] %vm1049, %v5690
          %5707 = vst.msk [vmem:[#allocation3 + $0xc0] sm:$0xff] %vm1049, %v5691
          %5708 = vst.msk [vmem:[#allocation3 + $0xe8] sm:$0xff] %vm1049, %v5692
          %5709 = vst.msk [vmem:[#allocation3 + $0x110] sm:$0xff] %vm1049, %v5693
          %5710 = vst.msk [vmem:[#allocation3 + $0x138] sm:$0xff] %vm1049, %v5694
          %p5711 = scmp.gt.s32.totalorder %s4224, 0
          // Predicated region
          $region77: #{dncnn_resnet_forward.1} parent=73 // pred_check
            %p5712 = pneg %p5711
          $region78: #{dncnn_resnet_forward.1} parent=73 // pred_check_branch
            %5714 = sbr.rel (%p5712) target = $region80
          $region79: #{dncnn_resnet_forward.1} parent=73 // pred_region
            %v5715 = vld [vmem:[#allocation4] sm:$0xff]
            %v5716 = vld [vmem:[#allocation4 + $0x8] sm:$0xff]
            %v5717 = vld [vmem:[#allocation4 + $0x10] sm:$0xff]
            %v5718 = vld [vmem:[#allocation4 + $0x18] sm:$0xff]
            %v5719 = vld [vmem:[#allocation4 + $0x20] sm:$0xff]
            %v5720 = vld [vmem:[#allocation4 + $0x28] sm:$0xff]
            %v5721 = vld [vmem:[#allocation4 + $0x30] sm:$0xff]
            %v5722 = vld [vmem:[#allocation4 + $0x38] sm:$0xff]
            %s5723 = sadd.s32 %s4229, 4294967289
            %v5732 = vunpack.c.l.b16 %v5715
            %v5733 = vunpack.c.h.b16 %v5715
            %v5734 = vunpack.c.l.b16 %v5716
            %v5735 = vunpack.c.h.b16 %v5716
            %v5736 = vunpack.c.l.b16 %v5717
            %v5737 = vunpack.c.h.b16 %v5717
            %v5738 = vunpack.c.l.b16 %v5718
            %v5739 = vunpack.c.h.b16 %v5718
            %v5740 = vunpack.c.l.b16 %v5719
            %v5741 = vunpack.c.h.b16 %v5719
            %v5742 = vunpack.c.l.b16 %v5720
            %v5743 = vunpack.c.h.b16 %v5720
            %v5744 = vunpack.c.l.b16 %v5721
            %v5745 = vunpack.c.h.b16 %v5721
            %v5746 = vunpack.c.l.b16 %v5722
            %v5747 = vunpack.c.h.b16 %v5722
            %v5748 = vpack.c.b16 %v5732, %v5732
            %v5749 = vpack.c.b16 %v5733, %v5733
            %v5750 = vpack.c.b16 %v5734, %v5734
            %v5751 = vpack.c.b16 %v5735, %v5735
            %v5752 = vpack.c.b16 %v5736, %v5736
            %v5753 = vpack.c.b16 %v5737, %v5737
            %v5754 = vpack.c.b16 %v5738, %v5738
            %v5755 = vpack.c.b16 %v5739, %v5739
            %v5756 = vpack.c.b16 %v5740, %v5740
            %v5757 = vpack.c.b16 %v5741, %v5741
            %v5758 = vpack.c.b16 %v5742, %v5742
            %v5759 = vpack.c.b16 %v5743, %v5743
            %v5760 = vpack.c.b16 %v5744, %v5744
            %v5761 = vpack.c.b16 %v5745, %v5745
            %v5762 = vpack.c.b16 %v5746, %v5746
            %v5763 = vpack.c.b16 %v5747, %v5747
            %v5765 = vshrl.u32 %v5748, 16
            %v5767 = vrot.slane %v5765, 7
            %v5768 = vshll.u32 %v5748, 16
            %v5770 = vor.u32 %v5767, %v5768
            %v5771 = vrot.slane %v5767, 4
            %v5773 = vshrl.u32 %v5749, 16
            %v5775 = vrot.slane %v5773, 7
            %v5776 = vshll.u32 %v5749, 16
            %v5778 = vor.u32 %v5775, %v5776
            %v5779 = vsel %vm3666, %v5771, %v5778
            %v5780 = vrot.slane %v5775, 4
            %v5782 = vshrl.u32 %v5750, 16
            %v5784 = vrot.slane %v5782, 7
            %v5785 = vshll.u32 %v5750, 16
            %v5787 = vor.u32 %v5784, %v5785
            %v5788 = vrot.slane %v5784, 4
            %v5790 = vshrl.u32 %v5751, 16
            %v5792 = vrot.slane %v5790, 7
            %v5793 = vshll.u32 %v5751, 16
            %v5795 = vor.u32 %v5792, %v5793
            %v5796 = vsel %vm3666, %v5788, %v5795
            %v5797 = vrot.slane %v5792, 4
            %v5799 = vshrl.u32 %v5752, 16
            %v5801 = vrot.slane %v5799, 7
            %v5802 = vshll.u32 %v5752, 16
            %v5804 = vor.u32 %v5801, %v5802
            %v5805 = vrot.slane %v5801, 4
            %v5807 = vshrl.u32 %v5753, 16
            %v5809 = vrot.slane %v5807, 7
            %v5810 = vshll.u32 %v5753, 16
            %v5812 = vor.u32 %v5809, %v5810
            %v5813 = vsel %vm3666, %v5805, %v5812
            %v5814 = vrot.slane %v5809, 4
            %v5816 = vshrl.u32 %v5754, 16
            %v5818 = vrot.slane %v5816, 7
            %v5819 = vshll.u32 %v5754, 16
            %v5821 = vor.u32 %v5818, %v5819
            %v5822 = vrot.slane %v5818, 4
            %v5824 = vshrl.u32 %v5755, 16
            %v5826 = vrot.slane %v5824, 7
            %v5827 = vshll.u32 %v5755, 16
            %v5829 = vor.u32 %v5826, %v5827
            %v5830 = vsel %vm3666, %v5822, %v5829
            %v5831 = vrot.slane %v5826, 4
            %v5833 = vshrl.u32 %v5756, 16
            %v5835 = vrot.slane %v5833, 7
            %v5836 = vshll.u32 %v5756, 16
            %v5838 = vor.u32 %v5835, %v5836
            %v5839 = vrot.slane %v5835, 4
            %v5841 = vshrl.u32 %v5757, 16
            %v5843 = vrot.slane %v5841, 7
            %v5844 = vshll.u32 %v5757, 16
            %v5846 = vor.u32 %v5843, %v5844
            %v5847 = vsel %vm3666, %v5839, %v5846
            %v5848 = vrot.slane %v5843, 4
            %v5850 = vshrl.u32 %v5758, 16
            %v5852 = vrot.slane %v5850, 7
            %v5853 = vshll.u32 %v5758, 16
            %v5855 = vor.u32 %v5852, %v5853
            %v5856 = vrot.slane %v5852, 4
            %v5858 = vshrl.u32 %v5759, 16
            %v5860 = vrot.slane %v5858, 7
            %v5861 = vshll.u32 %v5759, 16
            %v5863 = vor.u32 %v5860, %v5861
            %v5864 = vsel %vm3666, %v5856, %v5863
            %v5865 = vrot.slane %v5860, 4
            %v5867 = vshrl.u32 %v5760, 16
            %v5869 = vrot.slane %v5867, 7
            %v5870 = vshll.u32 %v5760, 16
            %v5872 = vor.u32 %v5869, %v5870
            %v5873 = vrot.slane %v5869, 4
            %v5875 = vshrl.u32 %v5761, 16
            %v5877 = vrot.slane %v5875, 7
            %v5878 = vshll.u32 %v5761, 16
            %v5880 = vor.u32 %v5877, %v5878
            %v5881 = vsel %vm3666, %v5873, %v5880
            %v5882 = vrot.slane %v5877, 4
            %v5884 = vshrl.u32 %v5762, 16
            %v5886 = vrot.slane %v5884, 7
            %v5887 = vshll.u32 %v5762, 16
            %v5889 = vor.u32 %v5886, %v5887
            %v5890 = vrot.slane %v5886, 4
            %v5892 = vshrl.u32 %v5763, 16
            %v5894 = vrot.slane %v5892, 7
            %v5895 = vshll.u32 %v5763, 16
            %v5897 = vor.u32 %v5894, %v5895
            %v5898 = vsel %vm3666, %v5890, %v5897
            %v5899 = vrot.slane %v5894, 4
            %s5924 = smul.u32 %s5723, 3
            %s5925 = smul.addr %s5924, 4
            %s5926 = scalar_lea.vmem [#allocation2], %s5925
            %v5927 = vld [vmem:[%s5926] sm:$0xf]
            %v5928 = vsel %vm3829, %v5770, %v5927
            %5929 = vst [vmem:[%s5926] sm:$0xf] %v5928
            %5930 = vst.msk [vmem:[%s5926 + $0x4] sm:$0xf] %vm251, %v5779
            %v5931 = vld [vmem:[%s5926 + $0x8] sm:$0x1]
            %v5932 = vsel %vm262, %v5780, %v5931
            %5933 = vst [vmem:[%s5926 + $0x8] sm:$0x1] %v5932
            %v5934 = vld [vmem:[%s5926 + $0xc] sm:$0xf]
            %v5935 = vsel %vm3829, %v5787, %v5934
            %5936 = vst [vmem:[%s5926 + $0xc] sm:$0xf] %v5935
            %5937 = vst.msk [vmem:[%s5926 + $0x10] sm:$0xf] %vm251, %v5796
            %v5938 = vld [vmem:[%s5926 + $0x14] sm:$0x1]
            %v5939 = vsel %vm262, %v5797, %v5938
            %5940 = vst [vmem:[%s5926 + $0x14] sm:$0x1] %v5939
            %v5941 = vld [vmem:[%s5926 + $0x18] sm:$0xf]
            %v5942 = vsel %vm3829, %v5804, %v5941
            %5943 = vst [vmem:[%s5926 + $0x18] sm:$0xf] %v5942
            %5944 = vst.msk [vmem:[%s5926 + $0x1c] sm:$0xf] %vm251, %v5813
            %v5945 = vld [vmem:[%s5926 + $0x20] sm:$0x1]
            %v5946 = vsel %vm262, %v5814, %v5945
            %5947 = vst [vmem:[%s5926 + $0x20] sm:$0x1] %v5946
            %v5948 = vld [vmem:[%s5926 + $0x24] sm:$0xf]
            %v5949 = vsel %vm3829, %v5821, %v5948
            %5950 = vst [vmem:[%s5926 + $0x24] sm:$0xf] %v5949
            %5951 = vst.msk [vmem:[%s5926 + $0x28] sm:$0xf] %vm251, %v5830
            %v5952 = vld [vmem:[%s5926 + $0x2c] sm:$0x1]
            %v5953 = vsel %vm262, %v5831, %v5952
            %5954 = vst [vmem:[%s5926 + $0x2c] sm:$0x1] %v5953
            %v5955 = vld [vmem:[%s5926 + $0x30] sm:$0xf]
            %v5956 = vsel %vm3829, %v5838, %v5955
            %5957 = vst [vmem:[%s5926 + $0x30] sm:$0xf] %v5956
            %5958 = vst.msk [vmem:[%s5926 + $0x34] sm:$0xf] %vm251, %v5847
            %v5959 = vld [vmem:[%s5926 + $0x38] sm:$0x1]
            %v5960 = vsel %vm262, %v5848, %v5959
            %5961 = vst [vmem:[%s5926 + $0x38] sm:$0x1] %v5960
            %v5962 = vld [vmem:[%s5926 + $0x3c] sm:$0xf]
            %v5963 = vsel %vm3829, %v5855, %v5962
            %5964 = vst [vmem:[%s5926 + $0x3c] sm:$0xf] %v5963
            %5965 = vst.msk [vmem:[%s5926 + $0x40] sm:$0xf] %vm251, %v5864
            %v5966 = vld [vmem:[%s5926 + $0x44] sm:$0x1]
            %v5967 = vsel %vm262, %v5865, %v5966
            %5968 = vst [vmem:[%s5926 + $0x44] sm:$0x1] %v5967
            %v5969 = vld [vmem:[%s5926 + $0x48] sm:$0xf]
            %v5970 = vsel %vm3829, %v5872, %v5969
            %5971 = vst [vmem:[%s5926 + $0x48] sm:$0xf] %v5970
            %5972 = vst.msk [vmem:[%s5926 + $0x4c] sm:$0xf] %vm251, %v5881
            %v5973 = vld [vmem:[%s5926 + $0x50] sm:$0x1]
            %v5974 = vsel %vm262, %v5882, %v5973
            %5975 = vst [vmem:[%s5926 + $0x50] sm:$0x1] %v5974
            %v5976 = vld [vmem:[%s5926 + $0x54] sm:$0xf]
            %v5977 = vsel %vm3829, %v5889, %v5976
            %5978 = vst [vmem:[%s5926 + $0x54] sm:$0xf] %v5977
            %5979 = vst.msk [vmem:[%s5926 + $0x58] sm:$0xf] %vm251, %v5898
            %v5980 = vld [vmem:[%s5926 + $0x5c] sm:$0x1]
            %v5981 = vsel %vm262, %v5899, %v5980
            %5982 = vst [vmem:[%s5926 + $0x5c] sm:$0x1] %v5981
          $region80: #{dncnn_resnet_forward.1} parent=73 // pred_fallthru
            _
          %v5983 = vld [vmem:[#allocation3] sm:$0xff]
          %v5984 = vld [vmem:[#allocation3 + $0x8] sm:$0xff]
          %v5985 = vld [vmem:[#allocation3 + $0x10] sm:$0xff]
          %v5986 = vld [vmem:[#allocation3 + $0x18] sm:$0xff]
          %v5987 = vld [vmem:[#allocation3 + $0x20] sm:$0xff]
          %v5988 = vld [vmem:[#allocation3 + $0x28] sm:$0xff]
          %v5989 = vld [vmem:[#allocation3 + $0x30] sm:$0xff]
          %v5990 = vld [vmem:[#allocation3 + $0x38] sm:$0xff]
          %v5991 = vld [vmem:[#allocation3 + $0x40] sm:$0xff]
          %v5992 = vld [vmem:[#allocation3 + $0x48] sm:$0xff]
          %v5993 = vld [vmem:[#allocation3 + $0x50] sm:$0xff]
          %v5994 = vld [vmem:[#allocation3 + $0x58] sm:$0xff]
          %v5995 = vld [vmem:[#allocation3 + $0x60] sm:$0xff]
          %v5996 = vld [vmem:[#allocation3 + $0x68] sm:$0xff]
          %v5997 = vld [vmem:[#allocation3 + $0x70] sm:$0xff]
          %v5998 = vld [vmem:[#allocation3 + $0x78] sm:$0xff]
          %v5999 = vld [vmem:[#allocation3 + $0x80] sm:$0xff]
          %v6000 = vld [vmem:[#allocation3 + $0x88] sm:$0xff]
          %v6001 = vld [vmem:[#allocation3 + $0x90] sm:$0xff]
          %v6002 = vld [vmem:[#allocation3 + $0x98] sm:$0xff]
          %v6003 = vld [vmem:[#allocation3 + $0xa0] sm:$0xff]
          %v6004 = vld [vmem:[#allocation3 + $0xa8] sm:$0xff]
          %v6005 = vld [vmem:[#allocation3 + $0xb0] sm:$0xff]
          %v6006 = vld [vmem:[#allocation3 + $0xb8] sm:$0xff]
          %v6007 = vld [vmem:[#allocation3 + $0xc0] sm:$0xff]
          %v6008 = vld [vmem:[#allocation3 + $0xc8] sm:$0xff]
          %v6009 = vld [vmem:[#allocation3 + $0xd0] sm:$0xff]
          %v6010 = vld [vmem:[#allocation3 + $0xd8] sm:$0xff]
          %v6011 = vld [vmem:[#allocation3 + $0xe0] sm:$0xff]
          %v6012 = vld [vmem:[#allocation3 + $0xe8] sm:$0xff]
          %v6013 = vld [vmem:[#allocation3 + $0xf0] sm:$0xff]
          %v6014 = vld [vmem:[#allocation3 + $0xf8] sm:$0xff]
          %v6015 = vld [vmem:[#allocation3 + $0x100] sm:$0xff]
          %v6016 = vld [vmem:[#allocation3 + $0x108] sm:$0xff]
          %v6017 = vld [vmem:[#allocation3 + $0x110] sm:$0xff]
          %v6018 = vld [vmem:[#allocation3 + $0x118] sm:$0xff]
          %v6019 = vld [vmem:[#allocation3 + $0x120] sm:$0xff]
          %v6020 = vld [vmem:[#allocation3 + $0x128] sm:$0xff]
          %v6021 = vld [vmem:[#allocation3 + $0x130] sm:$0xff]
          %v6022 = vld [vmem:[#allocation3 + $0x138] sm:$0xff]
          %v6023 = vld [vmem:[#allocation5] sm:$0xff]
          %v6024 = vld [vmem:[#allocation5 + $0x8] sm:$0xff]
          %v6025 = vld [vmem:[#allocation5 + $0x10] sm:$0xff]
          %v6026 = vld [vmem:[#allocation5 + $0x18] sm:$0xff]
          %v6027 = vld [vmem:[#allocation5 + $0x20] sm:$0xff]
          %v6028 = vld [vmem:[#allocation5 + $0x28] sm:$0xff]
          %v6029 = vld [vmem:[#allocation5 + $0x30] sm:$0xff]
          %v6030 = vld [vmem:[#allocation5 + $0x38] sm:$0xff]
          %v6031 = vld [vmem:[#allocation5 + $0x40] sm:$0xff]
          %v6032 = vld [vmem:[#allocation5 + $0x48] sm:$0xff]
          %v6033 = vld [vmem:[#allocation5 + $0x50] sm:$0xff]
          %v6034 = vld [vmem:[#allocation5 + $0x58] sm:$0xff]
          %v6035 = vld [vmem:[#allocation5 + $0x60] sm:$0xff]
          %v6036 = vld [vmem:[#allocation5 + $0x68] sm:$0xff]
          %v6037 = vld [vmem:[#allocation5 + $0x70] sm:$0xff]
          %v6038 = vld [vmem:[#allocation5 + $0x78] sm:$0xff]
          %v6039 = vld [vmem:[#allocation5 + $0x80] sm:$0xff]
          %v6040 = vld [vmem:[#allocation5 + $0x88] sm:$0xff]
          %v6041 = vld [vmem:[#allocation5 + $0x90] sm:$0xff]
          %v6042 = vld [vmem:[#allocation5 + $0x98] sm:$0xff]
          %v6043 = vld [vmem:[#allocation5 + $0xa0] sm:$0xff]
          %v6044 = vld [vmem:[#allocation5 + $0xa8] sm:$0xff]
          %v6045 = vld [vmem:[#allocation5 + $0xb0] sm:$0xff]
          %v6046 = vld [vmem:[#allocation5 + $0xb8] sm:$0xff]
          %v6047 = vld [vmem:[#allocation5 + $0xc0] sm:$0xff]
          %v6048 = vld [vmem:[#allocation5 + $0xc8] sm:$0xff]
          %v6049 = vld [vmem:[#allocation5 + $0xd0] sm:$0xff]
          %v6050 = vld [vmem:[#allocation5 + $0xd8] sm:$0xff]
          %v6051 = vld [vmem:[#allocation5 + $0xe0] sm:$0xff]
          %v6052 = vld [vmem:[#allocation5 + $0xe8] sm:$0xff]
          %v6053 = vld [vmem:[#allocation5 + $0xf0] sm:$0xff]
          %v6054 = vld [vmem:[#allocation5 + $0xf8] sm:$0xff]
          %v6055 = vld [vmem:[#allocation5 + $0x100] sm:$0xff]
          %v6056 = vld [vmem:[#allocation5 + $0x108] sm:$0xff]
          %v6057 = vld [vmem:[#allocation5 + $0x110] sm:$0xff]
          %v6058 = vld [vmem:[#allocation5 + $0x118] sm:$0xff]
          %v6060 = vsel %vm1049, %v5987, 0
          %v6063 = vsel %vm1049, %v5992, 0
          %v6066 = vsel %vm1049, %v5997, 0
          %v6069 = vsel %vm1049, %v6002, 0
          %v6072 = vsel %vm1049, %v6007, 0
          %v6075 = vsel %vm1049, %v6012, 0
          %v6078 = vsel %vm1049, %v6017, 0
          %v6081 = vsel %vm1049, %v6022, 0
          %6083 = vmatprep.subr.bf16.mxu0 0
          %6084 = vmatpush1.bf16.msra.mxu0 %v6023
          %6085 = vmatprep.subr.bf16.mxu0 0
          %6086 = vmatpush1.bf16.msra.mxu0 %v6024
          %6087 = vmatprep.subr.bf16.mxu0 0
          %6088 = vmatpush1.bf16.msra.mxu0 %v6025
          %6089 = vmatprep.subr.bf16.mxu0 0
          %6090 = vmatpush1.bf16.msra.mxu0 %v6026
          %6091 = vmatprep.subr.bf16.mxu0 0
          %6092 = vmatpush1.bf16.msra.mxu0 %v6027
          %6093 = vmatprep.subr.bf16.mxu0 0
          %6094 = vmatpush1.bf16.msra.mxu0 %v6028
          %6095 = vmatprep.subr.bf16.mxu0 0
          %6096 = vmatpush1.bf16.msra.mxu0 %v6029
          %6097 = vmatprep.subr.bf16.mxu0 0
          %6098 = vmatpush1.bf16.msra.mxu0 %v6030
          %6099 = vmatprep.subr.bf16.mxu0 0
          %6100 = vmatpush1.bf16.msra.mxu0 %v6031
          %6101 = vmatprep.subr.bf16.mxu0 0
          %6102 = vmatpush1.bf16.msra.mxu0 %v6032
          %6103 = vmatprep.subr.bf16.mxu0 0
          %6104 = vmatpush1.bf16.msra.mxu0 %v6033
          %6105 = vmatprep.subr.bf16.mxu0 0
          %6106 = vmatpush1.bf16.msra.mxu0 %v6034
          %6107 = vmatprep.subr.bf16.mxu0 0
          %6108 = vmatpush1.bf16.msra.mxu0 %v6035
          %6109 = vmatprep.subr.bf16.mxu0 0
          %6110 = vmatpush1.bf16.msra.mxu0 %v6036
          %6111 = vmatprep.subr.bf16.mxu0 0
          %6112 = vmatpush1.bf16.msra.mxu0 %v6037
          %6113 = vmatprep.subr.bf16.mxu0 0
          %6114 = vmatpush1.bf16.msra.mxu0 %v6038
          %6115 = vmatprep.mubr.bf16.mxu0 %v5984
          %6116 = vmatmul.mubr.bf16.gmra.mrb[0].mxu0 %v5983
          %v6117 = vpop.f32.mrb[0].mxu0
          %v6118 = vadd.f32 0.0, %v6117
          %v6119 = vpop.f32.mrb[0].mxu0
          %v6120 = vpop.f32.mrb[0].mxu0
          %v6121 = vadd.f32 0.0, %v6120
          %v6122 = vpop.f32.mrb[0].mxu0
          %6123 = vmatprep.mubr.bf16.mxu0 %v5989
          %6124 = vmatmul.mubr.bf16.gmra.mrb[0].mxu0 %v5988
          %v6125 = vpop.f32.mrb[0].mxu0
          %v6126 = vadd.f32 0.0, %v6125
          %v6127 = vpop.f32.mrb[0].mxu0
          %v6128 = vpop.f32.mrb[0].mxu0
          %v6129 = vadd.f32 0.0, %v6128
          %v6130 = vpop.f32.mrb[0].mxu0
          %6131 = vmatprep.mubr.bf16.mxu0 %v5994
          %6132 = vmatmul.mubr.bf16.gmra.mrb[0].mxu0 %v5993
          %v6133 = vpop.f32.mrb[0].mxu0
          %v6134 = vadd.f32 0.0, %v6133
          %v6135 = vpop.f32.mrb[0].mxu0
          %v6136 = vpop.f32.mrb[0].mxu0
          %v6137 = vadd.f32 0.0, %v6136
          %v6138 = vpop.f32.mrb[0].mxu0
          %6139 = vmatprep.mubr.bf16.mxu0 %v5999
          %6140 = vmatmul.mubr.bf16.gmra.mrb[0].mxu0 %v5998
          %v6141 = vpop.f32.mrb[0].mxu0
          %v6142 = vadd.f32 0.0, %v6141
          %v6143 = vpop.f32.mrb[0].mxu0
          %v6144 = vpop.f32.mrb[0].mxu0
          %v6145 = vadd.f32 0.0, %v6144
          %v6146 = vpop.f32.mrb[0].mxu0
          %6147 = vmatprep.mubr.bf16.mxu0 %v6004
          %6148 = vmatmul.mubr.bf16.gmra.mrb[0].mxu0 %v6003
          %v6149 = vpop.f32.mrb[0].mxu0
          %v6150 = vadd.f32 0.0, %v6149
          %v6151 = vpop.f32.mrb[0].mxu0
          %v6152 = vpop.f32.mrb[0].mxu0
          %v6153 = vadd.f32 0.0, %v6152
          %v6154 = vpop.f32.mrb[0].mxu0
          %6155 = vmatprep.mubr.bf16.mxu0 %v6009
          %6156 = vmatmul.mubr.bf16.gmra.mrb[0].mxu0 %v6008
          %v6157 = vpop.f32.mrb[0].mxu0
          %v6158 = vadd.f32 0.0, %v6157
          %v6159 = vpop.f32.mrb[0].mxu0
          %v6160 = vpop.f32.mrb[0].mxu0
          %v6161 = vadd.f32 0.0, %v6160
          %v6162 = vpop.f32.mrb[0].mxu0
          %6163 = vmatprep.mubr.bf16.mxu0 %v6014
          %6164 = vmatmul.mubr.bf16.gmra.mrb[0].mxu0 %v6013
          %v6165 = vpop.f32.mrb[0].mxu0
          %v6166 = vadd.f32 0.0, %v6165
          %v6167 = vpop.f32.mrb[0].mxu0
          %v6168 = vpop.f32.mrb[0].mxu0
          %v6169 = vadd.f32 0.0, %v6168
          %v6170 = vpop.f32.mrb[0].mxu0
          %6171 = vmatprep.mubr.bf16.mxu0 %v6019
          %6172 = vmatmul.mubr.bf16.gmra.mrb[0].mxu0 %v6018
          %v6173 = vpop.f32.mrb[0].mxu0
          %v6174 = vadd.f32 0.0, %v6173
          %v6175 = vpop.f32.mrb[0].mxu0
          %v6176 = vpop.f32.mrb[0].mxu0
          %v6177 = vadd.f32 0.0, %v6176
          %v6178 = vpop.f32.mrb[0].mxu0
          %6179 = vdwg.mxu0
          %6180 = vmatprep.subr.bf16.mxu0 0
          %6181 = vmatpush1.bf16.msra.mxu0 %v6039
          %6182 = vmatprep.subr.bf16.mxu0 0
          %6183 = vmatpush1.bf16.msra.mxu0 %v6040
          %6184 = vmatprep.subr.bf16.mxu0 0
          %6185 = vmatpush1.bf16.msra.mxu0 %v6041
          %6186 = vmatprep.subr.bf16.mxu0 0
          %6187 = vmatpush1.bf16.msra.mxu0 %v6042
          %6188 = vmatprep.subr.bf16.mxu0 0
          %6189 = vmatpush1.bf16.msra.mxu0 %v6043
          %6190 = vmatprep.subr.bf16.mxu0 0
          %6191 = vmatpush1.bf16.msra.mxu0 %v6044
          %6192 = vmatprep.subr.bf16.mxu0 0
          %6193 = vmatpush1.bf16.msra.mxu0 %v6045
          %6194 = vmatprep.subr.bf16.mxu0 0
          %6195 = vmatpush1.bf16.msra.mxu0 %v6046
          %6196 = vmatprep.subr.bf16.mxu0 0
          %6197 = vmatpush1.bf16.msra.mxu0 %v6047
          %6198 = vmatprep.subr.bf16.mxu0 0
          %6199 = vmatpush1.bf16.msra.mxu0 %v6048
          %6200 = vmatprep.subr.bf16.mxu0 0
          %6201 = vmatpush1.bf16.msra.mxu0 %v6049
          %6202 = vmatprep.subr.bf16.mxu0 0
          %6203 = vmatpush1.bf16.msra.mxu0 %v6050
          %6204 = vmatprep.subr.bf16.mxu0 0
          %6205 = vmatpush1.bf16.msra.mxu0 %v6051
          %6206 = vmatprep.subr.bf16.mxu0 0
          %6207 = vmatpush1.bf16.msra.mxu0 %v6052
          %6208 = vmatprep.subr.bf16.mxu0 0
          %6209 = vmatpush1.bf16.msra.mxu0 %v6053
          %6210 = vmatprep.subr.bf16.mxu0 0
          %6211 = vmatpush1.bf16.msra.mxu0 %v6054
          %6212 = vmatprep.mubr.bf16.mxu0 %v5986
          %6213 = vmatmul.mubr.bf16.gmra.mrb[0].mxu0 %v5985
          %v6214 = vpop.f32.mrb[0].mxu0
          %v6215 = vadd.f32 %v6118, %v6214
          %v6216 = vpop.f32.mrb[0].mxu0
          %v6217 = vpop.f32.mrb[0].mxu0
          %v6218 = vadd.f32 %v6121, %v6217
          %v6219 = vpop.f32.mrb[0].mxu0
          %6220 = vmatprep.mubr.bf16.mxu0 %v5991
          %6221 = vmatmul.mubr.bf16.gmra.mrb[0].mxu0 %v5990
          %v6222 = vpop.f32.mrb[0].mxu0
          %v6223 = vadd.f32 %v6126, %v6222
          %v6224 = vpop.f32.mrb[0].mxu0
          %v6225 = vpop.f32.mrb[0].mxu0
          %v6226 = vadd.f32 %v6129, %v6225
          %v6227 = vpop.f32.mrb[0].mxu0
          %6228 = vmatprep.mubr.bf16.mxu0 %v5996
          %6229 = vmatmul.mubr.bf16.gmra.mrb[0].mxu0 %v5995
          %v6230 = vpop.f32.mrb[0].mxu0
          %v6231 = vadd.f32 %v6134, %v6230
          %v6232 = vpop.f32.mrb[0].mxu0
          %v6233 = vpop.f32.mrb[0].mxu0
          %v6234 = vadd.f32 %v6137, %v6233
          %v6235 = vpop.f32.mrb[0].mxu0
          %6236 = vmatprep.mubr.bf16.mxu0 %v6001
          %6237 = vmatmul.mubr.bf16.gmra.mrb[0].mxu0 %v6000
          %v6238 = vpop.f32.mrb[0].mxu0
          %v6239 = vadd.f32 %v6142, %v6238
          %v6240 = vpop.f32.mrb[0].mxu0
          %v6241 = vpop.f32.mrb[0].mxu0
          %v6242 = vadd.f32 %v6145, %v6241
          %v6243 = vpop.f32.mrb[0].mxu0
          %6244 = vmatprep.mubr.bf16.mxu0 %v6006
          %6245 = vmatmul.mubr.bf16.gmra.mrb[0].mxu0 %v6005
          %v6246 = vpop.f32.mrb[0].mxu0
          %v6247 = vadd.f32 %v6150, %v6246
          %v6248 = vpop.f32.mrb[0].mxu0
          %v6249 = vpop.f32.mrb[0].mxu0
          %v6250 = vadd.f32 %v6153, %v6249
          %v6251 = vpop.f32.mrb[0].mxu0
          %6252 = vmatprep.mubr.bf16.mxu0 %v6011
          %6253 = vmatmul.mubr.bf16.gmra.mrb[0].mxu0 %v6010
          %v6254 = vpop.f32.mrb[0].mxu0
          %v6255 = vadd.f32 %v6158, %v6254
          %v6256 = vpop.f32.mrb[0].mxu0
          %v6257 = vpop.f32.mrb[0].mxu0
          %v6258 = vadd.f32 %v6161, %v6257
          %v6259 = vpop.f32.mrb[0].mxu0
          %6260 = vmatprep.mubr.bf16.mxu0 %v6016
          %6261 = vmatmul.mubr.bf16.gmra.mrb[0].mxu0 %v6015
          %v6262 = vpop.f32.mrb[0].mxu0
          %v6263 = vadd.f32 %v6166, %v6262
          %v6264 = vpop.f32.mrb[0].mxu0
          %v6265 = vpop.f32.mrb[0].mxu0
          %v6266 = vadd.f32 %v6169, %v6265
          %v6267 = vpop.f32.mrb[0].mxu0
          %6268 = vmatprep.mubr.bf16.mxu0 %v6021
          %6269 = vmatmul.mubr.bf16.gmra.mrb[0].mxu0 %v6020
          %v6270 = vpop.f32.mrb[0].mxu0
          %v6271 = vadd.f32 %v6174, %v6270
          %v6272 = vpop.f32.mrb[0].mxu0
          %v6273 = vpop.f32.mrb[0].mxu0
          %v6274 = vadd.f32 %v6177, %v6273
          %v6275 = vpop.f32.mrb[0].mxu0
          %6276 = vdwg.mxu0
          %6277 = vmatprep.subr.bf16.mxu0 0
          %6278 = vmatpush1.bf16.msra.mxu0 %v6055
          %6279 = vmatprep.subr.bf16.mxu0 0
          %6280 = vmatpush1.bf16.msra.mxu0 %v6056
          %6281 = vmatprep.subr.bf16.mxu0 0
          %6282 = vmatpush1.bf16.msra.mxu0 %v6057
          %6283 = vmatprep.subr.bf16.mxu0 0
          %6284 = vmatpush1.bf16.msra.mxu0 %v6058
          %6285 = vmatprep.subr.bf16.mxu0 0
          %6286 = vmatpush1.bf16.msra.mxu0 0
          %6287 = vmatprep.subr.bf16.mxu0 0
          %6288 = vmatpush1.bf16.msra.mxu0 0
          %6289 = vmatprep.subr.bf16.mxu0 0
          %6290 = vmatpush1.bf16.msra.mxu0 0
          %6291 = vmatprep.subr.bf16.mxu0 0
          %6292 = vmatpush1.bf16.msra.mxu0 0
          %6293 = vmatprep.subr.bf16.mxu0 0
          %6294 = vmatpush1.bf16.msra.mxu0 0
          %6295 = vmatprep.subr.bf16.mxu0 0
          %6296 = vmatpush1.bf16.msra.mxu0 0
          %6297 = vmatprep.subr.bf16.mxu0 0
          %6298 = vmatpush1.bf16.msra.mxu0 0
          %6299 = vmatprep.subr.bf16.mxu0 0
          %6300 = vmatpush1.bf16.msra.mxu0 0
          %6301 = vmatprep.subr.bf16.mxu0 0
          %6302 = vmatpush1.bf16.msra.mxu0 0
          %6303 = vmatprep.subr.bf16.mxu0 0
          %6304 = vmatpush1.bf16.msra.mxu0 0
          %6305 = vmatprep.subr.bf16.mxu0 0
          %6306 = vmatpush1.bf16.msra.mxu0 0
          %6307 = vmatprep.subr.bf16.mxu0 0
          %6308 = vmatpush1.bf16.msra.mxu0 0
          %6309 = vmatprep.mubr.bf16.mxu0 0
          %6310 = vmatmul.mubr.bf16.gmra.mrb[0].mxu0 %v6060
          %v6311 = vpop.f32.mrb[0].mxu0
          %v6312 = vadd.f32 %v6215, %v6311
          %v6313 = vpop.f32.mrb[0].mxu0
          %v6314 = vpop.f32.mrb[0].mxu0
          %v6315 = vadd.f32 %v6218, %v6314
          %v6316 = vpop.f32.mrb[0].mxu0
          %6317 = vmatprep.mubr.bf16.mxu0 0
          %6318 = vmatmul.mubr.bf16.gmra.mrb[0].mxu0 %v6063
          %v6319 = vpop.f32.mrb[0].mxu0
          %v6320 = vadd.f32 %v6223, %v6319
          %v6321 = vpop.f32.mrb[0].mxu0
          %v6322 = vpop.f32.mrb[0].mxu0
          %v6323 = vadd.f32 %v6226, %v6322
          %v6324 = vpop.f32.mrb[0].mxu0
          %6325 = vmatprep.mubr.bf16.mxu0 0
          %6326 = vmatmul.mubr.bf16.gmra.mrb[0].mxu0 %v6066
          %v6327 = vpop.f32.mrb[0].mxu0
          %v6328 = vadd.f32 %v6231, %v6327
          %v6329 = vpop.f32.mrb[0].mxu0
          %v6330 = vpop.f32.mrb[0].mxu0
          %v6331 = vadd.f32 %v6234, %v6330
          %v6332 = vpop.f32.mrb[0].mxu0
          %6333 = vmatprep.mubr.bf16.mxu0 0
          %6334 = vmatmul.mubr.bf16.gmra.mrb[0].mxu0 %v6069
          %v6335 = vpop.f32.mrb[0].mxu0
          %v6336 = vadd.f32 %v6239, %v6335
          %v6337 = vpop.f32.mrb[0].mxu0
          %v6338 = vpop.f32.mrb[0].mxu0
          %v6339 = vadd.f32 %v6242, %v6338
          %v6340 = vpop.f32.mrb[0].mxu0
          %6341 = vmatprep.mubr.bf16.mxu0 0
          %6342 = vmatmul.mubr.bf16.gmra.mrb[0].mxu0 %v6072
          %v6343 = vpop.f32.mrb[0].mxu0
          %v6344 = vadd.f32 %v6247, %v6343
          %v6345 = vpop.f32.mrb[0].mxu0
          %v6346 = vpop.f32.mrb[0].mxu0
          %v6347 = vadd.f32 %v6250, %v6346
          %v6348 = vpop.f32.mrb[0].mxu0
          %6349 = vmatprep.mubr.bf16.mxu0 0
          %6350 = vmatmul.mubr.bf16.gmra.mrb[0].mxu0 %v6075
          %v6351 = vpop.f32.mrb[0].mxu0
          %v6352 = vadd.f32 %v6255, %v6351
          %v6353 = vpop.f32.mrb[0].mxu0
          %v6354 = vpop.f32.mrb[0].mxu0
          %v6355 = vadd.f32 %v6258, %v6354
          %v6356 = vpop.f32.mrb[0].mxu0
          %6357 = vmatprep.mubr.bf16.mxu0 0
          %6358 = vmatmul.mubr.bf16.gmra.mrb[0].mxu0 %v6078
          %v6359 = vpop.f32.mrb[0].mxu0
          %v6360 = vadd.f32 %v6263, %v6359
          %v6361 = vpop.f32.mrb[0].mxu0
          %v6362 = vpop.f32.mrb[0].mxu0
          %v6363 = vadd.f32 %v6266, %v6362
          %v6364 = vpop.f32.mrb[0].mxu0
          %6365 = vmatprep.mubr.bf16.mxu0 0
          %6366 = vmatmul.mubr.bf16.gmra.mrb[0].mxu0 %v6081
          %v6367 = vpop.f32.mrb[0].mxu0
          %v6368 = vadd.f32 %v6271, %v6367
          %v6369 = vpop.f32.mrb[0].mxu0
          %v6370 = vpop.f32.mrb[0].mxu0
          %v6371 = vadd.f32 %v6274, %v6370
          %v6372 = vpop.f32.mrb[0].mxu0
          %6373 = vdwg.mxu0
          %v6375 = vlaneseq
          %v6376 = vshrl.u32 %v6375, 7
          %v6377 = vsub.s32 0, %v6376
          %v6378 = vrot.slane %v4220, %v6377
          %v6380 = vmul.f32 %v6312, %v6378
          %v6381 = vmul.f32 %v6315, %v6378
          %v6382 = vmul.f32 %v6320, %v6378
          %v6383 = vmul.f32 %v6323, %v6378
          %v6384 = vmul.f32 %v6328, %v6378
          %v6385 = vmul.f32 %v6331, %v6378
          %v6386 = vmul.f32 %v6336, %v6378
          %v6387 = vmul.f32 %v6339, %v6378
          %v6388 = vmul.f32 %v6344, %v6378
          %v6389 = vmul.f32 %v6347, %v6378
          %v6390 = vmul.f32 %v6352, %v6378
          %v6391 = vmul.f32 %v6355, %v6378
          %v6392 = vmul.f32 %v6360, %v6378
          %v6393 = vmul.f32 %v6363, %v6378
          %v6394 = vmul.f32 %v6368, %v6378
          %v6395 = vmul.f32 %v6371, %v6378
          %v6397 = vlaneseq
          %v6398 = vshrl.u32 %v6397, 7
          %v6399 = vsub.s32 0, %v6398
          %v6400 = vrot.slane %v4222, %v6399
          %v6402 = vadd.f32 %v6380, %v6400
          %v6403 = vadd.f32 %v6381, %v6400
          %v6404 = vadd.f32 %v6382, %v6400
          %v6405 = vadd.f32 %v6383, %v6400
          %v6406 = vadd.f32 %v6384, %v6400
          %v6407 = vadd.f32 %v6385, %v6400
          %v6408 = vadd.f32 %v6386, %v6400
          %v6409 = vadd.f32 %v6387, %v6400
          %v6410 = vadd.f32 %v6388, %v6400
          %v6411 = vadd.f32 %v6389, %v6400
          %v6412 = vadd.f32 %v6390, %v6400
          %v6413 = vadd.f32 %v6391, %v6400
          %v6414 = vadd.f32 %v6392, %v6400
          %v6415 = vadd.f32 %v6393, %v6400
          %v6416 = vadd.f32 %v6394, %v6400
          %v6417 = vadd.f32 %v6395, %v6400
          %v6418 = vmax.f32 %v6402, 0.0
          %v6419 = vmax.f32 %v6403, 0.0
          %v6420 = vmax.f32 %v6404, 0.0
          %v6421 = vmax.f32 %v6405, 0.0
          %v6422 = vmax.f32 %v6406, 0.0
          %v6423 = vmax.f32 %v6407, 0.0
          %v6424 = vmax.f32 %v6408, 0.0
          %v6425 = vmax.f32 %v6409, 0.0
          %v6426 = vmax.f32 %v6410, 0.0
          %v6427 = vmax.f32 %v6411, 0.0
          %v6428 = vmax.f32 %v6412, 0.0
          %v6429 = vmax.f32 %v6413, 0.0
          %v6430 = vmax.f32 %v6414, 0.0
          %v6431 = vmax.f32 %v6415, 0.0
          %v6432 = vmax.f32 %v6416, 0.0
          %v6433 = vmax.f32 %v6417, 0.0
          %v6434 = vld [vmem:[%s4682] sm:$0xf]
          %v6435 = vld [vmem:[%s4682 + $0x4] sm:$0xf]
          %v6436 = vld [vmem:[%s4682 + $0x8] sm:$0x1]
          %v6437 = vld [vmem:[%s4682 + $0xc] sm:$0xf]
          %v6438 = vld [vmem:[%s4682 + $0x10] sm:$0xf]
          %v6439 = vld [vmem:[%s4682 + $0x14] sm:$0x1]
          %v6440 = vld [vmem:[%s4682 + $0x18] sm:$0xf]
          %v6441 = vld [vmem:[%s4682 + $0x1c] sm:$0xf]
          %v6442 = vld [vmem:[%s4682 + $0x20] sm:$0x1]
          %v6443 = vld [vmem:[%s4682 + $0x24] sm:$0xf]
          %v6444 = vld [vmem:[%s4682 + $0x28] sm:$0xf]
          %v6445 = vld [vmem:[%s4682 + $0x2c] sm:$0x1]
          %v6446 = vld [vmem:[%s4682 + $0x30] sm:$0xf]
          %v6447 = vld [vmem:[%s4682 + $0x34] sm:$0xf]
          %v6448 = vld [vmem:[%s4682 + $0x38] sm:$0x1]
          %v6449 = vld [vmem:[%s4682 + $0x3c] sm:$0xf]
          %v6450 = vld [vmem:[%s4682 + $0x40] sm:$0xf]
          %v6451 = vld [vmem:[%s4682 + $0x44] sm:$0x1]
          %v6452 = vld [vmem:[%s4682 + $0x48] sm:$0xf]
          %v6453 = vld [vmem:[%s4682 + $0x4c] sm:$0xf]
          %v6454 = vld [vmem:[%s4682 + $0x50] sm:$0x1]
          %v6455 = vld [vmem:[%s4682 + $0x54] sm:$0xf]
          %v6456 = vld [vmem:[%s4682 + $0x58] sm:$0xf]
          %v6457 = vld [vmem:[%s4682 + $0x5c] sm:$0x1]
          %v6459 = vshrl.u32 %v6434, 16
          %v6461 = vrot.slane %v6459, 4
          %v6462 = vshll.u32 %v6434, 16
          %v6464 = vrot.slane %v6462, 5
          %v6465 = vor.u32 %v6461, %v6464
          %v6466 = vrot.slane %v6465, 4
          %v6468 = vshll.u32 %v6435, 16
          %v6470 = vrot.slane %v6468, 5
          %v6471 = vsel %vm4259, %v6466, %v6470
          %v6472 = vshrl.u32 %v6435, 16
          %v6474 = vrot.slane %v6472, 4
          %v6475 = vor.u32 %v6474, %v6470
          %v6476 = vrot.slane %v6475, 4
          %v6478 = vshll.u32 %v6436, 16
          %v6480 = vrot.slane %v6478, 5
          %v6481 = vsel %vm4259, %v6476, %v6480
          %v6483 = vshrl.u32 %v6437, 16
          %v6485 = vrot.slane %v6483, 4
          %v6486 = vshll.u32 %v6437, 16
          %v6488 = vrot.slane %v6486, 5
          %v6489 = vor.u32 %v6485, %v6488
          %v6490 = vrot.slane %v6489, 4
          %v6492 = vshll.u32 %v6438, 16
          %v6494 = vrot.slane %v6492, 5
          %v6495 = vsel %vm4259, %v6490, %v6494
          %v6496 = vshrl.u32 %v6438, 16
          %v6498 = vrot.slane %v6496, 4
          %v6499 = vor.u32 %v6498, %v6494
          %v6500 = vrot.slane %v6499, 4
          %v6502 = vshll.u32 %v6439, 16
          %v6504 = vrot.slane %v6502, 5
          %v6505 = vsel %vm4259, %v6500, %v6504
          %v6507 = vshrl.u32 %v6440, 16
          %v6509 = vrot.slane %v6507, 4
          %v6510 = vshll.u32 %v6440, 16
          %v6512 = vrot.slane %v6510, 5
          %v6513 = vor.u32 %v6509, %v6512
          %v6514 = vrot.slane %v6513, 4
          %v6516 = vshll.u32 %v6441, 16
          %v6518 = vrot.slane %v6516, 5
          %v6519 = vsel %vm4259, %v6514, %v6518
          %v6520 = vshrl.u32 %v6441, 16
          %v6522 = vrot.slane %v6520, 4
          %v6523 = vor.u32 %v6522, %v6518
          %v6524 = vrot.slane %v6523, 4
          %v6526 = vshll.u32 %v6442, 16
          %v6528 = vrot.slane %v6526, 5
          %v6529 = vsel %vm4259, %v6524, %v6528
          %v6531 = vshrl.u32 %v6443, 16
          %v6533 = vrot.slane %v6531, 4
          %v6534 = vshll.u32 %v6443, 16
          %v6536 = vrot.slane %v6534, 5
          %v6537 = vor.u32 %v6533, %v6536
          %v6538 = vrot.slane %v6537, 4
          %v6540 = vshll.u32 %v6444, 16
          %v6542 = vrot.slane %v6540, 5
          %v6543 = vsel %vm4259, %v6538, %v6542
          %v6544 = vshrl.u32 %v6444, 16
          %v6546 = vrot.slane %v6544, 4
          %v6547 = vor.u32 %v6546, %v6542
          %v6548 = vrot.slane %v6547, 4
          %v6550 = vshll.u32 %v6445, 16
          %v6552 = vrot.slane %v6550, 5
          %v6553 = vsel %vm4259, %v6548, %v6552
          %v6555 = vshrl.u32 %v6446, 16
          %v6557 = vrot.slane %v6555, 4
          %v6558 = vshll.u32 %v6446, 16
          %v6560 = vrot.slane %v6558, 5
          %v6561 = vor.u32 %v6557, %v6560
          %v6562 = vrot.slane %v6561, 4
          %v6564 = vshll.u32 %v6447, 16
          %v6566 = vrot.slane %v6564, 5
          %v6567 = vsel %vm4259, %v6562, %v6566
          %v6568 = vshrl.u32 %v6447, 16
          %v6570 = vrot.slane %v6568, 4
          %v6571 = vor.u32 %v6570, %v6566
          %v6572 = vrot.slane %v6571, 4
          %v6574 = vshll.u32 %v6448, 16
          %v6576 = vrot.slane %v6574, 5
          %v6577 = vsel %vm4259, %v6572, %v6576
          %v6579 = vshrl.u32 %v6449, 16
          %v6581 = vrot.slane %v6579, 4
          %v6582 = vshll.u32 %v6449, 16
          %v6584 = vrot.slane %v6582, 5
          %v6585 = vor.u32 %v6581, %v6584
          %v6586 = vrot.slane %v6585, 4
          %v6588 = vshll.u32 %v6450, 16
          %v6590 = vrot.slane %v6588, 5
          %v6591 = vsel %vm4259, %v6586, %v6590
          %v6592 = vshrl.u32 %v6450, 16
          %v6594 = vrot.slane %v6592, 4
          %v6595 = vor.u32 %v6594, %v6590
          %v6596 = vrot.slane %v6595, 4
          %v6598 = vshll.u32 %v6451, 16
          %v6600 = vrot.slane %v6598, 5
          %v6601 = vsel %vm4259, %v6596, %v6600
          %v6603 = vshrl.u32 %v6452, 16
          %v6605 = vrot.slane %v6603, 4
          %v6606 = vshll.u32 %v6452, 16
          %v6608 = vrot.slane %v6606, 5
          %v6609 = vor.u32 %v6605, %v6608
          %v6610 = vrot.slane %v6609, 4
          %v6612 = vshll.u32 %v6453, 16
          %v6614 = vrot.slane %v6612, 5
          %v6615 = vsel %vm4259, %v6610, %v6614
          %v6616 = vshrl.u32 %v6453, 16
          %v6618 = vrot.slane %v6616, 4
          %v6619 = vor.u32 %v6618, %v6614
          %v6620 = vrot.slane %v6619, 4
          %v6622 = vshll.u32 %v6454, 16
          %v6624 = vrot.slane %v6622, 5
          %v6625 = vsel %vm4259, %v6620, %v6624
          %v6627 = vshrl.u32 %v6455, 16
          %v6629 = vrot.slane %v6627, 4
          %v6630 = vshll.u32 %v6455, 16
          %v6632 = vrot.slane %v6630, 5
          %v6633 = vor.u32 %v6629, %v6632
          %v6634 = vrot.slane %v6633, 4
          %v6636 = vshll.u32 %v6456, 16
          %v6638 = vrot.slane %v6636, 5
          %v6639 = vsel %vm4259, %v6634, %v6638
          %v6640 = vshrl.u32 %v6456, 16
          %v6642 = vrot.slane %v6640, 4
          %v6643 = vor.u32 %v6642, %v6638
          %v6644 = vrot.slane %v6643, 4
          %v6646 = vshll.u32 %v6457, 16
          %v6648 = vrot.slane %v6646, 5
          %v6649 = vsel %vm4259, %v6644, %v6648
          %v6666 = vunpack.c.l.bf16 %v6471
          %v6667 = vunpack.c.l.bf16 %v6481
          %v6668 = vunpack.c.l.bf16 %v6495
          %v6669 = vunpack.c.l.bf16 %v6505
          %v6670 = vunpack.c.l.bf16 %v6519
          %v6671 = vunpack.c.l.bf16 %v6529
          %v6672 = vunpack.c.l.bf16 %v6543
          %v6673 = vunpack.c.l.bf16 %v6553
          %v6674 = vunpack.c.l.bf16 %v6567
          %v6675 = vunpack.c.l.bf16 %v6577
          %v6676 = vunpack.c.l.bf16 %v6591
          %v6677 = vunpack.c.l.bf16 %v6601
          %v6678 = vunpack.c.l.bf16 %v6615
          %v6679 = vunpack.c.l.bf16 %v6625
          %v6680 = vunpack.c.l.bf16 %v6639
          %v6681 = vunpack.c.l.bf16 %v6649
          %v6682 = vadd.f32 %v6418, %v6666
          %v6683 = vadd.f32 %v6419, %v6667
          %v6684 = vadd.f32 %v6420, %v6668
          %v6685 = vadd.f32 %v6421, %v6669
          %v6686 = vadd.f32 %v6422, %v6670
          %v6687 = vadd.f32 %v6423, %v6671
          %v6688 = vadd.f32 %v6424, %v6672
          %v6689 = vadd.f32 %v6425, %v6673
          %v6690 = vadd.f32 %v6426, %v6674
          %v6691 = vadd.f32 %v6427, %v6675
          %v6692 = vadd.f32 %v6428, %v6676
          %v6693 = vadd.f32 %v6429, %v6677
          %v6694 = vadd.f32 %v6430, %v6678
          %v6695 = vadd.f32 %v6431, %v6679
          %v6696 = vadd.f32 %v6432, %v6680
          %v6697 = vadd.f32 %v6433, %v6681
          %v6698 = vpack.c.bf16 %v6683, %v6682
          %v6699 = vpack.c.bf16 %v6685, %v6684
          %v6700 = vpack.c.bf16 %v6687, %v6686
          %v6701 = vpack.c.bf16 %v6689, %v6688
          %v6702 = vpack.c.bf16 %v6691, %v6690
          %v6703 = vpack.c.bf16 %v6693, %v6692
          %v6704 = vpack.c.bf16 %v6695, %v6694
          %v6705 = vpack.c.bf16 %v6697, %v6696
          %6706 = vst.msk [vmem:[#allocation4] sm:$0xff] %vm1049, %v6698
          %6707 = vst.msk [vmem:[#allocation4 + $0x8] sm:$0xff] %vm1049, %v6699
          %6708 = vst.msk [vmem:[#allocation4 + $0x10] sm:$0xff] %vm1049, %v6700
          %6709 = vst.msk [vmem:[#allocation4 + $0x18] sm:$0xff] %vm1049, %v6701
          %6710 = vst.msk [vmem:[#allocation4 + $0x20] sm:$0xff] %vm1049, %v6702
          %6711 = vst.msk [vmem:[#allocation4 + $0x28] sm:$0xff] %vm1049, %v6703
          %6712 = vst.msk [vmem:[#allocation4 + $0x30] sm:$0xff] %vm1049, %v6704
          %6713 = vst.msk [vmem:[#allocation4 + $0x38] sm:$0xff] %vm1049, %v6705
        $region74: #{dncnn_resnet_forward.1} parent=66 // loop_footer
          %s4228 = sadd.s32 1, %s4224
        $region75: #{dncnn_resnet_forward.1} parent=66 // loop_footer_branch
          %4223 = sbr.rel target = $region71
        $region76: #{dncnn_resnet_forward.1} parent=66 // loop_exit
          _
        %v6714 = vld [vmem:[#allocation4] sm:$0xff]
        %v6715 = vld [vmem:[#allocation4 + $0x8] sm:$0xff]
        %v6716 = vld [vmem:[#allocation4 + $0x10] sm:$0xff]
        %v6717 = vld [vmem:[#allocation4 + $0x18] sm:$0xff]
        %v6718 = vld [vmem:[#allocation4 + $0x20] sm:$0xff]
        %v6719 = vld [vmem:[#allocation4 + $0x28] sm:$0xff]
        %v6720 = vld [vmem:[#allocation4 + $0x30] sm:$0xff]
        %v6721 = vld [vmem:[#allocation4 + $0x38] sm:$0xff]
        %v6730 = vunpack.c.l.b16 %v6714
        %v6731 = vunpack.c.h.b16 %v6714
        %v6732 = vunpack.c.l.b16 %v6715
        %v6733 = vunpack.c.h.b16 %v6715
        %v6734 = vunpack.c.l.b16 %v6716
        %v6735 = vunpack.c.h.b16 %v6716
        %v6736 = vunpack.c.l.b16 %v6717
        %v6737 = vunpack.c.h.b16 %v6717
        %v6738 = vunpack.c.l.b16 %v6718
        %v6739 = vunpack.c.h.b16 %v6718
        %v6740 = vunpack.c.l.b16 %v6719
        %v6741 = vunpack.c.h.b16 %v6719
        %v6742 = vunpack.c.l.b16 %v6720
        %v6743 = vunpack.c.h.b16 %v6720
        %v6744 = vunpack.c.l.b16 %v6721
        %v6745 = vunpack.c.h.b16 %v6721
        %v6746 = vpack.c.b16 %v6730, %v6730
        %v6747 = vpack.c.b16 %v6731, %v6731
        %v6748 = vpack.c.b16 %v6732, %v6732
        %v6749 = vpack.c.b16 %v6733, %v6733
        %v6750 = vpack.c.b16 %v6734, %v6734
        %v6751 = vpack.c.b16 %v6735, %v6735
        %v6752 = vpack.c.b16 %v6736, %v6736
        %v6753 = vpack.c.b16 %v6737, %v6737
        %v6754 = vpack.c.b16 %v6738, %v6738
        %v6755 = vpack.c.b16 %v6739, %v6739
        %v6756 = vpack.c.b16 %v6740, %v6740
        %v6757 = vpack.c.b16 %v6741, %v6741
        %v6758 = vpack.c.b16 %v6742, %v6742
        %v6759 = vpack.c.b16 %v6743, %v6743
        %v6760 = vpack.c.b16 %v6744, %v6744
        %v6761 = vpack.c.b16 %v6745, %v6745
        %v6763 = vshrl.u32 %v6746, 16
        %v6765 = vrot.slane %v6763, 7
        %v6766 = vshll.u32 %v6746, 16
        %v6768 = vor.u32 %v6765, %v6766
        %v6769 = vrot.slane %v6765, 4
        %v6771 = vshrl.u32 %v6747, 16
        %v6773 = vrot.slane %v6771, 7
        %v6774 = vshll.u32 %v6747, 16
        %v6776 = vor.u32 %v6773, %v6774
        %v6777 = vsel %vm3666, %v6769, %v6776
        %v6778 = vrot.slane %v6773, 4
        %v6780 = vshrl.u32 %v6748, 16
        %v6782 = vrot.slane %v6780, 7
        %v6783 = vshll.u32 %v6748, 16
        %v6785 = vor.u32 %v6782, %v6783
        %v6786 = vrot.slane %v6782, 4
        %v6788 = vshrl.u32 %v6749, 16
        %v6790 = vrot.slane %v6788, 7
        %v6791 = vshll.u32 %v6749, 16
        %v6793 = vor.u32 %v6790, %v6791
        %v6794 = vsel %vm3666, %v6786, %v6793
        %v6795 = vrot.slane %v6790, 4
        %v6797 = vshrl.u32 %v6750, 16
        %v6799 = vrot.slane %v6797, 7
        %v6800 = vshll.u32 %v6750, 16
        %v6802 = vor.u32 %v6799, %v6800
        %v6803 = vrot.slane %v6799, 4
        %v6805 = vshrl.u32 %v6751, 16
        %v6807 = vrot.slane %v6805, 7
        %v6808 = vshll.u32 %v6751, 16
        %v6810 = vor.u32 %v6807, %v6808
        %v6811 = vsel %vm3666, %v6803, %v6810
        %v6812 = vrot.slane %v6807, 4
        %v6814 = vshrl.u32 %v6752, 16
        %v6816 = vrot.slane %v6814, 7
        %v6817 = vshll.u32 %v6752, 16
        %v6819 = vor.u32 %v6816, %v6817
        %v6820 = vrot.slane %v6816, 4
        %v6822 = vshrl.u32 %v6753, 16
        %v6824 = vrot.slane %v6822, 7
        %v6825 = vshll.u32 %v6753, 16
        %v6827 = vor.u32 %v6824, %v6825
        %v6828 = vsel %vm3666, %v6820, %v6827
        %v6829 = vrot.slane %v6824, 4
        %v6831 = vshrl.u32 %v6754, 16
        %v6833 = vrot.slane %v6831, 7
        %v6834 = vshll.u32 %v6754, 16
        %v6836 = vor.u32 %v6833, %v6834
        %v6837 = vrot.slane %v6833, 4
        %v6839 = vshrl.u32 %v6755, 16
        %v6841 = vrot.slane %v6839, 7
        %v6842 = vshll.u32 %v6755, 16
        %v6844 = vor.u32 %v6841, %v6842
        %v6845 = vsel %vm3666, %v6837, %v6844
        %v6846 = vrot.slane %v6841, 4
        %v6848 = vshrl.u32 %v6756, 16
        %v6850 = vrot.slane %v6848, 7
        %v6851 = vshll.u32 %v6756, 16
        %v6853 = vor.u32 %v6850, %v6851
        %v6854 = vrot.slane %v6850, 4
        %v6856 = vshrl.u32 %v6757, 16
        %v6858 = vrot.slane %v6856, 7
        %v6859 = vshll.u32 %v6757, 16
        %v6861 = vor.u32 %v6858, %v6859
        %v6862 = vsel %vm3666, %v6854, %v6861
        %v6863 = vrot.slane %v6858, 4
        %v6865 = vshrl.u32 %v6758, 16
        %v6867 = vrot.slane %v6865, 7
        %v6868 = vshll.u32 %v6758, 16
        %v6870 = vor.u32 %v6867, %v6868
        %v6871 = vrot.slane %v6867, 4
        %v6873 = vshrl.u32 %v6759, 16
        %v6875 = vrot.slane %v6873, 7
        %v6876 = vshll.u32 %v6759, 16
        %v6878 = vor.u32 %v6875, %v6876
        %v6879 = vsel %vm3666, %v6871, %v6878
        %v6880 = vrot.slane %v6875, 4
        %v6882 = vshrl.u32 %v6760, 16
        %v6884 = vrot.slane %v6882, 7
        %v6885 = vshll.u32 %v6760, 16
        %v6887 = vor.u32 %v6884, %v6885
        %v6888 = vrot.slane %v6884, 4
        %v6890 = vshrl.u32 %v6761, 16
        %v6892 = vrot.slane %v6890, 7
        %v6893 = vshll.u32 %v6761, 16
        %v6895 = vor.u32 %v6892, %v6893
        %v6896 = vsel %vm3666, %v6888, %v6895
        %v6897 = vrot.slane %v6892, 4
        %v6922 = vld [vmem:[%s3827] sm:$0xf]
        %v6923 = vsel %vm3829, %v6768, %v6922
        %6924 = vst [vmem:[%s3827] sm:$0xf] %v6923
        %6925 = vst.msk [vmem:[%s3827 + $0x4] sm:$0xf] %vm251, %v6777
        %v6926 = vld [vmem:[%s3827 + $0x8] sm:$0x1]
        %v6927 = vsel %vm262, %v6778, %v6926
        %6928 = vst [vmem:[%s3827 + $0x8] sm:$0x1] %v6927
        %v6929 = vld [vmem:[%s3827 + $0xc] sm:$0xf]
        %v6930 = vsel %vm3829, %v6785, %v6929
        %6931 = vst [vmem:[%s3827 + $0xc] sm:$0xf] %v6930
        %6932 = vst.msk [vmem:[%s3827 + $0x10] sm:$0xf] %vm251, %v6794
        %v6933 = vld [vmem:[%s3827 + $0x14] sm:$0x1]
        %v6934 = vsel %vm262, %v6795, %v6933
        %6935 = vst [vmem:[%s3827 + $0x14] sm:$0x1] %v6934
        %v6936 = vld [vmem:[%s3827 + $0x18] sm:$0xf]
        %v6937 = vsel %vm3829, %v6802, %v6936
        %6938 = vst [vmem:[%s3827 + $0x18] sm:$0xf] %v6937
        %6939 = vst.msk [vmem:[%s3827 + $0x1c] sm:$0xf] %vm251, %v6811
        %v6940 = vld [vmem:[%s3827 + $0x20] sm:$0x1]
        %v6941 = vsel %vm262, %v6812, %v6940
        %6942 = vst [vmem:[%s3827 + $0x20] sm:$0x1] %v6941
        %v6943 = vld [vmem:[%s3827 + $0x24] sm:$0xf]
        %v6944 = vsel %vm3829, %v6819, %v6943
        %6945 = vst [vmem:[%s3827 + $0x24] sm:$0xf] %v6944
        %6946 = vst.msk [vmem:[%s3827 + $0x28] sm:$0xf] %vm251, %v6828
        %v6947 = vld [vmem:[%s3827 + $0x2c] sm:$0x1]
        %v6948 = vsel %vm262, %v6829, %v6947
        %6949 = vst [vmem:[%s3827 + $0x2c] sm:$0x1] %v6948
        %v6950 = vld [vmem:[%s3827 + $0x30] sm:$0xf]
        %v6951 = vsel %vm3829, %v6836, %v6950
        %6952 = vst [vmem:[%s3827 + $0x30] sm:$0xf] %v6951
        %6953 = vst.msk [vmem:[%s3827 + $0x34] sm:$0xf] %vm251, %v6845
        %v6954 = vld [vmem:[%s3827 + $0x38] sm:$0x1]
        %v6955 = vsel %vm262, %v6846, %v6954
        %6956 = vst [vmem:[%s3827 + $0x38] sm:$0x1] %v6955
        %v6957 = vld [vmem:[%s3827 + $0x3c] sm:$0xf]
        %v6958 = vsel %vm3829, %v6853, %v6957
        %6959 = vst [vmem:[%s3827 + $0x3c] sm:$0xf] %v6958
        %6960 = vst.msk [vmem:[%s3827 + $0x40] sm:$0xf] %vm251, %v6862
        %v6961 = vld [vmem:[%s3827 + $0x44] sm:$0x1]
        %v6962 = vsel %vm262, %v6863, %v6961
        %6963 = vst [vmem:[%s3827 + $0x44] sm:$0x1] %v6962
        %v6964 = vld [vmem:[%s3827 + $0x48] sm:$0xf]
        %v6965 = vsel %vm3829, %v6870, %v6964
        %6966 = vst [vmem:[%s3827 + $0x48] sm:$0xf] %v6965
        %6967 = vst.msk [vmem:[%s3827 + $0x4c] sm:$0xf] %vm251, %v6879
        %v6968 = vld [vmem:[%s3827 + $0x50] sm:$0x1]
        %v6969 = vsel %vm262, %v6880, %v6968
        %6970 = vst [vmem:[%s3827 + $0x50] sm:$0x1] %v6969
        %v6971 = vld [vmem:[%s3827 + $0x54] sm:$0xf]
        %v6972 = vsel %vm3829, %v6887, %v6971
        %6973 = vst [vmem:[%s3827 + $0x54] sm:$0xf] %v6972
        %6974 = vst.msk [vmem:[%s3827 + $0x58] sm:$0xf] %vm251, %v6896
        %v6975 = vld [vmem:[%s3827 + $0x5c] sm:$0x1]
        %v6976 = vsel %vm262, %v6897, %v6975
        %6977 = vst [vmem:[%s3827 + $0x5c] sm:$0x1] %v6976
      $region67: #{dncnn_resnet_forward.1} parent=43 // loop_footer
        %s3891 = sadd.s32 1, %s3887
      $region68: #{dncnn_resnet_forward.1} parent=43 // loop_footer_branch
        %3886 = sbr.rel target = $region64
      $region69: #{dncnn_resnet_forward.1} parent=43 // loop_exit
        _
      loop: start=0, step=1, limit=2
      $region81: #{dncnn_resnet_forward.1} parent=43 // loop_pre_header
        _
      $region82: #{dncnn_resnet_forward.1} parent=43 // loop_header
        %s6979 = sphi 0, %s6983
        %p6980 = scmp.ge.s32.totalorder %s6979, 2
      $region83: #{dncnn_resnet_forward.1} parent=43 // loop_header_branch
        %6982 = sbr.rel (%p6980) target = $region87
      $region84: #{dncnn_resnet_forward.1} parent=43 // loop_body
        %s6984 = smul.u32 %s6979, 8
        %s6985 = smul.u32 %s6984, 3
        %s6986 = smul.addr %s6985, 4
        %s6987 = scalar_lea.vmem [#allocation2], %s6986
        %v6988 = vld [vmem:[%s6987] sm:$0xf]
        %v6989 = vld [vmem:[%s6987 + $0x4] sm:$0xf]
        %v6990 = vld [vmem:[%s6987 + $0xc] sm:$0xf]
        %v6991 = vld [vmem:[%s6987 + $0x10] sm:$0xf]
        %v6992 = vld [vmem:[%s6987 + $0x18] sm:$0xf]
        %v6993 = vld [vmem:[%s6987 + $0x1c] sm:$0xf]
        %v6994 = vld [vmem:[%s6987 + $0x24] sm:$0xf]
        %v6995 = vld [vmem:[%s6987 + $0x28] sm:$0xf]
        %v6996 = vld [vmem:[%s6987 + $0x30] sm:$0xf]
        %v6997 = vld [vmem:[%s6987 + $0x34] sm:$0xf]
        %v6998 = vld [vmem:[%s6987 + $0x3c] sm:$0xf]
        %v6999 = vld [vmem:[%s6987 + $0x40] sm:$0xf]
        %v7000 = vld [vmem:[%s6987 + $0x48] sm:$0xf]
        %v7001 = vld [vmem:[%s6987 + $0x4c] sm:$0xf]
        %v7002 = vld [vmem:[%s6987 + $0x54] sm:$0xf]
        %v7003 = vld [vmem:[%s6987 + $0x58] sm:$0xf]
        %v7004 = vld [vmem:[%s6987 + $0x8] sm:$0x1]
        %v7005 = vld [vmem:[%s6987 + $0x14] sm:$0x1]
        %v7006 = vld [vmem:[%s6987 + $0x20] sm:$0x1]
        %v7007 = vld [vmem:[%s6987 + $0x2c] sm:$0x1]
        %v7008 = vld [vmem:[%s6987 + $0x38] sm:$0x1]
        %v7009 = vld [vmem:[%s6987 + $0x44] sm:$0x1]
        %v7010 = vld [vmem:[%s6987 + $0x50] sm:$0x1]
        %v7011 = vld [vmem:[%s6987 + $0x5c] sm:$0x1]
        %vm7012 = vsmask.f32 3328
        %vm7013 = vsmask.f32 7440
        %vm7014 = vmor %vm7012, %vm7013
        %v7016 = vshrl.u32 %v6988, 16
        %v7018 = vrot.slane %v7016, 4
        %v7019 = vshll.u32 %v6988, 16
        %v7021 = vrot.slane %v7019, 5
        %v7022 = vor.u32 %v7018, %v7021
        %v7023 = vrot.slane %v7022, 4
        %v7025 = vshll.u32 %v6989, 16
        %v7027 = vrot.slane %v7025, 5
        %v7028 = vsel %vm7014, %v7023, %v7027
        %v7029 = vshrl.u32 %v6989, 16
        %v7031 = vrot.slane %v7029, 4
        %v7032 = vor.u32 %v7031, %v7027
        %v7033 = vrot.slane %v7032, 4
        %v7035 = vshll.u32 %v7004, 16
        %v7037 = vrot.slane %v7035, 5
        %v7038 = vsel %vm7014, %v7033, %v7037
        %v7040 = vshrl.u32 %v6990, 16
        %v7042 = vrot.slane %v7040, 4
        %v7043 = vshll.u32 %v6990, 16
        %v7045 = vrot.slane %v7043, 5
        %v7046 = vor.u32 %v7042, %v7045
        %v7047 = vrot.slane %v7046, 4
        %v7049 = vshll.u32 %v6991, 16
        %v7051 = vrot.slane %v7049, 5
        %v7052 = vsel %vm7014, %v7047, %v7051
        %v7053 = vshrl.u32 %v6991, 16
        %v7055 = vrot.slane %v7053, 4
        %v7056 = vor.u32 %v7055, %v7051
        %v7057 = vrot.slane %v7056, 4
        %v7059 = vshll.u32 %v7005, 16
        %v7061 = vrot.slane %v7059, 5
        %v7062 = vsel %vm7014, %v7057, %v7061
        %v7064 = vshrl.u32 %v6992, 16
        %v7066 = vrot.slane %v7064, 4
        %v7067 = vshll.u32 %v6992, 16
        %v7069 = vrot.slane %v7067, 5
        %v7070 = vor.u32 %v7066, %v7069
        %v7071 = vrot.slane %v7070, 4
        %v7073 = vshll.u32 %v6993, 16
        %v7075 = vrot.slane %v7073, 5
        %v7076 = vsel %vm7014, %v7071, %v7075
        %v7077 = vshrl.u32 %v6993, 16
        %v7079 = vrot.slane %v7077, 4
        %v7080 = vor.u32 %v7079, %v7075
        %v7081 = vrot.slane %v7080, 4
        %v7083 = vshll.u32 %v7006, 16
        %v7085 = vrot.slane %v7083, 5
        %v7086 = vsel %vm7014, %v7081, %v7085
        %v7088 = vshrl.u32 %v6994, 16
        %v7090 = vrot.slane %v7088, 4
        %v7091 = vshll.u32 %v6994, 16
        %v7093 = vrot.slane %v7091, 5
        %v7094 = vor.u32 %v7090, %v7093
        %v7095 = vrot.slane %v7094, 4
        %v7097 = vshll.u32 %v6995, 16
        %v7099 = vrot.slane %v7097, 5
        %v7100 = vsel %vm7014, %v7095, %v7099
        %v7101 = vshrl.u32 %v6995, 16
        %v7103 = vrot.slane %v7101, 4
        %v7104 = vor.u32 %v7103, %v7099
        %v7105 = vrot.slane %v7104, 4
        %v7107 = vshll.u32 %v7007, 16
        %v7109 = vrot.slane %v7107, 5
        %v7110 = vsel %vm7014, %v7105, %v7109
        %v7112 = vshrl.u32 %v6996, 16
        %v7114 = vrot.slane %v7112, 4
        %v7115 = vshll.u32 %v6996, 16
        %v7117 = vrot.slane %v7115, 5
        %v7118 = vor.u32 %v7114, %v7117
        %v7119 = vrot.slane %v7118, 4
        %v7121 = vshll.u32 %v6997, 16
        %v7123 = vrot.slane %v7121, 5
        %v7124 = vsel %vm7014, %v7119, %v7123
        %v7125 = vshrl.u32 %v6997, 16
        %v7127 = vrot.slane %v7125, 4
        %v7128 = vor.u32 %v7127, %v7123
        %v7129 = vrot.slane %v7128, 4
        %v7131 = vshll.u32 %v7008, 16
        %v7133 = vrot.slane %v7131, 5
        %v7134 = vsel %vm7014, %v7129, %v7133
        %v7136 = vshrl.u32 %v6998, 16
        %v7138 = vrot.slane %v7136, 4
        %v7139 = vshll.u32 %v6998, 16
        %v7141 = vrot.slane %v7139, 5
        %v7142 = vor.u32 %v7138, %v7141
        %v7143 = vrot.slane %v7142, 4
        %v7145 = vshll.u32 %v6999, 16
        %v7147 = vrot.slane %v7145, 5
        %v7148 = vsel %vm7014, %v7143, %v7147
        %v7149 = vshrl.u32 %v6999, 16
        %v7151 = vrot.slane %v7149, 4
        %v7152 = vor.u32 %v7151, %v7147
        %v7153 = vrot.slane %v7152, 4
        %v7155 = vshll.u32 %v7009, 16
        %v7157 = vrot.slane %v7155, 5
        %v7158 = vsel %vm7014, %v7153, %v7157
        %v7160 = vshrl.u32 %v7000, 16
        %v7162 = vrot.slane %v7160, 4
        %v7163 = vshll.u32 %v7000, 16
        %v7165 = vrot.slane %v7163, 5
        %v7166 = vor.u32 %v7162, %v7165
        %v7167 = vrot.slane %v7166, 4
        %v7169 = vshll.u32 %v7001, 16
        %v7171 = vrot.slane %v7169, 5
        %v7172 = vsel %vm7014, %v7167, %v7171
        %v7173 = vshrl.u32 %v7001, 16
        %v7175 = vrot.slane %v7173, 4
        %v7176 = vor.u32 %v7175, %v7171
        %v7177 = vrot.slane %v7176, 4
        %v7179 = vshll.u32 %v7010, 16
        %v7181 = vrot.slane %v7179, 5
        %v7182 = vsel %vm7014, %v7177, %v7181
        %v7184 = vshrl.u32 %v7002, 16
        %v7186 = vrot.slane %v7184, 4
        %v7187 = vshll.u32 %v7002, 16
        %v7189 = vrot.slane %v7187, 5
        %v7190 = vor.u32 %v7186, %v7189
        %v7191 = vrot.slane %v7190, 4
        %v7193 = vshll.u32 %v7003, 16
        %v7195 = vrot.slane %v7193, 5
        %v7196 = vsel %vm7014, %v7191, %v7195
        %v7197 = vshrl.u32 %v7003, 16
        %v7199 = vrot.slane %v7197, 4
        %v7200 = vor.u32 %v7199, %v7195
        %v7201 = vrot.slane %v7200, 4
        %v7203 = vshll.u32 %v7011, 16
        %v7205 = vrot.slane %v7203, 5
        %v7206 = vsel %vm7014, %v7201, %v7205
        %v7223 = vunpack.c.l.b16 %v6988
        %v7224 = vunpack.c.l.b16 %v6989
        %v7225 = vunpack.c.l.b16 %v6990
        %v7226 = vunpack.c.l.b16 %v6991
        %v7227 = vunpack.c.l.b16 %v6992
        %v7228 = vunpack.c.l.b16 %v6993
        %v7229 = vunpack.c.l.b16 %v6994
        %v7230 = vunpack.c.l.b16 %v6995
        %v7231 = vunpack.c.l.b16 %v6996
        %v7232 = vunpack.c.l.b16 %v6997
        %v7233 = vunpack.c.l.b16 %v6998
        %v7234 = vunpack.c.l.b16 %v6999
        %v7235 = vunpack.c.l.b16 %v7000
        %v7236 = vunpack.c.l.b16 %v7001
        %v7237 = vunpack.c.l.b16 %v7002
        %v7238 = vunpack.c.l.b16 %v7003
        %v7239 = vpack.c.b16 %v7224, %v7223
        %v7240 = vpack.c.b16 %v7226, %v7225
        %v7241 = vpack.c.b16 %v7228, %v7227
        %v7242 = vpack.c.b16 %v7230, %v7229
        %v7243 = vpack.c.b16 %v7232, %v7231
        %v7244 = vpack.c.b16 %v7234, %v7233
        %v7245 = vpack.c.b16 %v7236, %v7235
        %v7246 = vpack.c.b16 %v7238, %v7237
        %v7247 = vunpack.c.l.b16 %v7028
        %v7248 = vunpack.c.l.b16 %v7038
        %v7249 = vunpack.c.l.b16 %v7052
        %v7250 = vunpack.c.l.b16 %v7062
        %v7251 = vunpack.c.l.b16 %v7076
        %v7252 = vunpack.c.l.b16 %v7086
        %v7253 = vunpack.c.l.b16 %v7100
        %v7254 = vunpack.c.l.b16 %v7110
        %v7255 = vunpack.c.l.b16 %v7124
        %v7256 = vunpack.c.l.b16 %v7134
        %v7257 = vunpack.c.l.b16 %v7148
        %v7258 = vunpack.c.l.b16 %v7158
        %v7259 = vunpack.c.l.b16 %v7172
        %v7260 = vunpack.c.l.b16 %v7182
        %v7261 = vunpack.c.l.b16 %v7196
        %v7262 = vunpack.c.l.b16 %v7206
        %v7263 = vpack.c.b16 %v7248, %v7247
        %v7264 = vpack.c.b16 %v7250, %v7249
        %v7265 = vpack.c.b16 %v7252, %v7251
        %v7266 = vpack.c.b16 %v7254, %v7253
        %v7267 = vpack.c.b16 %v7256, %v7255
        %v7268 = vpack.c.b16 %v7258, %v7257
        %v7269 = vpack.c.b16 %v7260, %v7259
        %v7270 = vpack.c.b16 %v7262, %v7261
        %7271 = vrot.lane.b32.xlu0 %v7263, 64
        %v7272 = vpop.permute.xlu0 %7271
        %7273 = vrot.lane.b32.xlu0 %v7264, 64
        %v7274 = vpop.permute.xlu0 %7273
        %7275 = vrot.lane.b32.xlu0 %v7265, 64
        %v7276 = vpop.permute.xlu0 %7275
        %7277 = vrot.lane.b32.xlu0 %v7266, 64
        %v7278 = vpop.permute.xlu0 %7277
        %7279 = vrot.lane.b32.xlu0 %v7267, 64
        %v7280 = vpop.permute.xlu0 %7279
        %7281 = vrot.lane.b32.xlu0 %v7268, 64
        %v7282 = vpop.permute.xlu0 %7281
        %7283 = vrot.lane.b32.xlu0 %v7269, 64
        %v7284 = vpop.permute.xlu0 %7283
        %7285 = vrot.lane.b32.xlu0 %v7270, 64
        %v7286 = vpop.permute.xlu0 %7285
        %v7289 = vsel %vm1049, %v7239, %v7272
        %v7293 = vsel %vm1049, %v7240, %v7274
        %v7297 = vsel %vm1049, %v7241, %v7276
        %v7301 = vsel %vm1049, %v7242, %v7278
        %v7305 = vsel %vm1049, %v7243, %v7280
        %v7309 = vsel %vm1049, %v7244, %v7282
        %v7313 = vsel %vm1049, %v7245, %v7284
        %v7317 = vsel %vm1049, %v7246, %v7286
        %7319 = vst [vmem:[#allocation3] sm:$0xff] %v7289
        %7320 = vst [vmem:[#allocation3 + $0x28] sm:$0xff] %v7293
        %7321 = vst [vmem:[#allocation3 + $0x50] sm:$0xff] %v7297
        %7322 = vst [vmem:[#allocation3 + $0x78] sm:$0xff] %v7301
        %7323 = vst [vmem:[#allocation3 + $0xa0] sm:$0xff] %v7305
        %7324 = vst [vmem:[#allocation3 + $0xc8] sm:$0xff] %v7309
        %7325 = vst [vmem:[#allocation3 + $0xf0] sm:$0xff] %v7313
        %7326 = vst [vmem:[#allocation3 + $0x118] sm:$0xff] %v7317
        %v7327 = vld [vmem:[%s6987] sm:$0xe]
        %v7328 = vld [vmem:[%s6987 + $0x4] sm:$0xf]
        %v7329 = vld [vmem:[%s6987 + $0x8] sm:$0x1]
        %v7330 = vld [vmem:[%s6987 + $0xc] sm:$0xe]
        %v7331 = vld [vmem:[%s6987 + $0x10] sm:$0xf]
        %v7332 = vld [vmem:[%s6987 + $0x14] sm:$0x1]
        %v7333 = vld [vmem:[%s6987 + $0x18] sm:$0xe]
        %v7334 = vld [vmem:[%s6987 + $0x1c] sm:$0xf]
        %v7335 = vld [vmem:[%s6987 + $0x20] sm:$0x1]
        %v7336 = vld [vmem:[%s6987 + $0x24] sm:$0xe]
        %v7337 = vld [vmem:[%s6987 + $0x28] sm:$0xf]
        %v7338 = vld [vmem:[%s6987 + $0x2c] sm:$0x1]
        %v7339 = vld [vmem:[%s6987 + $0x30] sm:$0xe]
        %v7340 = vld [vmem:[%s6987 + $0x34] sm:$0xf]
        %v7341 = vld [vmem:[%s6987 + $0x38] sm:$0x1]
        %v7342 = vld [vmem:[%s6987 + $0x3c] sm:$0xe]
        %v7343 = vld [vmem:[%s6987 + $0x40] sm:$0xf]
        %v7344 = vld [vmem:[%s6987 + $0x44] sm:$0x1]
        %v7345 = vld [vmem:[%s6987 + $0x48] sm:$0xe]
        %v7346 = vld [vmem:[%s6987 + $0x4c] sm:$0xf]
        %v7347 = vld [vmem:[%s6987 + $0x50] sm:$0x1]
        %v7348 = vld [vmem:[%s6987 + $0x54] sm:$0xe]
        %v7349 = vld [vmem:[%s6987 + $0x58] sm:$0xf]
        %v7350 = vld [vmem:[%s6987 + $0x5c] sm:$0x1]
        %vm7375 = vcmask 1042432
        %vm7376 = vcmask 1046532
        %vm7377 = vmor %vm7375, %vm7376
        %v7378 = vrot.slane %v7327, 5
        %v7379 = vrot.slane %v7378, 4
        %v7380 = vrot.slane %v7328, 5
        %v7381 = vsel %vm7377, %v7379, %v7380
        %v7382 = vrot.slane %v7380, 4
        %v7383 = vrot.slane %v7329, 5
        %v7384 = vsel %vm7377, %v7382, %v7383
        %v7385 = vrot.slane %v7330, 5
        %v7386 = vrot.slane %v7385, 4
        %v7387 = vrot.slane %v7331, 5
        %v7388 = vsel %vm7377, %v7386, %v7387
        %v7389 = vrot.slane %v7387, 4
        %v7390 = vrot.slane %v7332, 5
        %v7391 = vsel %vm7377, %v7389, %v7390
        %v7392 = vrot.slane %v7333, 5
        %v7393 = vrot.slane %v7392, 4
        %v7394 = vrot.slane %v7334, 5
        %v7395 = vsel %vm7377, %v7393, %v7394
        %v7396 = vrot.slane %v7394, 4
        %v7397 = vrot.slane %v7335, 5
        %v7398 = vsel %vm7377, %v7396, %v7397
        %v7399 = vrot.slane %v7336, 5
        %v7400 = vrot.slane %v7399, 4
        %v7401 = vrot.slane %v7337, 5
        %v7402 = vsel %vm7377, %v7400, %v7401
        %v7403 = vrot.slane %v7401, 4
        %v7404 = vrot.slane %v7338, 5
        %v7405 = vsel %vm7377, %v7403, %v7404
        %v7406 = vrot.slane %v7339, 5
        %v7407 = vrot.slane %v7406, 4
        %v7408 = vrot.slane %v7340, 5
        %v7409 = vsel %vm7377, %v7407, %v7408
        %v7410 = vrot.slane %v7408, 4
        %v7411 = vrot.slane %v7341, 5
        %v7412 = vsel %vm7377, %v7410, %v7411
        %v7413 = vrot.slane %v7342, 5
        %v7414 = vrot.slane %v7413, 4
        %v7415 = vrot.slane %v7343, 5
        %v7416 = vsel %vm7377, %v7414, %v7415
        %v7417 = vrot.slane %v7415, 4
        %v7418 = vrot.slane %v7344, 5
        %v7419 = vsel %vm7377, %v7417, %v7418
        %v7420 = vrot.slane %v7345, 5
        %v7421 = vrot.slane %v7420, 4
        %v7422 = vrot.slane %v7346, 5
        %v7423 = vsel %vm7377, %v7421, %v7422
        %v7424 = vrot.slane %v7422, 4
        %v7425 = vrot.slane %v7347, 5
        %v7426 = vsel %vm7377, %v7424, %v7425
        %v7427 = vrot.slane %v7348, 5
        %v7428 = vrot.slane %v7427, 4
        %v7429 = vrot.slane %v7349, 5
        %v7430 = vsel %vm7377, %v7428, %v7429
        %v7431 = vrot.slane %v7429, 4
        %v7432 = vrot.slane %v7350, 5
        %v7433 = vsel %vm7377, %v7431, %v7432
        %s7434 = sadd.s32 %s6984, 1
        %s7435 = smul.u32 %s7434, 3
        %s7436 = smul.addr %s7435, 4
        %s7437 = scalar_lea.vmem [#allocation2], %s7436
        %v7438 = vld [vmem:[%s7437] sm:$0xf]
        %v7439 = vld [vmem:[%s7437 + $0x4] sm:$0xf]
        %v7440 = vld [vmem:[%s7437 + $0xc] sm:$0xf]
        %v7441 = vld [vmem:[%s7437 + $0x10] sm:$0xf]
        %v7442 = vld [vmem:[%s7437 + $0x18] sm:$0xf]
        %v7443 = vld [vmem:[%s7437 + $0x1c] sm:$0xf]
        %v7444 = vld [vmem:[%s7437 + $0x24] sm:$0xf]
        %v7445 = vld [vmem:[%s7437 + $0x28] sm:$0xf]
        %v7446 = vld [vmem:[%s7437 + $0x30] sm:$0xf]
        %v7447 = vld [vmem:[%s7437 + $0x34] sm:$0xf]
        %v7448 = vld [vmem:[%s7437 + $0x3c] sm:$0xf]
        %v7449 = vld [vmem:[%s7437 + $0x40] sm:$0xf]
        %v7450 = vld [vmem:[%s7437 + $0x48] sm:$0xf]
        %v7451 = vld [vmem:[%s7437 + $0x4c] sm:$0xf]
        %v7452 = vld [vmem:[%s7437 + $0x54] sm:$0xf]
        %v7453 = vld [vmem:[%s7437 + $0x58] sm:$0xf]
        %v7454 = vunpack.c.l.b16 %v7381
        %v7455 = vunpack.c.l.b16 %v7384
        %v7456 = vunpack.c.l.b16 %v7388
        %v7457 = vunpack.c.l.b16 %v7391
        %v7458 = vunpack.c.l.b16 %v7395
        %v7459 = vunpack.c.l.b16 %v7398
        %v7460 = vunpack.c.l.b16 %v7402
        %v7461 = vunpack.c.l.b16 %v7405
        %v7462 = vunpack.c.l.b16 %v7409
        %v7463 = vunpack.c.l.b16 %v7412
        %v7464 = vunpack.c.l.b16 %v7416
        %v7465 = vunpack.c.l.b16 %v7419
        %v7466 = vunpack.c.l.b16 %v7423
        %v7467 = vunpack.c.l.b16 %v7426
        %v7468 = vunpack.c.l.b16 %v7430
        %v7469 = vunpack.c.l.b16 %v7433
        %v7470 = vpack.c.b16 %v7455, %v7454
        %v7471 = vpack.c.b16 %v7457, %v7456
        %v7472 = vpack.c.b16 %v7459, %v7458
        %v7473 = vpack.c.b16 %v7461, %v7460
        %v7474 = vpack.c.b16 %v7463, %v7462
        %v7475 = vpack.c.b16 %v7465, %v7464
        %v7476 = vpack.c.b16 %v7467, %v7466
        %v7477 = vpack.c.b16 %v7469, %v7468
        %v7494 = vunpack.c.l.b16 %v7438
        %v7495 = vunpack.c.l.b16 %v7439
        %v7496 = vunpack.c.l.b16 %v7440
        %v7497 = vunpack.c.l.b16 %v7441
        %v7498 = vunpack.c.l.b16 %v7442
        %v7499 = vunpack.c.l.b16 %v7443
        %v7500 = vunpack.c.l.b16 %v7444
        %v7501 = vunpack.c.l.b16 %v7445
        %v7502 = vunpack.c.l.b16 %v7446
        %v7503 = vunpack.c.l.b16 %v7447
        %v7504 = vunpack.c.l.b16 %v7448
        %v7505 = vunpack.c.l.b16 %v7449
        %v7506 = vunpack.c.l.b16 %v7450
        %v7507 = vunpack.c.l.b16 %v7451
        %v7508 = vunpack.c.l.b16 %v7452
        %v7509 = vunpack.c.l.b16 %v7453
        %v7510 = vpack.c.b16 %v7495, %v7494
        %v7511 = vpack.c.b16 %v7497, %v7496
        %v7512 = vpack.c.b16 %v7499, %v7498
        %v7513 = vpack.c.b16 %v7501, %v7500
        %v7514 = vpack.c.b16 %v7503, %v7502
        %v7515 = vpack.c.b16 %v7505, %v7504
        %v7516 = vpack.c.b16 %v7507, %v7506
        %v7517 = vpack.c.b16 %v7509, %v7508
        %7518 = vrot.lane.b32.xlu0 %v7510, 64
        %v7519 = vpop.permute.xlu0 %7518
        %7520 = vrot.lane.b32.xlu0 %v7511, 64
        %v7521 = vpop.permute.xlu0 %7520
        %7522 = vrot.lane.b32.xlu0 %v7512, 64
        %v7523 = vpop.permute.xlu0 %7522
        %7524 = vrot.lane.b32.xlu0 %v7513, 64
        %v7525 = vpop.permute.xlu0 %7524
        %7526 = vrot.lane.b32.xlu0 %v7514, 64
        %v7527 = vpop.permute.xlu0 %7526
        %7528 = vrot.lane.b32.xlu0 %v7515, 64
        %v7529 = vpop.permute.xlu0 %7528
        %7530 = vrot.lane.b32.xlu0 %v7516, 64
        %v7531 = vpop.permute.xlu0 %7530
        %7532 = vrot.lane.b32.xlu0 %v7517, 64
        %v7533 = vpop.permute.xlu0 %7532
        %v7536 = vsel %vm1049, %v7470, %v7519
        %v7540 = vsel %vm1049, %v7471, %v7521
        %v7544 = vsel %vm1049, %v7472, %v7523
        %v7548 = vsel %vm1049, %v7473, %v7525
        %v7552 = vsel %vm1049, %v7474, %v7527
        %v7556 = vsel %vm1049, %v7475, %v7529
        %v7560 = vsel %vm1049, %v7476, %v7531
        %v7564 = vsel %vm1049, %v7477, %v7533
        %7566 = vst [vmem:[#allocation3 + $0x8] sm:$0xff] %v7536
        %7567 = vst [vmem:[#allocation3 + $0x30] sm:$0xff] %v7540
        %7568 = vst [vmem:[#allocation3 + $0x58] sm:$0xff] %v7544
        %7569 = vst [vmem:[#allocation3 + $0x80] sm:$0xff] %v7548
        %7570 = vst [vmem:[#allocation3 + $0xa8] sm:$0xff] %v7552
        %7571 = vst [vmem:[#allocation3 + $0xd0] sm:$0xff] %v7556
        %7572 = vst [vmem:[#allocation3 + $0xf8] sm:$0xff] %v7560
        %7573 = vst [vmem:[#allocation3 + $0x120] sm:$0xff] %v7564
        %v7574 = vld [vmem:[%s7437] sm:$0xf]
        %v7575 = vld [vmem:[%s7437 + $0x4] sm:$0xf]
        %v7576 = vld [vmem:[%s7437 + $0x8] sm:$0x1]
        %v7577 = vld [vmem:[%s7437 + $0xc] sm:$0xf]
        %v7578 = vld [vmem:[%s7437 + $0x10] sm:$0xf]
        %v7579 = vld [vmem:[%s7437 + $0x14] sm:$0x1]
        %v7580 = vld [vmem:[%s7437 + $0x18] sm:$0xf]
        %v7581 = vld [vmem:[%s7437 + $0x1c] sm:$0xf]
        %v7582 = vld [vmem:[%s7437 + $0x20] sm:$0x1]
        %v7583 = vld [vmem:[%s7437 + $0x24] sm:$0xf]
        %v7584 = vld [vmem:[%s7437 + $0x28] sm:$0xf]
        %v7585 = vld [vmem:[%s7437 + $0x2c] sm:$0x1]
        %v7586 = vld [vmem:[%s7437 + $0x30] sm:$0xf]
        %v7587 = vld [vmem:[%s7437 + $0x34] sm:$0xf]
        %v7588 = vld [vmem:[%s7437 + $0x38] sm:$0x1]
        %v7589 = vld [vmem:[%s7437 + $0x3c] sm:$0xf]
        %v7590 = vld [vmem:[%s7437 + $0x40] sm:$0xf]
        %v7591 = vld [vmem:[%s7437 + $0x44] sm:$0x1]
        %v7592 = vld [vmem:[%s7437 + $0x48] sm:$0xf]
        %v7593 = vld [vmem:[%s7437 + $0x4c] sm:$0xf]
        %v7594 = vld [vmem:[%s7437 + $0x50] sm:$0x1]
        %v7595 = vld [vmem:[%s7437 + $0x54] sm:$0xf]
        %v7596 = vld [vmem:[%s7437 + $0x58] sm:$0xf]
        %v7597 = vld [vmem:[%s7437 + $0x5c] sm:$0x1]
        %v7599 = vshrl.u32 %v7574, 16
        %v7601 = vrot.slane %v7599, 4
        %v7602 = vshll.u32 %v7574, 16
        %v7604 = vrot.slane %v7602, 5
        %v7605 = vor.u32 %v7601, %v7604
        %v7606 = vrot.slane %v7605, 4
        %v7608 = vshll.u32 %v7575, 16
        %v7610 = vrot.slane %v7608, 5
        %v7611 = vsel %vm7014, %v7606, %v7610
        %v7612 = vshrl.u32 %v7575, 16
        %v7614 = vrot.slane %v7612, 4
        %v7615 = vor.u32 %v7614, %v7610
        %v7616 = vrot.slane %v7615, 4
        %v7618 = vshll.u32 %v7576, 16
        %v7620 = vrot.slane %v7618, 5
        %v7621 = vsel %vm7014, %v7616, %v7620
        %v7623 = vshrl.u32 %v7577, 16
        %v7625 = vrot.slane %v7623, 4
        %v7626 = vshll.u32 %v7577, 16
        %v7628 = vrot.slane %v7626, 5
        %v7629 = vor.u32 %v7625, %v7628
        %v7630 = vrot.slane %v7629, 4
        %v7632 = vshll.u32 %v7578, 16
        %v7634 = vrot.slane %v7632, 5
        %v7635 = vsel %vm7014, %v7630, %v7634
        %v7636 = vshrl.u32 %v7578, 16
        %v7638 = vrot.slane %v7636, 4
        %v7639 = vor.u32 %v7638, %v7634
        %v7640 = vrot.slane %v7639, 4
        %v7642 = vshll.u32 %v7579, 16
        %v7644 = vrot.slane %v7642, 5
        %v7645 = vsel %vm7014, %v7640, %v7644
        %v7647 = vshrl.u32 %v7580, 16
        %v7649 = vrot.slane %v7647, 4
        %v7650 = vshll.u32 %v7580, 16
        %v7652 = vrot.slane %v7650, 5
        %v7653 = vor.u32 %v7649, %v7652
        %v7654 = vrot.slane %v7653, 4
        %v7656 = vshll.u32 %v7581, 16
        %v7658 = vrot.slane %v7656, 5
        %v7659 = vsel %vm7014, %v7654, %v7658
        %v7660 = vshrl.u32 %v7581, 16
        %v7662 = vrot.slane %v7660, 4
        %v7663 = vor.u32 %v7662, %v7658
        %v7664 = vrot.slane %v7663, 4
        %v7666 = vshll.u32 %v7582, 16
        %v7668 = vrot.slane %v7666, 5
        %v7669 = vsel %vm7014, %v7664, %v7668
        %v7671 = vshrl.u32 %v7583, 16
        %v7673 = vrot.slane %v7671, 4
        %v7674 = vshll.u32 %v7583, 16
        %v7676 = vrot.slane %v7674, 5
        %v7677 = vor.u32 %v7673, %v7676
        %v7678 = vrot.slane %v7677, 4
        %v7680 = vshll.u32 %v7584, 16
        %v7682 = vrot.slane %v7680, 5
        %v7683 = vsel %vm7014, %v7678, %v7682
        %v7684 = vshrl.u32 %v7584, 16
        %v7686 = vrot.slane %v7684, 4
        %v7687 = vor.u32 %v7686, %v7682
        %v7688 = vrot.slane %v7687, 4
        %v7690 = vshll.u32 %v7585, 16
        %v7692 = vrot.slane %v7690, 5
        %v7693 = vsel %vm7014, %v7688, %v7692
        %v7695 = vshrl.u32 %v7586, 16
        %v7697 = vrot.slane %v7695, 4
        %v7698 = vshll.u32 %v7586, 16
        %v7700 = vrot.slane %v7698, 5
        %v7701 = vor.u32 %v7697, %v7700
        %v7702 = vrot.slane %v7701, 4
        %v7704 = vshll.u32 %v7587, 16
        %v7706 = vrot.slane %v7704, 5
        %v7707 = vsel %vm7014, %v7702, %v7706
        %v7708 = vshrl.u32 %v7587, 16
        %v7710 = vrot.slane %v7708, 4
        %v7711 = vor.u32 %v7710, %v7706
        %v7712 = vrot.slane %v7711, 4
        %v7714 = vshll.u32 %v7588, 16
        %v7716 = vrot.slane %v7714, 5
        %v7717 = vsel %vm7014, %v7712, %v7716
        %v7719 = vshrl.u32 %v7589, 16
        %v7721 = vrot.slane %v7719, 4
        %v7722 = vshll.u32 %v7589, 16
        %v7724 = vrot.slane %v7722, 5
        %v7725 = vor.u32 %v7721, %v7724
        %v7726 = vrot.slane %v7725, 4
        %v7728 = vshll.u32 %v7590, 16
        %v7730 = vrot.slane %v7728, 5
        %v7731 = vsel %vm7014, %v7726, %v7730
        %v7732 = vshrl.u32 %v7590, 16
        %v7734 = vrot.slane %v7732, 4
        %v7735 = vor.u32 %v7734, %v7730
        %v7736 = vrot.slane %v7735, 4
        %v7738 = vshll.u32 %v7591, 16
        %v7740 = vrot.slane %v7738, 5
        %v7741 = vsel %vm7014, %v7736, %v7740
        %v7743 = vshrl.u32 %v7592, 16
        %v7745 = vrot.slane %v7743, 4
        %v7746 = vshll.u32 %v7592, 16
        %v7748 = vrot.slane %v7746, 5
        %v7749 = vor.u32 %v7745, %v7748
        %v7750 = vrot.slane %v7749, 4
        %v7752 = vshll.u32 %v7593, 16
        %v7754 = vrot.slane %v7752, 5
        %v7755 = vsel %vm7014, %v7750, %v7754
        %v7756 = vshrl.u32 %v7593, 16
        %v7758 = vrot.slane %v7756, 4
        %v7759 = vor.u32 %v7758, %v7754
        %v7760 = vrot.slane %v7759, 4
        %v7762 = vshll.u32 %v7594, 16
        %v7764 = vrot.slane %v7762, 5
        %v7765 = vsel %vm7014, %v7760, %v7764
        %v7767 = vshrl.u32 %v7595, 16
        %v7769 = vrot.slane %v7767, 4
        %v7770 = vshll.u32 %v7595, 16
        %v7772 = vrot.slane %v7770, 5
        %v7773 = vor.u32 %v7769, %v7772
        %v7774 = vrot.slane %v7773, 4
        %v7776 = vshll.u32 %v7596, 16
        %v7778 = vrot.slane %v7776, 5
        %v7779 = vsel %vm7014, %v7774, %v7778
        %v7780 = vshrl.u32 %v7596, 16
        %v7782 = vrot.slane %v7780, 4
        %v7783 = vor.u32 %v7782, %v7778
        %v7784 = vrot.slane %v7783, 4
        %v7786 = vshll.u32 %v7597, 16
        %v7788 = vrot.slane %v7786, 5
        %v7789 = vsel %vm7014, %v7784, %v7788
        %v7790 = vld [vmem:[%s7437] sm:$0xe]
        %v7791 = vld [vmem:[%s7437 + $0xc] sm:$0xe]
        %v7792 = vld [vmem:[%s7437 + $0x18] sm:$0xe]
        %v7793 = vld [vmem:[%s7437 + $0x24] sm:$0xe]
        %v7794 = vld [vmem:[%s7437 + $0x30] sm:$0xe]
        %v7795 = vld [vmem:[%s7437 + $0x3c] sm:$0xe]
        %v7796 = vld [vmem:[%s7437 + $0x48] sm:$0xe]
        %v7797 = vld [vmem:[%s7437 + $0x54] sm:$0xe]
        %v7822 = vrot.slane %v7790, 5
        %v7823 = vrot.slane %v7822, 4
        %v7824 = vrot.slane %v7575, 5
        %v7825 = vsel %vm7377, %v7823, %v7824
        %v7826 = vrot.slane %v7824, 4
        %v7827 = vrot.slane %v7576, 5
        %v7828 = vsel %vm7377, %v7826, %v7827
        %v7829 = vrot.slane %v7791, 5
        %v7830 = vrot.slane %v7829, 4
        %v7831 = vrot.slane %v7578, 5
        %v7832 = vsel %vm7377, %v7830, %v7831
        %v7833 = vrot.slane %v7831, 4
        %v7834 = vrot.slane %v7579, 5
        %v7835 = vsel %vm7377, %v7833, %v7834
        %v7836 = vrot.slane %v7792, 5
        %v7837 = vrot.slane %v7836, 4
        %v7838 = vrot.slane %v7581, 5
        %v7839 = vsel %vm7377, %v7837, %v7838
        %v7840 = vrot.slane %v7838, 4
        %v7841 = vrot.slane %v7582, 5
        %v7842 = vsel %vm7377, %v7840, %v7841
        %v7843 = vrot.slane %v7793, 5
        %v7844 = vrot.slane %v7843, 4
        %v7845 = vrot.slane %v7584, 5
        %v7846 = vsel %vm7377, %v7844, %v7845
        %v7847 = vrot.slane %v7845, 4
        %v7848 = vrot.slane %v7585, 5
        %v7849 = vsel %vm7377, %v7847, %v7848
        %v7850 = vrot.slane %v7794, 5
        %v7851 = vrot.slane %v7850, 4
        %v7852 = vrot.slane %v7587, 5
        %v7853 = vsel %vm7377, %v7851, %v7852
        %v7854 = vrot.slane %v7852, 4
        %v7855 = vrot.slane %v7588, 5
        %v7856 = vsel %vm7377, %v7854, %v7855
        %v7857 = vrot.slane %v7795, 5
        %v7858 = vrot.slane %v7857, 4
        %v7859 = vrot.slane %v7590, 5
        %v7860 = vsel %vm7377, %v7858, %v7859
        %v7861 = vrot.slane %v7859, 4
        %v7862 = vrot.slane %v7591, 5
        %v7863 = vsel %vm7377, %v7861, %v7862
        %v7864 = vrot.slane %v7796, 5
        %v7865 = vrot.slane %v7864, 4
        %v7866 = vrot.slane %v7593, 5
        %v7867 = vsel %vm7377, %v7865, %v7866
        %v7868 = vrot.slane %v7866, 4
        %v7869 = vrot.slane %v7594, 5
        %v7870 = vsel %vm7377, %v7868, %v7869
        %v7871 = vrot.slane %v7797, 5
        %v7872 = vrot.slane %v7871, 4
        %v7873 = vrot.slane %v7596, 5
        %v7874 = vsel %vm7377, %v7872, %v7873
        %v7875 = vrot.slane %v7873, 4
        %v7876 = vrot.slane %v7597, 5
        %v7877 = vsel %vm7377, %v7875, %v7876
        %v7878 = vunpack.c.l.b16 %v7611
        %v7879 = vunpack.c.l.b16 %v7621
        %v7880 = vunpack.c.l.b16 %v7635
        %v7881 = vunpack.c.l.b16 %v7645
        %v7882 = vunpack.c.l.b16 %v7659
        %v7883 = vunpack.c.l.b16 %v7669
        %v7884 = vunpack.c.l.b16 %v7683
        %v7885 = vunpack.c.l.b16 %v7693
        %v7886 = vunpack.c.l.b16 %v7707
        %v7887 = vunpack.c.l.b16 %v7717
        %v7888 = vunpack.c.l.b16 %v7731
        %v7889 = vunpack.c.l.b16 %v7741
        %v7890 = vunpack.c.l.b16 %v7755
        %v7891 = vunpack.c.l.b16 %v7765
        %v7892 = vunpack.c.l.b16 %v7779
        %v7893 = vunpack.c.l.b16 %v7789
        %v7894 = vpack.c.b16 %v7879, %v7878
        %v7895 = vpack.c.b16 %v7881, %v7880
        %v7896 = vpack.c.b16 %v7883, %v7882
        %v7897 = vpack.c.b16 %v7885, %v7884
        %v7898 = vpack.c.b16 %v7887, %v7886
        %v7899 = vpack.c.b16 %v7889, %v7888
        %v7900 = vpack.c.b16 %v7891, %v7890
        %v7901 = vpack.c.b16 %v7893, %v7892
        %v7902 = vunpack.c.l.b16 %v7825
        %v7903 = vunpack.c.l.b16 %v7828
        %v7904 = vunpack.c.l.b16 %v7832
        %v7905 = vunpack.c.l.b16 %v7835
        %v7906 = vunpack.c.l.b16 %v7839
        %v7907 = vunpack.c.l.b16 %v7842
        %v7908 = vunpack.c.l.b16 %v7846
        %v7909 = vunpack.c.l.b16 %v7849
        %v7910 = vunpack.c.l.b16 %v7853
        %v7911 = vunpack.c.l.b16 %v7856
        %v7912 = vunpack.c.l.b16 %v7860
        %v7913 = vunpack.c.l.b16 %v7863
        %v7914 = vunpack.c.l.b16 %v7867
        %v7915 = vunpack.c.l.b16 %v7870
        %v7916 = vunpack.c.l.b16 %v7874
        %v7917 = vunpack.c.l.b16 %v7877
        %v7918 = vpack.c.b16 %v7903, %v7902
        %v7919 = vpack.c.b16 %v7905, %v7904
        %v7920 = vpack.c.b16 %v7907, %v7906
        %v7921 = vpack.c.b16 %v7909, %v7908
        %v7922 = vpack.c.b16 %v7911, %v7910
        %v7923 = vpack.c.b16 %v7913, %v7912
        %v7924 = vpack.c.b16 %v7915, %v7914
        %v7925 = vpack.c.b16 %v7917, %v7916
        %7926 = vrot.lane.b32.xlu0 %v7918, 64
        %v7927 = vpop.permute.xlu0 %7926
        %7928 = vrot.lane.b32.xlu0 %v7919, 64
        %v7929 = vpop.permute.xlu0 %7928
        %7930 = vrot.lane.b32.xlu0 %v7920, 64
        %v7931 = vpop.permute.xlu0 %7930
        %7932 = vrot.lane.b32.xlu0 %v7921, 64
        %v7933 = vpop.permute.xlu0 %7932
        %7934 = vrot.lane.b32.xlu0 %v7922, 64
        %v7935 = vpop.permute.xlu0 %7934
        %7936 = vrot.lane.b32.xlu0 %v7923, 64
        %v7937 = vpop.permute.xlu0 %7936
        %7938 = vrot.lane.b32.xlu0 %v7924, 64
        %v7939 = vpop.permute.xlu0 %7938
        %7940 = vrot.lane.b32.xlu0 %v7925, 64
        %v7941 = vpop.permute.xlu0 %7940
        %v7944 = vsel %vm1049, %v7894, %v7927
        %v7948 = vsel %vm1049, %v7895, %v7929
        %v7952 = vsel %vm1049, %v7896, %v7931
        %v7956 = vsel %vm1049, %v7897, %v7933
        %v7960 = vsel %vm1049, %v7898, %v7935
        %v7964 = vsel %vm1049, %v7899, %v7937
        %v7968 = vsel %vm1049, %v7900, %v7939
        %v7972 = vsel %vm1049, %v7901, %v7941
        %7974 = vst [vmem:[#allocation3 + $0x10] sm:$0xff] %v7944
        %7975 = vst [vmem:[#allocation3 + $0x38] sm:$0xff] %v7948
        %7976 = vst [vmem:[#allocation3 + $0x60] sm:$0xff] %v7952
        %7977 = vst [vmem:[#allocation3 + $0x88] sm:$0xff] %v7956
        %7978 = vst [vmem:[#allocation3 + $0xb0] sm:$0xff] %v7960
        %7979 = vst [vmem:[#allocation3 + $0xd8] sm:$0xff] %v7964
        %7980 = vst [vmem:[#allocation3 + $0x100] sm:$0xff] %v7968
        %7981 = vst [vmem:[#allocation3 + $0x128] sm:$0xff] %v7972
        %s7982 = sadd.s32 %s6984, 2
        %s7983 = smul.u32 %s7982, 3
        %s7984 = smul.addr %s7983, 4
        %s7985 = scalar_lea.vmem [#allocation2], %s7984
        %v7986 = vld [vmem:[%s7985] sm:$0xf]
        %v7987 = vld [vmem:[%s7985 + $0x4] sm:$0xf]
        %v7988 = vld [vmem:[%s7985 + $0xc] sm:$0xf]
        %v7989 = vld [vmem:[%s7985 + $0x10] sm:$0xf]
        %v7990 = vld [vmem:[%s7985 + $0x18] sm:$0xf]
        %v7991 = vld [vmem:[%s7985 + $0x1c] sm:$0xf]
        %v7992 = vld [vmem:[%s7985 + $0x24] sm:$0xf]
        %v7993 = vld [vmem:[%s7985 + $0x28] sm:$0xf]
        %v7994 = vld [vmem:[%s7985 + $0x30] sm:$0xf]
        %v7995 = vld [vmem:[%s7985 + $0x34] sm:$0xf]
        %v7996 = vld [vmem:[%s7985 + $0x3c] sm:$0xf]
        %v7997 = vld [vmem:[%s7985 + $0x40] sm:$0xf]
        %v7998 = vld [vmem:[%s7985 + $0x48] sm:$0xf]
        %v7999 = vld [vmem:[%s7985 + $0x4c] sm:$0xf]
        %v8000 = vld [vmem:[%s7985 + $0x54] sm:$0xf]
        %v8001 = vld [vmem:[%s7985 + $0x58] sm:$0xf]
        %v8002 = vld [vmem:[%s7985 + $0x8] sm:$0x1]
        %v8003 = vld [vmem:[%s7985 + $0x14] sm:$0x1]
        %v8004 = vld [vmem:[%s7985 + $0x20] sm:$0x1]
        %v8005 = vld [vmem:[%s7985 + $0x2c] sm:$0x1]
        %v8006 = vld [vmem:[%s7985 + $0x38] sm:$0x1]
        %v8007 = vld [vmem:[%s7985 + $0x44] sm:$0x1]
        %v8008 = vld [vmem:[%s7985 + $0x50] sm:$0x1]
        %v8009 = vld [vmem:[%s7985 + $0x5c] sm:$0x1]
        %v8011 = vshrl.u32 %v7986, 16
        %v8013 = vrot.slane %v8011, 4
        %v8014 = vshll.u32 %v7986, 16
        %v8016 = vrot.slane %v8014, 5
        %v8017 = vor.u32 %v8013, %v8016
        %v8018 = vrot.slane %v8017, 4
        %v8020 = vshll.u32 %v7987, 16
        %v8022 = vrot.slane %v8020, 5
        %v8023 = vsel %vm7014, %v8018, %v8022
        %v8024 = vshrl.u32 %v7987, 16
        %v8026 = vrot.slane %v8024, 4
        %v8027 = vor.u32 %v8026, %v8022
        %v8028 = vrot.slane %v8027, 4
        %v8030 = vshll.u32 %v8002, 16
        %v8032 = vrot.slane %v8030, 5
        %v8033 = vsel %vm7014, %v8028, %v8032
        %v8035 = vshrl.u32 %v7988, 16
        %v8037 = vrot.slane %v8035, 4
        %v8038 = vshll.u32 %v7988, 16
        %v8040 = vrot.slane %v8038, 5
        %v8041 = vor.u32 %v8037, %v8040
        %v8042 = vrot.slane %v8041, 4
        %v8044 = vshll.u32 %v7989, 16
        %v8046 = vrot.slane %v8044, 5
        %v8047 = vsel %vm7014, %v8042, %v8046
        %v8048 = vshrl.u32 %v7989, 16
        %v8050 = vrot.slane %v8048, 4
        %v8051 = vor.u32 %v8050, %v8046
        %v8052 = vrot.slane %v8051, 4
        %v8054 = vshll.u32 %v8003, 16
        %v8056 = vrot.slane %v8054, 5
        %v8057 = vsel %vm7014, %v8052, %v8056
        %v8059 = vshrl.u32 %v7990, 16
        %v8061 = vrot.slane %v8059, 4
        %v8062 = vshll.u32 %v7990, 16
        %v8064 = vrot.slane %v8062, 5
        %v8065 = vor.u32 %v8061, %v8064
        %v8066 = vrot.slane %v8065, 4
        %v8068 = vshll.u32 %v7991, 16
        %v8070 = vrot.slane %v8068, 5
        %v8071 = vsel %vm7014, %v8066, %v8070
        %v8072 = vshrl.u32 %v7991, 16
        %v8074 = vrot.slane %v8072, 4
        %v8075 = vor.u32 %v8074, %v8070
        %v8076 = vrot.slane %v8075, 4
        %v8078 = vshll.u32 %v8004, 16
        %v8080 = vrot.slane %v8078, 5
        %v8081 = vsel %vm7014, %v8076, %v8080
        %v8083 = vshrl.u32 %v7992, 16
        %v8085 = vrot.slane %v8083, 4
        %v8086 = vshll.u32 %v7992, 16
        %v8088 = vrot.slane %v8086, 5
        %v8089 = vor.u32 %v8085, %v8088
        %v8090 = vrot.slane %v8089, 4
        %v8092 = vshll.u32 %v7993, 16
        %v8094 = vrot.slane %v8092, 5
        %v8095 = vsel %vm7014, %v8090, %v8094
        %v8096 = vshrl.u32 %v7993, 16
        %v8098 = vrot.slane %v8096, 4
        %v8099 = vor.u32 %v8098, %v8094
        %v8100 = vrot.slane %v8099, 4
        %v8102 = vshll.u32 %v8005, 16
        %v8104 = vrot.slane %v8102, 5
        %v8105 = vsel %vm7014, %v8100, %v8104
        %v8107 = vshrl.u32 %v7994, 16
        %v8109 = vrot.slane %v8107, 4
        %v8110 = vshll.u32 %v7994, 16
        %v8112 = vrot.slane %v8110, 5
        %v8113 = vor.u32 %v8109, %v8112
        %v8114 = vrot.slane %v8113, 4
        %v8116 = vshll.u32 %v7995, 16
        %v8118 = vrot.slane %v8116, 5
        %v8119 = vsel %vm7014, %v8114, %v8118
        %v8120 = vshrl.u32 %v7995, 16
        %v8122 = vrot.slane %v8120, 4
        %v8123 = vor.u32 %v8122, %v8118
        %v8124 = vrot.slane %v8123, 4
        %v8126 = vshll.u32 %v8006, 16
        %v8128 = vrot.slane %v8126, 5
        %v8129 = vsel %vm7014, %v8124, %v8128
        %v8131 = vshrl.u32 %v7996, 16
        %v8133 = vrot.slane %v8131, 4
        %v8134 = vshll.u32 %v7996, 16
        %v8136 = vrot.slane %v8134, 5
        %v8137 = vor.u32 %v8133, %v8136
        %v8138 = vrot.slane %v8137, 4
        %v8140 = vshll.u32 %v7997, 16
        %v8142 = vrot.slane %v8140, 5
        %v8143 = vsel %vm7014, %v8138, %v8142
        %v8144 = vshrl.u32 %v7997, 16
        %v8146 = vrot.slane %v8144, 4
        %v8147 = vor.u32 %v8146, %v8142
        %v8148 = vrot.slane %v8147, 4
        %v8150 = vshll.u32 %v8007, 16
        %v8152 = vrot.slane %v8150, 5
        %v8153 = vsel %vm7014, %v8148, %v8152
        %v8155 = vshrl.u32 %v7998, 16
        %v8157 = vrot.slane %v8155, 4
        %v8158 = vshll.u32 %v7998, 16
        %v8160 = vrot.slane %v8158, 5
        %v8161 = vor.u32 %v8157, %v8160
        %v8162 = vrot.slane %v8161, 4
        %v8164 = vshll.u32 %v7999, 16
        %v8166 = vrot.slane %v8164, 5
        %v8167 = vsel %vm7014, %v8162, %v8166
        %v8168 = vshrl.u32 %v7999, 16
        %v8170 = vrot.slane %v8168, 4
        %v8171 = vor.u32 %v8170, %v8166
        %v8172 = vrot.slane %v8171, 4
        %v8174 = vshll.u32 %v8008, 16
        %v8176 = vrot.slane %v8174, 5
        %v8177 = vsel %vm7014, %v8172, %v8176
        %v8179 = vshrl.u32 %v8000, 16
        %v8181 = vrot.slane %v8179, 4
        %v8182 = vshll.u32 %v8000, 16
        %v8184 = vrot.slane %v8182, 5
        %v8185 = vor.u32 %v8181, %v8184
        %v8186 = vrot.slane %v8185, 4
        %v8188 = vshll.u32 %v8001, 16
        %v8190 = vrot.slane %v8188, 5
        %v8191 = vsel %vm7014, %v8186, %v8190
        %v8192 = vshrl.u32 %v8001, 16
        %v8194 = vrot.slane %v8192, 4
        %v8195 = vor.u32 %v8194, %v8190
        %v8196 = vrot.slane %v8195, 4
        %v8198 = vshll.u32 %v8009, 16
        %v8200 = vrot.slane %v8198, 5
        %v8201 = vsel %vm7014, %v8196, %v8200
        %v8218 = vunpack.c.l.b16 %v7986
        %v8219 = vunpack.c.l.b16 %v7987
        %v8220 = vunpack.c.l.b16 %v7988
        %v8221 = vunpack.c.l.b16 %v7989
        %v8222 = vunpack.c.l.b16 %v7990
        %v8223 = vunpack.c.l.b16 %v7991
        %v8224 = vunpack.c.l.b16 %v7992
        %v8225 = vunpack.c.l.b16 %v7993
        %v8226 = vunpack.c.l.b16 %v7994
        %v8227 = vunpack.c.l.b16 %v7995
        %v8228 = vunpack.c.l.b16 %v7996
        %v8229 = vunpack.c.l.b16 %v7997
        %v8230 = vunpack.c.l.b16 %v7998
        %v8231 = vunpack.c.l.b16 %v7999
        %v8232 = vunpack.c.l.b16 %v8000
        %v8233 = vunpack.c.l.b16 %v8001
        %v8234 = vpack.c.b16 %v8219, %v8218
        %v8235 = vpack.c.b16 %v8221, %v8220
        %v8236 = vpack.c.b16 %v8223, %v8222
        %v8237 = vpack.c.b16 %v8225, %v8224
        %v8238 = vpack.c.b16 %v8227, %v8226
        %v8239 = vpack.c.b16 %v8229, %v8228
        %v8240 = vpack.c.b16 %v8231, %v8230
        %v8241 = vpack.c.b16 %v8233, %v8232
        %v8242 = vunpack.c.l.b16 %v8023
        %v8243 = vunpack.c.l.b16 %v8033
        %v8244 = vunpack.c.l.b16 %v8047
        %v8245 = vunpack.c.l.b16 %v8057
        %v8246 = vunpack.c.l.b16 %v8071
        %v8247 = vunpack.c.l.b16 %v8081
        %v8248 = vunpack.c.l.b16 %v8095
        %v8249 = vunpack.c.l.b16 %v8105
        %v8250 = vunpack.c.l.b16 %v8119
        %v8251 = vunpack.c.l.b16 %v8129
        %v8252 = vunpack.c.l.b16 %v8143
        %v8253 = vunpack.c.l.b16 %v8153
        %v8254 = vunpack.c.l.b16 %v8167
        %v8255 = vunpack.c.l.b16 %v8177
        %v8256 = vunpack.c.l.b16 %v8191
        %v8257 = vunpack.c.l.b16 %v8201
        %v8258 = vpack.c.b16 %v8243, %v8242
        %v8259 = vpack.c.b16 %v8245, %v8244
        %v8260 = vpack.c.b16 %v8247, %v8246
        %v8261 = vpack.c.b16 %v8249, %v8248
        %v8262 = vpack.c.b16 %v8251, %v8250
        %v8263 = vpack.c.b16 %v8253, %v8252
        %v8264 = vpack.c.b16 %v8255, %v8254
        %v8265 = vpack.c.b16 %v8257, %v8256
        %8266 = vrot.lane.b32.xlu0 %v8258, 64
        %v8267 = vpop.permute.xlu0 %8266
        %8268 = vrot.lane.b32.xlu0 %v8259, 64
        %v8269 = vpop.permute.xlu0 %8268
        %8270 = vrot.lane.b32.xlu0 %v8260, 64
        %v8271 = vpop.permute.xlu0 %8270
        %8272 = vrot.lane.b32.xlu0 %v8261, 64
        %v8273 = vpop.permute.xlu0 %8272
        %8274 = vrot.lane.b32.xlu0 %v8262, 64
        %v8275 = vpop.permute.xlu0 %8274
        %8276 = vrot.lane.b32.xlu0 %v8263, 64
        %v8277 = vpop.permute.xlu0 %8276
        %8278 = vrot.lane.b32.xlu0 %v8264, 64
        %v8279 = vpop.permute.xlu0 %8278
        %8280 = vrot.lane.b32.xlu0 %v8265, 64
        %v8281 = vpop.permute.xlu0 %8280
        %v8284 = vsel %vm1049, %v8234, %v8267
        %v8288 = vsel %vm1049, %v8235, %v8269
        %v8292 = vsel %vm1049, %v8236, %v8271
        %v8296 = vsel %vm1049, %v8237, %v8273
        %v8300 = vsel %vm1049, %v8238, %v8275
        %v8304 = vsel %vm1049, %v8239, %v8277
        %v8308 = vsel %vm1049, %v8240, %v8279
        %v8312 = vsel %vm1049, %v8241, %v8281
        %8314 = vst [vmem:[#allocation3 + $0x18] sm:$0xff] %v8284
        %8315 = vst [vmem:[#allocation3 + $0x40] sm:$0xff] %v8288
        %8316 = vst [vmem:[#allocation3 + $0x68] sm:$0xff] %v8292
        %8317 = vst [vmem:[#allocation3 + $0x90] sm:$0xff] %v8296
        %8318 = vst [vmem:[#allocation3 + $0xb8] sm:$0xff] %v8300
        %8319 = vst [vmem:[#allocation3 + $0xe0] sm:$0xff] %v8304
        %8320 = vst [vmem:[#allocation3 + $0x108] sm:$0xff] %v8308
        %8321 = vst [vmem:[#allocation3 + $0x130] sm:$0xff] %v8312
        %v8322 = vld [vmem:[%s7985] sm:$0xe]
        %v8323 = vld [vmem:[%s7985 + $0x4] sm:$0xf]
        %v8324 = vld [vmem:[%s7985 + $0x8] sm:$0x1]
        %v8325 = vld [vmem:[%s7985 + $0xc] sm:$0xe]
        %v8326 = vld [vmem:[%s7985 + $0x10] sm:$0xf]
        %v8327 = vld [vmem:[%s7985 + $0x14] sm:$0x1]
        %v8328 = vld [vmem:[%s7985 + $0x18] sm:$0xe]
        %v8329 = vld [vmem:[%s7985 + $0x1c] sm:$0xf]
        %v8330 = vld [vmem:[%s7985 + $0x20] sm:$0x1]
        %v8331 = vld [vmem:[%s7985 + $0x24] sm:$0xe]
        %v8332 = vld [vmem:[%s7985 + $0x28] sm:$0xf]
        %v8333 = vld [vmem:[%s7985 + $0x2c] sm:$0x1]
        %v8334 = vld [vmem:[%s7985 + $0x30] sm:$0xe]
        %v8335 = vld [vmem:[%s7985 + $0x34] sm:$0xf]
        %v8336 = vld [vmem:[%s7985 + $0x38] sm:$0x1]
        %v8337 = vld [vmem:[%s7985 + $0x3c] sm:$0xe]
        %v8338 = vld [vmem:[%s7985 + $0x40] sm:$0xf]
        %v8339 = vld [vmem:[%s7985 + $0x44] sm:$0x1]
        %v8340 = vld [vmem:[%s7985 + $0x48] sm:$0xe]
        %v8341 = vld [vmem:[%s7985 + $0x4c] sm:$0xf]
        %v8342 = vld [vmem:[%s7985 + $0x50] sm:$0x1]
        %v8343 = vld [vmem:[%s7985 + $0x54] sm:$0xe]
        %v8344 = vld [vmem:[%s7985 + $0x58] sm:$0xf]
        %v8345 = vld [vmem:[%s7985 + $0x5c] sm:$0x1]
        %v8370 = vrot.slane %v8322, 5
        %v8371 = vrot.slane %v8370, 4
        %v8372 = vrot.slane %v8323, 5
        %v8373 = vsel %vm7377, %v8371, %v8372
        %v8374 = vrot.slane %v8372, 4
        %v8375 = vrot.slane %v8324, 5
        %v8376 = vsel %vm7377, %v8374, %v8375
        %v8377 = vrot.slane %v8325, 5
        %v8378 = vrot.slane %v8377, 4
        %v8379 = vrot.slane %v8326, 5
        %v8380 = vsel %vm7377, %v8378, %v8379
        %v8381 = vrot.slane %v8379, 4
        %v8382 = vrot.slane %v8327, 5
        %v8383 = vsel %vm7377, %v8381, %v8382
        %v8384 = vrot.slane %v8328, 5
        %v8385 = vrot.slane %v8384, 4
        %v8386 = vrot.slane %v8329, 5
        %v8387 = vsel %vm7377, %v8385, %v8386
        %v8388 = vrot.slane %v8386, 4
        %v8389 = vrot.slane %v8330, 5
        %v8390 = vsel %vm7377, %v8388, %v8389
        %v8391 = vrot.slane %v8331, 5
        %v8392 = vrot.slane %v8391, 4
        %v8393 = vrot.slane %v8332, 5
        %v8394 = vsel %vm7377, %v8392, %v8393
        %v8395 = vrot.slane %v8393, 4
        %v8396 = vrot.slane %v8333, 5
        %v8397 = vsel %vm7377, %v8395, %v8396
        %v8398 = vrot.slane %v8334, 5
        %v8399 = vrot.slane %v8398, 4
        %v8400 = vrot.slane %v8335, 5
        %v8401 = vsel %vm7377, %v8399, %v8400
        %v8402 = vrot.slane %v8400, 4
        %v8403 = vrot.slane %v8336, 5
        %v8404 = vsel %vm7377, %v8402, %v8403
        %v8405 = vrot.slane %v8337, 5
        %v8406 = vrot.slane %v8405, 4
        %v8407 = vrot.slane %v8338, 5
        %v8408 = vsel %vm7377, %v8406, %v8407
        %v8409 = vrot.slane %v8407, 4
        %v8410 = vrot.slane %v8339, 5
        %v8411 = vsel %vm7377, %v8409, %v8410
        %v8412 = vrot.slane %v8340, 5
        %v8413 = vrot.slane %v8412, 4
        %v8414 = vrot.slane %v8341, 5
        %v8415 = vsel %vm7377, %v8413, %v8414
        %v8416 = vrot.slane %v8414, 4
        %v8417 = vrot.slane %v8342, 5
        %v8418 = vsel %vm7377, %v8416, %v8417
        %v8419 = vrot.slane %v8343, 5
        %v8420 = vrot.slane %v8419, 4
        %v8421 = vrot.slane %v8344, 5
        %v8422 = vsel %vm7377, %v8420, %v8421
        %v8423 = vrot.slane %v8421, 4
        %v8424 = vrot.slane %v8345, 5
        %v8425 = vsel %vm7377, %v8423, %v8424
        %v8426 = vunpack.c.l.b16 %v8373
        %v8427 = vunpack.c.l.b16 %v8376
        %v8428 = vunpack.c.l.b16 %v8380
        %v8429 = vunpack.c.l.b16 %v8383
        %v8430 = vunpack.c.l.b16 %v8387
        %v8431 = vunpack.c.l.b16 %v8390
        %v8432 = vunpack.c.l.b16 %v8394
        %v8433 = vunpack.c.l.b16 %v8397
        %v8434 = vunpack.c.l.b16 %v8401
        %v8435 = vunpack.c.l.b16 %v8404
        %v8436 = vunpack.c.l.b16 %v8408
        %v8437 = vunpack.c.l.b16 %v8411
        %v8438 = vunpack.c.l.b16 %v8415
        %v8439 = vunpack.c.l.b16 %v8418
        %v8440 = vunpack.c.l.b16 %v8422
        %v8441 = vunpack.c.l.b16 %v8425
        %v8442 = vpack.c.b16 %v8427, %v8426
        %v8443 = vpack.c.b16 %v8429, %v8428
        %v8444 = vpack.c.b16 %v8431, %v8430
        %v8445 = vpack.c.b16 %v8433, %v8432
        %v8446 = vpack.c.b16 %v8435, %v8434
        %v8447 = vpack.c.b16 %v8437, %v8436
        %v8448 = vpack.c.b16 %v8439, %v8438
        %v8449 = vpack.c.b16 %v8441, %v8440
        %8458 = vst.msk [vmem:[#allocation3 + $0x20] sm:$0xff] %vm1049, %v8442
        %8459 = vst.msk [vmem:[#allocation3 + $0x48] sm:$0xff] %vm1049, %v8443
        %8460 = vst.msk [vmem:[#allocation3 + $0x70] sm:$0xff] %vm1049, %v8444
        %8461 = vst.msk [vmem:[#allocation3 + $0x98] sm:$0xff] %vm1049, %v8445
        %8462 = vst.msk [vmem:[#allocation3 + $0xc0] sm:$0xff] %vm1049, %v8446
        %8463 = vst.msk [vmem:[#allocation3 + $0xe8] sm:$0xff] %vm1049, %v8447
        %8464 = vst.msk [vmem:[#allocation3 + $0x110] sm:$0xff] %vm1049, %v8448
        %8465 = vst.msk [vmem:[#allocation3 + $0x138] sm:$0xff] %vm1049, %v8449
        %v8466 = vld [vmem:[%s5] sm:$0x1f]
        %v8467 = vld [vmem:[#allocation3] sm:$0xff]
        %v8468 = vld [vmem:[#allocation3 + $0x8] sm:$0xff]
        %v8469 = vld [vmem:[#allocation3 + $0x10] sm:$0xff]
        %v8470 = vld [vmem:[#allocation3 + $0x18] sm:$0xff]
        %v8471 = vld [vmem:[#allocation3 + $0x20] sm:$0xff]
        %v8472 = vld [vmem:[#allocation3 + $0x28] sm:$0xff]
        %v8473 = vld [vmem:[#allocation3 + $0x30] sm:$0xff]
        %v8474 = vld [vmem:[#allocation3 + $0x38] sm:$0xff]
        %v8475 = vld [vmem:[#allocation3 + $0x40] sm:$0xff]
        %v8476 = vld [vmem:[#allocation3 + $0x48] sm:$0xff]
        %v8477 = vld [vmem:[#allocation3 + $0x50] sm:$0xff]
        %v8478 = vld [vmem:[#allocation3 + $0x58] sm:$0xff]
        %v8479 = vld [vmem:[#allocation3 + $0x60] sm:$0xff]
        %v8480 = vld [vmem:[#allocation3 + $0x68] sm:$0xff]
        %v8481 = vld [vmem:[#allocation3 + $0x70] sm:$0xff]
        %v8482 = vld [vmem:[#allocation3 + $0x78] sm:$0xff]
        %v8483 = vld [vmem:[#allocation3 + $0x80] sm:$0xff]
        %v8484 = vld [vmem:[#allocation3 + $0x88] sm:$0xff]
        %v8485 = vld [vmem:[#allocation3 + $0x90] sm:$0xff]
        %v8486 = vld [vmem:[#allocation3 + $0x98] sm:$0xff]
        %v8487 = vld [vmem:[#allocation3 + $0xa0] sm:$0xff]
        %v8488 = vld [vmem:[#allocation3 + $0xa8] sm:$0xff]
        %v8489 = vld [vmem:[#allocation3 + $0xb0] sm:$0xff]
        %v8490 = vld [vmem:[#allocation3 + $0xb8] sm:$0xff]
        %v8491 = vld [vmem:[#allocation3 + $0xc0] sm:$0xff]
        %v8492 = vld [vmem:[#allocation3 + $0xc8] sm:$0xff]
        %v8493 = vld [vmem:[#allocation3 + $0xd0] sm:$0xff]
        %v8494 = vld [vmem:[#allocation3 + $0xd8] sm:$0xff]
        %v8495 = vld [vmem:[#allocation3 + $0xe0] sm:$0xff]
        %v8496 = vld [vmem:[#allocation3 + $0xe8] sm:$0xff]
        %v8497 = vld [vmem:[#allocation3 + $0xf0] sm:$0xff]
        %v8498 = vld [vmem:[#allocation3 + $0xf8] sm:$0xff]
        %v8499 = vld [vmem:[#allocation3 + $0x100] sm:$0xff]
        %v8500 = vld [vmem:[#allocation3 + $0x108] sm:$0xff]
        %v8501 = vld [vmem:[#allocation3 + $0x110] sm:$0xff]
        %v8502 = vld [vmem:[#allocation3 + $0x118] sm:$0xff]
        %v8503 = vld [vmem:[#allocation3 + $0x120] sm:$0xff]
        %v8504 = vld [vmem:[#allocation3 + $0x128] sm:$0xff]
        %v8505 = vld [vmem:[#allocation3 + $0x130] sm:$0xff]
        %v8506 = vld [vmem:[#allocation3 + $0x138] sm:$0xff]
        %v8508 = vcombine.high %v8466, %v8466
        %v8510 = vunpack.c.l.s4 1966171168
        %v8511 = vunpack.c.0.s8 %v8510
        %v8512 = vlaneseq
        %v8513 = vshrl.u32 %v8512, 7
        %v8514 = vsub.s32 %v8511, %v8513
        %v8515 = vrot.slane %v8466, %v8514
        %v8517 = vunpack.c.l.s4 1966171168
        %v8518 = vunpack.c.0.s8 %v8517
        %v8519 = vlaneseq
        %v8520 = vshrl.u32 %v8519, 7
        %v8521 = vsub.s32 %v8518, %v8520
        %v8522 = vrot.slane %v8508, %v8521
        %v8523 = vcombine.high %v8515, %v8515
        %v8525 = vunpack.c.l.s4 1966171168
        %v8526 = vunpack.c.0.s8 %v8525
        %v8527 = vlaneseq
        %v8528 = vshrl.u32 %v8527, 7
        %v8529 = vsub.s32 %v8526, %v8528
        %v8530 = vrot.slane %v8515, %v8529
        %v8532 = vunpack.c.l.s4 1966171168
        %v8533 = vunpack.c.0.s8 %v8532
        %v8534 = vlaneseq
        %v8535 = vshrl.u32 %v8534, 7
        %v8536 = vsub.s32 %v8533, %v8535
        %v8537 = vrot.slane %v8522, %v8536
        %v8539 = vunpack.c.l.s4 1966171168
        %v8540 = vunpack.c.0.s8 %v8539
        %v8541 = vlaneseq
        %v8542 = vshrl.u32 %v8541, 7
        %v8543 = vsub.s32 %v8540, %v8542
        %v8544 = vrot.slane %v8523, %v8543
        %v8545 = vcombine.high %v8530, %v8530
        %v8546 = vcombine.high %v8544, %v8544
        %v8552 = vsel %vm1049, %v8537, 0
        %v8555 = vsel %vm1049, %v8471, 0
        %v8558 = vsel %vm1049, %v8476, 0
        %v8561 = vsel %vm1049, %v8481, 0
        %v8564 = vsel %vm1049, %v8486, 0
        %v8567 = vsel %vm1049, %v8491, 0
        %v8570 = vsel %vm1049, %v8496, 0
        %v8573 = vsel %vm1049, %v8501, 0
        %v8576 = vsel %vm1049, %v8506, 0
        %8578 = vmatprep.subr.bf16.mxu0 %v8468
        %8579 = vmatpush1.bf16.xpose.msra.mxu0 %v8467
        %8580 = vmatprep.subr.bf16.mxu0 %v8473
        %8581 = vmatpush1.bf16.xpose.msra.mxu0 %v8472
        %8582 = vmatprep.subr.bf16.mxu0 %v8478
        %8583 = vmatpush1.bf16.xpose.msra.mxu0 %v8477
        %8584 = vmatprep.subr.bf16.mxu0 %v8483
        %8585 = vmatpush1.bf16.xpose.msra.mxu0 %v8482
        %8586 = vmatprep.subr.bf16.mxu0 %v8488
        %8587 = vmatpush1.bf16.xpose.msra.mxu0 %v8487
        %8588 = vmatprep.subr.bf16.mxu0 %v8493
        %8589 = vmatpush1.bf16.xpose.msra.mxu0 %v8492
        %8590 = vmatprep.subr.bf16.mxu0 %v8498
        %8591 = vmatpush1.bf16.xpose.msra.mxu0 %v8497
        %8592 = vmatprep.subr.bf16.mxu0 %v8503
        %8593 = vmatpush1.bf16.xpose.msra.mxu0 %v8502
        %8594 = vmatprep.subr.bf16.mxu0 0
        %8595 = vmatpush1.bf16.xpose.msra.mxu0 0
        %8596 = vmatprep.subr.bf16.mxu0 0
        %8597 = vmatpush1.bf16.xpose.msra.mxu0 0
        %8598 = vmatprep.subr.bf16.mxu0 0
        %8599 = vmatpush1.bf16.xpose.msra.mxu0 0
        %8600 = vmatprep.subr.bf16.mxu0 0
        %8601 = vmatpush1.bf16.xpose.msra.mxu0 0
        %8602 = vmatprep.subr.bf16.mxu0 0
        %8603 = vmatpush1.bf16.xpose.msra.mxu0 0
        %8604 = vmatprep.subr.bf16.mxu0 0
        %8605 = vmatpush1.bf16.xpose.msra.mxu0 0
        %8606 = vmatprep.subr.bf16.mxu0 0
        %8607 = vmatpush1.bf16.xpose.msra.mxu0 0
        %8608 = vmatprep.subr.bf16.mxu0 0
        %8609 = vmatpush1.bf16.xpose.msra.mxu0 0
        %8610 = vmatprep.mubr.bf16.mxu0 %v8544
        %8611 = vmatmul.mubr.bf16.gmra.mrb[0].mxu0 %v8530
        %v8612 = vpop.f32.mrb[0].mxu0
        %v8613 = vadd.f32 0.0, %v8612
        %v8614 = vpop.f32.mrb[0].mxu0
        %v8615 = vpop.f32.mrb[0].mxu0
        %v8616 = vpop.f32.mrb[0].mxu0
        %8617 = vdwg.mxu0
        %8618 = vmatprep.subr.bf16.mxu0 %v8470
        %8619 = vmatpush1.bf16.xpose.msra.mxu0 %v8469
        %8620 = vmatprep.subr.bf16.mxu0 %v8475
        %8621 = vmatpush1.bf16.xpose.msra.mxu0 %v8474
        %8622 = vmatprep.subr.bf16.mxu0 %v8480
        %8623 = vmatpush1.bf16.xpose.msra.mxu0 %v8479
        %8624 = vmatprep.subr.bf16.mxu0 %v8485
        %8625 = vmatpush1.bf16.xpose.msra.mxu0 %v8484
        %8626 = vmatprep.subr.bf16.mxu0 %v8490
        %8627 = vmatpush1.bf16.xpose.msra.mxu0 %v8489
        %8628 = vmatprep.subr.bf16.mxu0 %v8495
        %8629 = vmatpush1.bf16.xpose.msra.mxu0 %v8494
        %8630 = vmatprep.subr.bf16.mxu0 %v8500
        %8631 = vmatpush1.bf16.xpose.msra.mxu0 %v8499
        %8632 = vmatprep.subr.bf16.mxu0 %v8505
        %8633 = vmatpush1.bf16.xpose.msra.mxu0 %v8504
        %8634 = vmatprep.subr.bf16.mxu0 0
        %8635 = vmatpush1.bf16.xpose.msra.mxu0 0
        %8636 = vmatprep.subr.bf16.mxu0 0
        %8637 = vmatpush1.bf16.xpose.msra.mxu0 0
        %8638 = vmatprep.subr.bf16.mxu0 0
        %8639 = vmatpush1.bf16.xpose.msra.mxu0 0
        %8640 = vmatprep.subr.bf16.mxu0 0
        %8641 = vmatpush1.bf16.xpose.msra.mxu0 0
        %8642 = vmatprep.subr.bf16.mxu0 0
        %8643 = vmatpush1.bf16.xpose.msra.mxu0 0
        %8644 = vmatprep.subr.bf16.mxu0 0
        %8645 = vmatpush1.bf16.xpose.msra.mxu0 0
        %8646 = vmatprep.subr.bf16.mxu0 0
        %8647 = vmatpush1.bf16.xpose.msra.mxu0 0
        %8648 = vmatprep.subr.bf16.mxu0 0
        %8649 = vmatpush1.bf16.xpose.msra.mxu0 0
        %8650 = vmatprep.mubr.bf16.mxu0 %v8546
        %8651 = vmatmul.mubr.bf16.gmra.mrb[0].mxu0 %v8545
        %v8652 = vpop.f32.mrb[0].mxu0
        %v8653 = vadd.f32 %v8613, %v8652
        %v8654 = vpop.f32.mrb[0].mxu0
        %v8655 = vpop.f32.mrb[0].mxu0
        %v8656 = vpop.f32.mrb[0].mxu0
        %8657 = vdwg.mxu0
        %8658 = vmatprep.subr.bf16.mxu0 0
        %8659 = vmatpush1.bf16.xpose.msra.mxu0 %v8555
        %8660 = vmatprep.subr.bf16.mxu0 0
        %8661 = vmatpush1.bf16.xpose.msra.mxu0 %v8558
        %8662 = vmatprep.subr.bf16.mxu0 0
        %8663 = vmatpush1.bf16.xpose.msra.mxu0 %v8561
        %8664 = vmatprep.subr.bf16.mxu0 0
        %8665 = vmatpush1.bf16.xpose.msra.mxu0 %v8564
        %8666 = vmatprep.subr.bf16.mxu0 0
        %8667 = vmatpush1.bf16.xpose.msra.mxu0 %v8567
        %8668 = vmatprep.subr.bf16.mxu0 0
        %8669 = vmatpush1.bf16.xpose.msra.mxu0 %v8570
        %8670 = vmatprep.subr.bf16.mxu0 0
        %8671 = vmatpush1.bf16.xpose.msra.mxu0 %v8573
        %8672 = vmatprep.subr.bf16.mxu0 0
        %8673 = vmatpush1.bf16.xpose.msra.mxu0 %v8576
        %8674 = vmatprep.subr.bf16.mxu0 0
        %8675 = vmatpush1.bf16.xpose.msra.mxu0 0
        %8676 = vmatprep.subr.bf16.mxu0 0
        %8677 = vmatpush1.bf16.xpose.msra.mxu0 0
        %8678 = vmatprep.subr.bf16.mxu0 0
        %8679 = vmatpush1.bf16.xpose.msra.mxu0 0
        %8680 = vmatprep.subr.bf16.mxu0 0
        %8681 = vmatpush1.bf16.xpose.msra.mxu0 0
        %8682 = vmatprep.subr.bf16.mxu0 0
        %8683 = vmatpush1.bf16.xpose.msra.mxu0 0
        %8684 = vmatprep.subr.bf16.mxu0 0
        %8685 = vmatpush1.bf16.xpose.msra.mxu0 0
        %8686 = vmatprep.subr.bf16.mxu0 0
        %8687 = vmatpush1.bf16.xpose.msra.mxu0 0
        %8688 = vmatprep.subr.bf16.mxu0 0
        %8689 = vmatpush1.bf16.xpose.msra.mxu0 0
        %8690 = vmatprep.mubr.bf16.mxu0 0
        %8691 = vmatmul.mubr.bf16.gmra.mrb[0].mxu0 %v8552
        %v8692 = vpop.f32.mrb[0].mxu0
        %v8693 = vadd.f32 %v8653, %v8692
        %v8694 = vpop.f32.mrb[0].mxu0
        %v8695 = vpop.f32.mrb[0].mxu0
        %v8696 = vpop.f32.mrb[0].mxu0
        %8697 = vdwg.mxu0
        %s8698 = scalar_lea.vmem %s249, %s6979
        %8699 = vst [vmem:[%s8698] sm:$0x1] %v8693
      $region85: #{dncnn_resnet_forward.1} parent=43 // loop_footer
        %s6983 = sadd.s32 1, %s6979
      $region86: #{dncnn_resnet_forward.1} parent=43 // loop_footer_branch
        %6978 = sbr.rel target = $region82
      $region87: #{dncnn_resnet_forward.1} parent=43 // loop_exit
        _
      %p8700 = scmp.lt.s32.totalorder %s17, 1
      %s8701 = scalar_select %p8700, %s17, 1
      %s8702 = smul.addr %s8701, 2
      %s8703 = scalar_lea.vmem %s6, %s8702
      // Predicated region
      $region88: #{dncnn_resnet_forward.1} parent=43 // pred_check
        %p8704 = pneg %p166
      $region89: #{dncnn_resnet_forward.1} parent=43 // pred_check_branch
        %8706 = sbr.rel (%p8704) target = $region91
      $region90: #{dncnn_resnet_forward.1} parent=43 // pred_region
        _
      $region91: #{dncnn_resnet_forward.1} parent=43 // pred_fallthru
        _
    $region44: #{dncnn_resnet_forward.1} parent=5 // pred_fallthru
      _
    %p8707 = scmp.le.s32.totalorder 2, %s12
    // Predicated region
    $region92: #{dncnn_resnet_forward.1} parent=5 // pred_check
      %p8708 = pneg %p8707
    $region93: #{dncnn_resnet_forward.1} parent=5 // pred_check_branch
      %8710 = sbr.rel (%p8708) target = $region95
    $region94: #{dncnn_resnet_forward.1} parent=5 // pred_region
      %s8711 = ssub.s32 %s12, 2
      // Predicated region
      $region96: #{dncnn_resnet_forward.1} parent=94 // pred_check
        %p8712 = pneg %p172
      $region97: #{dncnn_resnet_forward.1} parent=94 // pred_check_branch
        %8714 = sbr.rel (%p8712) target = $region99
      $region98: #{dncnn_resnet_forward.1} parent=94 // pred_region
        %p8715 = scmp.lt.s32.totalorder %s18, 1
        %s8716 = scalar_select %p8715, %s18, 1
        %s8717 = smul.addr %s8716, 2
        %s8718 = scalar_lea.vmem %s6, %s8717
      $region99: #{dncnn_resnet_forward.1} parent=94 // pred_fallthru
        _
    $region95: #{dncnn_resnet_forward.1} parent=5 // pred_fallthru
      _
  $region6: #{dncnn_resnet_forward.1} parent=0 // loop_footer
    %s16 = sadd.s32 1, %s12
  $region7: #{dncnn_resnet_forward.1} parent=0 // loop_footer_branch
    %11 = sbr.rel target = $region3
  $region8: #{dncnn_resnet_forward.1} parent=0 // loop_exit
    _

</llo_original>
